<compile_context>
chip_gen: v5e
topology: v5e:2x2
jax: 0.10.0
libtpu: 0.0.40
codegen_flags: <defaults>
</compile_context>

<pallas_src>
import functools

import jax
import jax.numpy as jnp
from jax.experimental import pallas as pl
from jax.experimental.pallas import tpu as pltpu


def _round_up(x, m):
    return ((x + m - 1) // m) * m


# ------------------------------ fused kernel ---------------------------------


def _head_kernel(x_ref, rw_ref, rb_ref,
                 c1w_ref, c1s_ref, c1b_ref,
                 c2w_ref, c2s_ref, c2b_ref,
                 sw1_ref, sw2_ref, ow_ref, ob_ref,
                 o_ref, buf1, buf2, *, H, W, base):
    HW = H * W

    # Zero the staging buffers (vertical zero padding via the margins) only on
    # the first grid step: scratch persists across the batch grid and the image
    # region is rewritten every step, so the margins stay zero.
    @pl.when(pl.program_id(0) == 0)
    def _():
        buf1[...] = jnp.zeros_like(buf1)
        buf2[...] = jnp.zeros_like(buf2)

    # Horizontal-padding masks, shape (HW, 1), broadcast over output channels.
    w_idx = jax.lax.broadcasted_iota(jnp.int32, (HW, 1), 0) % W
    mask_left = w_idx >= 1          # tap dx == 0 reads source column w - 1
    mask_right = w_idx <= (W - 2)   # tap dx == 2 reads source column w + 1

    def conv3x3(buf, w_ref, scale_ref, bias_ref):
        # buf: (HB, Cin) f32, image rows at [base, base + HW), margins zero.
        # w_ref: (9, Cin, Cout) bf16.  Accumulate in registers (f32).
        acc = None
        for tap in range(9):            # unrolled at trace time (static slices)
            dy, dx = divmod(tap, 3)
            start = base + (dy - 1) * W + (dx - 1)
            xs = buf[pl.ds(start, HW), :].astype(jnp.bfloat16)
            p = jnp.dot(xs, w_ref[tap], preferred_element_type=jnp.float32)
            if dx == 0:
                p = jnp.where(mask_left, p, 0.0)
            elif dx == 2:
                p = jnp.where(mask_right, p, 0.0)
            acc = p if acc is None else acc + p
        y = acc * scale_ref[...] + bias_ref[...]   # folded eval-mode BN (f32)
        return jnp.maximum(y, 0.0)                 # ReLU

    # conv_reduce: 1x1 conv + bias (bf16 MXU, f32 accumulate)
    r = (jnp.dot(x_ref[...], rw_ref[...], preferred_element_type=jnp.float32)
         + rb_ref[...])                            # (HW, 384)

    # stage into flat buffer (aligned store: base is a multiple of 8)
    buf1[pl.ds(base, HW), :] = r

    h1 = conv3x3(buf1, c1w_ref, c1s_ref, c1b_ref)  # (HW, 192) f32

    buf2[pl.ds(base, HW), :] = h1

    h2 = conv3x3(buf2, c2w_ref, c2s_ref, c2b_ref)  # (HW, 128) f32 (96 real + pad)

    # SEBlock: spatial average pool -> fc1 -> ReLU -> fc2 -> sigmoid -> scale
    y = jnp.mean(h2, axis=0, keepdims=True)        # (1, 128)
    hfc = jnp.maximum(
        jnp.dot(y.astype(jnp.bfloat16), sw1_ref[...],
                preferred_element_type=jnp.float32), 0.0)
    s = jax.nn.sigmoid(
        jnp.dot(hfc.astype(jnp.bfloat16), sw2_ref[...],
                preferred_element_type=jnp.float32))
    excited = (h2 * s).astype(jnp.bfloat16)        # (HW, 128)

    # out_conv: 1x1 conv + bias, lane-dense (128-wide) store
    out = (jnp.dot(excited, ow_ref[...], preferred_element_type=jnp.float32)
           + ob_ref[...])
    o_ref[...] = out.astype(o_ref.dtype)


# ------------------------------ pallas wrapper --------------------------------


def yolo_head_fused(params, features_nchw):
    """features_nchw: backbone output (B, 960, H, W) f32 -> (B, H*W, n_out_pad) f32."""
    B, c_back, H, W = features_nchw.shape
    HW = H * W
    x = jnp.transpose(features_nchw, (0, 2, 3, 1)).reshape(B, HW, c_back)
    x = x.astype(jnp.bfloat16)

    c_red = params["reduce_w"].shape[1]
    c1_out = params["c1_w"].shape[2]
    c2p = params["c2_w"].shape[2]
    srp = params["se_w1"].shape[1]
    nop = params["out_w"].shape[1]

    # flat staging buffer: image rows at [base, base+HW), zero margins of at
    # least W+1 rows on both sides (so every 3x3 shift stays in bounds).
    base = _round_up(W + 1, 8)
    hb = _round_up(base + HW + W + 1, 8)

    kernel = functools.partial(_head_kernel, H=H, W=W, base=base)

    out = pl.pallas_call(
        kernel,
        out_shape=jax.ShapeDtypeStruct((B, HW, nop), jnp.float32),
        grid_spec=pltpu.PrefetchScalarGridSpec(
            num_scalar_prefetch=0,
            grid=(B,),
            in_specs=[
                pl.BlockSpec((None, HW, c_back), lambda b: (b, 0, 0)),
                pl.BlockSpec((c_back, c_red), lambda b: (0, 0)),
                pl.BlockSpec((1, c_red), lambda b: (0, 0)),
                pl.BlockSpec((9, c_red, c1_out), lambda b: (0, 0, 0)),
                pl.BlockSpec((1, c1_out), lambda b: (0, 0)),
                pl.BlockSpec((1, c1_out), lambda b: (0, 0)),
                pl.BlockSpec((9, c1_out, c2p), lambda b: (0, 0, 0)),
                pl.BlockSpec((1, c2p), lambda b: (0, 0)),
                pl.BlockSpec((1, c2p), lambda b: (0, 0)),
                pl.BlockSpec((c2p, srp), lambda b: (0, 0)),
                pl.BlockSpec((srp, c2p), lambda b: (0, 0)),
                pl.BlockSpec((c2p, nop), lambda b: (0, 0)),
                pl.BlockSpec((1, nop), lambda b: (0, 0)),
            ],
            out_specs=pl.BlockSpec((None, HW, nop), lambda b: (b, 0, 0)),
            scratch_shapes=[
                pltpu.VMEM((hb, c_red), jnp.float32),   # conv1 input staging
                pltpu.VMEM((hb, c1_out), jnp.float32),  # conv2 input staging
            ],
        ),
        compiler_params=pltpu.CompilerParams(
            dimension_semantics=("parallel",),
            vmem_limit_bytes=32 * 1024 * 1024,
        ),
    )(
        x,
        params["reduce_w"], params["reduce_b"].reshape(1, -1),
        params["c1_w"], params["c1_scale"].reshape(1, -1),
        params["c1_bias"].reshape(1, -1),
        params["c2_w"], params["c2_scale"].reshape(1, -1),
        params["c2_bias"].reshape(1, -1),
        params["se_w1"], params["se_w2"],
        params["out_w"], params["out_b"].reshape(1, -1),
    )
    return out


def yolo_face_detector_forward(params, features_nchw, num_anchors, num_classes):
    """features_nchw: backbone output (B, 960, H, W). Returns NCHW logits."""
    B, _, H, W = features_nchw.shape
    n_out = num_anchors * (5 + num_classes)
    out = yolo_head_fused(params, features_nchw)        # (B, H*W, n_out_pad) f32
    out = out.reshape(B, H, W, -1)[:, :, :, :n_out]     # drop zero-padded channels
    return jnp.transpose(out, (0, 3, 1, 2))             # NHWC -> NCHW


# ------------------------------ parameter setup --------------------------------


def _fold_bn(conv_bias, gamma, beta, mean, var, eps=1e-5):
    # eval-mode BatchNorm folded into (scale, bias) applied after the conv matmul
    scale = gamma / jnp.sqrt(var + eps)
    bias = (conv_bias - mean) * scale + beta
    return scale, bias


def init_params(key, num_anchors, num_classes):
    c_back, c_red = 960, 384          # conv_reduce: 960 -> 384
    c1_out = c_red // 2               # head.conv1: 384 -> 192
    c2_out = c_red // 4               # head.conv2: 192 -> 96
    se_red = c2_out // 16             # SEBlock reduction: 96 // 16 = 6
    n_out = num_anchors * (5 + num_classes)

    # lane-dense padded widths (padded weight/bias entries are zero)
    c2p = _round_up(c2_out, 128)
    srp = _round_up(se_red, 128)
    nop = _round_up(n_out, 128)

    keys = iter(jax.random.split(key, 24))

    def nrm(shape, s=0.05):
        return s * jax.random.normal(next(keys), shape, jnp.float32)

    p = {}
    # conv_reduce (1x1, bias): weights stored as (Cin, Cout)
    p["reduce_w"] = nrm((c_back, c_red)).astype(jnp.bfloat16)
    p["reduce_b"] = nrm((c_red,))

    # head.conv1: 3x3 conv (9, Cin, Cout) + eval-mode BN folded to affine
    w1 = nrm((9, c_red, c1_out))
    b1 = nrm((c1_out,))
    g1 = 1.0 + nrm((c1_out,)); bet1 = nrm((c1_out,))
    m1 = nrm((c1_out,)); v1 = jnp.abs(nrm((c1_out,))) + 1.0
    p["c1_scale"], p["c1_bias"] = _fold_bn(b1, g1, bet1, m1, v1)
    p["c1_w"] = w1.astype(jnp.bfloat16)

    # head.conv2: 3x3 conv, output channels zero-padded 96 -> 128
    w2 = nrm((9, c1_out, c2_out))
    b2 = nrm((c2_out,))
    g2 = 1.0 + nrm((c2_out,)); bet2 = nrm((c2_out,))
    m2 = nrm((c2_out,)); v2 = jnp.abs(nrm((c2_out,))) + 1.0
    s2, bb2 = _fold_bn(b2, g2, bet2, m2, v2)
    p["c2_w"] = (jnp.zeros((9, c1_out, c2p), jnp.float32)
                 .at[:, :, :c2_out].set(w2)).astype(jnp.bfloat16)
    p["c2_scale"] = jnp.zeros((c2p,), jnp.float32).at[:c2_out].set(s2)
    p["c2_bias"] = jnp.zeros((c2p,), jnp.float32).at[:c2_out].set(bb2)

    # SEBlock fc weights (no bias), stored as (in, out); padded regions are zero
    p["se_w1"] = (jnp.zeros((c2p, srp), jnp.float32)
                  .at[:c2_out, :se_red].set(nrm((c2_out, se_red)))
                  ).astype(jnp.bfloat16)
    p["se_w2"] = (jnp.zeros((srp, c2p), jnp.float32)
                  .at[:se_red, :c2_out].set(nrm((se_red, c2_out)))
                  ).astype(jnp.bfloat16)

    # out_conv (1x1, bias), output channels zero-padded n_out -> 128
    p["out_w"] = (jnp.zeros((c2p, nop), jnp.float32)
                  .at[:c2_out, :n_out].set(nrm((c2_out, n_out)))
                  ).astype(jnp.bfloat16)
    p["out_b"] = jnp.zeros((nop,), jnp.float32).at[:n_out].set(nrm((n_out,)))
    return p


# ------------------------------------ main -------------------------------------

if __name__ == "__main__":
    key = jax.random.PRNGKey(0)
    B, H, W = 2, 8, 8
    num_anchors, num_classes = 3, 2
    n_out = num_anchors * (5 + num_classes)

    params = init_params(key, num_anchors, num_classes)
    feat_key = jax.random.fold_in(key, 999)
    features = jax.random.normal(feat_key, (B, 960, H, W), jnp.float32)

    out = yolo_face_detector_forward(params, features, num_anchors, num_classes)
    out = jax.block_until_ready(out)

    assert out.shape == (B, n_out, H, W), out.shape
    assert out.dtype == jnp.float32
    assert bool(jnp.all(jnp.isfinite(out)))
    print("KERNEL_OK")
</pallas_src>

<mosaic_0001>
module attributes {stable_mosaic.version = 11 : i64} {
  func.func @_head_kernel(%arg0: i32, %arg1: memref<1x64x960xbf16, #tpu.memory_space<vmem>>, %arg2: memref<960x384xbf16, #tpu.memory_space<vmem>>, %arg3: memref<1x384xf32, #tpu.memory_space<vmem>>, %arg4: memref<9x384x192xbf16, #tpu.memory_space<vmem>>, %arg5: memref<1x192xf32, #tpu.memory_space<vmem>>, %arg6: memref<1x192xf32, #tpu.memory_space<vmem>>, %arg7: memref<9x192x128xbf16, #tpu.memory_space<vmem>>, %arg8: memref<1x128xf32, #tpu.memory_space<vmem>>, %arg9: memref<1x128xf32, #tpu.memory_space<vmem>>, %arg10: memref<128x128xbf16, #tpu.memory_space<vmem>>, %arg11: memref<128x128xbf16, #tpu.memory_space<vmem>>, %arg12: memref<128x128xbf16, #tpu.memory_space<vmem>>, %arg13: memref<1x128xf32, #tpu.memory_space<vmem>>, %arg14: memref<1x64x128xf32, #tpu.memory_space<vmem>>, %arg15: memref<96x384xf32, #tpu.memory_space<vmem>>, %arg16: memref<96x192xf32, #tpu.memory_space<vmem>>) attributes {dimension_semantics = [#tpu.dimension_semantics<parallel>], iteration_bounds = array<i64: 2>, scalar_prefetch = 0 : i64, scratch_operands = 2 : i64, tpu.core_type = #tpu.core_type<tc>, window_params = [{transform_indices = @transform_0, window_bounds = array<i64: 1, 64, 960>}, {pipeline_mode = #tpu.pipeline_mode<synchronous>, transform_indices = @transform_1, window_bounds = array<i64: 960, 384>}, {pipeline_mode = #tpu.pipeline_mode<synchronous>, transform_indices = @transform_2, window_bounds = array<i64: 1, 384>}, {pipeline_mode = #tpu.pipeline_mode<synchronous>, transform_indices = @transform_3, window_bounds = array<i64: 9, 384, 192>}, {pipeline_mode = #tpu.pipeline_mode<synchronous>, transform_indices = @transform_4, window_bounds = array<i64: 1, 192>}, {pipeline_mode = #tpu.pipeline_mode<synchronous>, transform_indices = @transform_5, window_bounds = array<i64: 1, 192>}, {pipeline_mode = #tpu.pipeline_mode<synchronous>, transform_indices = @transform_6, window_bounds = array<i64: 9, 192, 128>}, {pipeline_mode = #tpu.pipeline_mode<synchronous>, transform_indices = @transform_7, window_bounds = array<i64: 1, 128>}, {pipeline_mode = #tpu.pipeline_mode<synchronous>, transform_indices = @transform_8, window_bounds = array<i64: 1, 128>}, {pipeline_mode = #tpu.pipeline_mode<synchronous>, transform_indices = @transform_9, window_bounds = array<i64: 128, 128>}, {pipeline_mode = #tpu.pipeline_mode<synchronous>, transform_indices = @transform_10, window_bounds = array<i64: 128, 128>}, {pipeline_mode = #tpu.pipeline_mode<synchronous>, transform_indices = @transform_11, window_bounds = array<i64: 128, 128>}, {pipeline_mode = #tpu.pipeline_mode<synchronous>, transform_indices = @transform_12, window_bounds = array<i64: 1, 128>}, {transform_indices = @transform_13, window_bounds = array<i64: 1, 64, 128>}]} {
    %c0_i32 = arith.constant 0 : i32
    %0 = arith.cmpi eq, %arg0, %c0_i32 : i32
    %1 = arith.extui %0 : i1 to i32
    %c0_i32_0 = arith.constant 0 : i32
    %2 = arith.cmpi ne, %1, %c0_i32_0 : i32
    scf.if %2 {
      %cst_149 = arith.constant 0.000000e+00 : f32
      %231 = vector.broadcast %cst_149 : f32 to vector<96x384xf32>
      %c0_150 = arith.constant 0 : index
      %c0_151 = arith.constant 0 : index
      %232 = vector.load %arg15[%c0_150, %c0_151] : memref<96x384xf32, #tpu.memory_space<vmem>>, vector<96x384xf32>
      tpu.vector_store %arg15[%c0_150, %c0_151], %231 {strides = array<i32>} : memref<96x384xf32, #tpu.memory_space<vmem>>, vector<96x384xf32>,
      %cst_152 = arith.constant 0.000000e+00 : f32
      %233 = vector.broadcast %cst_152 : f32 to vector<96x192xf32>
      %c0_153 = arith.constant 0 : index
      %c0_154 = arith.constant 0 : index
      %234 = vector.load %arg16[%c0_153, %c0_154] : memref<96x192xf32, #tpu.memory_space<vmem>>, vector<96x192xf32>
      tpu.vector_store %arg16[%c0_153, %c0_154], %233 {strides = array<i32>} : memref<96x192xf32, #tpu.memory_space<vmem>>, vector<96x192xf32>,
    } else {
    }
    %3 = tpu.iota {dimensions = array<i32: 0>} : vector<64x1xi32>
    %c8_i32 = arith.constant 8 : i32
    %c0_i32_1 = arith.constant 0 : i32
    %4 = arith.cmpi eq, %c8_i32, %c0_i32_1 : i32
    %c1_i32 = arith.constant 1 : i32
    %5 = arith.select %4, %c1_i32, %c8_i32 : i32
    %6 = vector.broadcast %5 : i32 to vector<64x1xi32>
    %7 = arith.remsi %3, %6 : vector<64x1xi32>
    %c0_i32_2 = arith.constant 0 : i32
    %8 = vector.broadcast %c0_i32_2 : i32 to vector<64x1xi32>
    %9 = arith.cmpi ne, %7, %8 : vector<64x1xi32>
    %c0_i32_3 = arith.constant 0 : i32
    %10 = vector.broadcast %c0_i32_3 : i32 to vector<64x1xi32>
    %11 = arith.cmpi slt, %7, %10 : vector<64x1xi32>
    %c0_i32_4 = arith.constant 0 : i32
    %12 = arith.cmpi slt, %5, %c0_i32_4 : i32
    %13 = vector.broadcast %12 : i1 to vector<64x1xi1>
    %14 = vector.broadcast %13 : vector<64x1xi1> to vector<64x1xi1>
    %15 = arith.xori %11, %14 : vector<64x1xi1>
    %16 = arith.andi %15, %9 : vector<64x1xi1>
    %17 = vector.broadcast %5 : i32 to vector<64x1xi32>
    %18 = arith.addi %7, %17 : vector<64x1xi32>
    %19 = arith.select %16, %18, %7 : vector<64x1xi1>, vector<64x1xi32>
    %c1_i32_5 = arith.constant 1 : i32
    %20 = vector.broadcast %c1_i32_5 : i32 to vector<64x1xi32>
    %21 = arith.cmpi sge, %19, %20 : vector<64x1xi32>
    %c6_i32 = arith.constant 6 : i32
    %22 = vector.broadcast %c6_i32 : i32 to vector<64x1xi32>
    %23 = arith.cmpi sle, %19, %22 : vector<64x1xi32>
    %c0 = arith.constant 0 : index
    %c0_6 = arith.constant 0 : index
    %c0_7 = arith.constant 0 : index
    %24 = vector.load %arg1[%c0, %c0_6, %c0_7] : memref<1x64x960xbf16, #tpu.memory_space<vmem>>, vector<1x64x960xbf16>
    %25 = vector.shape_cast %24 : vector<1x64x960xbf16> to vector<64x960xbf16>
    %c0_8 = arith.constant 0 : index
    %c0_9 = arith.constant 0 : index
    %26 = vector.load %arg2[%c0_8, %c0_9] : memref<960x384xbf16, #tpu.memory_space<vmem>>, vector<960x384xbf16>
    %cst = arith.constant dense<0.000000e+00> : vector<64x384xf32>
    %27 = tpu.matmul %25, %26, %cst {dimension_numbers = #tpu.dot_dimension_numbers<[1], [0], [0], [1], [0, 0, 1, 1], [], []>} : vector<64x960xbf16>, vector<960x384xbf16>, vector<64x384xf32> -> vector<64x384xf32>
    %c0_10 = arith.constant 0 : index
    %c0_11 = arith.constant 0 : index
    %28 = vector.load %arg3[%c0_10, %c0_11] : memref<1x384xf32, #tpu.memory_space<vmem>>, vector<1x384xf32>
    %29 = vector.broadcast %28 : vector<1x384xf32> to vector<64x384xf32>
    %30 = arith.addf %27, %29 : vector<64x384xf32>
    %c16 = arith.constant 16 : index
    %c0_12 = arith.constant 0 : index
    %31 = vector.load %arg15[%c16, %c0_12] : memref<96x384xf32, #tpu.memory_space<vmem>>, vector<64x384xf32>
    tpu.vector_store %arg15[%c16, %c0_12], %30 {strides = array<i32>} : memref<96x384xf32, #tpu.memory_space<vmem>>, vector<64x384xf32>,
    %c7 = arith.constant 7 : index
    %c0_13 = arith.constant 0 : index
    %32 = vector.load %arg15[%c7, %c0_13] : memref<96x384xf32, #tpu.memory_space<vmem>>, vector<64x384xf32>
    %33 = arith.truncf %32 : vector<64x384xf32> to vector<64x384xbf16>
    %c0_14 = arith.constant 0 : index
    %c0_15 = arith.constant 0 : index
    %c0_16 = arith.constant 0 : index
    %34 = vector.load %arg4[%c0_14, %c0_15, %c0_16] : memref<9x384x192xbf16, #tpu.memory_space<vmem>>, vector<1x384x192xbf16>
    %35 = vector.shape_cast %34 : vector<1x384x192xbf16> to vector<384x192xbf16>
    %cst_17 = arith.constant dense<0.000000e+00> : vector<64x192xf32>
    %36 = tpu.matmul %33, %35, %cst_17 {dimension_numbers = #tpu.dot_dimension_numbers<[1], [0], [0], [1], [0, 0, 1, 1], [], []>} : vector<64x384xbf16>, vector<384x192xbf16>, vector<64x192xf32> -> vector<64x192xf32>
    %cst_18 = arith.constant 0.000000e+00 : f32
    %37 = vector.shape_cast %21 : vector<64x1xi1> to vector<64x1xi1>
    %38 = vector.broadcast %37 : vector<64x1xi1> to vector<64x192xi1>
    %39 = vector.broadcast %cst_18 : f32 to vector<64x192xf32>
    %40 = arith.select %38, %36, %39 : vector<64x192xi1>, vector<64x192xf32>
    %c8 = arith.constant 8 : index
    %c0_19 = arith.constant 0 : index
    %41 = vector.load %arg15[%c8, %c0_19] : memref<96x384xf32, #tpu.memory_space<vmem>>, vector<64x384xf32>
    %42 = arith.truncf %41 : vector<64x384xf32> to vector<64x384xbf16>
    %c1 = arith.constant 1 : index
    %c0_20 = arith.constant 0 : index
    %c0_21 = arith.constant 0 : index
    %43 = vector.load %arg4[%c1, %c0_20, %c0_21] : memref<9x384x192xbf16, #tpu.memory_space<vmem>>, vector<1x384x192xbf16>
    %44 = vector.shape_cast %43 : vector<1x384x192xbf16> to vector<384x192xbf16>
    %cst_22 = arith.constant dense<0.000000e+00> : vector<64x192xf32>
    %45 = tpu.matmul %42, %44, %cst_22 {dimension_numbers = #tpu.dot_dimension_numbers<[1], [0], [0], [1], [0, 0, 1, 1], [], []>} : vector<64x384xbf16>, vector<384x192xbf16>, vector<64x192xf32> -> vector<64x192xf32>
    %46 = arith.addf %40, %45 : vector<64x192xf32>
    %c9 = arith.constant 9 : index
    %c0_23 = arith.constant 0 : index
    %47 = vector.load %arg15[%c9, %c0_23] : memref<96x384xf32, #tpu.memory_space<vmem>>, vector<64x384xf32>
    %48 = arith.truncf %47 : vector<64x384xf32> to vector<64x384xbf16>
    %c2 = arith.constant 2 : index
    %c0_24 = arith.constant 0 : index
    %c0_25 = arith.constant 0 : index
    %49 = vector.load %arg4[%c2, %c0_24, %c0_25] : memref<9x384x192xbf16, #tpu.memory_space<vmem>>, vector<1x384x192xbf16>
    %50 = vector.shape_cast %49 : vector<1x384x192xbf16> to vector<384x192xbf16>
    %cst_26 = arith.constant dense<0.000000e+00> : vector<64x192xf32>
    %51 = tpu.matmul %48, %50, %cst_26 {dimension_numbers = #tpu.dot_dimension_numbers<[1], [0], [0], [1], [0, 0, 1, 1], [], []>} : vector<64x384xbf16>, vector<384x192xbf16>, vector<64x192xf32> -> vector<64x192xf32>
    %cst_27 = arith.constant 0.000000e+00 : f32
    %52 = vector.shape_cast %23 : vector<64x1xi1> to vector<64x1xi1>
    %53 = vector.broadcast %52 : vector<64x1xi1> to vector<64x192xi1>
    %54 = vector.broadcast %cst_27 : f32 to vector<64x192xf32>
    %55 = arith.select %53, %51, %54 : vector<64x192xi1>, vector<64x192xf32>
    %56 = arith.addf %46, %55 : vector<64x192xf32>
    %c15 = arith.constant 15 : index
    %c0_28 = arith.constant 0 : index
    %57 = vector.load %arg15[%c15, %c0_28] : memref<96x384xf32, #tpu.memory_space<vmem>>, vector<64x384xf32>
    %58 = arith.truncf %57 : vector<64x384xf32> to vector<64x384xbf16>
    %c3 = arith.constant 3 : index
    %c0_29 = arith.constant 0 : index
    %c0_30 = arith.constant 0 : index
    %59 = vector.load %arg4[%c3, %c0_29, %c0_30] : memref<9x384x192xbf16, #tpu.memory_space<vmem>>, vector<1x384x192xbf16>
    %60 = vector.shape_cast %59 : vector<1x384x192xbf16> to vector<384x192xbf16>
    %cst_31 = arith.constant dense<0.000000e+00> : vector<64x192xf32>
    %61 = tpu.matmul %58, %60, %cst_31 {dimension_numbers = #tpu.dot_dimension_numbers<[1], [0], [0], [1], [0, 0, 1, 1], [], []>} : vector<64x384xbf16>, vector<384x192xbf16>, vector<64x192xf32> -> vector<64x192xf32>
    %cst_32 = arith.constant 0.000000e+00 : f32
    %62 = vector.shape_cast %21 : vector<64x1xi1> to vector<64x1xi1>
    %63 = vector.broadcast %62 : vector<64x1xi1> to vector<64x192xi1>
    %64 = vector.broadcast %cst_32 : f32 to vector<64x192xf32>
    %65 = arith.select %63, %61, %64 : vector<64x192xi1>, vector<64x192xf32>
    %66 = arith.addf %56, %65 : vector<64x192xf32>
    %c16_33 = arith.constant 16 : index
    %c0_34 = arith.constant 0 : index
    %67 = vector.load %arg15[%c16_33, %c0_34] : memref<96x384xf32, #tpu.memory_space<vmem>>, vector<64x384xf32>
    %68 = arith.truncf %67 : vector<64x384xf32> to vector<64x384xbf16>
    %c4 = arith.constant 4 : index
    %c0_35 = arith.constant 0 : index
    %c0_36 = arith.constant 0 : index
    %69 = vector.load %arg4[%c4, %c0_35, %c0_36] : memref<9x384x192xbf16, #tpu.memory_space<vmem>>, vector<1x384x192xbf16>
    %70 = vector.shape_cast %69 : vector<1x384x192xbf16> to vector<384x192xbf16>
    %cst_37 = arith.constant dense<0.000000e+00> : vector<64x192xf32>
    %71 = tpu.matmul %68, %70, %cst_37 {dimension_numbers = #tpu.dot_dimension_numbers<[1], [0], [0], [1], [0, 0, 1, 1], [], []>} : vector<64x384xbf16>, vector<384x192xbf16>, vector<64x192xf32> -> vector<64x192xf32>
    %72 = arith.addf %66, %71 : vector<64x192xf32>
    %c17 = arith.constant 17 : index
    %c0_38 = arith.constant 0 : index
    %73 = vector.load %arg15[%c17, %c0_38] : memref<96x384xf32, #tpu.memory_space<vmem>>, vector<64x384xf32>
    %74 = arith.truncf %73 : vector<64x384xf32> to vector<64x384xbf16>
    %c5 = arith.constant 5 : index
    %c0_39 = arith.constant 0 : index
    %c0_40 = arith.constant 0 : index
    %75 = vector.load %arg4[%c5, %c0_39, %c0_40] : memref<9x384x192xbf16, #tpu.memory_space<vmem>>, vector<1x384x192xbf16>
    %76 = vector.shape_cast %75 : vector<1x384x192xbf16> to vector<384x192xbf16>
    %cst_41 = arith.constant dense<0.000000e+00> : vector<64x192xf32>
    %77 = tpu.matmul %74, %76, %cst_41 {dimension_numbers = #tpu.dot_dimension_numbers<[1], [0], [0], [1], [0, 0, 1, 1], [], []>} : vector<64x384xbf16>, vector<384x192xbf16>, vector<64x192xf32> -> vector<64x192xf32>
    %cst_42 = arith.constant 0.000000e+00 : f32
    %78 = vector.shape_cast %23 : vector<64x1xi1> to vector<64x1xi1>
    %79 = vector.broadcast %78 : vector<64x1xi1> to vector<64x192xi1>
    %80 = vector.broadcast %cst_42 : f32 to vector<64x192xf32>
    %81 = arith.select %79, %77, %80 : vector<64x192xi1>, vector<64x192xf32>
    %82 = arith.addf %72, %81 : vector<64x192xf32>
    %c23 = arith.constant 23 : index
    %c0_43 = arith.constant 0 : index
    %83 = vector.load %arg15[%c23, %c0_43] : memref<96x384xf32, #tpu.memory_space<vmem>>, vector<64x384xf32>
    %84 = arith.truncf %83 : vector<64x384xf32> to vector<64x384xbf16>
    %c6 = arith.constant 6 : index
    %c0_44 = arith.constant 0 : index
    %c0_45 = arith.constant 0 : index
    %85 = vector.load %arg4[%c6, %c0_44, %c0_45] : memref<9x384x192xbf16, #tpu.memory_space<vmem>>, vector<1x384x192xbf16>
    %86 = vector.shape_cast %85 : vector<1x384x192xbf16> to vector<384x192xbf16>
    %cst_46 = arith.constant dense<0.000000e+00> : vector<64x192xf32>
    %87 = tpu.matmul %84, %86, %cst_46 {dimension_numbers = #tpu.dot_dimension_numbers<[1], [0], [0], [1], [0, 0, 1, 1], [], []>} : vector<64x384xbf16>, vector<384x192xbf16>, vector<64x192xf32> -> vector<64x192xf32>
    %cst_47 = arith.constant 0.000000e+00 : f32
    %88 = vector.shape_cast %21 : vector<64x1xi1> to vector<64x1xi1>
    %89 = vector.broadcast %88 : vector<64x1xi1> to vector<64x192xi1>
    %90 = vector.broadcast %cst_47 : f32 to vector<64x192xf32>
    %91 = arith.select %89, %87, %90 : vector<64x192xi1>, vector<64x192xf32>
    %92 = arith.addf %82, %91 : vector<64x192xf32>
    %c24 = arith.constant 24 : index
    %c0_48 = arith.constant 0 : index
    %93 = vector.load %arg15[%c24, %c0_48] : memref<96x384xf32, #tpu.memory_space<vmem>>, vector<64x384xf32>
    %94 = arith.truncf %93 : vector<64x384xf32> to vector<64x384xbf16>
    %c7_49 = arith.constant 7 : index
    %c0_50 = arith.constant 0 : index
    %c0_51 = arith.constant 0 : index
    %95 = vector.load %arg4[%c7_49, %c0_50, %c0_51] : memref<9x384x192xbf16, #tpu.memory_space<vmem>>, vector<1x384x192xbf16>
    %96 = vector.shape_cast %95 : vector<1x384x192xbf16> to vector<384x192xbf16>
    %cst_52 = arith.constant dense<0.000000e+00> : vector<64x192xf32>
    %97 = tpu.matmul %94, %96, %cst_52 {dimension_numbers = #tpu.dot_dimension_numbers<[1], [0], [0], [1], [0, 0, 1, 1], [], []>} : vector<64x384xbf16>, vector<384x192xbf16>, vector<64x192xf32> -> vector<64x192xf32>
    %98 = arith.addf %92, %97 : vector<64x192xf32>
    %c25 = arith.constant 25 : index
    %c0_53 = arith.constant 0 : index
    %99 = vector.load %arg15[%c25, %c0_53] : memref<96x384xf32, #tpu.memory_space<vmem>>, vector<64x384xf32>
    %100 = arith.truncf %99 : vector<64x384xf32> to vector<64x384xbf16>
    %c8_54 = arith.constant 8 : index
    %c0_55 = arith.constant 0 : index
    %c0_56 = arith.constant 0 : index
    %101 = vector.load %arg4[%c8_54, %c0_55, %c0_56] : memref<9x384x192xbf16, #tpu.memory_space<vmem>>, vector<1x384x192xbf16>
    %102 = vector.shape_cast %101 : vector<1x384x192xbf16> to vector<384x192xbf16>
    %cst_57 = arith.constant dense<0.000000e+00> : vector<64x192xf32>
    %103 = tpu.matmul %100, %102, %cst_57 {dimension_numbers = #tpu.dot_dimension_numbers<[1], [0], [0], [1], [0, 0, 1, 1], [], []>} : vector<64x384xbf16>, vector<384x192xbf16>, vector<64x192xf32> -> vector<64x192xf32>
    %cst_58 = arith.constant 0.000000e+00 : f32
    %104 = vector.shape_cast %23 : vector<64x1xi1> to vector<64x1xi1>
    %105 = vector.broadcast %104 : vector<64x1xi1> to vector<64x192xi1>
    %106 = vector.broadcast %cst_58 : f32 to vector<64x192xf32>
    %107 = arith.select %105, %103, %106 : vector<64x192xi1>, vector<64x192xf32>
    %108 = arith.addf %98, %107 : vector<64x192xf32>
    %c0_59 = arith.constant 0 : index
    %c0_60 = arith.constant 0 : index
    %109 = vector.load %arg5[%c0_59, %c0_60] : memref<1x192xf32, #tpu.memory_space<vmem>>, vector<1x192xf32>
    %110 = vector.broadcast %109 : vector<1x192xf32> to vector<64x192xf32>
    %111 = arith.mulf %108, %110 : vector<64x192xf32>
    %c0_61 = arith.constant 0 : index
    %c0_62 = arith.constant 0 : index
    %112 = vector.load %arg6[%c0_61, %c0_62] : memref<1x192xf32, #tpu.memory_space<vmem>>, vector<1x192xf32>
    %113 = vector.broadcast %112 : vector<1x192xf32> to vector<64x192xf32>
    %114 = arith.addf %111, %113 : vector<64x192xf32>
    %cst_63 = arith.constant 0.000000e+00 : f32
    %115 = vector.broadcast %cst_63 : f32 to vector<64x192xf32>
    %116 = arith.maximumf %114, %115 : vector<64x192xf32>
    %c16_64 = arith.constant 16 : index
    %c0_65 = arith.constant 0 : index
    %117 = vector.load %arg16[%c16_64, %c0_65] : memref<96x192xf32, #tpu.memory_space<vmem>>, vector<64x192xf32>
    tpu.vector_store %arg16[%c16_64, %c0_65], %116 {strides = array<i32>} : memref<96x192xf32, #tpu.memory_space<vmem>>, vector<64x192xf32>,
    %c7_66 = arith.constant 7 : index
    %c0_67 = arith.constant 0 : index
    %118 = vector.load %arg16[%c7_66, %c0_67] : memref<96x192xf32, #tpu.memory_space<vmem>>, vector<64x192xf32>
    %119 = arith.truncf %118 : vector<64x192xf32> to vector<64x192xbf16>
    %c0_68 = arith.constant 0 : index
    %c0_69 = arith.constant 0 : index
    %c0_70 = arith.constant 0 : index
    %120 = vector.load %arg7[%c0_68, %c0_69, %c0_70] : memref<9x192x128xbf16, #tpu.memory_space<vmem>>, vector<1x192x128xbf16>
    %121 = vector.shape_cast %120 : vector<1x192x128xbf16> to vector<192x128xbf16>
    %cst_71 = arith.constant dense<0.000000e+00> : vector<64x128xf32>
    %122 = tpu.matmul %119, %121, %cst_71 {dimension_numbers = #tpu.dot_dimension_numbers<[1], [0], [0], [1], [0, 0, 1, 1], [], []>} : vector<64x192xbf16>, vector<192x128xbf16>, vector<64x128xf32> -> vector<64x128xf32>
    %cst_72 = arith.constant 0.000000e+00 : f32
    %123 = vector.shape_cast %21 : vector<64x1xi1> to vector<64x1xi1>
    %124 = vector.broadcast %123 : vector<64x1xi1> to vector<64x128xi1>
    %125 = vector.broadcast %cst_72 : f32 to vector<64x128xf32>
    %126 = arith.select %124, %122, %125 : vector<64x128xi1>, vector<64x128xf32>
    %c8_73 = arith.constant 8 : index
    %c0_74 = arith.constant 0 : index
    %127 = vector.load %arg16[%c8_73, %c0_74] : memref<96x192xf32, #tpu.memory_space<vmem>>, vector<64x192xf32>
    %128 = arith.truncf %127 : vector<64x192xf32> to vector<64x192xbf16>
    %c1_75 = arith.constant 1 : index
    %c0_76 = arith.constant 0 : index
    %c0_77 = arith.constant 0 : index
    %129 = vector.load %arg7[%c1_75, %c0_76, %c0_77] : memref<9x192x128xbf16, #tpu.memory_space<vmem>>, vector<1x192x128xbf16>
    %130 = vector.shape_cast %129 : vector<1x192x128xbf16> to vector<192x128xbf16>
    %cst_78 = arith.constant dense<0.000000e+00> : vector<64x128xf32>
    %131 = tpu.matmul %128, %130, %cst_78 {dimension_numbers = #tpu.dot_dimension_numbers<[1], [0], [0], [1], [0, 0, 1, 1], [], []>} : vector<64x192xbf16>, vector<192x128xbf16>, vector<64x128xf32> -> vector<64x128xf32>
    %132 = arith.addf %126, %131 : vector<64x128xf32>
    %c9_79 = arith.constant 9 : index
    %c0_80 = arith.constant 0 : index
    %133 = vector.load %arg16[%c9_79, %c0_80] : memref<96x192xf32, #tpu.memory_space<vmem>>, vector<64x192xf32>
    %134 = arith.truncf %133 : vector<64x192xf32> to vector<64x192xbf16>
    %c2_81 = arith.constant 2 : index
    %c0_82 = arith.constant 0 : index
    %c0_83 = arith.constant 0 : index
    %135 = vector.load %arg7[%c2_81, %c0_82, %c0_83] : memref<9x192x128xbf16, #tpu.memory_space<vmem>>, vector<1x192x128xbf16>
    %136 = vector.shape_cast %135 : vector<1x192x128xbf16> to vector<192x128xbf16>
    %cst_84 = arith.constant dense<0.000000e+00> : vector<64x128xf32>
    %137 = tpu.matmul %134, %136, %cst_84 {dimension_numbers = #tpu.dot_dimension_numbers<[1], [0], [0], [1], [0, 0, 1, 1], [], []>} : vector<64x192xbf16>, vector<192x128xbf16>, vector<64x128xf32> -> vector<64x128xf32>
    %cst_85 = arith.constant 0.000000e+00 : f32
    %138 = vector.shape_cast %23 : vector<64x1xi1> to vector<64x1xi1>
    %139 = vector.broadcast %138 : vector<64x1xi1> to vector<64x128xi1>
    %140 = vector.broadcast %cst_85 : f32 to vector<64x128xf32>
    %141 = arith.select %139, %137, %140 : vector<64x128xi1>, vector<64x128xf32>
    %142 = arith.addf %132, %141 : vector<64x128xf32>
    %c15_86 = arith.constant 15 : index
    %c0_87 = arith.constant 0 : index
    %143 = vector.load %arg16[%c15_86, %c0_87] : memref<96x192xf32, #tpu.memory_space<vmem>>, vector<64x192xf32>
    %144 = arith.truncf %143 : vector<64x192xf32> to vector<64x192xbf16>
    %c3_88 = arith.constant 3 : index
    %c0_89 = arith.constant 0 : index
    %c0_90 = arith.constant 0 : index
    %145 = vector.load %arg7[%c3_88, %c0_89, %c0_90] : memref<9x192x128xbf16, #tpu.memory_space<vmem>>, vector<1x192x128xbf16>
    %146 = vector.shape_cast %145 : vector<1x192x128xbf16> to vector<192x128xbf16>
    %cst_91 = arith.constant dense<0.000000e+00> : vector<64x128xf32>
    %147 = tpu.matmul %144, %146, %cst_91 {dimension_numbers = #tpu.dot_dimension_numbers<[1], [0], [0], [1], [0, 0, 1, 1], [], []>} : vector<64x192xbf16>, vector<192x128xbf16>, vector<64x128xf32> -> vector<64x128xf32>
    %cst_92 = arith.constant 0.000000e+00 : f32
    %148 = vector.shape_cast %21 : vector<64x1xi1> to vector<64x1xi1>
    %149 = vector.broadcast %148 : vector<64x1xi1> to vector<64x128xi1>
    %150 = vector.broadcast %cst_92 : f32 to vector<64x128xf32>
    %151 = arith.select %149, %147, %150 : vector<64x128xi1>, vector<64x128xf32>
    %152 = arith.addf %142, %151 : vector<64x128xf32>
    %c16_93 = arith.constant 16 : index
    %c0_94 = arith.constant 0 : index
    %153 = vector.load %arg16[%c16_93, %c0_94] : memref<96x192xf32, #tpu.memory_space<vmem>>, vector<64x192xf32>
    %154 = arith.truncf %153 : vector<64x192xf32> to vector<64x192xbf16>
    %c4_95 = arith.constant 4 : index
    %c0_96 = arith.constant 0 : index
    %c0_97 = arith.constant 0 : index
    %155 = vector.load %arg7[%c4_95, %c0_96, %c0_97] : memref<9x192x128xbf16, #tpu.memory_space<vmem>>, vector<1x192x128xbf16>
    %156 = vector.shape_cast %155 : vector<1x192x128xbf16> to vector<192x128xbf16>
    %cst_98 = arith.constant dense<0.000000e+00> : vector<64x128xf32>
    %157 = tpu.matmul %154, %156, %cst_98 {dimension_numbers = #tpu.dot_dimension_numbers<[1], [0], [0], [1], [0, 0, 1, 1], [], []>} : vector<64x192xbf16>, vector<192x128xbf16>, vector<64x128xf32> -> vector<64x128xf32>
    %158 = arith.addf %152, %157 : vector<64x128xf32>
    %c17_99 = arith.constant 17 : index
    %c0_100 = arith.constant 0 : index
    %159 = vector.load %arg16[%c17_99, %c0_100] : memref<96x192xf32, #tpu.memory_space<vmem>>, vector<64x192xf32>
    %160 = arith.truncf %159 : vector<64x192xf32> to vector<64x192xbf16>
    %c5_101 = arith.constant 5 : index
    %c0_102 = arith.constant 0 : index
    %c0_103 = arith.constant 0 : index
    %161 = vector.load %arg7[%c5_101, %c0_102, %c0_103] : memref<9x192x128xbf16, #tpu.memory_space<vmem>>, vector<1x192x128xbf16>
    %162 = vector.shape_cast %161 : vector<1x192x128xbf16> to vector<192x128xbf16>
    %cst_104 = arith.constant dense<0.000000e+00> : vector<64x128xf32>
    %163 = tpu.matmul %160, %162, %cst_104 {dimension_numbers = #tpu.dot_dimension_numbers<[1], [0], [0], [1], [0, 0, 1, 1], [], []>} : vector<64x192xbf16>, vector<192x128xbf16>, vector<64x128xf32> -> vector<64x128xf32>
    %cst_105 = arith.constant 0.000000e+00 : f32
    %164 = vector.shape_cast %23 : vector<64x1xi1> to vector<64x1xi1>
    %165 = vector.broadcast %164 : vector<64x1xi1> to vector<64x128xi1>
    %166 = vector.broadcast %cst_105 : f32 to vector<64x128xf32>
    %167 = arith.select %165, %163, %166 : vector<64x128xi1>, vector<64x128xf32>
    %168 = arith.addf %158, %167 : vector<64x128xf32>
    %c23_106 = arith.constant 23 : index
    %c0_107 = arith.constant 0 : index
    %169 = vector.load %arg16[%c23_106, %c0_107] : memref<96x192xf32, #tpu.memory_space<vmem>>, vector<64x192xf32>
    %170 = arith.truncf %169 : vector<64x192xf32> to vector<64x192xbf16>
    %c6_108 = arith.constant 6 : index
    %c0_109 = arith.constant 0 : index
    %c0_110 = arith.constant 0 : index
    %171 = vector.load %arg7[%c6_108, %c0_109, %c0_110] : memref<9x192x128xbf16, #tpu.memory_space<vmem>>, vector<1x192x128xbf16>
    %172 = vector.shape_cast %171 : vector<1x192x128xbf16> to vector<192x128xbf16>
    %cst_111 = arith.constant dense<0.000000e+00> : vector<64x128xf32>
    %173 = tpu.matmul %170, %172, %cst_111 {dimension_numbers = #tpu.dot_dimension_numbers<[1], [0], [0], [1], [0, 0, 1, 1], [], []>} : vector<64x192xbf16>, vector<192x128xbf16>, vector<64x128xf32> -> vector<64x128xf32>
    %cst_112 = arith.constant 0.000000e+00 : f32
    %174 = vector.shape_cast %21 : vector<64x1xi1> to vector<64x1xi1>
    %175 = vector.broadcast %174 : vector<64x1xi1> to vector<64x128xi1>
    %176 = vector.broadcast %cst_112 : f32 to vector<64x128xf32>
    %177 = arith.select %175, %173, %176 : vector<64x128xi1>, vector<64x128xf32>
    %178 = arith.addf %168, %177 : vector<64x128xf32>
    %c24_113 = arith.constant 24 : index
    %c0_114 = arith.constant 0 : index
    %179 = vector.load %arg16[%c24_113, %c0_114] : memref<96x192xf32, #tpu.memory_space<vmem>>, vector<64x192xf32>
    %180 = arith.truncf %179 : vector<64x192xf32> to vector<64x192xbf16>
    %c7_115 = arith.constant 7 : index
    %c0_116 = arith.constant 0 : index
    %c0_117 = arith.constant 0 : index
    %181 = vector.load %arg7[%c7_115, %c0_116, %c0_117] : memref<9x192x128xbf16, #tpu.memory_space<vmem>>, vector<1x192x128xbf16>
    %182 = vector.shape_cast %181 : vector<1x192x128xbf16> to vector<192x128xbf16>
    %cst_118 = arith.constant dense<0.000000e+00> : vector<64x128xf32>
    %183 = tpu.matmul %180, %182, %cst_118 {dimension_numbers = #tpu.dot_dimension_numbers<[1], [0], [0], [1], [0, 0, 1, 1], [], []>} : vector<64x192xbf16>, vector<192x128xbf16>, vector<64x128xf32> -> vector<64x128xf32>
    %184 = arith.addf %178, %183 : vector<64x128xf32>
    %c25_119 = arith.constant 25 : index
    %c0_120 = arith.constant 0 : index
    %185 = vector.load %arg16[%c25_119, %c0_120] : memref<96x192xf32, #tpu.memory_space<vmem>>, vector<64x192xf32>
    %186 = arith.truncf %185 : vector<64x192xf32> to vector<64x192xbf16>
    %c8_121 = arith.constant 8 : index
    %c0_122 = arith.constant 0 : index
    %c0_123 = arith.constant 0 : index
    %187 = vector.load %arg7[%c8_121, %c0_122, %c0_123] : memref<9x192x128xbf16, #tpu.memory_space<vmem>>, vector<1x192x128xbf16>
    %188 = vector.shape_cast %187 : vector<1x192x128xbf16> to vector<192x128xbf16>
    %cst_124 = arith.constant dense<0.000000e+00> : vector<64x128xf32>
    %189 = tpu.matmul %186, %188, %cst_124 {dimension_numbers = #tpu.dot_dimension_numbers<[1], [0], [0], [1], [0, 0, 1, 1], [], []>} : vector<64x192xbf16>, vector<192x128xbf16>, vector<64x128xf32> -> vector<64x128xf32>
    %cst_125 = arith.constant 0.000000e+00 : f32
    %190 = vector.shape_cast %23 : vector<64x1xi1> to vector<64x1xi1>
    %191 = vector.broadcast %190 : vector<64x1xi1> to vector<64x128xi1>
    %192 = vector.broadcast %cst_125 : f32 to vector<64x128xf32>
    %193 = arith.select %191, %189, %192 : vector<64x128xi1>, vector<64x128xf32>
    %194 = arith.addf %184, %193 : vector<64x128xf32>
    %c0_126 = arith.constant 0 : index
    %c0_127 = arith.constant 0 : index
    %195 = vector.load %arg8[%c0_126, %c0_127] : memref<1x128xf32, #tpu.memory_space<vmem>>, vector<1x128xf32>
    %196 = vector.broadcast %195 : vector<1x128xf32> to vector<64x128xf32>
    %197 = arith.mulf %194, %196 : vector<64x128xf32>
    %c0_128 = arith.constant 0 : index
    %c0_129 = arith.constant 0 : index
    %198 = vector.load %arg9[%c0_128, %c0_129] : memref<1x128xf32, #tpu.memory_space<vmem>>, vector<1x128xf32>
    %199 = vector.broadcast %198 : vector<1x128xf32> to vector<64x128xf32>
    %200 = arith.addf %197, %199 : vector<64x128xf32>
    %cst_130 = arith.constant 0.000000e+00 : f32
    %201 = vector.broadcast %cst_130 : f32 to vector<64x128xf32>
    %202 = arith.maximumf %200, %201 : vector<64x128xf32>
    %cst_131 = arith.constant dense<0.000000e+00> : vector<128xf32>
    %203 = vector.multi_reduction <add>, %202, %cst_131 [0] : vector<64x128xf32> to vector<128xf32>
    %204 = vector.shape_cast %203 : vector<128xf32> to vector<1x128xf32>
    %cst_132 = arith.constant 6.400000e+01 : f32
    %205 = vector.broadcast %cst_132 : f32 to vector<1x128xf32>
    %206 = arith.divf %204, %205 : vector<1x128xf32>
    %207 = arith.truncf %206 : vector<1x128xf32> to vector<1x128xbf16>
    %c0_133 = arith.constant 0 : index
    %c0_134 = arith.constant 0 : index
    %208 = vector.load %arg10[%c0_133, %c0_134] : memref<128x128xbf16, #tpu.memory_space<vmem>>, vector<128x128xbf16>
    %cst_135 = arith.constant dense<0.000000e+00> : vector<1x128xf32>
    %209 = tpu.matmul %207, %208, %cst_135 {dimension_numbers = #tpu.dot_dimension_numbers<[1], [0], [0], [1], [0, 0, 1, 1], [], []>} : vector<1x128xbf16>, vector<128x128xbf16>, vector<1x128xf32> -> vector<1x128xf32>
    %cst_136 = arith.constant 0.000000e+00 : f32
    %210 = vector.broadcast %cst_136 : f32 to vector<1x128xf32>
    %211 = arith.maximumf %209, %210 : vector<1x128xf32>
    %212 = arith.truncf %211 : vector<1x128xf32> to vector<1x128xbf16>
    %c0_137 = arith.constant 0 : index
    %c0_138 = arith.constant 0 : index
    %213 = vector.load %arg11[%c0_137, %c0_138] : memref<128x128xbf16, #tpu.memory_space<vmem>>, vector<128x128xbf16>
    %cst_139 = arith.constant dense<0.000000e+00> : vector<1x128xf32>
    %214 = tpu.matmul %212, %213, %cst_139 {dimension_numbers = #tpu.dot_dimension_numbers<[1], [0], [0], [1], [0, 0, 1, 1], [], []>} : vector<1x128xbf16>, vector<128x128xbf16>, vector<1x128xf32> -> vector<1x128xf32>
    %215 = arith.negf %214 : vector<1x128xf32>
    %216 = math.exp %215 : vector<1x128xf32>
    %cst_140 = arith.constant 1.000000e+00 : f32
    %217 = vector.broadcast %cst_140 : f32 to vector<1x128xf32>
    %218 = arith.addf %217, %216 : vector<1x128xf32>
    %219 = arith.divf %217, %218 : vector<1x128xf32>
    %220 = vector.broadcast %219 : vector<1x128xf32> to vector<64x128xf32>
    %221 = arith.mulf %202, %220 : vector<64x128xf32>
    %222 = arith.truncf %221 : vector<64x128xf32> to vector<64x128xbf16>
    %c0_141 = arith.constant 0 : index
    %c0_142 = arith.constant 0 : index
    %223 = vector.load %arg12[%c0_141, %c0_142] : memref<128x128xbf16, #tpu.memory_space<vmem>>, vector<128x128xbf16>
    %cst_143 = arith.constant dense<0.000000e+00> : vector<64x128xf32>
    %224 = tpu.matmul %222, %223, %cst_143 {dimension_numbers = #tpu.dot_dimension_numbers<[1], [0], [0], [1], [0, 0, 1, 1], [], []>} : vector<64x128xbf16>, vector<128x128xbf16>, vector<64x128xf32> -> vector<64x128xf32>
    %c0_144 = arith.constant 0 : index
    %c0_145 = arith.constant 0 : index
    %225 = vector.load %arg13[%c0_144, %c0_145] : memref<1x128xf32, #tpu.memory_space<vmem>>, vector<1x128xf32>
    %226 = vector.broadcast %225 : vector<1x128xf32> to vector<64x128xf32>
    %227 = arith.addf %224, %226 : vector<64x128xf32>
    %c0_146 = arith.constant 0 : index
    %c0_147 = arith.constant 0 : index
    %c0_148 = arith.constant 0 : index
    %228 = vector.load %arg14[%c0_146, %c0_147, %c0_148] : memref<1x64x128xf32, #tpu.memory_space<vmem>>, vector<1x64x128xf32>
    %229 = vector.shape_cast %228 : vector<1x64x128xf32> to vector<64x128xf32>
    %230 = vector.shape_cast %227 : vector<64x128xf32> to vector<1x64x128xf32>
    tpu.vector_store %arg14[%c0_146, %c0_147, %c0_148], %230 {strides = array<i32>} : memref<1x64x128xf32, #tpu.memory_space<vmem>>, vector<1x64x128xf32>,
    return
  }
  func.func @transform_0(%arg0: i32) -> (i32, i32, i32) {
    %c0_i32 = arith.constant 0 : i32
    %c0_i32_0 = arith.constant 0 : i32
    %c0_i32_1 = arith.constant 0 : i32
    return %arg0, %c0_i32, %c0_i32_0 : i32, i32, i32
  }
  func.func @transform_1(%arg0: i32) -> (i32, i32) {
    %c0_i32 = arith.constant 0 : i32
    %c0_i32_0 = arith.constant 0 : i32
    %c0_i32_1 = arith.constant 0 : i32
    return %c0_i32, %c0_i32_0 : i32, i32
  }
  func.func @transform_2(%arg0: i32) -> (i32, i32) {
    %c0_i32 = arith.constant 0 : i32
    %c0_i32_0 = arith.constant 0 : i32
    %c0_i32_1 = arith.constant 0 : i32
    return %c0_i32, %c0_i32_0 : i32, i32
  }
  func.func @transform_3(%arg0: i32) -> (i32, i32, i32) {
    %c0_i32 = arith.constant 0 : i32
    %c0_i32_0 = arith.constant 0 : i32
    %c0_i32_1 = arith.constant 0 : i32
    %c0_i32_2 = arith.constant 0 : i32
    return %c0_i32, %c0_i32_0, %c0_i32_1 : i32, i32, i32
  }
  func.func @transform_4(%arg0: i32) -> (i32, i32) {
    %c0_i32 = arith.constant 0 : i32
    %c0_i32_0 = arith.constant 0 : i32
    %c0_i32_1 = arith.constant 0 : i32
    return %c0_i32, %c0_i32_0 : i32, i32
  }
  func.func @transform_5(%arg0: i32) -> (i32, i32) {
    %c0_i32 = arith.constant 0 : i32
    %c0_i32_0 = arith.constant 0 : i32
    %c0_i32_1 = arith.constant 0 : i32
    return %c0_i32, %c0_i32_0 : i32, i32
  }
  func.func @transform_6(%arg0: i32) -> (i32, i32, i32) {
    %c0_i32 = arith.constant 0 : i32
    %c0_i32_0 = arith.constant 0 : i32
    %c0_i32_1 = arith.constant 0 : i32
    %c0_i32_2 = arith.constant 0 : i32
    return %c0_i32, %c0_i32_0, %c0_i32_1 : i32, i32, i32
  }
  func.func @transform_7(%arg0: i32) -> (i32, i32) {
    %c0_i32 = arith.constant 0 : i32
    %c0_i32_0 = arith.constant 0 : i32
    %c0_i32_1 = arith.constant 0 : i32
    return %c0_i32, %c0_i32_0 : i32, i32
  }
  func.func @transform_8(%arg0: i32) -> (i32, i32) {
    %c0_i32 = arith.constant 0 : i32
    %c0_i32_0 = arith.constant 0 : i32
    %c0_i32_1 = arith.constant 0 : i32
    return %c0_i32, %c0_i32_0 : i32, i32
  }
  func.func @transform_9(%arg0: i32) -> (i32, i32) {
    %c0_i32 = arith.constant 0 : i32
    %c0_i32_0 = arith.constant 0 : i32
    %c0_i32_1 = arith.constant 0 : i32
    return %c0_i32, %c0_i32_0 : i32, i32
  }
  func.func @transform_10(%arg0: i32) -> (i32, i32) {
    %c0_i32 = arith.constant 0 : i32
    %c0_i32_0 = arith.constant 0 : i32
    %c0_i32_1 = arith.constant 0 : i32
    return %c0_i32, %c0_i32_0 : i32, i32
  }
  func.func @transform_11(%arg0: i32) -> (i32, i32) {
    %c0_i32 = arith.constant 0 : i32
    %c0_i32_0 = arith.constant 0 : i32
    %c0_i32_1 = arith.constant 0 : i32
    return %c0_i32, %c0_i32_0 : i32, i32
  }
  func.func @transform_12(%arg0: i32) -> (i32, i32) {
    %c0_i32 = arith.constant 0 : i32
    %c0_i32_0 = arith.constant 0 : i32
    %c0_i32_1 = arith.constant 0 : i32
    return %c0_i32, %c0_i32_0 : i32, i32
  }
  func.func @transform_13(%arg0: i32) -> (i32, i32, i32) {
    %c0_i32 = arith.constant 0 : i32
    %c0_i32_0 = arith.constant 0 : i32
    %c0_i32_1 = arith.constant 0 : i32
    return %arg0, %c0_i32, %c0_i32_0 : i32, i32, i32
  }
}

</mosaic_0001>

<llo_original>
// kernel: tpu_custom_call.1
$region0: #{tpu_custom_call.1}
  #allocation0 [shape = 'u32[]', space=smem, size = 0x4, offset = 0x4, fixed_abs, tag = 'smem constant byte address 0x4 - core index']
  #allocation1 [shape = 'u32[72,128]{1,0:T(1,128)}', space=vmem, size = 0x9000, scoped, tag = 'internal scratch']
  #allocation2 [shape = 'f32[96,384]{1,0:T(8,128)}', space=vmem, size = 0x24000, scoped, tag = 'scratch operand']
  #allocation3 [shape = 'f32[96,192]{1,0:T(8,128)}', space=vmem, size = 0x18000, scoped, tag = 'scratch operand']
  %s0 = inlined_call_operand.vmem [shape: bf16[2,64,960], index: 0, kind: input, shape index: {}]
  %s1 = inlined_call_operand.vmem [shape: bf16[960,384], index: 1, kind: input, shape index: {}]
  %s2 = inlined_call_operand.vmem [shape: f32[1,384], index: 2, kind: input, shape index: {}]
  %s3 = inlined_call_operand.vmem [shape: bf16[9,384,192], index: 3, kind: input, shape index: {}]
  %s4 = inlined_call_operand.vmem [shape: f32[1,192], index: 4, kind: input, shape index: {}]
  %s5 = inlined_call_operand.vmem [shape: f32[1,192], index: 5, kind: input, shape index: {}]
  %s6 = inlined_call_operand.vmem [shape: bf16[9,192,128], index: 6, kind: input, shape index: {}]
  %s7 = inlined_call_operand.vmem [shape: f32[1,128], index: 7, kind: input, shape index: {}]
  %s8 = inlined_call_operand.vmem [shape: f32[1,128], index: 8, kind: input, shape index: {}]
  %s9 = inlined_call_operand.vmem [shape: bf16[128,128], index: 9, kind: input, shape index: {}]
  %s10 = inlined_call_operand.vmem [shape: bf16[128,128], index: 10, kind: input, shape index: {}]
  %s11 = inlined_call_operand.vmem [shape: bf16[128,128], index: 11, kind: input, shape index: {}]
  %s12 = inlined_call_operand.vmem [shape: f32[1,128], index: 12, kind: input, shape index: {}]
  %s13 = inlined_call_operand.hbm [shape: f32[2,64,128], index: 13, kind: output, shape index: {}]
  %s14 = sld [smem:[#allocation0]]
  $region89: #{tpu_custom_call.1} parent=0
    _
  %s16 = ssub.s32 1, %s14
  %s17 = scalar_select 0, %s16, %s14
  $region1: #{tpu_custom_call.1} parent=0
    #allocation4 [shape = 'u8[65536]{0}', space=vmem, size = 0x10000, scoped, tag = 'output window, operand 0']
    #allocation5 [shape = 's32[2]{0}', space=sflag, size = 0x8, scoped, tag = 'scoped memory for tpu_custom_call.1']
    %18 = vsyncpa [#allocation5], 0
    %s19 = scalar_lea.sflag [#allocation5], 1
    %20 = vsyncpa %s19, 0
    loop: start=0, step=1, limit=4
    $region2: #{tpu_custom_call.1} parent=1 // loop_pre_header
      _
    $region3: #{tpu_custom_call.1} parent=1 // loop_header
      %s22 = sphi 0, %s26
      %p23 = scmp.ge.s32.totalorder %s22, 4
      %s32 = sphi 0, %s34
      %s35 = sphi 0, %s32
      %s36 = sphi 0, %s35
      %s52 = sphi 0, %s36
      %s56 = sphi 0, %s56
      %s58 = sphi 0, %s56
      %s59 = sphi 0, %s58
      %s73 = sphi 0, %s59
      %s77 = sphi 0, %s77
      %s79 = sphi 0, %s77
      %s80 = sphi 0, %s79
      %s94 = sphi 0, %s80
      %s98 = sphi 0, %s98
      %s100 = sphi 0, %s98
      %s101 = sphi 0, %s100
      %s115 = sphi 0, %s101
      %s119 = sphi 0, %s119
      %s121 = sphi 0, %s119
      %s122 = sphi 0, %s121
      %s136 = sphi 0, %s122
      %s140 = sphi 0, %s140
      %s142 = sphi 0, %s140
      %s143 = sphi 0, %s142
      %s157 = sphi 0, %s143
      %s161 = sphi 0, %s161
      %s163 = sphi 0, %s161
      %s164 = sphi 0, %s163
      %s178 = sphi 0, %s164
      %s182 = sphi 0, %s182
      %s184 = sphi 0, %s182
      %s185 = sphi 0, %s184
      %s199 = sphi 0, %s185
      %s203 = sphi 0, %s203
      %s205 = sphi 0, %s203
      %s206 = sphi 0, %s205
      %s220 = sphi 0, %s206
      %s224 = sphi 0, %s224
      %s226 = sphi 0, %s224
      %s227 = sphi 0, %s226
      %s241 = sphi 0, %s227
      %s245 = sphi 0, %s245
      %s247 = sphi 0, %s245
      %s248 = sphi 0, %s247
      %s262 = sphi 0, %s248
      %s266 = sphi 0, %s266
      %s268 = sphi 0, %s266
      %s269 = sphi 0, %s268
      %s283 = sphi 0, %s269
      %s287 = sphi 0, %s287
      %s289 = sphi 0, %s287
      %s290 = sphi 0, %s289
      %s304 = sphi 0, %s290
      %s310 = sphi 0, %s312
      %s313 = sphi 0, %s310
      %s314 = sphi 0, %s313
      %s330 = sphi 0, %s314
    $region4: #{tpu_custom_call.1} parent=1 // loop_header_branch
      %25 = sbr.rel (%p23) target = $region8
    $region5: #{tpu_custom_call.1} parent=1 // loop_body
      %s27 = ssub.s32 %s22, 1
      %s28 = ssub.s32 %s22, 2
      %s29 = sadd.s32 %s22, 1
      %s30 = ssub.s32 %s22, %s29
      %p31 = scmp.eq.s32.totalorder %s30, 0
      %s33 = sadd.s32 %s32, 1
      %s34 = scalar_select %p31, %s32, %s33
      %p37 = pneg %p31
      %p38 = scmp.eq.s32.totalorder %s22, 1
      %p39 = por %p37, %p38
      %p40 = scmp.ne.s32.totalorder %s32, %s35
      %p41 = scmp.eq.s32.totalorder %s22, 0
      %p42 = por %p40, %p41
      %p43 = scmp.ne.s32.totalorder %s32, %s35
      %p44 = scmp.eq.s32.totalorder %s27, 1
      %p45 = por %p43, %p44
      %p46 = scmp.ne.s32.totalorder %s35, %s36
      %p47 = scmp.eq.s32.totalorder %s27, 0
      %p48 = por %p46, %p47
      %p49 = scmp.ne.s32.totalorder %s35, %s36
      %p50 = scmp.eq.s32.totalorder %s28, 1
      %p51 = por %p49, %p50
      %p53 = scmp.ne.s32.totalorder %s36, %s52
      %p54 = scmp.eq.s32.totalorder %s28, 0
      %p55 = por %p53, %p54
      %s57 = sadd.s32 %s56, 1
      %p60 = scmp.eq.s32.totalorder %s22, 1
      %p61 = scmp.ne.s32.totalorder %s56, %s58
      %p62 = scmp.eq.s32.totalorder %s22, 0
      %p63 = por %p61, %p62
      %p64 = scmp.ne.s32.totalorder %s56, %s58
      %p65 = scmp.eq.s32.totalorder %s27, 1
      %p66 = por %p64, %p65
      %p67 = scmp.ne.s32.totalorder %s58, %s59
      %p68 = scmp.eq.s32.totalorder %s27, 0
      %p69 = por %p67, %p68
      %p70 = scmp.ne.s32.totalorder %s58, %s59
      %p71 = scmp.eq.s32.totalorder %s28, 1
      %p72 = por %p70, %p71
      %p74 = scmp.ne.s32.totalorder %s59, %s73
      %p75 = scmp.eq.s32.totalorder %s28, 0
      %p76 = por %p74, %p75
      %s78 = sadd.s32 %s77, 1
      %p81 = scmp.eq.s32.totalorder %s22, 1
      %p82 = scmp.ne.s32.totalorder %s77, %s79
      %p83 = scmp.eq.s32.totalorder %s22, 0
      %p84 = por %p82, %p83
      %p85 = scmp.ne.s32.totalorder %s77, %s79
      %p86 = scmp.eq.s32.totalorder %s27, 1
      %p87 = por %p85, %p86
      %p88 = scmp.ne.s32.totalorder %s79, %s80
      %p89 = scmp.eq.s32.totalorder %s27, 0
      %p90 = por %p88, %p89
      %p91 = scmp.ne.s32.totalorder %s79, %s80
      %p92 = scmp.eq.s32.totalorder %s28, 1
      %p93 = por %p91, %p92
      %p95 = scmp.ne.s32.totalorder %s80, %s94
      %p96 = scmp.eq.s32.totalorder %s28, 0
      %p97 = por %p95, %p96
      %s99 = sadd.s32 %s98, 1
      %p102 = scmp.eq.s32.totalorder %s22, 1
      %p103 = scmp.ne.s32.totalorder %s98, %s100
      %p104 = scmp.eq.s32.totalorder %s22, 0
      %p105 = por %p103, %p104
      %p106 = scmp.ne.s32.totalorder %s98, %s100
      %p107 = scmp.eq.s32.totalorder %s27, 1
      %p108 = por %p106, %p107
      %p109 = scmp.ne.s32.totalorder %s100, %s101
      %p110 = scmp.eq.s32.totalorder %s27, 0
      %p111 = por %p109, %p110
      %p112 = scmp.ne.s32.totalorder %s100, %s101
      %p113 = scmp.eq.s32.totalorder %s28, 1
      %p114 = por %p112, %p113
      %p116 = scmp.ne.s32.totalorder %s101, %s115
      %p117 = scmp.eq.s32.totalorder %s28, 0
      %p118 = por %p116, %p117
      %s120 = sadd.s32 %s119, 1
      %p123 = scmp.eq.s32.totalorder %s22, 1
      %p124 = scmp.ne.s32.totalorder %s119, %s121
      %p125 = scmp.eq.s32.totalorder %s22, 0
      %p126 = por %p124, %p125
      %p127 = scmp.ne.s32.totalorder %s119, %s121
      %p128 = scmp.eq.s32.totalorder %s27, 1
      %p129 = por %p127, %p128
      %p130 = scmp.ne.s32.totalorder %s121, %s122
      %p131 = scmp.eq.s32.totalorder %s27, 0
      %p132 = por %p130, %p131
      %p133 = scmp.ne.s32.totalorder %s121, %s122
      %p134 = scmp.eq.s32.totalorder %s28, 1
      %p135 = por %p133, %p134
      %p137 = scmp.ne.s32.totalorder %s122, %s136
      %p138 = scmp.eq.s32.totalorder %s28, 0
      %p139 = por %p137, %p138
      %s141 = sadd.s32 %s140, 1
      %p144 = scmp.eq.s32.totalorder %s22, 1
      %p145 = scmp.ne.s32.totalorder %s140, %s142
      %p146 = scmp.eq.s32.totalorder %s22, 0
      %p147 = por %p145, %p146
      %p148 = scmp.ne.s32.totalorder %s140, %s142
      %p149 = scmp.eq.s32.totalorder %s27, 1
      %p150 = por %p148, %p149
      %p151 = scmp.ne.s32.totalorder %s142, %s143
      %p152 = scmp.eq.s32.totalorder %s27, 0
      %p153 = por %p151, %p152
      %p154 = scmp.ne.s32.totalorder %s142, %s143
      %p155 = scmp.eq.s32.totalorder %s28, 1
      %p156 = por %p154, %p155
      %p158 = scmp.ne.s32.totalorder %s143, %s157
      %p159 = scmp.eq.s32.totalorder %s28, 0
      %p160 = por %p158, %p159
      %s162 = sadd.s32 %s161, 1
      %p165 = scmp.eq.s32.totalorder %s22, 1
      %p166 = scmp.ne.s32.totalorder %s161, %s163
      %p167 = scmp.eq.s32.totalorder %s22, 0
      %p168 = por %p166, %p167
      %p169 = scmp.ne.s32.totalorder %s161, %s163
      %p170 = scmp.eq.s32.totalorder %s27, 1
      %p171 = por %p169, %p170
      %p172 = scmp.ne.s32.totalorder %s163, %s164
      %p173 = scmp.eq.s32.totalorder %s27, 0
      %p174 = por %p172, %p173
      %p175 = scmp.ne.s32.totalorder %s163, %s164
      %p176 = scmp.eq.s32.totalorder %s28, 1
      %p177 = por %p175, %p176
      %p179 = scmp.ne.s32.totalorder %s164, %s178
      %p180 = scmp.eq.s32.totalorder %s28, 0
      %p181 = por %p179, %p180
      %s183 = sadd.s32 %s182, 1
      %p186 = scmp.eq.s32.totalorder %s22, 1
      %p187 = scmp.ne.s32.totalorder %s182, %s184
      %p188 = scmp.eq.s32.totalorder %s22, 0
      %p189 = por %p187, %p188
      %p190 = scmp.ne.s32.totalorder %s182, %s184
      %p191 = scmp.eq.s32.totalorder %s27, 1
      %p192 = por %p190, %p191
      %p193 = scmp.ne.s32.totalorder %s184, %s185
      %p194 = scmp.eq.s32.totalorder %s27, 0
      %p195 = por %p193, %p194
      %p196 = scmp.ne.s32.totalorder %s184, %s185
      %p197 = scmp.eq.s32.totalorder %s28, 1
      %p198 = por %p196, %p197
      %p200 = scmp.ne.s32.totalorder %s185, %s199
      %p201 = scmp.eq.s32.totalorder %s28, 0
      %p202 = por %p200, %p201
      %s204 = sadd.s32 %s203, 1
      %p207 = scmp.eq.s32.totalorder %s22, 1
      %p208 = scmp.ne.s32.totalorder %s203, %s205
      %p209 = scmp.eq.s32.totalorder %s22, 0
      %p210 = por %p208, %p209
      %p211 = scmp.ne.s32.totalorder %s203, %s205
      %p212 = scmp.eq.s32.totalorder %s27, 1
      %p213 = por %p211, %p212
      %p214 = scmp.ne.s32.totalorder %s205, %s206
      %p215 = scmp.eq.s32.totalorder %s27, 0
      %p216 = por %p214, %p215
      %p217 = scmp.ne.s32.totalorder %s205, %s206
      %p218 = scmp.eq.s32.totalorder %s28, 1
      %p219 = por %p217, %p218
      %p221 = scmp.ne.s32.totalorder %s206, %s220
      %p222 = scmp.eq.s32.totalorder %s28, 0
      %p223 = por %p221, %p222
      %s225 = sadd.s32 %s224, 1
      %p228 = scmp.eq.s32.totalorder %s22, 1
      %p229 = scmp.ne.s32.totalorder %s224, %s226
      %p230 = scmp.eq.s32.totalorder %s22, 0
      %p231 = por %p229, %p230
      %p232 = scmp.ne.s32.totalorder %s224, %s226
      %p233 = scmp.eq.s32.totalorder %s27, 1
      %p234 = por %p232, %p233
      %p235 = scmp.ne.s32.totalorder %s226, %s227
      %p236 = scmp.eq.s32.totalorder %s27, 0
      %p237 = por %p235, %p236
      %p238 = scmp.ne.s32.totalorder %s226, %s227
      %p239 = scmp.eq.s32.totalorder %s28, 1
      %p240 = por %p238, %p239
      %p242 = scmp.ne.s32.totalorder %s227, %s241
      %p243 = scmp.eq.s32.totalorder %s28, 0
      %p244 = por %p242, %p243
      %s246 = sadd.s32 %s245, 1
      %p249 = scmp.eq.s32.totalorder %s22, 1
      %p250 = scmp.ne.s32.totalorder %s245, %s247
      %p251 = scmp.eq.s32.totalorder %s22, 0
      %p252 = por %p250, %p251
      %p253 = scmp.ne.s32.totalorder %s245, %s247
      %p254 = scmp.eq.s32.totalorder %s27, 1
      %p255 = por %p253, %p254
      %p256 = scmp.ne.s32.totalorder %s247, %s248
      %p257 = scmp.eq.s32.totalorder %s27, 0
      %p258 = por %p256, %p257
      %p259 = scmp.ne.s32.totalorder %s247, %s248
      %p260 = scmp.eq.s32.totalorder %s28, 1
      %p261 = por %p259, %p260
      %p263 = scmp.ne.s32.totalorder %s248, %s262
      %p264 = scmp.eq.s32.totalorder %s28, 0
      %p265 = por %p263, %p264
      %s267 = sadd.s32 %s266, 1
      %p270 = scmp.eq.s32.totalorder %s22, 1
      %p271 = scmp.ne.s32.totalorder %s266, %s268
      %p272 = scmp.eq.s32.totalorder %s22, 0
      %p273 = por %p271, %p272
      %p274 = scmp.ne.s32.totalorder %s266, %s268
      %p275 = scmp.eq.s32.totalorder %s27, 1
      %p276 = por %p274, %p275
      %p277 = scmp.ne.s32.totalorder %s268, %s269
      %p278 = scmp.eq.s32.totalorder %s27, 0
      %p279 = por %p277, %p278
      %p280 = scmp.ne.s32.totalorder %s268, %s269
      %p281 = scmp.eq.s32.totalorder %s28, 1
      %p282 = por %p280, %p281
      %p284 = scmp.ne.s32.totalorder %s269, %s283
      %p285 = scmp.eq.s32.totalorder %s28, 0
      %p286 = por %p284, %p285
      %s288 = sadd.s32 %s287, 1
      %p291 = scmp.eq.s32.totalorder %s22, 1
      %p292 = scmp.ne.s32.totalorder %s287, %s289
      %p293 = scmp.eq.s32.totalorder %s22, 0
      %p294 = por %p292, %p293
      %p295 = scmp.ne.s32.totalorder %s287, %s289
      %p296 = scmp.eq.s32.totalorder %s27, 1
      %p297 = por %p295, %p296
      %p298 = scmp.ne.s32.totalorder %s289, %s290
      %p299 = scmp.eq.s32.totalorder %s27, 0
      %p300 = por %p298, %p299
      %p301 = scmp.ne.s32.totalorder %s289, %s290
      %p302 = scmp.eq.s32.totalorder %s28, 1
      %p303 = por %p301, %p302
      %p305 = scmp.ne.s32.totalorder %s290, %s304
      %p306 = scmp.eq.s32.totalorder %s28, 0
      %p307 = por %p305, %p306
      %s308 = ssub.s32 %s22, %s29
      %p309 = scmp.eq.s32.totalorder %s308, 0
      %s311 = sadd.s32 %s310, 1
      %s312 = scalar_select %p309, %s310, %s311
      %p315 = pneg %p309
      %p316 = scmp.eq.s32.totalorder %s22, 1
      %p317 = por %p315, %p316
      %p318 = scmp.ne.s32.totalorder %s310, %s313
      %p319 = scmp.eq.s32.totalorder %s22, 0
      %p320 = por %p318, %p319
      %p321 = scmp.ne.s32.totalorder %s310, %s313
      %p322 = scmp.eq.s32.totalorder %s27, 1
      %p323 = por %p321, %p322
      %p324 = scmp.ne.s32.totalorder %s313, %s314
      %p325 = scmp.eq.s32.totalorder %s27, 0
      %p326 = por %p324, %p325
      %p327 = scmp.ne.s32.totalorder %s313, %s314
      %p328 = scmp.eq.s32.totalorder %s28, 1
      %p329 = por %p327, %p328
      %p331 = scmp.ne.s32.totalorder %s314, %s330
      %p332 = scmp.eq.s32.totalorder %s28, 0
      %p333 = por %p331, %p332
      %p334 = scmp.le.s32.totalorder 1, %s22
      %p335 = scmp.lt.s32.totalorder %s22, 3
      %p336 = pnand %p334, %p335
      %p337 = pneg %p336
      // Predicated region
      $region9: #{tpu_custom_call.1} parent=5 // pred_check
        _
      $region10: #{tpu_custom_call.1} parent=5 // pred_check_branch
        %339 = sbr.rel (%p336) target = $region12
      $region11: #{tpu_custom_call.1} parent=5 // pred_region
        %s340 = ssub.s32 %s22, 1
        // Predicated region
        $region13: #{tpu_custom_call.1} parent=11 // pred_check
          %p341 = pneg %p69
        $region14: #{tpu_custom_call.1} parent=11 // pred_check_branch
          %343 = sbr.rel (%p341) target = $region16
        $region15: #{tpu_custom_call.1} parent=11 // pred_region
          _
        $region16: #{tpu_custom_call.1} parent=11 // pred_fallthru
          _
        // Predicated region
        $region17: #{tpu_custom_call.1} parent=11 // pred_check
          %p344 = pneg %p90
        $region18: #{tpu_custom_call.1} parent=11 // pred_check_branch
          %346 = sbr.rel (%p344) target = $region20
        $region19: #{tpu_custom_call.1} parent=11 // pred_region
          _
        $region20: #{tpu_custom_call.1} parent=11 // pred_fallthru
          _
        // Predicated region
        $region21: #{tpu_custom_call.1} parent=11 // pred_check
          %p347 = pneg %p111
        $region22: #{tpu_custom_call.1} parent=11 // pred_check_branch
          %349 = sbr.rel (%p347) target = $region24
        $region23: #{tpu_custom_call.1} parent=11 // pred_region
          _
        $region24: #{tpu_custom_call.1} parent=11 // pred_fallthru
          _
        // Predicated region
        $region25: #{tpu_custom_call.1} parent=11 // pred_check
          %p350 = pneg %p132
        $region26: #{tpu_custom_call.1} parent=11 // pred_check_branch
          %352 = sbr.rel (%p350) target = $region28
        $region27: #{tpu_custom_call.1} parent=11 // pred_region
          _
        $region28: #{tpu_custom_call.1} parent=11 // pred_fallthru
          _
        // Predicated region
        $region29: #{tpu_custom_call.1} parent=11 // pred_check
          %p353 = pneg %p153
        $region30: #{tpu_custom_call.1} parent=11 // pred_check_branch
          %355 = sbr.rel (%p353) target = $region32
        $region31: #{tpu_custom_call.1} parent=11 // pred_region
          _
        $region32: #{tpu_custom_call.1} parent=11 // pred_fallthru
          _
        // Predicated region
        $region33: #{tpu_custom_call.1} parent=11 // pred_check
          %p356 = pneg %p174
        $region34: #{tpu_custom_call.1} parent=11 // pred_check_branch
          %358 = sbr.rel (%p356) target = $region36
        $region35: #{tpu_custom_call.1} parent=11 // pred_region
          _
        $region36: #{tpu_custom_call.1} parent=11 // pred_fallthru
          _
        // Predicated region
        $region37: #{tpu_custom_call.1} parent=11 // pred_check
          %p359 = pneg %p195
        $region38: #{tpu_custom_call.1} parent=11 // pred_check_branch
          %361 = sbr.rel (%p359) target = $region40
        $region39: #{tpu_custom_call.1} parent=11 // pred_region
          _
        $region40: #{tpu_custom_call.1} parent=11 // pred_fallthru
          _
        // Predicated region
        $region41: #{tpu_custom_call.1} parent=11 // pred_check
          %p362 = pneg %p216
        $region42: #{tpu_custom_call.1} parent=11 // pred_check_branch
          %364 = sbr.rel (%p362) target = $region44
        $region43: #{tpu_custom_call.1} parent=11 // pred_region
          _
        $region44: #{tpu_custom_call.1} parent=11 // pred_fallthru
          _
        // Predicated region
        $region45: #{tpu_custom_call.1} parent=11 // pred_check
          %p365 = pneg %p237
        $region46: #{tpu_custom_call.1} parent=11 // pred_check_branch
          %367 = sbr.rel (%p365) target = $region48
        $region47: #{tpu_custom_call.1} parent=11 // pred_region
          _
        $region48: #{tpu_custom_call.1} parent=11 // pred_fallthru
          _
        // Predicated region
        $region49: #{tpu_custom_call.1} parent=11 // pred_check
          %p368 = pneg %p258
        $region50: #{tpu_custom_call.1} parent=11 // pred_check_branch
          %370 = sbr.rel (%p368) target = $region52
        $region51: #{tpu_custom_call.1} parent=11 // pred_region
          _
        $region52: #{tpu_custom_call.1} parent=11 // pred_fallthru
          _
        // Predicated region
        $region53: #{tpu_custom_call.1} parent=11 // pred_check
          %p371 = pneg %p279
        $region54: #{tpu_custom_call.1} parent=11 // pred_check_branch
          %373 = sbr.rel (%p371) target = $region56
        $region55: #{tpu_custom_call.1} parent=11 // pred_region
          _
        $region56: #{tpu_custom_call.1} parent=11 // pred_fallthru
          _
        // Predicated region
        $region57: #{tpu_custom_call.1} parent=11 // pred_check
          %p374 = pneg %p300
        $region58: #{tpu_custom_call.1} parent=11 // pred_check_branch
          %376 = sbr.rel (%p374) target = $region60
        $region59: #{tpu_custom_call.1} parent=11 // pred_region
          _
        $region60: #{tpu_custom_call.1} parent=11 // pred_fallthru
          _
      $region12: #{tpu_custom_call.1} parent=5 // pred_fallthru
        _
      %p377 = scmp.lt.s32.totalorder %s22, 2
      // Predicated region
      $region61: #{tpu_custom_call.1} parent=5 // pred_check
        %p378 = pneg %p377
      $region62: #{tpu_custom_call.1} parent=5 // pred_check_branch
        %380 = sbr.rel (%p378) target = $region64
      $region63: #{tpu_custom_call.1} parent=5 // pred_region
        // Predicated region
        $region65: #{tpu_custom_call.1} parent=63 // pred_check
          %p381 = pneg %p42
        $region66: #{tpu_custom_call.1} parent=63 // pred_check_branch
          %383 = sbr.rel (%p381) target = $region68
        $region67: #{tpu_custom_call.1} parent=63 // pred_region
          %p384 = scmp.lt.s32.totalorder %s22, 1
          %s385 = scalar_select %p384, %s22, 1
          %s386 = smul.addr %s385, 64
          %s387 = smul.addr %s386, 4
          %s388 = scalar_lea.vmem %s0, %s387
        $region68: #{tpu_custom_call.1} parent=63 // pred_fallthru
          _
      $region64: #{tpu_custom_call.1} parent=5 // pred_fallthru
        _
      %p389 = scmp.le.s32.totalorder 1, %s22
      %p390 = scmp.lt.s32.totalorder %s22, 3
      %p391 = pnand %p389, %p390
      %p392 = pneg %p391
      // Predicated region
      $region69: #{tpu_custom_call.1} parent=5 // pred_check
        _
      $region70: #{tpu_custom_call.1} parent=5 // pred_check_branch
        %394 = sbr.rel (%p391) target = $region72
      $region71: #{tpu_custom_call.1} parent=5 // pred_region
        %s395 = ssub.s32 %s22, 1
        %p396 = scmp.lt.s32.totalorder %s27, 1
        %s397 = scalar_select %p396, %s27, 1
        %s398 = smul.addr %s397, 64
        %s399 = smul.addr %s398, 4
        %s400 = scalar_lea.vmem %s0, %s399
        %p401 = pneg %p48
        %p402 = pneg %p45
        %p403 = pneg %p69
        %p404 = pneg %p66
        %p405 = pneg %p90
        %p406 = pneg %p87
        %p407 = pneg %p111
        %p408 = pneg %p108
        %p409 = pneg %p132
        %p410 = pneg %p129
        %p411 = pneg %p153
        %p412 = pneg %p150
        %p413 = pneg %p174
        %p414 = pneg %p171
        %p415 = pneg %p195
        %p416 = pneg %p192
        %p417 = pneg %p216
        %p418 = pneg %p213
        %p419 = pneg %p237
        %p420 = pneg %p234
        %p421 = pneg %p258
        %p422 = pneg %p255
        %p423 = pneg %p279
        %p424 = pneg %p276
        %p425 = pneg %p300
        %p426 = pneg %p297
        %p427 = pneg %p326
        %p428 = pneg %p323
        %s429 = sand.u32 %s313, 1
        %s430 = scalar_lea.sflag [#allocation5], %s429
        %s431 = sand.u32 %s313, 1
        %s432 = smul.addr %s431, 64
        %s433 = scalar_lea.vmem [#allocation4], %s432
        %p434 = scmp.lt.s32.totalorder %s27, 1
        %s435 = scalar_select %p434, %s27, 1
        %s436 = smul.addr %s435, 64
        %s437 = smul.addr %s436, 4
        %s438 = scalar_lea.vmem %s0, %s437
        %p440 = scmp.eq.s32.totalorder %s27, 0
        // Predicated region
        $region73: #{tpu_custom_call.1} parent=71 // pred_check
          %p441 = pneg %p440
        $region74: #{tpu_custom_call.1} parent=71 // pred_check_branch
          %443 = sbr.rel (%p441) target = $region76
        $region75: #{tpu_custom_call.1} parent=71 // pred_region
          %444 = vst [vmem:[#allocation2] sm:$0xff] 0.0
          %445 = vst [vmem:[#allocation2 + $0x8] sm:$0xff] 0.0
          %446 = vst [vmem:[#allocation2 + $0x10] sm:$0xff] 0.0
          %447 = vst [vmem:[#allocation2 + $0x18] sm:$0xff] 0.0
          %448 = vst [vmem:[#allocation2 + $0x20] sm:$0xff] 0.0
          %449 = vst [vmem:[#allocation2 + $0x28] sm:$0xff] 0.0
          %450 = vst [vmem:[#allocation2 + $0x30] sm:$0xff] 0.0
          %451 = vst [vmem:[#allocation2 + $0x38] sm:$0xff] 0.0
          %452 = vst [vmem:[#allocation2 + $0x40] sm:$0xff] 0.0
          %453 = vst [vmem:[#allocation2 + $0x48] sm:$0xff] 0.0
          %454 = vst [vmem:[#allocation2 + $0x50] sm:$0xff] 0.0
          %455 = vst [vmem:[#allocation2 + $0x58] sm:$0xff] 0.0
          %456 = vst [vmem:[#allocation2 + $0x60] sm:$0xff] 0.0
          %457 = vst [vmem:[#allocation2 + $0x68] sm:$0xff] 0.0
          %458 = vst [vmem:[#allocation2 + $0x70] sm:$0xff] 0.0
          %459 = vst [vmem:[#allocation2 + $0x78] sm:$0xff] 0.0
          %460 = vst [vmem:[#allocation2 + $0x80] sm:$0xff] 0.0
          %461 = vst [vmem:[#allocation2 + $0x88] sm:$0xff] 0.0
          %462 = vst [vmem:[#allocation2 + $0x90] sm:$0xff] 0.0
          %463 = vst [vmem:[#allocation2 + $0x98] sm:$0xff] 0.0
          %464 = vst [vmem:[#allocation2 + $0xa0] sm:$0xff] 0.0
          %465 = vst [vmem:[#allocation2 + $0xa8] sm:$0xff] 0.0
          %466 = vst [vmem:[#allocation2 + $0xb0] sm:$0xff] 0.0
          %467 = vst [vmem:[#allocation2 + $0xb8] sm:$0xff] 0.0
          %468 = vst [vmem:[#allocation2 + $0xc0] sm:$0xff] 0.0
          %469 = vst [vmem:[#allocation2 + $0xc8] sm:$0xff] 0.0
          %470 = vst [vmem:[#allocation2 + $0xd0] sm:$0xff] 0.0
          %471 = vst [vmem:[#allocation2 + $0xd8] sm:$0xff] 0.0
          %472 = vst [vmem:[#allocation2 + $0xe0] sm:$0xff] 0.0
          %473 = vst [vmem:[#allocation2 + $0xe8] sm:$0xff] 0.0
          %474 = vst [vmem:[#allocation2 + $0xf0] sm:$0xff] 0.0
          %475 = vst [vmem:[#allocation2 + $0xf8] sm:$0xff] 0.0
          %476 = vst [vmem:[#allocation2 + $0x100] sm:$0xff] 0.0
          %477 = vst [vmem:[#allocation2 + $0x108] sm:$0xff] 0.0
          %478 = vst [vmem:[#allocation2 + $0x110] sm:$0xff] 0.0
          %479 = vst [vmem:[#allocation2 + $0x118] sm:$0xff] 0.0
          %480 = vst [vmem:[#allocation3] sm:$0xff] 0.0
          %vm481 = vcmask 523264
          %482 = vst.msk [vmem:[#allocation3 + $0x8] sm:$0xff] %vm481, 0.0
          %483 = vst [vmem:[#allocation3 + $0x10] sm:$0xff] 0.0
          %484 = vst.msk [vmem:[#allocation3 + $0x18] sm:$0xff] %vm481, 0.0
          %485 = vst [vmem:[#allocation3 + $0x20] sm:$0xff] 0.0
          %486 = vst.msk [vmem:[#allocation3 + $0x28] sm:$0xff] %vm481, 0.0
          %487 = vst [vmem:[#allocation3 + $0x30] sm:$0xff] 0.0
          %488 = vst.msk [vmem:[#allocation3 + $0x38] sm:$0xff] %vm481, 0.0
          %489 = vst [vmem:[#allocation3 + $0x40] sm:$0xff] 0.0
          %490 = vst.msk [vmem:[#allocation3 + $0x48] sm:$0xff] %vm481, 0.0
          %491 = vst [vmem:[#allocation3 + $0x50] sm:$0xff] 0.0
          %492 = vst.msk [vmem:[#allocation3 + $0x58] sm:$0xff] %vm481, 0.0
          %493 = vst [vmem:[#allocation3 + $0x60] sm:$0xff] 0.0
          %494 = vst.msk [vmem:[#allocation3 + $0x68] sm:$0xff] %vm481, 0.0
          %495 = vst [vmem:[#allocation3 + $0x70] sm:$0xff] 0.0
          %496 = vst.msk [vmem:[#allocation3 + $0x78] sm:$0xff] %vm481, 0.0
          %497 = vst [vmem:[#allocation3 + $0x80] sm:$0xff] 0.0
          %498 = vst.msk [vmem:[#allocation3 + $0x88] sm:$0xff] %vm481, 0.0
          %499 = vst [vmem:[#allocation3 + $0x90] sm:$0xff] 0.0
          %500 = vst.msk [vmem:[#allocation3 + $0x98] sm:$0xff] %vm481, 0.0
          %501 = vst [vmem:[#allocation3 + $0xa0] sm:$0xff] 0.0
          %502 = vst.msk [vmem:[#allocation3 + $0xa8] sm:$0xff] %vm481, 0.0
          %503 = vst [vmem:[#allocation3 + $0xb0] sm:$0xff] 0.0
          %504 = vst.msk [vmem:[#allocation3 + $0xb8] sm:$0xff] %vm481, 0.0
        $region76: #{tpu_custom_call.1} parent=71 // pred_fallthru
          _
        %v505 = vlaneseq
        %v506 = vshrl.u32 %v505, 7
        %v507 = vadd.s32 %v506, 8
        %v508 = vadd.s32 %v506, 16
        %v509 = vadd.s32 %v506, 24
        %v510 = vadd.s32 %v506, 32
        %v511 = vadd.s32 %v506, 40
        %v512 = vadd.s32 %v506, 48
        %v513 = vadd.s32 %v506, 56
        %vm514 = vcmp.lt.s32.totalorder %v506, 0
        %v515 = vsub.s32 0, %v506
        %v516 = vsel %vm514, %v515, %v506
        %v517 = vshrl.u32 %v516, 3
        %v518 = vand.u32 %v516, 7
        %v519 = vsub.s32 0, %v518
        %v520 = vsel %vm514, %v519, %v518
        %vm521 = vcmp.lt.s32.totalorder %v507, 0
        %v522 = vsub.s32 0, %v507
        %v523 = vsel %vm521, %v522, %v507
        %v524 = vshrl.u32 %v523, 3
        %v525 = vand.u32 %v523, 7
        %v526 = vsub.s32 0, %v525
        %v527 = vsel %vm521, %v526, %v525
        %vm528 = vcmp.lt.s32.totalorder %v508, 0
        %v529 = vsub.s32 0, %v508
        %v530 = vsel %vm528, %v529, %v508
        %v531 = vshrl.u32 %v530, 3
        %v532 = vand.u32 %v530, 7
        %v533 = vsub.s32 0, %v532
        %v534 = vsel %vm528, %v533, %v532
        %vm535 = vcmp.lt.s32.totalorder %v509, 0
        %v536 = vsub.s32 0, %v509
        %v537 = vsel %vm535, %v536, %v509
        %v538 = vshrl.u32 %v537, 3
        %v539 = vand.u32 %v537, 7
        %v540 = vsub.s32 0, %v539
        %v541 = vsel %vm535, %v540, %v539
        %vm542 = vcmp.lt.s32.totalorder %v510, 0
        %v543 = vsub.s32 0, %v510
        %v544 = vsel %vm542, %v543, %v510
        %v545 = vshrl.u32 %v544, 3
        %v546 = vand.u32 %v544, 7
        %v547 = vsub.s32 0, %v546
        %v548 = vsel %vm542, %v547, %v546
        %vm549 = vcmp.lt.s32.totalorder %v511, 0
        %v550 = vsub.s32 0, %v511
        %v551 = vsel %vm549, %v550, %v511
        %v552 = vshrl.u32 %v551, 3
        %v553 = vand.u32 %v551, 7
        %v554 = vsub.s32 0, %v553
        %v555 = vsel %vm549, %v554, %v553
        %vm556 = vcmp.lt.s32.totalorder %v512, 0
        %v557 = vsub.s32 0, %v512
        %v558 = vsel %vm556, %v557, %v512
        %v559 = vshrl.u32 %v558, 3
        %v560 = vand.u32 %v558, 7
        %v561 = vsub.s32 0, %v560
        %v562 = vsel %vm556, %v561, %v560
        %vm563 = vcmp.lt.s32.totalorder %v513, 0
        %v564 = vsub.s32 0, %v513
        %v565 = vsel %vm563, %v564, %v513
        %v566 = vshrl.u32 %v565, 3
        %v567 = vand.u32 %v565, 7
        %v568 = vsub.s32 0, %v567
        %v569 = vsel %vm563, %v568, %v567
        %vm570 = vcmp.ne.s32.totalorder %v520, 0
        %vm571 = vcmp.ne.s32.totalorder %v527, 0
        %vm572 = vcmp.ne.s32.totalorder %v534, 0
        %vm573 = vcmp.ne.s32.totalorder %v541, 0
        %vm574 = vcmp.ne.s32.totalorder %v548, 0
        %vm575 = vcmp.ne.s32.totalorder %v555, 0
        %vm576 = vcmp.ne.s32.totalorder %v562, 0
        %vm577 = vcmp.ne.s32.totalorder %v569, 0
        %vm578 = vcmp.lt.s32.totalorder %v520, 0
        %vm579 = vcmp.lt.s32.totalorder %v527, 0
        %vm580 = vcmp.lt.s32.totalorder %v534, 0
        %vm581 = vcmp.lt.s32.totalorder %v541, 0
        %vm582 = vcmp.lt.s32.totalorder %v548, 0
        %vm583 = vcmp.lt.s32.totalorder %v555, 0
        %vm584 = vcmp.lt.s32.totalorder %v562, 0
        %vm585 = vcmp.lt.s32.totalorder %v569, 0
        %vm586 = vmand %vm578, %vm570
        %vm587 = vmand %vm579, %vm571
        %vm588 = vmand %vm580, %vm572
        %vm589 = vmand %vm581, %vm573
        %vm590 = vmand %vm582, %vm574
        %vm591 = vmand %vm583, %vm575
        %vm592 = vmand %vm584, %vm576
        %vm593 = vmand %vm585, %vm577
        %v594 = vadd.s32 %v520, 8
        %v595 = vadd.s32 %v527, 8
        %v596 = vadd.s32 %v534, 8
        %v597 = vadd.s32 %v541, 8
        %v598 = vadd.s32 %v548, 8
        %v599 = vadd.s32 %v555, 8
        %v600 = vadd.s32 %v562, 8
        %v601 = vadd.s32 %v569, 8
        %v602 = vsel %vm586, %v594, %v520
        %v603 = vsel %vm587, %v595, %v527
        %v604 = vsel %vm588, %v596, %v534
        %v605 = vsel %vm589, %v597, %v541
        %v606 = vsel %vm590, %v598, %v548
        %v607 = vsel %vm591, %v599, %v555
        %v608 = vsel %vm592, %v600, %v562
        %v609 = vsel %vm593, %v601, %v569
        %vm610 = vcmp.ge.s32.totalorder %v602, 1
        %vm611 = vcmp.ge.s32.totalorder %v603, 1
        %vm612 = vcmp.ge.s32.totalorder %v604, 1
        %vm613 = vcmp.ge.s32.totalorder %v605, 1
        %vm614 = vcmp.ge.s32.totalorder %v606, 1
        %vm615 = vcmp.ge.s32.totalorder %v607, 1
        %vm616 = vcmp.ge.s32.totalorder %v608, 1
        %vm617 = vcmp.ge.s32.totalorder %v609, 1
        %vm618 = vcmp.le.s32.totalorder %v602, 6
        %vm619 = vcmp.le.s32.totalorder %v603, 6
        %vm620 = vcmp.le.s32.totalorder %v604, 6
        %vm621 = vcmp.le.s32.totalorder %v605, 6
        %vm622 = vcmp.le.s32.totalorder %v606, 6
        %vm623 = vcmp.le.s32.totalorder %v607, 6
        %vm624 = vcmp.le.s32.totalorder %v608, 6
        %vm625 = vcmp.le.s32.totalorder %v609, 6
        %v626 = vld [vmem:[%s438] sm:$0xff]
        %v627 = vld [vmem:[%s438 + $0x8] sm:$0xff]
        %v628 = vld [vmem:[%s438 + $0x10] sm:$0xff]
        %v629 = vld [vmem:[%s438 + $0x18] sm:$0xff]
        %v630 = vld [vmem:[%s438 + $0x20] sm:$0xff]
        %v631 = vld [vmem:[%s438 + $0x28] sm:$0xff]
        %v632 = vld [vmem:[%s438 + $0x30] sm:$0xff]
        %v633 = vld [vmem:[%s438 + $0x38] sm:$0xff]
        %v634 = vld [vmem:[%s438 + $0x40] sm:$0xff]
        %v635 = vld [vmem:[%s438 + $0x48] sm:$0xff]
        %v636 = vld [vmem:[%s438 + $0x50] sm:$0xff]
        %v637 = vld [vmem:[%s438 + $0x58] sm:$0xff]
        %v638 = vld [vmem:[%s438 + $0x60] sm:$0xff]
        %v639 = vld [vmem:[%s438 + $0x68] sm:$0xff]
        %v640 = vld [vmem:[%s438 + $0x70] sm:$0xff]
        %v641 = vld [vmem:[%s438 + $0x78] sm:$0xff]
        %v642 = vld [vmem:[%s438 + $0x80] sm:$0xff]
        %v643 = vld [vmem:[%s438 + $0x88] sm:$0xff]
        %v644 = vld [vmem:[%s438 + $0x90] sm:$0xff]
        %v645 = vld [vmem:[%s438 + $0x98] sm:$0xff]
        %v646 = vld [vmem:[%s438 + $0xa0] sm:$0xff]
        %v647 = vld [vmem:[%s438 + $0xa8] sm:$0xff]
        %v648 = vld [vmem:[%s438 + $0xb0] sm:$0xff]
        %v649 = vld [vmem:[%s438 + $0xb8] sm:$0xff]
        %v650 = vld [vmem:[%s438 + $0xc0] sm:$0xff]
        %v651 = vld [vmem:[%s438 + $0xc8] sm:$0xff]
        %v652 = vld [vmem:[%s438 + $0xd0] sm:$0xff]
        %v653 = vld [vmem:[%s438 + $0xd8] sm:$0xff]
        %v654 = vld [vmem:[%s438 + $0xe0] sm:$0xff]
        %v655 = vld [vmem:[%s438 + $0xe8] sm:$0xff]
        %v656 = vld [vmem:[%s438 + $0xf0] sm:$0xff]
        %v657 = vld [vmem:[%s438 + $0xf8] sm:$0xff]
        %v658 = vld [vmem:[%s1] sm:$0xff]
        %v659 = vld [vmem:[%s1 + $0x8] sm:$0xf]
        %v660 = vld [vmem:[%s1 + $0xc] sm:$0xff]
        %v661 = vld [vmem:[%s1 + $0x14] sm:$0xf]
        %v662 = vld [vmem:[%s1 + $0x18] sm:$0xff]
        %v663 = vld [vmem:[%s1 + $0x20] sm:$0xf]
        %v664 = vld [vmem:[%s1 + $0x24] sm:$0xff]
        %v665 = vld [vmem:[%s1 + $0x2c] sm:$0xf]
        %v666 = vld [vmem:[%s1 + $0x30] sm:$0xff]
        %v667 = vld [vmem:[%s1 + $0x38] sm:$0xf]
        %v668 = vld [vmem:[%s1 + $0x3c] sm:$0xff]
        %v669 = vld [vmem:[%s1 + $0x44] sm:$0xf]
        %v670 = vld [vmem:[%s1 + $0x48] sm:$0xff]
        %v671 = vld [vmem:[%s1 + $0x50] sm:$0xf]
        %v672 = vld [vmem:[%s1 + $0x54] sm:$0xff]
        %v673 = vld [vmem:[%s1 + $0x5c] sm:$0xf]
        %v674 = vld [vmem:[%s1 + $0x60] sm:$0xff]
        %v675 = vld [vmem:[%s1 + $0x68] sm:$0xf]
        %v676 = vld [vmem:[%s1 + $0x6c] sm:$0xff]
        %v677 = vld [vmem:[%s1 + $0x74] sm:$0xf]
        %v678 = vld [vmem:[%s1 + $0x78] sm:$0xff]
        %v679 = vld [vmem:[%s1 + $0x80] sm:$0xf]
        %v680 = vld [vmem:[%s1 + $0x84] sm:$0xff]
        %v681 = vld [vmem:[%s1 + $0x8c] sm:$0xf]
        %v682 = vld [vmem:[%s1 + $0x90] sm:$0xff]
        %v683 = vld [vmem:[%s1 + $0x98] sm:$0xf]
        %v684 = vld [vmem:[%s1 + $0x9c] sm:$0xff]
        %v685 = vld [vmem:[%s1 + $0xa4] sm:$0xf]
        %v686 = vld [vmem:[%s1 + $0xa8] sm:$0xff]
        %v687 = vld [vmem:[%s1 + $0xb0] sm:$0xf]
        %v688 = vld [vmem:[%s1 + $0xb4] sm:$0xff]
        %v689 = vld [vmem:[%s1 + $0xbc] sm:$0xf]
        %v690 = vld [vmem:[%s1 + $0xc0] sm:$0xff]
        %v691 = vld [vmem:[%s1 + $0xc8] sm:$0xf]
        %v692 = vld [vmem:[%s1 + $0xcc] sm:$0xff]
        %v693 = vld [vmem:[%s1 + $0xd4] sm:$0xf]
        %v694 = vld [vmem:[%s1 + $0xd8] sm:$0xff]
        %v695 = vld [vmem:[%s1 + $0xe0] sm:$0xf]
        %v696 = vld [vmem:[%s1 + $0xe4] sm:$0xff]
        %v697 = vld [vmem:[%s1 + $0xec] sm:$0xf]
        %v698 = vld [vmem:[%s1 + $0xf0] sm:$0xff]
        %v699 = vld [vmem:[%s1 + $0xf8] sm:$0xf]
        %v700 = vld [vmem:[%s1 + $0xfc] sm:$0xff]
        %v701 = vld [vmem:[%s1 + $0x104] sm:$0xf]
        %v702 = vld [vmem:[%s1 + $0x108] sm:$0xff]
        %v703 = vld [vmem:[%s1 + $0x110] sm:$0xf]
        %v704 = vld [vmem:[%s1 + $0x114] sm:$0xff]
        %v705 = vld [vmem:[%s1 + $0x11c] sm:$0xf]
        %v706 = vld [vmem:[%s1 + $0x120] sm:$0xff]
        %v707 = vld [vmem:[%s1 + $0x128] sm:$0xf]
        %v708 = vld [vmem:[%s1 + $0x12c] sm:$0xff]
        %v709 = vld [vmem:[%s1 + $0x134] sm:$0xf]
        %v710 = vld [vmem:[%s1 + $0x138] sm:$0xff]
        %v711 = vld [vmem:[%s1 + $0x140] sm:$0xf]
        %v712 = vld [vmem:[%s1 + $0x144] sm:$0xff]
        %v713 = vld [vmem:[%s1 + $0x14c] sm:$0xf]
        %v714 = vld [vmem:[%s1 + $0x150] sm:$0xff]
        %v715 = vld [vmem:[%s1 + $0x158] sm:$0xf]
        %v716 = vld [vmem:[%s1 + $0x15c] sm:$0xff]
        %v717 = vld [vmem:[%s1 + $0x164] sm:$0xf]
        %v718 = vld [vmem:[%s1 + $0x168] sm:$0xff]
        %v719 = vld [vmem:[%s1 + $0x170] sm:$0xf]
        %v720 = vld [vmem:[%s1 + $0x174] sm:$0xff]
        %v721 = vld [vmem:[%s1 + $0x17c] sm:$0xf]
        %v722 = vld [vmem:[%s1 + $0x180] sm:$0xff]
        %v723 = vld [vmem:[%s1 + $0x188] sm:$0xf]
        %v724 = vld [vmem:[%s1 + $0x18c] sm:$0xff]
        %v725 = vld [vmem:[%s1 + $0x194] sm:$0xf]
        %v726 = vld [vmem:[%s1 + $0x198] sm:$0xff]
        %v727 = vld [vmem:[%s1 + $0x1a0] sm:$0xf]
        %v728 = vld [vmem:[%s1 + $0x1a4] sm:$0xff]
        %v729 = vld [vmem:[%s1 + $0x1ac] sm:$0xf]
        %v730 = vld [vmem:[%s1 + $0x1b0] sm:$0xff]
        %v731 = vld [vmem:[%s1 + $0x1b8] sm:$0xf]
        %v732 = vld [vmem:[%s1 + $0x1bc] sm:$0xff]
        %v733 = vld [vmem:[%s1 + $0x1c4] sm:$0xf]
        %v734 = vld [vmem:[%s1 + $0x1c8] sm:$0xff]
        %v735 = vld [vmem:[%s1 + $0x1d0] sm:$0xf]
        %v736 = vld [vmem:[%s1 + $0x1d4] sm:$0xff]
        %v737 = vld [vmem:[%s1 + $0x1dc] sm:$0xf]
        %v738 = vld [vmem:[%s1 + $0x1e0] sm:$0xff]
        %v739 = vld [vmem:[%s1 + $0x1e8] sm:$0xf]
        %v740 = vld [vmem:[%s1 + $0x1ec] sm:$0xff]
        %v741 = vld [vmem:[%s1 + $0x1f4] sm:$0xf]
        %v742 = vld [vmem:[%s1 + $0x1f8] sm:$0xff]
        %v743 = vld [vmem:[%s1 + $0x200] sm:$0xf]
        %v744 = vld [vmem:[%s1 + $0x204] sm:$0xff]
        %v745 = vld [vmem:[%s1 + $0x20c] sm:$0xf]
        %v746 = vld [vmem:[%s1 + $0x210] sm:$0xff]
        %v747 = vld [vmem:[%s1 + $0x218] sm:$0xf]
        %v748 = vld [vmem:[%s1 + $0x21c] sm:$0xff]
        %v749 = vld [vmem:[%s1 + $0x224] sm:$0xf]
        %v750 = vld [vmem:[%s1 + $0x228] sm:$0xff]
        %v751 = vld [vmem:[%s1 + $0x230] sm:$0xf]
        %v752 = vld [vmem:[%s1 + $0x234] sm:$0xff]
        %v753 = vld [vmem:[%s1 + $0x23c] sm:$0xf]
        %v754 = vld [vmem:[%s1 + $0x240] sm:$0xff]
        %v755 = vld [vmem:[%s1 + $0x248] sm:$0xf]
        %v756 = vld [vmem:[%s1 + $0x24c] sm:$0xff]
        %v757 = vld [vmem:[%s1 + $0x254] sm:$0xf]
        %v758 = vld [vmem:[%s1 + $0x258] sm:$0xff]
        %v759 = vld [vmem:[%s1 + $0x260] sm:$0xf]
        %v760 = vld [vmem:[%s1 + $0x264] sm:$0xff]
        %v761 = vld [vmem:[%s1 + $0x26c] sm:$0xf]
        %v762 = vld [vmem:[%s1 + $0x270] sm:$0xff]
        %v763 = vld [vmem:[%s1 + $0x278] sm:$0xf]
        %v764 = vld [vmem:[%s1 + $0x27c] sm:$0xff]
        %v765 = vld [vmem:[%s1 + $0x284] sm:$0xf]
        %v766 = vld [vmem:[%s1 + $0x288] sm:$0xff]
        %v767 = vld [vmem:[%s1 + $0x290] sm:$0xf]
        %v768 = vld [vmem:[%s1 + $0x294] sm:$0xff]
        %v769 = vld [vmem:[%s1 + $0x29c] sm:$0xf]
        %v770 = vld [vmem:[%s1 + $0x2a0] sm:$0xff]
        %v771 = vld [vmem:[%s1 + $0x2a8] sm:$0xf]
        %v772 = vld [vmem:[%s1 + $0x2ac] sm:$0xff]
        %v773 = vld [vmem:[%s1 + $0x2b4] sm:$0xf]
        %v774 = vld [vmem:[%s1 + $0x2b8] sm:$0xff]
        %v775 = vld [vmem:[%s1 + $0x2c0] sm:$0xf]
        %v776 = vld [vmem:[%s1 + $0x2c4] sm:$0xff]
        %v777 = vld [vmem:[%s1 + $0x2cc] sm:$0xf]
        %v778 = vld [vmem:[%s1 + $0x2d0] sm:$0xff]
        %v779 = vld [vmem:[%s1 + $0x2d8] sm:$0xf]
        %v780 = vld [vmem:[%s1 + $0x2dc] sm:$0xff]
        %v781 = vld [vmem:[%s1 + $0x2e4] sm:$0xf]
        %v782 = vld [vmem:[%s1 + $0x2e8] sm:$0xff]
        %v783 = vld [vmem:[%s1 + $0x2f0] sm:$0xf]
        %v784 = vld [vmem:[%s1 + $0x2f4] sm:$0xff]
        %v785 = vld [vmem:[%s1 + $0x2fc] sm:$0xf]
        %v786 = vld [vmem:[%s1 + $0x300] sm:$0xff]
        %v787 = vld [vmem:[%s1 + $0x308] sm:$0xf]
        %v788 = vld [vmem:[%s1 + $0x30c] sm:$0xff]
        %v789 = vld [vmem:[%s1 + $0x314] sm:$0xf]
        %v790 = vld [vmem:[%s1 + $0x318] sm:$0xff]
        %v791 = vld [vmem:[%s1 + $0x320] sm:$0xf]
        %v792 = vld [vmem:[%s1 + $0x324] sm:$0xff]
        %v793 = vld [vmem:[%s1 + $0x32c] sm:$0xf]
        %v794 = vld [vmem:[%s1 + $0x330] sm:$0xff]
        %v795 = vld [vmem:[%s1 + $0x338] sm:$0xf]
        %v796 = vld [vmem:[%s1 + $0x33c] sm:$0xff]
        %v797 = vld [vmem:[%s1 + $0x344] sm:$0xf]
        %v798 = vld [vmem:[%s1 + $0x348] sm:$0xff]
        %v799 = vld [vmem:[%s1 + $0x350] sm:$0xf]
        %v800 = vld [vmem:[%s1 + $0x354] sm:$0xff]
        %v801 = vld [vmem:[%s1 + $0x35c] sm:$0xf]
        %v802 = vld [vmem:[%s1 + $0x360] sm:$0xff]
        %v803 = vld [vmem:[%s1 + $0x368] sm:$0xf]
        %v804 = vld [vmem:[%s1 + $0x36c] sm:$0xff]
        %v805 = vld [vmem:[%s1 + $0x374] sm:$0xf]
        %v806 = vld [vmem:[%s1 + $0x378] sm:$0xff]
        %v807 = vld [vmem:[%s1 + $0x380] sm:$0xf]
        %v808 = vld [vmem:[%s1 + $0x384] sm:$0xff]
        %v809 = vld [vmem:[%s1 + $0x38c] sm:$0xf]
        %v810 = vld [vmem:[%s1 + $0x390] sm:$0xff]
        %v811 = vld [vmem:[%s1 + $0x398] sm:$0xf]
        %v812 = vld [vmem:[%s1 + $0x39c] sm:$0xff]
        %v813 = vld [vmem:[%s1 + $0x3a4] sm:$0xf]
        %v814 = vld [vmem:[%s1 + $0x3a8] sm:$0xff]
        %v815 = vld [vmem:[%s1 + $0x3b0] sm:$0xf]
        %v816 = vld [vmem:[%s1 + $0x3b4] sm:$0xff]
        %v817 = vld [vmem:[%s1 + $0x3bc] sm:$0xf]
        %v818 = vld [vmem:[%s1 + $0x3c0] sm:$0xff]
        %v819 = vld [vmem:[%s1 + $0x3c8] sm:$0xf]
        %v820 = vld [vmem:[%s1 + $0x3cc] sm:$0xff]
        %v821 = vld [vmem:[%s1 + $0x3d4] sm:$0xf]
        %v822 = vld [vmem:[%s1 + $0x3d8] sm:$0xff]
        %v823 = vld [vmem:[%s1 + $0x3e0] sm:$0xf]
        %v824 = vld [vmem:[%s1 + $0x3e4] sm:$0xff]
        %v825 = vld [vmem:[%s1 + $0x3ec] sm:$0xf]
        %v826 = vld [vmem:[%s1 + $0x3f0] sm:$0xff]
        %v827 = vld [vmem:[%s1 + $0x3f8] sm:$0xf]
        %v828 = vld [vmem:[%s1 + $0x3fc] sm:$0xff]
        %v829 = vld [vmem:[%s1 + $0x404] sm:$0xf]
        %v830 = vld [vmem:[%s1 + $0x408] sm:$0xff]
        %v831 = vld [vmem:[%s1 + $0x410] sm:$0xf]
        %v832 = vld [vmem:[%s1 + $0x414] sm:$0xff]
        %v833 = vld [vmem:[%s1 + $0x41c] sm:$0xf]
        %v834 = vld [vmem:[%s1 + $0x420] sm:$0xff]
        %v835 = vld [vmem:[%s1 + $0x428] sm:$0xf]
        %v836 = vld [vmem:[%s1 + $0x42c] sm:$0xff]
        %v837 = vld [vmem:[%s1 + $0x434] sm:$0xf]
        %v838 = vld [vmem:[%s1 + $0x438] sm:$0xff]
        %v839 = vld [vmem:[%s1 + $0x440] sm:$0xf]
        %v840 = vld [vmem:[%s1 + $0x444] sm:$0xff]
        %v841 = vld [vmem:[%s1 + $0x44c] sm:$0xf]
        %v842 = vld [vmem:[%s1 + $0x450] sm:$0xff]
        %v843 = vld [vmem:[%s1 + $0x458] sm:$0xf]
        %v844 = vld [vmem:[%s1 + $0x45c] sm:$0xff]
        %v845 = vld [vmem:[%s1 + $0x464] sm:$0xf]
        %v846 = vld [vmem:[%s1 + $0x468] sm:$0xff]
        %v847 = vld [vmem:[%s1 + $0x470] sm:$0xf]
        %v848 = vld [vmem:[%s1 + $0x474] sm:$0xff]
        %v849 = vld [vmem:[%s1 + $0x47c] sm:$0xf]
        %v850 = vld [vmem:[%s1 + $0x480] sm:$0xff]
        %v851 = vld [vmem:[%s1 + $0x488] sm:$0xf]
        %v852 = vld [vmem:[%s1 + $0x48c] sm:$0xff]
        %v853 = vld [vmem:[%s1 + $0x494] sm:$0xf]
        %v854 = vld [vmem:[%s1 + $0x498] sm:$0xff]
        %v855 = vld [vmem:[%s1 + $0x4a0] sm:$0xf]
        %v856 = vld [vmem:[%s1 + $0x4a4] sm:$0xff]
        %v857 = vld [vmem:[%s1 + $0x4ac] sm:$0xf]
        %v858 = vld [vmem:[%s1 + $0x4b0] sm:$0xff]
        %v859 = vld [vmem:[%s1 + $0x4b8] sm:$0xf]
        %v860 = vld [vmem:[%s1 + $0x4bc] sm:$0xff]
        %v861 = vld [vmem:[%s1 + $0x4c4] sm:$0xf]
        %v862 = vld [vmem:[%s1 + $0x4c8] sm:$0xff]
        %v863 = vld [vmem:[%s1 + $0x4d0] sm:$0xf]
        %v864 = vld [vmem:[%s1 + $0x4d4] sm:$0xff]
        %v865 = vld [vmem:[%s1 + $0x4dc] sm:$0xf]
        %v866 = vld [vmem:[%s1 + $0x4e0] sm:$0xff]
        %v867 = vld [vmem:[%s1 + $0x4e8] sm:$0xf]
        %v868 = vld [vmem:[%s1 + $0x4ec] sm:$0xff]
        %v869 = vld [vmem:[%s1 + $0x4f4] sm:$0xf]
        %v870 = vld [vmem:[%s1 + $0x4f8] sm:$0xff]
        %v871 = vld [vmem:[%s1 + $0x500] sm:$0xf]
        %v872 = vld [vmem:[%s1 + $0x504] sm:$0xff]
        %v873 = vld [vmem:[%s1 + $0x50c] sm:$0xf]
        %v874 = vld [vmem:[%s1 + $0x510] sm:$0xff]
        %v875 = vld [vmem:[%s1 + $0x518] sm:$0xf]
        %v876 = vld [vmem:[%s1 + $0x51c] sm:$0xff]
        %v877 = vld [vmem:[%s1 + $0x524] sm:$0xf]
        %v878 = vld [vmem:[%s1 + $0x528] sm:$0xff]
        %v879 = vld [vmem:[%s1 + $0x530] sm:$0xf]
        %v880 = vld [vmem:[%s1 + $0x534] sm:$0xff]
        %v881 = vld [vmem:[%s1 + $0x53c] sm:$0xf]
        %v882 = vld [vmem:[%s1 + $0x540] sm:$0xff]
        %v883 = vld [vmem:[%s1 + $0x548] sm:$0xf]
        %v884 = vld [vmem:[%s1 + $0x54c] sm:$0xff]
        %v885 = vld [vmem:[%s1 + $0x554] sm:$0xf]
        %v886 = vld [vmem:[%s1 + $0x558] sm:$0xff]
        %v887 = vld [vmem:[%s1 + $0x560] sm:$0xf]
        %v888 = vld [vmem:[%s1 + $0x564] sm:$0xff]
        %v889 = vld [vmem:[%s1 + $0x56c] sm:$0xf]
        %v890 = vld [vmem:[%s1 + $0x570] sm:$0xff]
        %v891 = vld [vmem:[%s1 + $0x578] sm:$0xf]
        %v892 = vld [vmem:[%s1 + $0x57c] sm:$0xff]
        %v893 = vld [vmem:[%s1 + $0x584] sm:$0xf]
        %v894 = vld [vmem:[%s1 + $0x588] sm:$0xff]
        %v895 = vld [vmem:[%s1 + $0x590] sm:$0xf]
        %v896 = vld [vmem:[%s1 + $0x594] sm:$0xff]
        %v897 = vld [vmem:[%s1 + $0x59c] sm:$0xf]
        %v898 = vld [vmem:[%s2] sm:$0x7]
        %v900 = vperm.slane %v898, 0
        %v901 = vperm.slane %v898, 1
        %v902 = vperm.slane %v898, 2
        %v938 = vunpack.c.l.b16 %v626
        %v939 = vunpack.c.h.b16 %v626
        %v940 = vunpack.c.l.b16 %v627
        %v941 = vunpack.c.h.b16 %v627
        %v942 = vunpack.c.l.b16 %v628
        %v943 = vunpack.c.h.b16 %v628
        %v944 = vunpack.c.l.b16 %v629
        %v945 = vunpack.c.h.b16 %v629
        %v946 = vunpack.c.l.b16 %v630
        %v947 = vunpack.c.h.b16 %v630
        %v948 = vunpack.c.l.b16 %v631
        %v949 = vunpack.c.h.b16 %v631
        %v950 = vunpack.c.l.b16 %v632
        %v951 = vunpack.c.h.b16 %v632
        %v952 = vunpack.c.l.b16 %v633
        %v953 = vunpack.c.h.b16 %v633
        %v954 = vunpack.c.l.b16 %v634
        %v955 = vunpack.c.h.b16 %v634
        %v956 = vunpack.c.l.b16 %v635
        %v957 = vunpack.c.h.b16 %v635
        %v958 = vunpack.c.l.b16 %v636
        %v959 = vunpack.c.h.b16 %v636
        %v960 = vunpack.c.l.b16 %v637
        %v961 = vunpack.c.h.b16 %v637
        %v962 = vunpack.c.l.b16 %v638
        %v963 = vunpack.c.h.b16 %v638
        %v964 = vunpack.c.l.b16 %v639
        %v965 = vunpack.c.h.b16 %v639
        %v966 = vunpack.c.l.b16 %v640
        %v967 = vunpack.c.h.b16 %v640
        %v968 = vunpack.c.l.b16 %v641
        %v969 = vunpack.c.h.b16 %v641
        %v970 = vunpack.c.l.b16 %v642
        %v971 = vunpack.c.h.b16 %v642
        %v972 = vunpack.c.l.b16 %v643
        %v973 = vunpack.c.h.b16 %v643
        %v974 = vunpack.c.l.b16 %v644
        %v975 = vunpack.c.h.b16 %v644
        %v976 = vunpack.c.l.b16 %v645
        %v977 = vunpack.c.h.b16 %v645
        %v978 = vunpack.c.l.b16 %v646
        %v979 = vunpack.c.h.b16 %v646
        %v980 = vunpack.c.l.b16 %v647
        %v981 = vunpack.c.h.b16 %v647
        %v982 = vunpack.c.l.b16 %v648
        %v983 = vunpack.c.h.b16 %v648
        %v984 = vunpack.c.l.b16 %v649
        %v985 = vunpack.c.h.b16 %v649
        %v986 = vunpack.c.l.b16 %v650
        %v987 = vunpack.c.h.b16 %v650
        %v988 = vunpack.c.l.b16 %v651
        %v989 = vunpack.c.h.b16 %v651
        %v990 = vunpack.c.l.b16 %v652
        %v991 = vunpack.c.h.b16 %v652
        %v992 = vunpack.c.l.b16 %v653
        %v993 = vunpack.c.h.b16 %v653
        %v994 = vunpack.c.l.b16 %v654
        %v995 = vunpack.c.h.b16 %v654
        %v996 = vunpack.c.l.b16 %v655
        %v997 = vunpack.c.h.b16 %v655
        %v998 = vunpack.c.l.b16 %v656
        %v999 = vunpack.c.h.b16 %v656
        %v1000 = vunpack.c.l.b16 %v657
        %v1001 = vunpack.c.h.b16 %v657
        %v1002 = vpack.c.b16 %v946, %v938
        %v1003 = vpack.c.b16 %v947, %v939
        %v1004 = vpack.c.b16 %v948, %v940
        %v1005 = vpack.c.b16 %v949, %v941
        %v1006 = vpack.c.b16 %v950, %v942
        %v1007 = vpack.c.b16 %v951, %v943
        %v1008 = vpack.c.b16 %v952, %v944
        %v1009 = vpack.c.b16 %v953, %v945
        %v1010 = vpack.c.b16 %v962, %v954
        %v1011 = vpack.c.b16 %v963, %v955
        %v1012 = vpack.c.b16 %v964, %v956
        %v1013 = vpack.c.b16 %v965, %v957
        %v1014 = vpack.c.b16 %v966, %v958
        %v1015 = vpack.c.b16 %v967, %v959
        %v1016 = vpack.c.b16 %v968, %v960
        %v1017 = vpack.c.b16 %v969, %v961
        %v1018 = vpack.c.b16 %v978, %v970
        %v1019 = vpack.c.b16 %v979, %v971
        %v1020 = vpack.c.b16 %v980, %v972
        %v1021 = vpack.c.b16 %v981, %v973
        %v1022 = vpack.c.b16 %v982, %v974
        %v1023 = vpack.c.b16 %v983, %v975
        %v1024 = vpack.c.b16 %v984, %v976
        %v1025 = vpack.c.b16 %v985, %v977
        %v1026 = vpack.c.b16 %v994, %v986
        %v1027 = vpack.c.b16 %v995, %v987
        %v1028 = vpack.c.b16 %v996, %v988
        %v1029 = vpack.c.b16 %v997, %v989
        %v1030 = vpack.c.b16 %v998, %v990
        %v1031 = vpack.c.b16 %v999, %v991
        %v1032 = vpack.c.b16 %v1000, %v992
        %v1033 = vpack.c.b16 %v1001, %v993
        %v1302 = vunpack.c.l.b16 %v658
        %v1303 = vunpack.c.h.b16 %v658
        %v1304 = vunpack.c.l.b16 %v659
        %v1305 = vunpack.c.l.b16 %v660
        %v1306 = vunpack.c.h.b16 %v660
        %v1307 = vunpack.c.l.b16 %v661
        %v1308 = vunpack.c.l.b16 %v662
        %v1309 = vunpack.c.h.b16 %v662
        %v1310 = vunpack.c.l.b16 %v663
        %v1311 = vunpack.c.l.b16 %v664
        %v1312 = vunpack.c.h.b16 %v664
        %v1313 = vunpack.c.l.b16 %v665
        %v1314 = vunpack.c.l.b16 %v666
        %v1315 = vunpack.c.h.b16 %v666
        %v1316 = vunpack.c.l.b16 %v667
        %v1317 = vunpack.c.l.b16 %v668
        %v1318 = vunpack.c.h.b16 %v668
        %v1319 = vunpack.c.l.b16 %v669
        %v1320 = vunpack.c.l.b16 %v670
        %v1321 = vunpack.c.h.b16 %v670
        %v1322 = vunpack.c.l.b16 %v671
        %v1323 = vunpack.c.l.b16 %v672
        %v1324 = vunpack.c.h.b16 %v672
        %v1325 = vunpack.c.l.b16 %v673
        %v1326 = vunpack.c.l.b16 %v674
        %v1327 = vunpack.c.h.b16 %v674
        %v1328 = vunpack.c.l.b16 %v675
        %v1329 = vunpack.c.l.b16 %v676
        %v1330 = vunpack.c.h.b16 %v676
        %v1331 = vunpack.c.l.b16 %v677
        %v1332 = vunpack.c.l.b16 %v678
        %v1333 = vunpack.c.h.b16 %v678
        %v1334 = vunpack.c.l.b16 %v679
        %v1335 = vunpack.c.l.b16 %v680
        %v1336 = vunpack.c.h.b16 %v680
        %v1337 = vunpack.c.l.b16 %v681
        %v1338 = vunpack.c.l.b16 %v682
        %v1339 = vunpack.c.h.b16 %v682
        %v1340 = vunpack.c.l.b16 %v683
        %v1341 = vunpack.c.l.b16 %v684
        %v1342 = vunpack.c.h.b16 %v684
        %v1343 = vunpack.c.l.b16 %v685
        %v1344 = vunpack.c.l.b16 %v686
        %v1345 = vunpack.c.h.b16 %v686
        %v1346 = vunpack.c.l.b16 %v687
        %v1347 = vunpack.c.l.b16 %v688
        %v1348 = vunpack.c.h.b16 %v688
        %v1349 = vunpack.c.l.b16 %v689
        %v1350 = vunpack.c.l.b16 %v690
        %v1351 = vunpack.c.h.b16 %v690
        %v1352 = vunpack.c.l.b16 %v691
        %v1353 = vunpack.c.l.b16 %v692
        %v1354 = vunpack.c.h.b16 %v692
        %v1355 = vunpack.c.l.b16 %v693
        %v1356 = vunpack.c.l.b16 %v694
        %v1357 = vunpack.c.h.b16 %v694
        %v1358 = vunpack.c.l.b16 %v695
        %v1359 = vunpack.c.l.b16 %v696
        %v1360 = vunpack.c.h.b16 %v696
        %v1361 = vunpack.c.l.b16 %v697
        %v1362 = vunpack.c.l.b16 %v698
        %v1363 = vunpack.c.h.b16 %v698
        %v1364 = vunpack.c.l.b16 %v699
        %v1365 = vunpack.c.l.b16 %v700
        %v1366 = vunpack.c.h.b16 %v700
        %v1367 = vunpack.c.l.b16 %v701
        %v1368 = vunpack.c.l.b16 %v702
        %v1369 = vunpack.c.h.b16 %v702
        %v1370 = vunpack.c.l.b16 %v703
        %v1371 = vunpack.c.l.b16 %v704
        %v1372 = vunpack.c.h.b16 %v704
        %v1373 = vunpack.c.l.b16 %v705
        %v1374 = vunpack.c.l.b16 %v706
        %v1375 = vunpack.c.h.b16 %v706
        %v1376 = vunpack.c.l.b16 %v707
        %v1377 = vunpack.c.l.b16 %v708
        %v1378 = vunpack.c.h.b16 %v708
        %v1379 = vunpack.c.l.b16 %v709
        %v1380 = vunpack.c.l.b16 %v710
        %v1381 = vunpack.c.h.b16 %v710
        %v1382 = vunpack.c.l.b16 %v711
        %v1383 = vunpack.c.l.b16 %v712
        %v1384 = vunpack.c.h.b16 %v712
        %v1385 = vunpack.c.l.b16 %v713
        %v1386 = vunpack.c.l.b16 %v714
        %v1387 = vunpack.c.h.b16 %v714
        %v1388 = vunpack.c.l.b16 %v715
        %v1389 = vunpack.c.l.b16 %v716
        %v1390 = vunpack.c.h.b16 %v716
        %v1391 = vunpack.c.l.b16 %v717
        %v1392 = vunpack.c.l.b16 %v718
        %v1393 = vunpack.c.h.b16 %v718
        %v1394 = vunpack.c.l.b16 %v719
        %v1395 = vunpack.c.l.b16 %v720
        %v1396 = vunpack.c.h.b16 %v720
        %v1397 = vunpack.c.l.b16 %v721
        %v1398 = vunpack.c.l.b16 %v722
        %v1399 = vunpack.c.h.b16 %v722
        %v1400 = vunpack.c.l.b16 %v723
        %v1401 = vunpack.c.l.b16 %v724
        %v1402 = vunpack.c.h.b16 %v724
        %v1403 = vunpack.c.l.b16 %v725
        %v1404 = vunpack.c.l.b16 %v726
        %v1405 = vunpack.c.h.b16 %v726
        %v1406 = vunpack.c.l.b16 %v727
        %v1407 = vunpack.c.l.b16 %v728
        %v1408 = vunpack.c.h.b16 %v728
        %v1409 = vunpack.c.l.b16 %v729
        %v1410 = vunpack.c.l.b16 %v730
        %v1411 = vunpack.c.h.b16 %v730
        %v1412 = vunpack.c.l.b16 %v731
        %v1413 = vunpack.c.l.b16 %v732
        %v1414 = vunpack.c.h.b16 %v732
        %v1415 = vunpack.c.l.b16 %v733
        %v1416 = vunpack.c.l.b16 %v734
        %v1417 = vunpack.c.h.b16 %v734
        %v1418 = vunpack.c.l.b16 %v735
        %v1419 = vunpack.c.l.b16 %v736
        %v1420 = vunpack.c.h.b16 %v736
        %v1421 = vunpack.c.l.b16 %v737
        %v1422 = vunpack.c.l.b16 %v738
        %v1423 = vunpack.c.h.b16 %v738
        %v1424 = vunpack.c.l.b16 %v739
        %v1425 = vunpack.c.l.b16 %v740
        %v1426 = vunpack.c.h.b16 %v740
        %v1427 = vunpack.c.l.b16 %v741
        %v1428 = vunpack.c.l.b16 %v742
        %v1429 = vunpack.c.h.b16 %v742
        %v1430 = vunpack.c.l.b16 %v743
        %v1431 = vunpack.c.l.b16 %v744
        %v1432 = vunpack.c.h.b16 %v744
        %v1433 = vunpack.c.l.b16 %v745
        %v1434 = vunpack.c.l.b16 %v746
        %v1435 = vunpack.c.h.b16 %v746
        %v1436 = vunpack.c.l.b16 %v747
        %v1437 = vunpack.c.l.b16 %v748
        %v1438 = vunpack.c.h.b16 %v748
        %v1439 = vunpack.c.l.b16 %v749
        %v1440 = vunpack.c.l.b16 %v750
        %v1441 = vunpack.c.h.b16 %v750
        %v1442 = vunpack.c.l.b16 %v751
        %v1443 = vunpack.c.l.b16 %v752
        %v1444 = vunpack.c.h.b16 %v752
        %v1445 = vunpack.c.l.b16 %v753
        %v1446 = vunpack.c.l.b16 %v754
        %v1447 = vunpack.c.h.b16 %v754
        %v1448 = vunpack.c.l.b16 %v755
        %v1449 = vunpack.c.l.b16 %v756
        %v1450 = vunpack.c.h.b16 %v756
        %v1451 = vunpack.c.l.b16 %v757
        %v1452 = vunpack.c.l.b16 %v758
        %v1453 = vunpack.c.h.b16 %v758
        %v1454 = vunpack.c.l.b16 %v759
        %v1455 = vunpack.c.l.b16 %v760
        %v1456 = vunpack.c.h.b16 %v760
        %v1457 = vunpack.c.l.b16 %v761
        %v1458 = vunpack.c.l.b16 %v762
        %v1459 = vunpack.c.h.b16 %v762
        %v1460 = vunpack.c.l.b16 %v763
        %v1461 = vunpack.c.l.b16 %v764
        %v1462 = vunpack.c.h.b16 %v764
        %v1463 = vunpack.c.l.b16 %v765
        %v1464 = vunpack.c.l.b16 %v766
        %v1465 = vunpack.c.h.b16 %v766
        %v1466 = vunpack.c.l.b16 %v767
        %v1467 = vunpack.c.l.b16 %v768
        %v1468 = vunpack.c.h.b16 %v768
        %v1469 = vunpack.c.l.b16 %v769
        %v1470 = vunpack.c.l.b16 %v770
        %v1471 = vunpack.c.h.b16 %v770
        %v1472 = vunpack.c.l.b16 %v771
        %v1473 = vunpack.c.l.b16 %v772
        %v1474 = vunpack.c.h.b16 %v772
        %v1475 = vunpack.c.l.b16 %v773
        %v1476 = vunpack.c.l.b16 %v774
        %v1477 = vunpack.c.h.b16 %v774
        %v1478 = vunpack.c.l.b16 %v775
        %v1479 = vunpack.c.l.b16 %v776
        %v1480 = vunpack.c.h.b16 %v776
        %v1481 = vunpack.c.l.b16 %v777
        %v1482 = vunpack.c.l.b16 %v778
        %v1483 = vunpack.c.h.b16 %v778
        %v1484 = vunpack.c.l.b16 %v779
        %v1485 = vunpack.c.l.b16 %v780
        %v1486 = vunpack.c.h.b16 %v780
        %v1487 = vunpack.c.l.b16 %v781
        %v1488 = vunpack.c.l.b16 %v782
        %v1489 = vunpack.c.h.b16 %v782
        %v1490 = vunpack.c.l.b16 %v783
        %v1491 = vunpack.c.l.b16 %v784
        %v1492 = vunpack.c.h.b16 %v784
        %v1493 = vunpack.c.l.b16 %v785
        %v1494 = vunpack.c.l.b16 %v786
        %v1495 = vunpack.c.h.b16 %v786
        %v1496 = vunpack.c.l.b16 %v787
        %v1497 = vunpack.c.l.b16 %v788
        %v1498 = vunpack.c.h.b16 %v788
        %v1499 = vunpack.c.l.b16 %v789
        %v1500 = vunpack.c.l.b16 %v790
        %v1501 = vunpack.c.h.b16 %v790
        %v1502 = vunpack.c.l.b16 %v791
        %v1503 = vunpack.c.l.b16 %v792
        %v1504 = vunpack.c.h.b16 %v792
        %v1505 = vunpack.c.l.b16 %v793
        %v1506 = vunpack.c.l.b16 %v794
        %v1507 = vunpack.c.h.b16 %v794
        %v1508 = vunpack.c.l.b16 %v795
        %v1509 = vunpack.c.l.b16 %v796
        %v1510 = vunpack.c.h.b16 %v796
        %v1511 = vunpack.c.l.b16 %v797
        %v1512 = vunpack.c.l.b16 %v798
        %v1513 = vunpack.c.h.b16 %v798
        %v1514 = vunpack.c.l.b16 %v799
        %v1515 = vunpack.c.l.b16 %v800
        %v1516 = vunpack.c.h.b16 %v800
        %v1517 = vunpack.c.l.b16 %v801
        %v1518 = vunpack.c.l.b16 %v802
        %v1519 = vunpack.c.h.b16 %v802
        %v1520 = vunpack.c.l.b16 %v803
        %v1521 = vunpack.c.l.b16 %v804
        %v1522 = vunpack.c.h.b16 %v804
        %v1523 = vunpack.c.l.b16 %v805
        %v1524 = vunpack.c.l.b16 %v806
        %v1525 = vunpack.c.h.b16 %v806
        %v1526 = vunpack.c.l.b16 %v807
        %v1527 = vunpack.c.l.b16 %v808
        %v1528 = vunpack.c.h.b16 %v808
        %v1529 = vunpack.c.l.b16 %v809
        %v1530 = vunpack.c.l.b16 %v810
        %v1531 = vunpack.c.h.b16 %v810
        %v1532 = vunpack.c.l.b16 %v811
        %v1533 = vunpack.c.l.b16 %v812
        %v1534 = vunpack.c.h.b16 %v812
        %v1535 = vunpack.c.l.b16 %v813
        %v1536 = vunpack.c.l.b16 %v814
        %v1537 = vunpack.c.h.b16 %v814
        %v1538 = vunpack.c.l.b16 %v815
        %v1539 = vunpack.c.l.b16 %v816
        %v1540 = vunpack.c.h.b16 %v816
        %v1541 = vunpack.c.l.b16 %v817
        %v1542 = vunpack.c.l.b16 %v818
        %v1543 = vunpack.c.h.b16 %v818
        %v1544 = vunpack.c.l.b16 %v819
        %v1545 = vunpack.c.l.b16 %v820
        %v1546 = vunpack.c.h.b16 %v820
        %v1547 = vunpack.c.l.b16 %v821
        %v1548 = vunpack.c.l.b16 %v822
        %v1549 = vunpack.c.h.b16 %v822
        %v1550 = vunpack.c.l.b16 %v823
        %v1551 = vunpack.c.l.b16 %v824
        %v1552 = vunpack.c.h.b16 %v824
        %v1553 = vunpack.c.l.b16 %v825
        %v1554 = vunpack.c.l.b16 %v826
        %v1555 = vunpack.c.h.b16 %v826
        %v1556 = vunpack.c.l.b16 %v827
        %v1557 = vunpack.c.l.b16 %v828
        %v1558 = vunpack.c.h.b16 %v828
        %v1559 = vunpack.c.l.b16 %v829
        %v1560 = vunpack.c.l.b16 %v830
        %v1561 = vunpack.c.h.b16 %v830
        %v1562 = vunpack.c.l.b16 %v831
        %v1563 = vunpack.c.l.b16 %v832
        %v1564 = vunpack.c.h.b16 %v832
        %v1565 = vunpack.c.l.b16 %v833
        %v1566 = vunpack.c.l.b16 %v834
        %v1567 = vunpack.c.h.b16 %v834
        %v1568 = vunpack.c.l.b16 %v835
        %v1569 = vunpack.c.l.b16 %v836
        %v1570 = vunpack.c.h.b16 %v836
        %v1571 = vunpack.c.l.b16 %v837
        %v1572 = vunpack.c.l.b16 %v838
        %v1573 = vunpack.c.h.b16 %v838
        %v1574 = vunpack.c.l.b16 %v839
        %v1575 = vunpack.c.l.b16 %v840
        %v1576 = vunpack.c.h.b16 %v840
        %v1577 = vunpack.c.l.b16 %v841
        %v1578 = vunpack.c.l.b16 %v842
        %v1579 = vunpack.c.h.b16 %v842
        %v1580 = vunpack.c.l.b16 %v843
        %v1581 = vunpack.c.l.b16 %v844
        %v1582 = vunpack.c.h.b16 %v844
        %v1583 = vunpack.c.l.b16 %v845
        %v1584 = vunpack.c.l.b16 %v846
        %v1585 = vunpack.c.h.b16 %v846
        %v1586 = vunpack.c.l.b16 %v847
        %v1587 = vunpack.c.l.b16 %v848
        %v1588 = vunpack.c.h.b16 %v848
        %v1589 = vunpack.c.l.b16 %v849
        %v1590 = vunpack.c.l.b16 %v850
        %v1591 = vunpack.c.h.b16 %v850
        %v1592 = vunpack.c.l.b16 %v851
        %v1593 = vunpack.c.l.b16 %v852
        %v1594 = vunpack.c.h.b16 %v852
        %v1595 = vunpack.c.l.b16 %v853
        %v1596 = vunpack.c.l.b16 %v854
        %v1597 = vunpack.c.h.b16 %v854
        %v1598 = vunpack.c.l.b16 %v855
        %v1599 = vunpack.c.l.b16 %v856
        %v1600 = vunpack.c.h.b16 %v856
        %v1601 = vunpack.c.l.b16 %v857
        %v1602 = vunpack.c.l.b16 %v858
        %v1603 = vunpack.c.h.b16 %v858
        %v1604 = vunpack.c.l.b16 %v859
        %v1605 = vunpack.c.l.b16 %v860
        %v1606 = vunpack.c.h.b16 %v860
        %v1607 = vunpack.c.l.b16 %v861
        %v1608 = vunpack.c.l.b16 %v862
        %v1609 = vunpack.c.h.b16 %v862
        %v1610 = vunpack.c.l.b16 %v863
        %v1611 = vunpack.c.l.b16 %v864
        %v1612 = vunpack.c.h.b16 %v864
        %v1613 = vunpack.c.l.b16 %v865
        %v1614 = vunpack.c.l.b16 %v866
        %v1615 = vunpack.c.h.b16 %v866
        %v1616 = vunpack.c.l.b16 %v867
        %v1617 = vunpack.c.l.b16 %v868
        %v1618 = vunpack.c.h.b16 %v868
        %v1619 = vunpack.c.l.b16 %v869
        %v1620 = vunpack.c.l.b16 %v870
        %v1621 = vunpack.c.h.b16 %v870
        %v1622 = vunpack.c.l.b16 %v871
        %v1623 = vunpack.c.l.b16 %v872
        %v1624 = vunpack.c.h.b16 %v872
        %v1625 = vunpack.c.l.b16 %v873
        %v1626 = vunpack.c.l.b16 %v874
        %v1627 = vunpack.c.h.b16 %v874
        %v1628 = vunpack.c.l.b16 %v875
        %v1629 = vunpack.c.l.b16 %v876
        %v1630 = vunpack.c.h.b16 %v876
        %v1631 = vunpack.c.l.b16 %v877
        %v1632 = vunpack.c.l.b16 %v878
        %v1633 = vunpack.c.h.b16 %v878
        %v1634 = vunpack.c.l.b16 %v879
        %v1635 = vunpack.c.l.b16 %v880
        %v1636 = vunpack.c.h.b16 %v880
        %v1637 = vunpack.c.l.b16 %v881
        %v1638 = vunpack.c.l.b16 %v882
        %v1639 = vunpack.c.h.b16 %v882
        %v1640 = vunpack.c.l.b16 %v883
        %v1641 = vunpack.c.l.b16 %v884
        %v1642 = vunpack.c.h.b16 %v884
        %v1643 = vunpack.c.l.b16 %v885
        %v1644 = vunpack.c.l.b16 %v886
        %v1645 = vunpack.c.h.b16 %v886
        %v1646 = vunpack.c.l.b16 %v887
        %v1647 = vunpack.c.l.b16 %v888
        %v1648 = vunpack.c.h.b16 %v888
        %v1649 = vunpack.c.l.b16 %v889
        %v1650 = vunpack.c.l.b16 %v890
        %v1651 = vunpack.c.h.b16 %v890
        %v1652 = vunpack.c.l.b16 %v891
        %v1653 = vunpack.c.l.b16 %v892
        %v1654 = vunpack.c.h.b16 %v892
        %v1655 = vunpack.c.l.b16 %v893
        %v1656 = vunpack.c.l.b16 %v894
        %v1657 = vunpack.c.h.b16 %v894
        %v1658 = vunpack.c.l.b16 %v895
        %v1659 = vunpack.c.l.b16 %v896
        %v1660 = vunpack.c.h.b16 %v896
        %v1661 = vunpack.c.l.b16 %v897
        %v1662 = vpack.c.b16 %v1305, %v1302
        %v1663 = vpack.c.b16 %v1306, %v1303
        %v1664 = vpack.c.b16 %v1307, %v1304
        %v1665 = vpack.c.b16 %v1311, %v1308
        %v1666 = vpack.c.b16 %v1312, %v1309
        %v1667 = vpack.c.b16 %v1313, %v1310
        %v1668 = vpack.c.b16 %v1317, %v1314
        %v1669 = vpack.c.b16 %v1318, %v1315
        %v1670 = vpack.c.b16 %v1319, %v1316
        %v1671 = vpack.c.b16 %v1323, %v1320
        %v1672 = vpack.c.b16 %v1324, %v1321
        %v1673 = vpack.c.b16 %v1325, %v1322
        %v1674 = vpack.c.b16 %v1329, %v1326
        %v1675 = vpack.c.b16 %v1330, %v1327
        %v1676 = vpack.c.b16 %v1331, %v1328
        %v1677 = vpack.c.b16 %v1335, %v1332
        %v1678 = vpack.c.b16 %v1336, %v1333
        %v1679 = vpack.c.b16 %v1337, %v1334
        %v1680 = vpack.c.b16 %v1341, %v1338
        %v1681 = vpack.c.b16 %v1342, %v1339
        %v1682 = vpack.c.b16 %v1343, %v1340
        %v1683 = vpack.c.b16 %v1347, %v1344
        %v1684 = vpack.c.b16 %v1348, %v1345
        %v1685 = vpack.c.b16 %v1349, %v1346
        %v1686 = vpack.c.b16 %v1353, %v1350
        %v1687 = vpack.c.b16 %v1354, %v1351
        %v1688 = vpack.c.b16 %v1355, %v1352
        %v1689 = vpack.c.b16 %v1359, %v1356
        %v1690 = vpack.c.b16 %v1360, %v1357
        %v1691 = vpack.c.b16 %v1361, %v1358
        %v1692 = vpack.c.b16 %v1365, %v1362
        %v1693 = vpack.c.b16 %v1366, %v1363
        %v1694 = vpack.c.b16 %v1367, %v1364
        %v1695 = vpack.c.b16 %v1371, %v1368
        %v1696 = vpack.c.b16 %v1372, %v1369
        %v1697 = vpack.c.b16 %v1373, %v1370
        %v1698 = vpack.c.b16 %v1377, %v1374
        %v1699 = vpack.c.b16 %v1378, %v1375
        %v1700 = vpack.c.b16 %v1379, %v1376
        %v1701 = vpack.c.b16 %v1383, %v1380
        %v1702 = vpack.c.b16 %v1384, %v1381
        %v1703 = vpack.c.b16 %v1385, %v1382
        %v1704 = vpack.c.b16 %v1389, %v1386
        %v1705 = vpack.c.b16 %v1390, %v1387
        %v1706 = vpack.c.b16 %v1391, %v1388
        %v1707 = vpack.c.b16 %v1395, %v1392
        %v1708 = vpack.c.b16 %v1396, %v1393
        %v1709 = vpack.c.b16 %v1397, %v1394
        %v1710 = vpack.c.b16 %v1401, %v1398
        %v1711 = vpack.c.b16 %v1402, %v1399
        %v1712 = vpack.c.b16 %v1403, %v1400
        %v1713 = vpack.c.b16 %v1407, %v1404
        %v1714 = vpack.c.b16 %v1408, %v1405
        %v1715 = vpack.c.b16 %v1409, %v1406
        %v1716 = vpack.c.b16 %v1413, %v1410
        %v1717 = vpack.c.b16 %v1414, %v1411
        %v1718 = vpack.c.b16 %v1415, %v1412
        %v1719 = vpack.c.b16 %v1419, %v1416
        %v1720 = vpack.c.b16 %v1420, %v1417
        %v1721 = vpack.c.b16 %v1421, %v1418
        %v1722 = vpack.c.b16 %v1425, %v1422
        %v1723 = vpack.c.b16 %v1426, %v1423
        %v1724 = vpack.c.b16 %v1427, %v1424
        %v1725 = vpack.c.b16 %v1431, %v1428
        %v1726 = vpack.c.b16 %v1432, %v1429
        %v1727 = vpack.c.b16 %v1433, %v1430
        %v1728 = vpack.c.b16 %v1437, %v1434
        %v1729 = vpack.c.b16 %v1438, %v1435
        %v1730 = vpack.c.b16 %v1439, %v1436
        %v1731 = vpack.c.b16 %v1443, %v1440
        %v1732 = vpack.c.b16 %v1444, %v1441
        %v1733 = vpack.c.b16 %v1445, %v1442
        %v1734 = vpack.c.b16 %v1449, %v1446
        %v1735 = vpack.c.b16 %v1450, %v1447
        %v1736 = vpack.c.b16 %v1451, %v1448
        %v1737 = vpack.c.b16 %v1455, %v1452
        %v1738 = vpack.c.b16 %v1456, %v1453
        %v1739 = vpack.c.b16 %v1457, %v1454
        %v1740 = vpack.c.b16 %v1461, %v1458
        %v1741 = vpack.c.b16 %v1462, %v1459
        %v1742 = vpack.c.b16 %v1463, %v1460
        %v1743 = vpack.c.b16 %v1467, %v1464
        %v1744 = vpack.c.b16 %v1468, %v1465
        %v1745 = vpack.c.b16 %v1469, %v1466
        %v1746 = vpack.c.b16 %v1473, %v1470
        %v1747 = vpack.c.b16 %v1474, %v1471
        %v1748 = vpack.c.b16 %v1475, %v1472
        %v1749 = vpack.c.b16 %v1479, %v1476
        %v1750 = vpack.c.b16 %v1480, %v1477
        %v1751 = vpack.c.b16 %v1481, %v1478
        %v1752 = vpack.c.b16 %v1485, %v1482
        %v1753 = vpack.c.b16 %v1486, %v1483
        %v1754 = vpack.c.b16 %v1487, %v1484
        %v1755 = vpack.c.b16 %v1491, %v1488
        %v1756 = vpack.c.b16 %v1492, %v1489
        %v1757 = vpack.c.b16 %v1493, %v1490
        %v1758 = vpack.c.b16 %v1497, %v1494
        %v1759 = vpack.c.b16 %v1498, %v1495
        %v1760 = vpack.c.b16 %v1499, %v1496
        %v1761 = vpack.c.b16 %v1503, %v1500
        %v1762 = vpack.c.b16 %v1504, %v1501
        %v1763 = vpack.c.b16 %v1505, %v1502
        %v1764 = vpack.c.b16 %v1509, %v1506
        %v1765 = vpack.c.b16 %v1510, %v1507
        %v1766 = vpack.c.b16 %v1511, %v1508
        %v1767 = vpack.c.b16 %v1515, %v1512
        %v1768 = vpack.c.b16 %v1516, %v1513
        %v1769 = vpack.c.b16 %v1517, %v1514
        %v1770 = vpack.c.b16 %v1521, %v1518
        %v1771 = vpack.c.b16 %v1522, %v1519
        %v1772 = vpack.c.b16 %v1523, %v1520
        %v1773 = vpack.c.b16 %v1527, %v1524
        %v1774 = vpack.c.b16 %v1528, %v1525
        %v1775 = vpack.c.b16 %v1529, %v1526
        %v1776 = vpack.c.b16 %v1533, %v1530
        %v1777 = vpack.c.b16 %v1534, %v1531
        %v1778 = vpack.c.b16 %v1535, %v1532
        %v1779 = vpack.c.b16 %v1539, %v1536
        %v1780 = vpack.c.b16 %v1540, %v1537
        %v1781 = vpack.c.b16 %v1541, %v1538
        %v1782 = vpack.c.b16 %v1545, %v1542
        %v1783 = vpack.c.b16 %v1546, %v1543
        %v1784 = vpack.c.b16 %v1547, %v1544
        %v1785 = vpack.c.b16 %v1551, %v1548
        %v1786 = vpack.c.b16 %v1552, %v1549
        %v1787 = vpack.c.b16 %v1553, %v1550
        %v1788 = vpack.c.b16 %v1557, %v1554
        %v1789 = vpack.c.b16 %v1558, %v1555
        %v1790 = vpack.c.b16 %v1559, %v1556
        %v1791 = vpack.c.b16 %v1563, %v1560
        %v1792 = vpack.c.b16 %v1564, %v1561
        %v1793 = vpack.c.b16 %v1565, %v1562
        %v1794 = vpack.c.b16 %v1569, %v1566
        %v1795 = vpack.c.b16 %v1570, %v1567
        %v1796 = vpack.c.b16 %v1571, %v1568
        %v1797 = vpack.c.b16 %v1575, %v1572
        %v1798 = vpack.c.b16 %v1576, %v1573
        %v1799 = vpack.c.b16 %v1577, %v1574
        %v1800 = vpack.c.b16 %v1581, %v1578
        %v1801 = vpack.c.b16 %v1582, %v1579
        %v1802 = vpack.c.b16 %v1583, %v1580
        %v1803 = vpack.c.b16 %v1587, %v1584
        %v1804 = vpack.c.b16 %v1588, %v1585
        %v1805 = vpack.c.b16 %v1589, %v1586
        %v1806 = vpack.c.b16 %v1593, %v1590
        %v1807 = vpack.c.b16 %v1594, %v1591
        %v1808 = vpack.c.b16 %v1595, %v1592
        %v1809 = vpack.c.b16 %v1599, %v1596
        %v1810 = vpack.c.b16 %v1600, %v1597
        %v1811 = vpack.c.b16 %v1601, %v1598
        %v1812 = vpack.c.b16 %v1605, %v1602
        %v1813 = vpack.c.b16 %v1606, %v1603
        %v1814 = vpack.c.b16 %v1607, %v1604
        %v1815 = vpack.c.b16 %v1611, %v1608
        %v1816 = vpack.c.b16 %v1612, %v1609
        %v1817 = vpack.c.b16 %v1613, %v1610
        %v1818 = vpack.c.b16 %v1617, %v1614
        %v1819 = vpack.c.b16 %v1618, %v1615
        %v1820 = vpack.c.b16 %v1619, %v1616
        %v1821 = vpack.c.b16 %v1623, %v1620
        %v1822 = vpack.c.b16 %v1624, %v1621
        %v1823 = vpack.c.b16 %v1625, %v1622
        %v1824 = vpack.c.b16 %v1629, %v1626
        %v1825 = vpack.c.b16 %v1630, %v1627
        %v1826 = vpack.c.b16 %v1631, %v1628
        %v1827 = vpack.c.b16 %v1635, %v1632
        %v1828 = vpack.c.b16 %v1636, %v1633
        %v1829 = vpack.c.b16 %v1637, %v1634
        %v1830 = vpack.c.b16 %v1641, %v1638
        %v1831 = vpack.c.b16 %v1642, %v1639
        %v1832 = vpack.c.b16 %v1643, %v1640
        %v1833 = vpack.c.b16 %v1647, %v1644
        %v1834 = vpack.c.b16 %v1648, %v1645
        %v1835 = vpack.c.b16 %v1649, %v1646
        %v1836 = vpack.c.b16 %v1653, %v1650
        %v1837 = vpack.c.b16 %v1654, %v1651
        %v1838 = vpack.c.b16 %v1655, %v1652
        %v1839 = vpack.c.b16 %v1659, %v1656
        %v1840 = vpack.c.b16 %v1660, %v1657
        %v1841 = vpack.c.b16 %v1661, %v1658
        %vm2022 = vcmask 523264
        %v2024 = vsel %vm2022, %v1009, 0
        %v2027 = vsel %vm2022, %v1017, 0
        %v2030 = vsel %vm2022, %v1025, 0
        %v2033 = vsel %vm2022, %v1033, 0
        %2035 = vmatpush.bf16.msra.mxu0 %v1683
        %2036 = vmatpush.bf16.msra.mxu0 %v1680
        %2037 = vmatpush.bf16.msra.mxu0 %v1677
        %2038 = vmatpush.bf16.msra.mxu0 %v1674
        %2039 = vmatpush.bf16.msra.mxu0 %v1671
        %2040 = vmatpush.bf16.msra.mxu0 %v1668
        %2041 = vmatpush.bf16.msra.mxu0 %v1665
        %2042 = vmatpush.bf16.msra.mxu0 %v1662
        %2043 = vmatmul.bf16.gmra.mxu0 %v1002
        %v2044 = vpop.f32.mrf.mxu0
        %v2045 = vadd.f32 %v900, %v2044
        %v2046 = vpop.f32.mrf.mxu0
        %v2047 = vadd.f32 %v900, %v2046
        %2048 = vmatmul.bf16.gmra.mxu0 %v1010
        %v2049 = vpop.f32.mrf.mxu0
        %v2050 = vadd.f32 %v900, %v2049
        %v2051 = vpop.f32.mrf.mxu0
        %v2052 = vadd.f32 %v900, %v2051
        %2053 = vmatmul.bf16.gmra.mxu0 %v1018
        %v2054 = vpop.f32.mrf.mxu0
        %v2055 = vadd.f32 %v900, %v2054
        %v2056 = vpop.f32.mrf.mxu0
        %v2057 = vadd.f32 %v900, %v2056
        %2058 = vmatmul.bf16.gmra.mxu0 %v1026
        %v2059 = vpop.f32.mrf.mxu0
        %v2060 = vadd.f32 %v900, %v2059
        %v2061 = vpop.f32.mrf.mxu0
        %v2062 = vadd.f32 %v900, %v2061
        %2063 = vdwg.mxu0
        %2064 = vmatpush.bf16.msra.mxu0 %v1707
        %2065 = vmatpush.bf16.msra.mxu0 %v1704
        %2066 = vmatpush.bf16.msra.mxu0 %v1701
        %2067 = vmatpush.bf16.msra.mxu0 %v1698
        %2068 = vmatpush.bf16.msra.mxu0 %v1695
        %2069 = vmatpush.bf16.msra.mxu0 %v1692
        %2070 = vmatpush.bf16.msra.mxu0 %v1689
        %2071 = vmatpush.bf16.msra.mxu0 %v1686
        %2072 = vmatmul.bf16.gmra.mxu0 %v1003
        %v2073 = vpop.f32.mrf.mxu0
        %v2074 = vadd.f32 %v2045, %v2073
        %v2075 = vpop.f32.mrf.mxu0
        %v2076 = vadd.f32 %v2047, %v2075
        %2077 = vmatmul.bf16.gmra.mxu0 %v1011
        %v2078 = vpop.f32.mrf.mxu0
        %v2079 = vadd.f32 %v2050, %v2078
        %v2080 = vpop.f32.mrf.mxu0
        %v2081 = vadd.f32 %v2052, %v2080
        %2082 = vmatmul.bf16.gmra.mxu0 %v1019
        %v2083 = vpop.f32.mrf.mxu0
        %v2084 = vadd.f32 %v2055, %v2083
        %v2085 = vpop.f32.mrf.mxu0
        %v2086 = vadd.f32 %v2057, %v2085
        %2087 = vmatmul.bf16.gmra.mxu0 %v1027
        %v2088 = vpop.f32.mrf.mxu0
        %v2089 = vadd.f32 %v2060, %v2088
        %v2090 = vpop.f32.mrf.mxu0
        %v2091 = vadd.f32 %v2062, %v2090
        %2092 = vdwg.mxu0
        %2093 = vmatpush.bf16.msra.mxu0 %v1731
        %2094 = vmatpush.bf16.msra.mxu0 %v1728
        %2095 = vmatpush.bf16.msra.mxu0 %v1725
        %2096 = vmatpush.bf16.msra.mxu0 %v1722
        %2097 = vmatpush.bf16.msra.mxu0 %v1719
        %2098 = vmatpush.bf16.msra.mxu0 %v1716
        %2099 = vmatpush.bf16.msra.mxu0 %v1713
        %2100 = vmatpush.bf16.msra.mxu0 %v1710
        %2101 = vmatmul.bf16.gmra.mxu0 %v1004
        %v2102 = vpop.f32.mrf.mxu0
        %v2103 = vadd.f32 %v2074, %v2102
        %v2104 = vpop.f32.mrf.mxu0
        %v2105 = vadd.f32 %v2076, %v2104
        %2106 = vmatmul.bf16.gmra.mxu0 %v1012
        %v2107 = vpop.f32.mrf.mxu0
        %v2108 = vadd.f32 %v2079, %v2107
        %v2109 = vpop.f32.mrf.mxu0
        %v2110 = vadd.f32 %v2081, %v2109
        %2111 = vmatmul.bf16.gmra.mxu0 %v1020
        %v2112 = vpop.f32.mrf.mxu0
        %v2113 = vadd.f32 %v2084, %v2112
        %v2114 = vpop.f32.mrf.mxu0
        %v2115 = vadd.f32 %v2086, %v2114
        %2116 = vmatmul.bf16.gmra.mxu0 %v1028
        %v2117 = vpop.f32.mrf.mxu0
        %v2118 = vadd.f32 %v2089, %v2117
        %v2119 = vpop.f32.mrf.mxu0
        %v2120 = vadd.f32 %v2091, %v2119
        %2121 = vdwg.mxu0
        %2122 = vmatpush.bf16.msra.mxu0 %v1755
        %2123 = vmatpush.bf16.msra.mxu0 %v1752
        %2124 = vmatpush.bf16.msra.mxu0 %v1749
        %2125 = vmatpush.bf16.msra.mxu0 %v1746
        %2126 = vmatpush.bf16.msra.mxu0 %v1743
        %2127 = vmatpush.bf16.msra.mxu0 %v1740
        %2128 = vmatpush.bf16.msra.mxu0 %v1737
        %2129 = vmatpush.bf16.msra.mxu0 %v1734
        %2130 = vmatmul.bf16.gmra.mxu0 %v1005
        %v2131 = vpop.f32.mrf.mxu0
        %v2132 = vadd.f32 %v2103, %v2131
        %v2133 = vpop.f32.mrf.mxu0
        %v2134 = vadd.f32 %v2105, %v2133
        %2135 = vmatmul.bf16.gmra.mxu0 %v1013
        %v2136 = vpop.f32.mrf.mxu0
        %v2137 = vadd.f32 %v2108, %v2136
        %v2138 = vpop.f32.mrf.mxu0
        %v2139 = vadd.f32 %v2110, %v2138
        %2140 = vmatmul.bf16.gmra.mxu0 %v1021
        %v2141 = vpop.f32.mrf.mxu0
        %v2142 = vadd.f32 %v2113, %v2141
        %v2143 = vpop.f32.mrf.mxu0
        %v2144 = vadd.f32 %v2115, %v2143
        %2145 = vmatmul.bf16.gmra.mxu0 %v1029
        %v2146 = vpop.f32.mrf.mxu0
        %v2147 = vadd.f32 %v2118, %v2146
        %v2148 = vpop.f32.mrf.mxu0
        %v2149 = vadd.f32 %v2120, %v2148
        %2150 = vdwg.mxu0
        %2151 = vmatpush.bf16.msra.mxu0 %v1779
        %2152 = vmatpush.bf16.msra.mxu0 %v1776
        %2153 = vmatpush.bf16.msra.mxu0 %v1773
        %2154 = vmatpush.bf16.msra.mxu0 %v1770
        %2155 = vmatpush.bf16.msra.mxu0 %v1767
        %2156 = vmatpush.bf16.msra.mxu0 %v1764
        %2157 = vmatpush.bf16.msra.mxu0 %v1761
        %2158 = vmatpush.bf16.msra.mxu0 %v1758
        %2159 = vmatmul.bf16.gmra.mxu0 %v1006
        %v2160 = vpop.f32.mrf.mxu0
        %v2161 = vadd.f32 %v2132, %v2160
        %v2162 = vpop.f32.mrf.mxu0
        %v2163 = vadd.f32 %v2134, %v2162
        %2164 = vmatmul.bf16.gmra.mxu0 %v1014
        %v2165 = vpop.f32.mrf.mxu0
        %v2166 = vadd.f32 %v2137, %v2165
        %v2167 = vpop.f32.mrf.mxu0
        %v2168 = vadd.f32 %v2139, %v2167
        %2169 = vmatmul.bf16.gmra.mxu0 %v1022
        %v2170 = vpop.f32.mrf.mxu0
        %v2171 = vadd.f32 %v2142, %v2170
        %v2172 = vpop.f32.mrf.mxu0
        %v2173 = vadd.f32 %v2144, %v2172
        %2174 = vmatmul.bf16.gmra.mxu0 %v1030
        %v2175 = vpop.f32.mrf.mxu0
        %v2176 = vadd.f32 %v2147, %v2175
        %v2177 = vpop.f32.mrf.mxu0
        %v2178 = vadd.f32 %v2149, %v2177
        %2179 = vdwg.mxu0
        %2180 = vmatpush.bf16.msra.mxu0 %v1803
        %2181 = vmatpush.bf16.msra.mxu0 %v1800
        %2182 = vmatpush.bf16.msra.mxu0 %v1797
        %2183 = vmatpush.bf16.msra.mxu0 %v1794
        %2184 = vmatpush.bf16.msra.mxu0 %v1791
        %2185 = vmatpush.bf16.msra.mxu0 %v1788
        %2186 = vmatpush.bf16.msra.mxu0 %v1785
        %2187 = vmatpush.bf16.msra.mxu0 %v1782
        %2188 = vmatmul.bf16.gmra.mxu0 %v1007
        %v2189 = vpop.f32.mrf.mxu0
        %v2190 = vadd.f32 %v2161, %v2189
        %v2191 = vpop.f32.mrf.mxu0
        %v2192 = vadd.f32 %v2163, %v2191
        %2193 = vmatmul.bf16.gmra.mxu0 %v1015
        %v2194 = vpop.f32.mrf.mxu0
        %v2195 = vadd.f32 %v2166, %v2194
        %v2196 = vpop.f32.mrf.mxu0
        %v2197 = vadd.f32 %v2168, %v2196
        %2198 = vmatmul.bf16.gmra.mxu0 %v1023
        %v2199 = vpop.f32.mrf.mxu0
        %v2200 = vadd.f32 %v2171, %v2199
        %v2201 = vpop.f32.mrf.mxu0
        %v2202 = vadd.f32 %v2173, %v2201
        %2203 = vmatmul.bf16.gmra.mxu0 %v1031
        %v2204 = vpop.f32.mrf.mxu0
        %v2205 = vadd.f32 %v2176, %v2204
        %v2206 = vpop.f32.mrf.mxu0
        %v2207 = vadd.f32 %v2178, %v2206
        %2208 = vdwg.mxu0
        %2209 = vmatpush.bf16.msra.mxu0 %v1827
        %2210 = vmatpush.bf16.msra.mxu0 %v1824
        %2211 = vmatpush.bf16.msra.mxu0 %v1821
        %2212 = vmatpush.bf16.msra.mxu0 %v1818
        %2213 = vmatpush.bf16.msra.mxu0 %v1815
        %2214 = vmatpush.bf16.msra.mxu0 %v1812
        %2215 = vmatpush.bf16.msra.mxu0 %v1809
        %2216 = vmatpush.bf16.msra.mxu0 %v1806
        %2217 = vmatmul.bf16.gmra.mxu0 %v1008
        %v2218 = vpop.f32.mrf.mxu0
        %v2219 = vadd.f32 %v2190, %v2218
        %v2220 = vpop.f32.mrf.mxu0
        %v2221 = vadd.f32 %v2192, %v2220
        %2222 = vmatmul.bf16.gmra.mxu0 %v1016
        %v2223 = vpop.f32.mrf.mxu0
        %v2224 = vadd.f32 %v2195, %v2223
        %v2225 = vpop.f32.mrf.mxu0
        %v2226 = vadd.f32 %v2197, %v2225
        %2227 = vmatmul.bf16.gmra.mxu0 %v1024
        %v2228 = vpop.f32.mrf.mxu0
        %v2229 = vadd.f32 %v2200, %v2228
        %v2230 = vpop.f32.mrf.mxu0
        %v2231 = vadd.f32 %v2202, %v2230
        %2232 = vmatmul.bf16.gmra.mxu0 %v1032
        %v2233 = vpop.f32.mrf.mxu0
        %v2234 = vadd.f32 %v2205, %v2233
        %v2235 = vpop.f32.mrf.mxu0
        %v2236 = vadd.f32 %v2207, %v2235
        %2237 = vdwg.mxu0
        %2238 = vmatpush.bf16.msra.mxu0 0
        %2239 = vmatpush.bf16.msra.mxu0 0
        %2240 = vmatpush.bf16.msra.mxu0 0
        %2241 = vmatpush.bf16.msra.mxu0 0
        %2242 = vmatpush.bf16.msra.mxu0 %v1839
        %2243 = vmatpush.bf16.msra.mxu0 %v1836
        %2244 = vmatpush.bf16.msra.mxu0 %v1833
        %2245 = vmatpush.bf16.msra.mxu0 %v1830
        %2246 = vmatmul.bf16.gmra.mxu0 %v2024
        %v2247 = vpop.f32.mrf.mxu0
        %v2248 = vadd.f32 %v2219, %v2247
        %v2249 = vpop.f32.mrf.mxu0
        %v2250 = vadd.f32 %v2221, %v2249
        %2251 = vmatmul.bf16.gmra.mxu0 %v2027
        %v2252 = vpop.f32.mrf.mxu0
        %v2253 = vadd.f32 %v2224, %v2252
        %v2254 = vpop.f32.mrf.mxu0
        %v2255 = vadd.f32 %v2226, %v2254
        %2256 = vmatmul.bf16.gmra.mxu0 %v2030
        %v2257 = vpop.f32.mrf.mxu0
        %v2258 = vadd.f32 %v2229, %v2257
        %v2259 = vpop.f32.mrf.mxu0
        %v2260 = vadd.f32 %v2231, %v2259
        %2261 = vmatmul.bf16.gmra.mxu0 %v2033
        %v2262 = vpop.f32.mrf.mxu0
        %v2263 = vadd.f32 %v2234, %v2262
        %v2264 = vpop.f32.mrf.mxu0
        %v2265 = vadd.f32 %v2236, %v2264
        %2266 = vdwg.mxu0
        %2267 = vmatpush.bf16.msra.mxu0 %v1684
        %2268 = vmatpush.bf16.msra.mxu0 %v1681
        %2269 = vmatpush.bf16.msra.mxu0 %v1678
        %2270 = vmatpush.bf16.msra.mxu0 %v1675
        %2271 = vmatpush.bf16.msra.mxu0 %v1672
        %2272 = vmatpush.bf16.msra.mxu0 %v1669
        %2273 = vmatpush.bf16.msra.mxu0 %v1666
        %2274 = vmatpush.bf16.msra.mxu0 %v1663
        %2275 = vmatmul.bf16.gmra.mxu0 %v1002
        %v2276 = vpop.f32.mrf.mxu0
        %v2277 = vadd.f32 %v901, %v2276
        %v2278 = vpop.f32.mrf.mxu0
        %v2279 = vadd.f32 %v901, %v2278
        %2280 = vmatmul.bf16.gmra.mxu0 %v1010
        %v2281 = vpop.f32.mrf.mxu0
        %v2282 = vadd.f32 %v901, %v2281
        %v2283 = vpop.f32.mrf.mxu0
        %v2284 = vadd.f32 %v901, %v2283
        %2285 = vmatmul.bf16.gmra.mxu0 %v1018
        %v2286 = vpop.f32.mrf.mxu0
        %v2287 = vadd.f32 %v901, %v2286
        %v2288 = vpop.f32.mrf.mxu0
        %v2289 = vadd.f32 %v901, %v2288
        %2290 = vmatmul.bf16.gmra.mxu0 %v1026
        %v2291 = vpop.f32.mrf.mxu0
        %v2292 = vadd.f32 %v901, %v2291
        %v2293 = vpop.f32.mrf.mxu0
        %v2294 = vadd.f32 %v901, %v2293
        %2295 = vdwg.mxu0
        %2296 = vmatpush.bf16.msra.mxu0 %v1708
        %2297 = vmatpush.bf16.msra.mxu0 %v1705
        %2298 = vmatpush.bf16.msra.mxu0 %v1702
        %2299 = vmatpush.bf16.msra.mxu0 %v1699
        %2300 = vmatpush.bf16.msra.mxu0 %v1696
        %2301 = vmatpush.bf16.msra.mxu0 %v1693
        %2302 = vmatpush.bf16.msra.mxu0 %v1690
        %2303 = vmatpush.bf16.msra.mxu0 %v1687
        %2304 = vmatmul.bf16.gmra.mxu0 %v1003
        %v2305 = vpop.f32.mrf.mxu0
        %v2306 = vadd.f32 %v2277, %v2305
        %v2307 = vpop.f32.mrf.mxu0
        %v2308 = vadd.f32 %v2279, %v2307
        %2309 = vmatmul.bf16.gmra.mxu0 %v1011
        %v2310 = vpop.f32.mrf.mxu0
        %v2311 = vadd.f32 %v2282, %v2310
        %v2312 = vpop.f32.mrf.mxu0
        %v2313 = vadd.f32 %v2284, %v2312
        %2314 = vmatmul.bf16.gmra.mxu0 %v1019
        %v2315 = vpop.f32.mrf.mxu0
        %v2316 = vadd.f32 %v2287, %v2315
        %v2317 = vpop.f32.mrf.mxu0
        %v2318 = vadd.f32 %v2289, %v2317
        %2319 = vmatmul.bf16.gmra.mxu0 %v1027
        %v2320 = vpop.f32.mrf.mxu0
        %v2321 = vadd.f32 %v2292, %v2320
        %v2322 = vpop.f32.mrf.mxu0
        %v2323 = vadd.f32 %v2294, %v2322
        %2324 = vdwg.mxu0
        %2325 = vmatpush.bf16.msra.mxu0 %v1732
        %2326 = vmatpush.bf16.msra.mxu0 %v1729
        %2327 = vmatpush.bf16.msra.mxu0 %v1726
        %2328 = vmatpush.bf16.msra.mxu0 %v1723
        %2329 = vmatpush.bf16.msra.mxu0 %v1720
        %2330 = vmatpush.bf16.msra.mxu0 %v1717
        %2331 = vmatpush.bf16.msra.mxu0 %v1714
        %2332 = vmatpush.bf16.msra.mxu0 %v1711
        %2333 = vmatmul.bf16.gmra.mxu0 %v1004
        %v2334 = vpop.f32.mrf.mxu0
        %v2335 = vadd.f32 %v2306, %v2334
        %v2336 = vpop.f32.mrf.mxu0
        %v2337 = vadd.f32 %v2308, %v2336
        %2338 = vmatmul.bf16.gmra.mxu0 %v1012
        %v2339 = vpop.f32.mrf.mxu0
        %v2340 = vadd.f32 %v2311, %v2339
        %v2341 = vpop.f32.mrf.mxu0
        %v2342 = vadd.f32 %v2313, %v2341
        %2343 = vmatmul.bf16.gmra.mxu0 %v1020
        %v2344 = vpop.f32.mrf.mxu0
        %v2345 = vadd.f32 %v2316, %v2344
        %v2346 = vpop.f32.mrf.mxu0
        %v2347 = vadd.f32 %v2318, %v2346
        %2348 = vmatmul.bf16.gmra.mxu0 %v1028
        %v2349 = vpop.f32.mrf.mxu0
        %v2350 = vadd.f32 %v2321, %v2349
        %v2351 = vpop.f32.mrf.mxu0
        %v2352 = vadd.f32 %v2323, %v2351
        %2353 = vdwg.mxu0
        %2354 = vmatpush.bf16.msra.mxu0 %v1756
        %2355 = vmatpush.bf16.msra.mxu0 %v1753
        %2356 = vmatpush.bf16.msra.mxu0 %v1750
        %2357 = vmatpush.bf16.msra.mxu0 %v1747
        %2358 = vmatpush.bf16.msra.mxu0 %v1744
        %2359 = vmatpush.bf16.msra.mxu0 %v1741
        %2360 = vmatpush.bf16.msra.mxu0 %v1738
        %2361 = vmatpush.bf16.msra.mxu0 %v1735
        %2362 = vmatmul.bf16.gmra.mxu0 %v1005
        %v2363 = vpop.f32.mrf.mxu0
        %v2364 = vadd.f32 %v2335, %v2363
        %v2365 = vpop.f32.mrf.mxu0
        %v2366 = vadd.f32 %v2337, %v2365
        %2367 = vmatmul.bf16.gmra.mxu0 %v1013
        %v2368 = vpop.f32.mrf.mxu0
        %v2369 = vadd.f32 %v2340, %v2368
        %v2370 = vpop.f32.mrf.mxu0
        %v2371 = vadd.f32 %v2342, %v2370
        %2372 = vmatmul.bf16.gmra.mxu0 %v1021
        %v2373 = vpop.f32.mrf.mxu0
        %v2374 = vadd.f32 %v2345, %v2373
        %v2375 = vpop.f32.mrf.mxu0
        %v2376 = vadd.f32 %v2347, %v2375
        %2377 = vmatmul.bf16.gmra.mxu0 %v1029
        %v2378 = vpop.f32.mrf.mxu0
        %v2379 = vadd.f32 %v2350, %v2378
        %v2380 = vpop.f32.mrf.mxu0
        %v2381 = vadd.f32 %v2352, %v2380
        %2382 = vdwg.mxu0
        %2383 = vmatpush.bf16.msra.mxu0 %v1780
        %2384 = vmatpush.bf16.msra.mxu0 %v1777
        %2385 = vmatpush.bf16.msra.mxu0 %v1774
        %2386 = vmatpush.bf16.msra.mxu0 %v1771
        %2387 = vmatpush.bf16.msra.mxu0 %v1768
        %2388 = vmatpush.bf16.msra.mxu0 %v1765
        %2389 = vmatpush.bf16.msra.mxu0 %v1762
        %2390 = vmatpush.bf16.msra.mxu0 %v1759
        %2391 = vmatmul.bf16.gmra.mxu0 %v1006
        %v2392 = vpop.f32.mrf.mxu0
        %v2393 = vadd.f32 %v2364, %v2392
        %v2394 = vpop.f32.mrf.mxu0
        %v2395 = vadd.f32 %v2366, %v2394
        %2396 = vmatmul.bf16.gmra.mxu0 %v1014
        %v2397 = vpop.f32.mrf.mxu0
        %v2398 = vadd.f32 %v2369, %v2397
        %v2399 = vpop.f32.mrf.mxu0
        %v2400 = vadd.f32 %v2371, %v2399
        %2401 = vmatmul.bf16.gmra.mxu0 %v1022
        %v2402 = vpop.f32.mrf.mxu0
        %v2403 = vadd.f32 %v2374, %v2402
        %v2404 = vpop.f32.mrf.mxu0
        %v2405 = vadd.f32 %v2376, %v2404
        %2406 = vmatmul.bf16.gmra.mxu0 %v1030
        %v2407 = vpop.f32.mrf.mxu0
        %v2408 = vadd.f32 %v2379, %v2407
        %v2409 = vpop.f32.mrf.mxu0
        %v2410 = vadd.f32 %v2381, %v2409
        %2411 = vdwg.mxu0
        %2412 = vmatpush.bf16.msra.mxu0 %v1804
        %2413 = vmatpush.bf16.msra.mxu0 %v1801
        %2414 = vmatpush.bf16.msra.mxu0 %v1798
        %2415 = vmatpush.bf16.msra.mxu0 %v1795
        %2416 = vmatpush.bf16.msra.mxu0 %v1792
        %2417 = vmatpush.bf16.msra.mxu0 %v1789
        %2418 = vmatpush.bf16.msra.mxu0 %v1786
        %2419 = vmatpush.bf16.msra.mxu0 %v1783
        %2420 = vmatmul.bf16.gmra.mxu0 %v1007
        %v2421 = vpop.f32.mrf.mxu0
        %v2422 = vadd.f32 %v2393, %v2421
        %v2423 = vpop.f32.mrf.mxu0
        %v2424 = vadd.f32 %v2395, %v2423
        %2425 = vmatmul.bf16.gmra.mxu0 %v1015
        %v2426 = vpop.f32.mrf.mxu0
        %v2427 = vadd.f32 %v2398, %v2426
        %v2428 = vpop.f32.mrf.mxu0
        %v2429 = vadd.f32 %v2400, %v2428
        %2430 = vmatmul.bf16.gmra.mxu0 %v1023
        %v2431 = vpop.f32.mrf.mxu0
        %v2432 = vadd.f32 %v2403, %v2431
        %v2433 = vpop.f32.mrf.mxu0
        %v2434 = vadd.f32 %v2405, %v2433
        %2435 = vmatmul.bf16.gmra.mxu0 %v1031
        %v2436 = vpop.f32.mrf.mxu0
        %v2437 = vadd.f32 %v2408, %v2436
        %v2438 = vpop.f32.mrf.mxu0
        %v2439 = vadd.f32 %v2410, %v2438
        %2440 = vdwg.mxu0
        %2441 = vmatpush.bf16.msra.mxu0 %v1828
        %2442 = vmatpush.bf16.msra.mxu0 %v1825
        %2443 = vmatpush.bf16.msra.mxu0 %v1822
        %2444 = vmatpush.bf16.msra.mxu0 %v1819
        %2445 = vmatpush.bf16.msra.mxu0 %v1816
        %2446 = vmatpush.bf16.msra.mxu0 %v1813
        %2447 = vmatpush.bf16.msra.mxu0 %v1810
        %2448 = vmatpush.bf16.msra.mxu0 %v1807
        %2449 = vmatmul.bf16.gmra.mxu0 %v1008
        %v2450 = vpop.f32.mrf.mxu0
        %v2451 = vadd.f32 %v2422, %v2450
        %v2452 = vpop.f32.mrf.mxu0
        %v2453 = vadd.f32 %v2424, %v2452
        %2454 = vmatmul.bf16.gmra.mxu0 %v1016
        %v2455 = vpop.f32.mrf.mxu0
        %v2456 = vadd.f32 %v2427, %v2455
        %v2457 = vpop.f32.mrf.mxu0
        %v2458 = vadd.f32 %v2429, %v2457
        %2459 = vmatmul.bf16.gmra.mxu0 %v1024
        %v2460 = vpop.f32.mrf.mxu0
        %v2461 = vadd.f32 %v2432, %v2460
        %v2462 = vpop.f32.mrf.mxu0
        %v2463 = vadd.f32 %v2434, %v2462
        %2464 = vmatmul.bf16.gmra.mxu0 %v1032
        %v2465 = vpop.f32.mrf.mxu0
        %v2466 = vadd.f32 %v2437, %v2465
        %v2467 = vpop.f32.mrf.mxu0
        %v2468 = vadd.f32 %v2439, %v2467
        %2469 = vdwg.mxu0
        %2470 = vmatpush.bf16.msra.mxu0 0
        %2471 = vmatpush.bf16.msra.mxu0 0
        %2472 = vmatpush.bf16.msra.mxu0 0
        %2473 = vmatpush.bf16.msra.mxu0 0
        %2474 = vmatpush.bf16.msra.mxu0 %v1840
        %2475 = vmatpush.bf16.msra.mxu0 %v1837
        %2476 = vmatpush.bf16.msra.mxu0 %v1834
        %2477 = vmatpush.bf16.msra.mxu0 %v1831
        %2478 = vmatmul.bf16.gmra.mxu0 %v2024
        %v2479 = vpop.f32.mrf.mxu0
        %v2480 = vadd.f32 %v2451, %v2479
        %v2481 = vpop.f32.mrf.mxu0
        %v2482 = vadd.f32 %v2453, %v2481
        %2483 = vmatmul.bf16.gmra.mxu0 %v2027
        %v2484 = vpop.f32.mrf.mxu0
        %v2485 = vadd.f32 %v2456, %v2484
        %v2486 = vpop.f32.mrf.mxu0
        %v2487 = vadd.f32 %v2458, %v2486
        %2488 = vmatmul.bf16.gmra.mxu0 %v2030
        %v2489 = vpop.f32.mrf.mxu0
        %v2490 = vadd.f32 %v2461, %v2489
        %v2491 = vpop.f32.mrf.mxu0
        %v2492 = vadd.f32 %v2463, %v2491
        %2493 = vmatmul.bf16.gmra.mxu0 %v2033
        %v2494 = vpop.f32.mrf.mxu0
        %v2495 = vadd.f32 %v2466, %v2494
        %v2496 = vpop.f32.mrf.mxu0
        %v2497 = vadd.f32 %v2468, %v2496
        %2498 = vdwg.mxu0
        %2499 = vmatpush.bf16.msra.mxu0 %v1685
        %2500 = vmatpush.bf16.msra.mxu0 %v1682
        %2501 = vmatpush.bf16.msra.mxu0 %v1679
        %2502 = vmatpush.bf16.msra.mxu0 %v1676
        %2503 = vmatpush.bf16.msra.mxu0 %v1673
        %2504 = vmatpush.bf16.msra.mxu0 %v1670
        %2505 = vmatpush.bf16.msra.mxu0 %v1667
        %2506 = vmatpush.bf16.msra.mxu0 %v1664
        %2507 = vmatmul.bf16.gmra.mxu0 %v1002
        %v2508 = vpop.f32.mrf.mxu0
        %v2509 = vadd.f32 %v902, %v2508
        %v2510 = vpop.f32.mrf.mxu0
        %v2511 = vadd.f32 %v902, %v2510
        %2512 = vmatmul.bf16.gmra.mxu0 %v1010
        %v2513 = vpop.f32.mrf.mxu0
        %v2514 = vadd.f32 %v902, %v2513
        %v2515 = vpop.f32.mrf.mxu0
        %v2516 = vadd.f32 %v902, %v2515
        %2517 = vmatmul.bf16.gmra.mxu0 %v1018
        %v2518 = vpop.f32.mrf.mxu0
        %v2519 = vadd.f32 %v902, %v2518
        %v2520 = vpop.f32.mrf.mxu0
        %v2521 = vadd.f32 %v902, %v2520
        %2522 = vmatmul.bf16.gmra.mxu0 %v1026
        %v2523 = vpop.f32.mrf.mxu0
        %v2524 = vadd.f32 %v902, %v2523
        %v2525 = vpop.f32.mrf.mxu0
        %v2526 = vadd.f32 %v902, %v2525
        %2527 = vdwg.mxu0
        %2528 = vmatpush.bf16.msra.mxu0 %v1709
        %2529 = vmatpush.bf16.msra.mxu0 %v1706
        %2530 = vmatpush.bf16.msra.mxu0 %v1703
        %2531 = vmatpush.bf16.msra.mxu0 %v1700
        %2532 = vmatpush.bf16.msra.mxu0 %v1697
        %2533 = vmatpush.bf16.msra.mxu0 %v1694
        %2534 = vmatpush.bf16.msra.mxu0 %v1691
        %2535 = vmatpush.bf16.msra.mxu0 %v1688
        %2536 = vmatmul.bf16.gmra.mxu0 %v1003
        %v2537 = vpop.f32.mrf.mxu0
        %v2538 = vadd.f32 %v2509, %v2537
        %v2539 = vpop.f32.mrf.mxu0
        %v2540 = vadd.f32 %v2511, %v2539
        %2541 = vmatmul.bf16.gmra.mxu0 %v1011
        %v2542 = vpop.f32.mrf.mxu0
        %v2543 = vadd.f32 %v2514, %v2542
        %v2544 = vpop.f32.mrf.mxu0
        %v2545 = vadd.f32 %v2516, %v2544
        %2546 = vmatmul.bf16.gmra.mxu0 %v1019
        %v2547 = vpop.f32.mrf.mxu0
        %v2548 = vadd.f32 %v2519, %v2547
        %v2549 = vpop.f32.mrf.mxu0
        %v2550 = vadd.f32 %v2521, %v2549
        %2551 = vmatmul.bf16.gmra.mxu0 %v1027
        %v2552 = vpop.f32.mrf.mxu0
        %v2553 = vadd.f32 %v2524, %v2552
        %v2554 = vpop.f32.mrf.mxu0
        %v2555 = vadd.f32 %v2526, %v2554
        %2556 = vdwg.mxu0
        %2557 = vmatpush.bf16.msra.mxu0 %v1733
        %2558 = vmatpush.bf16.msra.mxu0 %v1730
        %2559 = vmatpush.bf16.msra.mxu0 %v1727
        %2560 = vmatpush.bf16.msra.mxu0 %v1724
        %2561 = vmatpush.bf16.msra.mxu0 %v1721
        %2562 = vmatpush.bf16.msra.mxu0 %v1718
        %2563 = vmatpush.bf16.msra.mxu0 %v1715
        %2564 = vmatpush.bf16.msra.mxu0 %v1712
        %2565 = vmatmul.bf16.gmra.mxu0 %v1004
        %v2566 = vpop.f32.mrf.mxu0
        %v2567 = vadd.f32 %v2538, %v2566
        %v2568 = vpop.f32.mrf.mxu0
        %v2569 = vadd.f32 %v2540, %v2568
        %2570 = vmatmul.bf16.gmra.mxu0 %v1012
        %v2571 = vpop.f32.mrf.mxu0
        %v2572 = vadd.f32 %v2543, %v2571
        %v2573 = vpop.f32.mrf.mxu0
        %v2574 = vadd.f32 %v2545, %v2573
        %2575 = vmatmul.bf16.gmra.mxu0 %v1020
        %v2576 = vpop.f32.mrf.mxu0
        %v2577 = vadd.f32 %v2548, %v2576
        %v2578 = vpop.f32.mrf.mxu0
        %v2579 = vadd.f32 %v2550, %v2578
        %2580 = vmatmul.bf16.gmra.mxu0 %v1028
        %v2581 = vpop.f32.mrf.mxu0
        %v2582 = vadd.f32 %v2553, %v2581
        %v2583 = vpop.f32.mrf.mxu0
        %v2584 = vadd.f32 %v2555, %v2583
        %2585 = vdwg.mxu0
        %2586 = vmatpush.bf16.msra.mxu0 %v1757
        %2587 = vmatpush.bf16.msra.mxu0 %v1754
        %2588 = vmatpush.bf16.msra.mxu0 %v1751
        %2589 = vmatpush.bf16.msra.mxu0 %v1748
        %2590 = vmatpush.bf16.msra.mxu0 %v1745
        %2591 = vmatpush.bf16.msra.mxu0 %v1742
        %2592 = vmatpush.bf16.msra.mxu0 %v1739
        %2593 = vmatpush.bf16.msra.mxu0 %v1736
        %2594 = vmatmul.bf16.gmra.mxu0 %v1005
        %v2595 = vpop.f32.mrf.mxu0
        %v2596 = vadd.f32 %v2567, %v2595
        %v2597 = vpop.f32.mrf.mxu0
        %v2598 = vadd.f32 %v2569, %v2597
        %2599 = vmatmul.bf16.gmra.mxu0 %v1013
        %v2600 = vpop.f32.mrf.mxu0
        %v2601 = vadd.f32 %v2572, %v2600
        %v2602 = vpop.f32.mrf.mxu0
        %v2603 = vadd.f32 %v2574, %v2602
        %2604 = vmatmul.bf16.gmra.mxu0 %v1021
        %v2605 = vpop.f32.mrf.mxu0
        %v2606 = vadd.f32 %v2577, %v2605
        %v2607 = vpop.f32.mrf.mxu0
        %v2608 = vadd.f32 %v2579, %v2607
        %2609 = vmatmul.bf16.gmra.mxu0 %v1029
        %v2610 = vpop.f32.mrf.mxu0
        %v2611 = vadd.f32 %v2582, %v2610
        %v2612 = vpop.f32.mrf.mxu0
        %v2613 = vadd.f32 %v2584, %v2612
        %2614 = vdwg.mxu0
        %2615 = vmatpush.bf16.msra.mxu0 %v1781
        %2616 = vmatpush.bf16.msra.mxu0 %v1778
        %2617 = vmatpush.bf16.msra.mxu0 %v1775
        %2618 = vmatpush.bf16.msra.mxu0 %v1772
        %2619 = vmatpush.bf16.msra.mxu0 %v1769
        %2620 = vmatpush.bf16.msra.mxu0 %v1766
        %2621 = vmatpush.bf16.msra.mxu0 %v1763
        %2622 = vmatpush.bf16.msra.mxu0 %v1760
        %2623 = vmatmul.bf16.gmra.mxu0 %v1006
        %v2624 = vpop.f32.mrf.mxu0
        %v2625 = vadd.f32 %v2596, %v2624
        %v2626 = vpop.f32.mrf.mxu0
        %v2627 = vadd.f32 %v2598, %v2626
        %2628 = vmatmul.bf16.gmra.mxu0 %v1014
        %v2629 = vpop.f32.mrf.mxu0
        %v2630 = vadd.f32 %v2601, %v2629
        %v2631 = vpop.f32.mrf.mxu0
        %v2632 = vadd.f32 %v2603, %v2631
        %2633 = vmatmul.bf16.gmra.mxu0 %v1022
        %v2634 = vpop.f32.mrf.mxu0
        %v2635 = vadd.f32 %v2606, %v2634
        %v2636 = vpop.f32.mrf.mxu0
        %v2637 = vadd.f32 %v2608, %v2636
        %2638 = vmatmul.bf16.gmra.mxu0 %v1030
        %v2639 = vpop.f32.mrf.mxu0
        %v2640 = vadd.f32 %v2611, %v2639
        %v2641 = vpop.f32.mrf.mxu0
        %v2642 = vadd.f32 %v2613, %v2641
        %2643 = vdwg.mxu0
        %2644 = vmatpush.bf16.msra.mxu0 %v1805
        %2645 = vmatpush.bf16.msra.mxu0 %v1802
        %2646 = vmatpush.bf16.msra.mxu0 %v1799
        %2647 = vmatpush.bf16.msra.mxu0 %v1796
        %2648 = vmatpush.bf16.msra.mxu0 %v1793
        %2649 = vmatpush.bf16.msra.mxu0 %v1790
        %2650 = vmatpush.bf16.msra.mxu0 %v1787
        %2651 = vmatpush.bf16.msra.mxu0 %v1784
        %2652 = vmatmul.bf16.gmra.mxu0 %v1007
        %v2653 = vpop.f32.mrf.mxu0
        %v2654 = vadd.f32 %v2625, %v2653
        %v2655 = vpop.f32.mrf.mxu0
        %v2656 = vadd.f32 %v2627, %v2655
        %2657 = vmatmul.bf16.gmra.mxu0 %v1015
        %v2658 = vpop.f32.mrf.mxu0
        %v2659 = vadd.f32 %v2630, %v2658
        %v2660 = vpop.f32.mrf.mxu0
        %v2661 = vadd.f32 %v2632, %v2660
        %2662 = vmatmul.bf16.gmra.mxu0 %v1023
        %v2663 = vpop.f32.mrf.mxu0
        %v2664 = vadd.f32 %v2635, %v2663
        %v2665 = vpop.f32.mrf.mxu0
        %v2666 = vadd.f32 %v2637, %v2665
        %2667 = vmatmul.bf16.gmra.mxu0 %v1031
        %v2668 = vpop.f32.mrf.mxu0
        %v2669 = vadd.f32 %v2640, %v2668
        %v2670 = vpop.f32.mrf.mxu0
        %v2671 = vadd.f32 %v2642, %v2670
        %2672 = vdwg.mxu0
        %2673 = vmatpush.bf16.msra.mxu0 %v1829
        %2674 = vmatpush.bf16.msra.mxu0 %v1826
        %2675 = vmatpush.bf16.msra.mxu0 %v1823
        %2676 = vmatpush.bf16.msra.mxu0 %v1820
        %2677 = vmatpush.bf16.msra.mxu0 %v1817
        %2678 = vmatpush.bf16.msra.mxu0 %v1814
        %2679 = vmatpush.bf16.msra.mxu0 %v1811
        %2680 = vmatpush.bf16.msra.mxu0 %v1808
        %2681 = vmatmul.bf16.gmra.mxu0 %v1008
        %v2682 = vpop.f32.mrf.mxu0
        %v2683 = vadd.f32 %v2654, %v2682
        %v2684 = vpop.f32.mrf.mxu0
        %v2685 = vadd.f32 %v2656, %v2684
        %2686 = vmatmul.bf16.gmra.mxu0 %v1016
        %v2687 = vpop.f32.mrf.mxu0
        %v2688 = vadd.f32 %v2659, %v2687
        %v2689 = vpop.f32.mrf.mxu0
        %v2690 = vadd.f32 %v2661, %v2689
        %2691 = vmatmul.bf16.gmra.mxu0 %v1024
        %v2692 = vpop.f32.mrf.mxu0
        %v2693 = vadd.f32 %v2664, %v2692
        %v2694 = vpop.f32.mrf.mxu0
        %v2695 = vadd.f32 %v2666, %v2694
        %2696 = vmatmul.bf16.gmra.mxu0 %v1032
        %v2697 = vpop.f32.mrf.mxu0
        %v2698 = vadd.f32 %v2669, %v2697
        %v2699 = vpop.f32.mrf.mxu0
        %v2700 = vadd.f32 %v2671, %v2699
        %2701 = vdwg.mxu0
        %2702 = vmatpush.bf16.msra.mxu0 0
        %2703 = vmatpush.bf16.msra.mxu0 0
        %2704 = vmatpush.bf16.msra.mxu0 0
        %2705 = vmatpush.bf16.msra.mxu0 0
        %2706 = vmatpush.bf16.msra.mxu0 %v1841
        %2707 = vmatpush.bf16.msra.mxu0 %v1838
        %2708 = vmatpush.bf16.msra.mxu0 %v1835
        %2709 = vmatpush.bf16.msra.mxu0 %v1832
        %2710 = vmatmul.bf16.gmra.mxu0 %v2024
        %v2711 = vpop.f32.mrf.mxu0
        %v2712 = vadd.f32 %v2683, %v2711
        %v2713 = vpop.f32.mrf.mxu0
        %v2714 = vadd.f32 %v2685, %v2713
        %2715 = vmatmul.bf16.gmra.mxu0 %v2027
        %v2716 = vpop.f32.mrf.mxu0
        %v2717 = vadd.f32 %v2688, %v2716
        %v2718 = vpop.f32.mrf.mxu0
        %v2719 = vadd.f32 %v2690, %v2718
        %2720 = vmatmul.bf16.gmra.mxu0 %v2030
        %v2721 = vpop.f32.mrf.mxu0
        %v2722 = vadd.f32 %v2693, %v2721
        %v2723 = vpop.f32.mrf.mxu0
        %v2724 = vadd.f32 %v2695, %v2723
        %2725 = vmatmul.bf16.gmra.mxu0 %v2033
        %v2726 = vpop.f32.mrf.mxu0
        %v2727 = vadd.f32 %v2698, %v2726
        %v2728 = vpop.f32.mrf.mxu0
        %v2729 = vadd.f32 %v2700, %v2728
        %2730 = vdwg.mxu0
        %2731 = vst [vmem:[#allocation2 + $0x30] sm:$0xff] %v2248
        %2732 = vst [vmem:[#allocation2 + $0x38] sm:$0xff] %v2480
        %2733 = vst [vmem:[#allocation2 + $0x40] sm:$0xff] %v2712
        %2734 = vst [vmem:[#allocation2 + $0x48] sm:$0xff] %v2250
        %2735 = vst [vmem:[#allocation2 + $0x50] sm:$0xff] %v2482
        %2736 = vst [vmem:[#allocation2 + $0x58] sm:$0xff] %v2714
        %2737 = vst [vmem:[#allocation2 + $0x60] sm:$0xff] %v2253
        %2738 = vst [vmem:[#allocation2 + $0x68] sm:$0xff] %v2485
        %2739 = vst [vmem:[#allocation2 + $0x70] sm:$0xff] %v2717
        %2740 = vst [vmem:[#allocation2 + $0x78] sm:$0xff] %v2255
        %2741 = vst [vmem:[#allocation2 + $0x80] sm:$0xff] %v2487
        %2742 = vst [vmem:[#allocation2 + $0x88] sm:$0xff] %v2719
        %2743 = vst [vmem:[#allocation2 + $0x90] sm:$0xff] %v2258
        %2744 = vst [vmem:[#allocation2 + $0x98] sm:$0xff] %v2490
        %2745 = vst [vmem:[#allocation2 + $0xa0] sm:$0xff] %v2722
        %2746 = vst [vmem:[#allocation2 + $0xa8] sm:$0xff] %v2260
        %2747 = vst [vmem:[#allocation2 + $0xb0] sm:$0xff] %v2492
        %2748 = vst [vmem:[#allocation2 + $0xb8] sm:$0xff] %v2724
        %2749 = vst [vmem:[#allocation2 + $0xc0] sm:$0xff] %v2263
        %2750 = vst [vmem:[#allocation2 + $0xc8] sm:$0xff] %v2495
        %2751 = vst [vmem:[#allocation2 + $0xd0] sm:$0xff] %v2727
        %2752 = vst [vmem:[#allocation2 + $0xd8] sm:$0xff] %v2265
        %2753 = vst [vmem:[#allocation2 + $0xe0] sm:$0xff] %v2497
        %2754 = vst [vmem:[#allocation2 + $0xe8] sm:$0xff] %v2729
        %v2755 = vld [vmem:[#allocation2] sm:$0x80]
        %v2756 = vld [vmem:[#allocation2 + $0x8] sm:$0x80]
        %v2757 = vld [vmem:[#allocation2 + $0x10] sm:$0x80]
        %v2758 = vld [vmem:[#allocation2 + $0x18] sm:$0xff]
        %v2759 = vld [vmem:[#allocation2 + $0x20] sm:$0xff]
        %v2760 = vld [vmem:[#allocation2 + $0x28] sm:$0xff]
        %v2761 = vld [vmem:[#allocation2 + $0x30] sm:$0xff]
        %v2762 = vld [vmem:[#allocation2 + $0x38] sm:$0xff]
        %v2763 = vld [vmem:[#allocation2 + $0x40] sm:$0xff]
        %v2764 = vld [vmem:[#allocation2 + $0x48] sm:$0xff]
        %v2765 = vld [vmem:[#allocation2 + $0x50] sm:$0xff]
        %v2766 = vld [vmem:[#allocation2 + $0x58] sm:$0xff]
        %v2767 = vld [vmem:[#allocation2 + $0x60] sm:$0xff]
        %v2768 = vld [vmem:[#allocation2 + $0x68] sm:$0xff]
        %v2769 = vld [vmem:[#allocation2 + $0x70] sm:$0xff]
        %v2770 = vld [vmem:[#allocation2 + $0x78] sm:$0xff]
        %v2771 = vld [vmem:[#allocation2 + $0x80] sm:$0xff]
        %v2772 = vld [vmem:[#allocation2 + $0x88] sm:$0xff]
        %v2773 = vld [vmem:[#allocation2 + $0x90] sm:$0xff]
        %v2774 = vld [vmem:[#allocation2 + $0x98] sm:$0xff]
        %v2775 = vld [vmem:[#allocation2 + $0xa0] sm:$0xff]
        %v2776 = vld [vmem:[#allocation2 + $0xa8] sm:$0xff]
        %v2777 = vld [vmem:[#allocation2 + $0xb0] sm:$0xff]
        %v2778 = vld [vmem:[#allocation2 + $0xb8] sm:$0xff]
        %v2779 = vld [vmem:[#allocation2 + $0xc0] sm:$0x7f]
        %v2780 = vld [vmem:[#allocation2 + $0xc8] sm:$0x7f]
        %v2781 = vld [vmem:[#allocation2 + $0xd0] sm:$0x7f]
        %v2782 = vpack.c.bf16 %v2758, %v2755
        %v2783 = vpack.c.bf16 %v2759, %v2756
        %v2784 = vpack.c.bf16 %v2760, %v2757
        %v2785 = vpack.c.bf16 %v2764, %v2761
        %v2786 = vpack.c.bf16 %v2765, %v2762
        %v2787 = vpack.c.bf16 %v2766, %v2763
        %v2788 = vpack.c.bf16 %v2770, %v2767
        %v2789 = vpack.c.bf16 %v2771, %v2768
        %v2790 = vpack.c.bf16 %v2772, %v2769
        %v2791 = vpack.c.bf16 %v2776, %v2773
        %v2792 = vpack.c.bf16 %v2777, %v2774
        %v2793 = vpack.c.bf16 %v2778, %v2775
        %v2794 = vpack.c.bf16 %v2779, %v2779
        %v2795 = vpack.c.bf16 %v2780, %v2780
        %v2796 = vpack.c.bf16 %v2781, %v2781
        %v2797 = vld [vmem:[%s3] sm:$0xff]
        %v2798 = vld [vmem:[%s3 + $0x8] sm:$0xff]
        %v2799 = vld [vmem:[%s3 + $0x10] sm:$0xff]
        %v2800 = vld [vmem:[%s3 + $0x18] sm:$0xff]
        %v2801 = vld [vmem:[%s3 + $0x20] sm:$0xff]
        %v2802 = vld [vmem:[%s3 + $0x28] sm:$0xff]
        %v2803 = vld [vmem:[%s3 + $0x30] sm:$0xff]
        %v2804 = vld [vmem:[%s3 + $0x38] sm:$0xff]
        %v2805 = vld [vmem:[%s3 + $0x40] sm:$0xff]
        %v2806 = vld [vmem:[%s3 + $0x48] sm:$0xff]
        %v2807 = vld [vmem:[%s3 + $0x50] sm:$0xff]
        %v2808 = vld [vmem:[%s3 + $0x58] sm:$0xff]
        %v2809 = vld [vmem:[%s3 + $0x60] sm:$0xff]
        %v2810 = vld [vmem:[%s3 + $0x68] sm:$0xff]
        %v2811 = vld [vmem:[%s3 + $0x70] sm:$0xff]
        %v2812 = vld [vmem:[%s3 + $0x78] sm:$0xff]
        %v2813 = vld [vmem:[%s3 + $0x80] sm:$0xff]
        %v2814 = vld [vmem:[%s3 + $0x88] sm:$0xff]
        %v2815 = vld [vmem:[%s3 + $0x90] sm:$0xff]
        %v2816 = vld [vmem:[%s3 + $0x98] sm:$0xff]
        %v2817 = vld [vmem:[%s3 + $0xa0] sm:$0xff]
        %v2818 = vld [vmem:[%s3 + $0xa8] sm:$0xff]
        %v2819 = vld [vmem:[%s3 + $0xb0] sm:$0xff]
        %v2820 = vld [vmem:[%s3 + $0xb8] sm:$0xff]
        %v2821 = vld [vmem:[%s3 + $0xc0] sm:$0xff]
        %v2822 = vld [vmem:[%s3 + $0xc8] sm:$0xff]
        %v2823 = vld [vmem:[%s3 + $0xd0] sm:$0xff]
        %v2824 = vld [vmem:[%s3 + $0xd8] sm:$0xff]
        %v2825 = vld [vmem:[%s3 + $0xe0] sm:$0xff]
        %v2826 = vld [vmem:[%s3 + $0xe8] sm:$0xff]
        %v2827 = vld [vmem:[%s3 + $0xf0] sm:$0xff]
        %v2828 = vld [vmem:[%s3 + $0xf8] sm:$0xff]
        %v2829 = vld [vmem:[%s3 + $0x100] sm:$0xff]
        %v2830 = vld [vmem:[%s3 + $0x108] sm:$0xff]
        %v2831 = vld [vmem:[%s3 + $0x110] sm:$0xff]
        %v2832 = vld [vmem:[%s3 + $0x118] sm:$0xff]
        %v2833 = vld [vmem:[%s3 + $0x120] sm:$0xff]
        %v2834 = vld [vmem:[%s3 + $0x128] sm:$0xff]
        %v2835 = vld [vmem:[%s3 + $0x130] sm:$0xff]
        %v2836 = vld [vmem:[%s3 + $0x138] sm:$0xff]
        %v2837 = vld [vmem:[%s3 + $0x140] sm:$0xff]
        %v2838 = vld [vmem:[%s3 + $0x148] sm:$0xff]
        %v2839 = vld [vmem:[%s3 + $0x150] sm:$0xff]
        %v2840 = vld [vmem:[%s3 + $0x158] sm:$0xff]
        %v2841 = vld [vmem:[%s3 + $0x160] sm:$0xff]
        %v2842 = vld [vmem:[%s3 + $0x168] sm:$0xff]
        %v2843 = vld [vmem:[%s3 + $0x170] sm:$0xff]
        %v2844 = vld [vmem:[%s3 + $0x178] sm:$0xff]
        %vm2845 = vsmask.f32 4352
        %v2847 = vshrl.u32 %v2782, 16
        %v2849 = vrot.slane %v2847, 3
        %v2850 = vshll.u32 %v2782, 16
        %v2852 = vrot.slane %v2850, 4
        %v2853 = vor.u32 %v2849, %v2852
        %v2855 = vshrl.u32 %v2785, 16
        %v2857 = vrot.slane %v2855, 3
        %v2858 = vshll.u32 %v2785, 16
        %v2860 = vrot.slane %v2858, 4
        %v2861 = vor.u32 %v2857, %v2860
        %v2862 = vsel %vm2845, %v2853, %v2861
        %v2864 = vshrl.u32 %v2783, 16
        %v2866 = vrot.slane %v2864, 3
        %v2867 = vshll.u32 %v2783, 16
        %v2869 = vrot.slane %v2867, 4
        %v2870 = vor.u32 %v2866, %v2869
        %v2872 = vshrl.u32 %v2786, 16
        %v2874 = vrot.slane %v2872, 3
        %v2875 = vshll.u32 %v2786, 16
        %v2877 = vrot.slane %v2875, 4
        %v2878 = vor.u32 %v2874, %v2877
        %v2879 = vsel %vm2845, %v2870, %v2878
        %v2881 = vshrl.u32 %v2784, 16
        %v2883 = vrot.slane %v2881, 3
        %v2884 = vshll.u32 %v2784, 16
        %v2886 = vrot.slane %v2884, 4
        %v2887 = vor.u32 %v2883, %v2886
        %v2889 = vshrl.u32 %v2787, 16
        %v2891 = vrot.slane %v2889, 3
        %v2892 = vshll.u32 %v2787, 16
        %v2894 = vrot.slane %v2892, 4
        %v2895 = vor.u32 %v2891, %v2894
        %v2896 = vsel %vm2845, %v2887, %v2895
        %v2898 = vshrl.u32 %v2788, 16
        %v2900 = vrot.slane %v2898, 3
        %v2901 = vshll.u32 %v2788, 16
        %v2903 = vrot.slane %v2901, 4
        %v2904 = vor.u32 %v2900, %v2903
        %v2905 = vsel %vm2845, %v2861, %v2904
        %v2907 = vshrl.u32 %v2789, 16
        %v2909 = vrot.slane %v2907, 3
        %v2910 = vshll.u32 %v2789, 16
        %v2912 = vrot.slane %v2910, 4
        %v2913 = vor.u32 %v2909, %v2912
        %v2914 = vsel %vm2845, %v2878, %v2913
        %v2916 = vshrl.u32 %v2790, 16
        %v2918 = vrot.slane %v2916, 3
        %v2919 = vshll.u32 %v2790, 16
        %v2921 = vrot.slane %v2919, 4
        %v2922 = vor.u32 %v2918, %v2921
        %v2923 = vsel %vm2845, %v2895, %v2922
        %v2925 = vshrl.u32 %v2791, 16
        %v2927 = vrot.slane %v2925, 3
        %v2928 = vshll.u32 %v2791, 16
        %v2930 = vrot.slane %v2928, 4
        %v2931 = vor.u32 %v2927, %v2930
        %v2932 = vsel %vm2845, %v2904, %v2931
        %v2934 = vshrl.u32 %v2792, 16
        %v2936 = vrot.slane %v2934, 3
        %v2937 = vshll.u32 %v2792, 16
        %v2939 = vrot.slane %v2937, 4
        %v2940 = vor.u32 %v2936, %v2939
        %v2941 = vsel %vm2845, %v2913, %v2940
        %v2943 = vshrl.u32 %v2793, 16
        %v2945 = vrot.slane %v2943, 3
        %v2946 = vshll.u32 %v2793, 16
        %v2948 = vrot.slane %v2946, 4
        %v2949 = vor.u32 %v2945, %v2948
        %v2950 = vsel %vm2845, %v2922, %v2949
        %v2952 = vshrl.u32 %v2794, 16
        %v2954 = vrot.slane %v2952, 3
        %v2955 = vshll.u32 %v2794, 16
        %v2957 = vrot.slane %v2955, 4
        %v2958 = vor.u32 %v2954, %v2957
        %v2959 = vsel %vm2845, %v2931, %v2958
        %v2961 = vshrl.u32 %v2795, 16
        %v2963 = vrot.slane %v2961, 3
        %v2964 = vshll.u32 %v2795, 16
        %v2966 = vrot.slane %v2964, 4
        %v2967 = vor.u32 %v2963, %v2966
        %v2968 = vsel %vm2845, %v2940, %v2967
        %v2970 = vshrl.u32 %v2796, 16
        %v2972 = vrot.slane %v2970, 3
        %v2973 = vshll.u32 %v2796, 16
        %v2975 = vrot.slane %v2973, 4
        %v2976 = vor.u32 %v2972, %v2975
        %v2977 = vsel %vm2845, %v2949, %v2976
        %v3038 = vunpack.c.l.b16 %v2797
        %v3039 = vunpack.c.h.b16 %v2797
        %v3040 = vunpack.c.l.b16 %v2798
        %v3041 = vunpack.c.h.b16 %v2798
        %v3042 = vunpack.c.l.b16 %v2799
        %v3043 = vunpack.c.h.b16 %v2799
        %v3044 = vunpack.c.l.b16 %v2800
        %v3045 = vunpack.c.h.b16 %v2800
        %v3046 = vunpack.c.l.b16 %v2801
        %v3047 = vunpack.c.h.b16 %v2801
        %v3048 = vunpack.c.l.b16 %v2802
        %v3049 = vunpack.c.h.b16 %v2802
        %v3050 = vunpack.c.l.b16 %v2803
        %v3051 = vunpack.c.h.b16 %v2803
        %v3052 = vunpack.c.l.b16 %v2804
        %v3053 = vunpack.c.h.b16 %v2804
        %v3054 = vunpack.c.l.b16 %v2805
        %v3055 = vunpack.c.h.b16 %v2805
        %v3056 = vunpack.c.l.b16 %v2806
        %v3057 = vunpack.c.h.b16 %v2806
        %v3058 = vunpack.c.l.b16 %v2807
        %v3059 = vunpack.c.h.b16 %v2807
        %v3060 = vunpack.c.l.b16 %v2808
        %v3061 = vunpack.c.h.b16 %v2808
        %v3062 = vunpack.c.l.b16 %v2809
        %v3063 = vunpack.c.h.b16 %v2809
        %v3064 = vunpack.c.l.b16 %v2810
        %v3065 = vunpack.c.h.b16 %v2810
        %v3066 = vunpack.c.l.b16 %v2811
        %v3067 = vunpack.c.h.b16 %v2811
        %v3068 = vunpack.c.l.b16 %v2812
        %v3069 = vunpack.c.h.b16 %v2812
        %v3070 = vunpack.c.l.b16 %v2813
        %v3071 = vunpack.c.h.b16 %v2813
        %v3072 = vunpack.c.l.b16 %v2814
        %v3073 = vunpack.c.h.b16 %v2814
        %v3074 = vunpack.c.l.b16 %v2815
        %v3075 = vunpack.c.h.b16 %v2815
        %v3076 = vunpack.c.l.b16 %v2816
        %v3077 = vunpack.c.h.b16 %v2816
        %v3078 = vunpack.c.l.b16 %v2817
        %v3079 = vunpack.c.h.b16 %v2817
        %v3080 = vunpack.c.l.b16 %v2818
        %v3081 = vunpack.c.h.b16 %v2818
        %v3082 = vunpack.c.l.b16 %v2819
        %v3083 = vunpack.c.h.b16 %v2819
        %v3084 = vunpack.c.l.b16 %v2820
        %v3085 = vunpack.c.h.b16 %v2820
        %v3086 = vunpack.c.l.b16 %v2821
        %v3087 = vunpack.c.h.b16 %v2821
        %v3088 = vunpack.c.l.b16 %v2822
        %v3089 = vunpack.c.h.b16 %v2822
        %v3090 = vunpack.c.l.b16 %v2823
        %v3091 = vunpack.c.h.b16 %v2823
        %v3092 = vunpack.c.l.b16 %v2824
        %v3093 = vunpack.c.h.b16 %v2824
        %v3094 = vunpack.c.l.b16 %v2825
        %v3095 = vunpack.c.h.b16 %v2825
        %v3096 = vunpack.c.l.b16 %v2826
        %v3097 = vunpack.c.h.b16 %v2826
        %v3098 = vunpack.c.l.b16 %v2827
        %v3099 = vunpack.c.h.b16 %v2827
        %v3100 = vunpack.c.l.b16 %v2828
        %v3101 = vunpack.c.h.b16 %v2828
        %v3102 = vunpack.c.l.b16 %v2829
        %v3103 = vunpack.c.h.b16 %v2829
        %v3104 = vunpack.c.l.b16 %v2830
        %v3105 = vunpack.c.h.b16 %v2830
        %v3106 = vunpack.c.l.b16 %v2831
        %v3107 = vunpack.c.h.b16 %v2831
        %v3108 = vunpack.c.l.b16 %v2832
        %v3109 = vunpack.c.h.b16 %v2832
        %v3110 = vunpack.c.l.b16 %v2833
        %v3111 = vunpack.c.h.b16 %v2833
        %v3112 = vunpack.c.l.b16 %v2834
        %v3113 = vunpack.c.h.b16 %v2834
        %v3114 = vunpack.c.l.b16 %v2835
        %v3115 = vunpack.c.h.b16 %v2835
        %v3116 = vunpack.c.l.b16 %v2836
        %v3117 = vunpack.c.h.b16 %v2836
        %v3118 = vunpack.c.l.b16 %v2837
        %v3119 = vunpack.c.h.b16 %v2837
        %v3120 = vunpack.c.l.b16 %v2838
        %v3121 = vunpack.c.h.b16 %v2838
        %v3122 = vunpack.c.l.b16 %v2839
        %v3123 = vunpack.c.h.b16 %v2839
        %v3124 = vunpack.c.l.b16 %v2840
        %v3125 = vunpack.c.h.b16 %v2840
        %v3126 = vunpack.c.l.b16 %v2841
        %v3127 = vunpack.c.h.b16 %v2841
        %v3128 = vunpack.c.l.b16 %v2842
        %v3129 = vunpack.c.h.b16 %v2842
        %v3130 = vunpack.c.l.b16 %v2843
        %v3131 = vunpack.c.h.b16 %v2843
        %v3132 = vunpack.c.l.b16 %v2844
        %v3133 = vunpack.c.h.b16 %v2844
        %v3134 = vpack.c.b16 %v3040, %v3038
        %v3135 = vpack.c.b16 %v3041, %v3039
        %v3136 = vpack.c.b16 %v3044, %v3042
        %v3137 = vpack.c.b16 %v3045, %v3043
        %v3138 = vpack.c.b16 %v3048, %v3046
        %v3139 = vpack.c.b16 %v3049, %v3047
        %v3140 = vpack.c.b16 %v3052, %v3050
        %v3141 = vpack.c.b16 %v3053, %v3051
        %v3142 = vpack.c.b16 %v3056, %v3054
        %v3143 = vpack.c.b16 %v3057, %v3055
        %v3144 = vpack.c.b16 %v3060, %v3058
        %v3145 = vpack.c.b16 %v3061, %v3059
        %v3146 = vpack.c.b16 %v3064, %v3062
        %v3147 = vpack.c.b16 %v3065, %v3063
        %v3148 = vpack.c.b16 %v3068, %v3066
        %v3149 = vpack.c.b16 %v3069, %v3067
        %v3150 = vpack.c.b16 %v3072, %v3070
        %v3151 = vpack.c.b16 %v3073, %v3071
        %v3152 = vpack.c.b16 %v3076, %v3074
        %v3153 = vpack.c.b16 %v3077, %v3075
        %v3154 = vpack.c.b16 %v3080, %v3078
        %v3155 = vpack.c.b16 %v3081, %v3079
        %v3156 = vpack.c.b16 %v3084, %v3082
        %v3157 = vpack.c.b16 %v3085, %v3083
        %v3158 = vpack.c.b16 %v3088, %v3086
        %v3159 = vpack.c.b16 %v3089, %v3087
        %v3160 = vpack.c.b16 %v3092, %v3090
        %v3161 = vpack.c.b16 %v3093, %v3091
        %v3162 = vpack.c.b16 %v3096, %v3094
        %v3163 = vpack.c.b16 %v3097, %v3095
        %v3164 = vpack.c.b16 %v3100, %v3098
        %v3165 = vpack.c.b16 %v3101, %v3099
        %v3166 = vpack.c.b16 %v3104, %v3102
        %v3167 = vpack.c.b16 %v3105, %v3103
        %v3168 = vpack.c.b16 %v3108, %v3106
        %v3169 = vpack.c.b16 %v3109, %v3107
        %v3170 = vpack.c.b16 %v3112, %v3110
        %v3171 = vpack.c.b16 %v3113, %v3111
        %v3172 = vpack.c.b16 %v3116, %v3114
        %v3173 = vpack.c.b16 %v3117, %v3115
        %v3174 = vpack.c.b16 %v3120, %v3118
        %v3175 = vpack.c.b16 %v3121, %v3119
        %v3176 = vpack.c.b16 %v3124, %v3122
        %v3177 = vpack.c.b16 %v3125, %v3123
        %v3178 = vpack.c.b16 %v3128, %v3126
        %v3179 = vpack.c.b16 %v3129, %v3127
        %v3180 = vpack.c.b16 %v3132, %v3130
        %v3181 = vpack.c.b16 %v3133, %v3131
        %3230 = vmatpush.bf16.msra.mxu0 %v3148
        %3231 = vmatpush.bf16.msra.mxu0 %v3146
        %3232 = vmatpush.bf16.msra.mxu0 %v3144
        %3233 = vmatpush.bf16.msra.mxu0 %v3142
        %3234 = vmatpush.bf16.msra.mxu0 %v3140
        %3235 = vmatpush.bf16.msra.mxu0 %v3138
        %3236 = vmatpush.bf16.msra.mxu0 %v3136
        %3237 = vmatpush.bf16.msra.mxu0 %v3134
        %3238 = vmatmul.bf16.gmra.mxu0 %v2862
        %v3239 = vpop.f32.mrf.mxu0
        %v3240 = vadd.f32 0.0, %v3239
        %v3241 = vpop.f32.mrf.mxu0
        %v3242 = vadd.f32 0.0, %v3241
        %3243 = vmatmul.bf16.gmra.mxu0 %v2905
        %v3244 = vpop.f32.mrf.mxu0
        %v3245 = vadd.f32 0.0, %v3244
        %v3246 = vpop.f32.mrf.mxu0
        %v3247 = vadd.f32 0.0, %v3246
        %3248 = vmatmul.bf16.gmra.mxu0 %v2932
        %v3249 = vpop.f32.mrf.mxu0
        %v3250 = vadd.f32 0.0, %v3249
        %v3251 = vpop.f32.mrf.mxu0
        %v3252 = vadd.f32 0.0, %v3251
        %3253 = vmatmul.bf16.gmra.mxu0 %v2959
        %v3254 = vpop.f32.mrf.mxu0
        %v3255 = vadd.f32 0.0, %v3254
        %v3256 = vpop.f32.mrf.mxu0
        %v3257 = vadd.f32 0.0, %v3256
        %3258 = vdwg.mxu0
        %3259 = vmatpush.bf16.msra.mxu0 %v3164
        %3260 = vmatpush.bf16.msra.mxu0 %v3162
        %3261 = vmatpush.bf16.msra.mxu0 %v3160
        %3262 = vmatpush.bf16.msra.mxu0 %v3158
        %3263 = vmatpush.bf16.msra.mxu0 %v3156
        %3264 = vmatpush.bf16.msra.mxu0 %v3154
        %3265 = vmatpush.bf16.msra.mxu0 %v3152
        %3266 = vmatpush.bf16.msra.mxu0 %v3150
        %3267 = vmatmul.bf16.gmra.mxu0 %v2879
        %v3268 = vpop.f32.mrf.mxu0
        %v3269 = vadd.f32 %v3240, %v3268
        %v3270 = vpop.f32.mrf.mxu0
        %v3271 = vadd.f32 %v3242, %v3270
        %3272 = vmatmul.bf16.gmra.mxu0 %v2914
        %v3273 = vpop.f32.mrf.mxu0
        %v3274 = vadd.f32 %v3245, %v3273
        %v3275 = vpop.f32.mrf.mxu0
        %v3276 = vadd.f32 %v3247, %v3275
        %3277 = vmatmul.bf16.gmra.mxu0 %v2941
        %v3278 = vpop.f32.mrf.mxu0
        %v3279 = vadd.f32 %v3250, %v3278
        %v3280 = vpop.f32.mrf.mxu0
        %v3281 = vadd.f32 %v3252, %v3280
        %3282 = vmatmul.bf16.gmra.mxu0 %v2968
        %v3283 = vpop.f32.mrf.mxu0
        %v3284 = vadd.f32 %v3255, %v3283
        %v3285 = vpop.f32.mrf.mxu0
        %v3286 = vadd.f32 %v3257, %v3285
        %3287 = vdwg.mxu0
        %3288 = vmatpush.bf16.msra.mxu0 %v3180
        %3289 = vmatpush.bf16.msra.mxu0 %v3178
        %3290 = vmatpush.bf16.msra.mxu0 %v3176
        %3291 = vmatpush.bf16.msra.mxu0 %v3174
        %3292 = vmatpush.bf16.msra.mxu0 %v3172
        %3293 = vmatpush.bf16.msra.mxu0 %v3170
        %3294 = vmatpush.bf16.msra.mxu0 %v3168
        %3295 = vmatpush.bf16.msra.mxu0 %v3166
        %3296 = vmatmul.bf16.gmra.mxu0 %v2896
        %v3297 = vpop.f32.mrf.mxu0
        %v3298 = vadd.f32 %v3269, %v3297
        %v3299 = vpop.f32.mrf.mxu0
        %v3300 = vadd.f32 %v3271, %v3299
        %3301 = vmatmul.bf16.gmra.mxu0 %v2923
        %v3302 = vpop.f32.mrf.mxu0
        %v3303 = vadd.f32 %v3274, %v3302
        %v3304 = vpop.f32.mrf.mxu0
        %v3305 = vadd.f32 %v3276, %v3304
        %3306 = vmatmul.bf16.gmra.mxu0 %v2950
        %v3307 = vpop.f32.mrf.mxu0
        %v3308 = vadd.f32 %v3279, %v3307
        %v3309 = vpop.f32.mrf.mxu0
        %v3310 = vadd.f32 %v3281, %v3309
        %3311 = vmatmul.bf16.gmra.mxu0 %v2977
        %v3312 = vpop.f32.mrf.mxu0
        %v3313 = vadd.f32 %v3284, %v3312
        %v3314 = vpop.f32.mrf.mxu0
        %v3315 = vadd.f32 %v3286, %v3314
        %3316 = vdwg.mxu0
        %3317 = vmatpush.bf16.msra.mxu0 %v3149
        %3318 = vmatpush.bf16.msra.mxu0 %v3147
        %3319 = vmatpush.bf16.msra.mxu0 %v3145
        %3320 = vmatpush.bf16.msra.mxu0 %v3143
        %3321 = vmatpush.bf16.msra.mxu0 %v3141
        %3322 = vmatpush.bf16.msra.mxu0 %v3139
        %3323 = vmatpush.bf16.msra.mxu0 %v3137
        %3324 = vmatpush.bf16.msra.mxu0 %v3135
        %3325 = vmatmul.bf16.gmra.mxu0 %v2862
        %v3326 = vpop.f32.mrf.mxu0
        %v3327 = vadd.f32 0.0, %v3326
        %v3328 = vpop.f32.mrf.mxu0
        %v3329 = vadd.f32 0.0, %v3328
        %3330 = vmatmul.bf16.gmra.mxu0 %v2905
        %v3331 = vpop.f32.mrf.mxu0
        %v3332 = vadd.f32 0.0, %v3331
        %v3333 = vpop.f32.mrf.mxu0
        %v3334 = vadd.f32 0.0, %v3333
        %3335 = vmatmul.bf16.gmra.mxu0 %v2932
        %v3336 = vpop.f32.mrf.mxu0
        %v3337 = vadd.f32 0.0, %v3336
        %v3338 = vpop.f32.mrf.mxu0
        %v3339 = vadd.f32 0.0, %v3338
        %3340 = vmatmul.bf16.gmra.mxu0 %v2959
        %v3341 = vpop.f32.mrf.mxu0
        %v3342 = vadd.f32 0.0, %v3341
        %v3343 = vpop.f32.mrf.mxu0
        %v3344 = vadd.f32 0.0, %v3343
        %3345 = vdwg.mxu0
        %3346 = vmatpush.bf16.msra.mxu0 %v3165
        %3347 = vmatpush.bf16.msra.mxu0 %v3163
        %3348 = vmatpush.bf16.msra.mxu0 %v3161
        %3349 = vmatpush.bf16.msra.mxu0 %v3159
        %3350 = vmatpush.bf16.msra.mxu0 %v3157
        %3351 = vmatpush.bf16.msra.mxu0 %v3155
        %3352 = vmatpush.bf16.msra.mxu0 %v3153
        %3353 = vmatpush.bf16.msra.mxu0 %v3151
        %3354 = vmatmul.bf16.gmra.mxu0 %v2879
        %v3355 = vpop.f32.mrf.mxu0
        %v3356 = vadd.f32 %v3327, %v3355
        %v3357 = vpop.f32.mrf.mxu0
        %v3358 = vadd.f32 %v3329, %v3357
        %3359 = vmatmul.bf16.gmra.mxu0 %v2914
        %v3360 = vpop.f32.mrf.mxu0
        %v3361 = vadd.f32 %v3332, %v3360
        %v3362 = vpop.f32.mrf.mxu0
        %v3363 = vadd.f32 %v3334, %v3362
        %3364 = vmatmul.bf16.gmra.mxu0 %v2941
        %v3365 = vpop.f32.mrf.mxu0
        %v3366 = vadd.f32 %v3337, %v3365
        %v3367 = vpop.f32.mrf.mxu0
        %v3368 = vadd.f32 %v3339, %v3367
        %3369 = vmatmul.bf16.gmra.mxu0 %v2968
        %v3370 = vpop.f32.mrf.mxu0
        %v3371 = vadd.f32 %v3342, %v3370
        %v3372 = vpop.f32.mrf.mxu0
        %v3373 = vadd.f32 %v3344, %v3372
        %3374 = vdwg.mxu0
        %3375 = vmatpush.bf16.msra.mxu0 %v3181
        %3376 = vmatpush.bf16.msra.mxu0 %v3179
        %3377 = vmatpush.bf16.msra.mxu0 %v3177
        %3378 = vmatpush.bf16.msra.mxu0 %v3175
        %3379 = vmatpush.bf16.msra.mxu0 %v3173
        %3380 = vmatpush.bf16.msra.mxu0 %v3171
        %3381 = vmatpush.bf16.msra.mxu0 %v3169
        %3382 = vmatpush.bf16.msra.mxu0 %v3167
        %3383 = vmatmul.bf16.gmra.mxu0 %v2896
        %v3384 = vpop.f32.mrf.mxu0
        %v3385 = vadd.f32 %v3356, %v3384
        %v3386 = vpop.f32.mrf.mxu0
        %v3387 = vadd.f32 %v3358, %v3386
        %3388 = vmatmul.bf16.gmra.mxu0 %v2923
        %v3389 = vpop.f32.mrf.mxu0
        %v3390 = vadd.f32 %v3361, %v3389
        %v3391 = vpop.f32.mrf.mxu0
        %v3392 = vadd.f32 %v3363, %v3391
        %3393 = vmatmul.bf16.gmra.mxu0 %v2950
        %v3394 = vpop.f32.mrf.mxu0
        %v3395 = vadd.f32 %v3366, %v3394
        %v3396 = vpop.f32.mrf.mxu0
        %v3397 = vadd.f32 %v3368, %v3396
        %3398 = vmatmul.bf16.gmra.mxu0 %v2977
        %v3399 = vpop.f32.mrf.mxu0
        %v3400 = vadd.f32 %v3371, %v3399
        %v3401 = vpop.f32.mrf.mxu0
        %v3402 = vadd.f32 %v3373, %v3401
        %3403 = vdwg.mxu0
        %v3404 = vsel %vm610, 1, 0
        %v3405 = vsel %vm611, 1, 0
        %v3406 = vsel %vm612, 1, 0
        %v3407 = vsel %vm613, 1, 0
        %v3408 = vsel %vm614, 1, 0
        %v3409 = vsel %vm615, 1, 0
        %v3410 = vsel %vm616, 1, 0
        %v3411 = vsel %vm617, 1, 0
        %vm3412 = vcmp.eq.s32.totalorder %v3404, 1
        %vm3413 = vcmp.eq.s32.totalorder %v3405, 1
        %vm3414 = vcmp.eq.s32.totalorder %v3406, 1
        %vm3415 = vcmp.eq.s32.totalorder %v3407, 1
        %vm3416 = vcmp.eq.s32.totalorder %v3408, 1
        %vm3417 = vcmp.eq.s32.totalorder %v3409, 1
        %vm3418 = vcmp.eq.s32.totalorder %v3410, 1
        %vm3419 = vcmp.eq.s32.totalorder %v3411, 1
        %v3420 = vsel %vm3412, %v3298, 0.0
        %v3421 = vsel %vm3412, %v3385, 0.0
        %v3422 = vsel %vm3413, %v3300, 0.0
        %v3423 = vsel %vm3413, %v3387, 0.0
        %v3424 = vsel %vm3414, %v3303, 0.0
        %v3425 = vsel %vm3414, %v3390, 0.0
        %v3426 = vsel %vm3415, %v3305, 0.0
        %v3427 = vsel %vm3415, %v3392, 0.0
        %v3428 = vsel %vm3416, %v3308, 0.0
        %v3429 = vsel %vm3416, %v3395, 0.0
        %v3430 = vsel %vm3417, %v3310, 0.0
        %v3431 = vsel %vm3417, %v3397, 0.0
        %v3432 = vsel %vm3418, %v3313, 0.0
        %v3433 = vsel %vm3418, %v3400, 0.0
        %v3434 = vsel %vm3419, %v3315, 0.0
        %v3435 = vsel %vm3419, %v3402, 0.0
        %v3436 = vld [vmem:[#allocation2 + $0xc0] sm:$0xff]
        %v3437 = vld [vmem:[#allocation2 + $0xc8] sm:$0xff]
        %v3438 = vld [vmem:[#allocation2 + $0xd0] sm:$0xff]
        %v3439 = vpack.c.bf16 %v2761, %v2758
        %v3440 = vpack.c.bf16 %v2762, %v2759
        %v3441 = vpack.c.bf16 %v2763, %v2760
        %v3442 = vpack.c.bf16 %v2767, %v2764
        %v3443 = vpack.c.bf16 %v2768, %v2765
        %v3444 = vpack.c.bf16 %v2769, %v2766
        %v3445 = vpack.c.bf16 %v2773, %v2770
        %v3446 = vpack.c.bf16 %v2774, %v2771
        %v3447 = vpack.c.bf16 %v2775, %v2772
        %v3448 = vpack.c.bf16 %v3436, %v2776
        %v3449 = vpack.c.bf16 %v3437, %v2777
        %v3450 = vpack.c.bf16 %v3438, %v2778
        %s3451 = scalar_lea.vmem %s3, 384
        %v3452 = vld [vmem:[%s3451] sm:$0xff]
        %v3453 = vld [vmem:[%s3451 + $0x8] sm:$0xff]
        %v3454 = vld [vmem:[%s3451 + $0x10] sm:$0xff]
        %v3455 = vld [vmem:[%s3451 + $0x18] sm:$0xff]
        %v3456 = vld [vmem:[%s3451 + $0x20] sm:$0xff]
        %v3457 = vld [vmem:[%s3451 + $0x28] sm:$0xff]
        %v3458 = vld [vmem:[%s3451 + $0x30] sm:$0xff]
        %v3459 = vld [vmem:[%s3451 + $0x38] sm:$0xff]
        %v3460 = vld [vmem:[%s3451 + $0x40] sm:$0xff]
        %v3461 = vld [vmem:[%s3451 + $0x48] sm:$0xff]
        %v3462 = vld [vmem:[%s3451 + $0x50] sm:$0xff]
        %v3463 = vld [vmem:[%s3451 + $0x58] sm:$0xff]
        %v3464 = vld [vmem:[%s3451 + $0x60] sm:$0xff]
        %v3465 = vld [vmem:[%s3451 + $0x68] sm:$0xff]
        %v3466 = vld [vmem:[%s3451 + $0x70] sm:$0xff]
        %v3467 = vld [vmem:[%s3451 + $0x78] sm:$0xff]
        %v3468 = vld [vmem:[%s3451 + $0x80] sm:$0xff]
        %v3469 = vld [vmem:[%s3451 + $0x88] sm:$0xff]
        %v3470 = vld [vmem:[%s3451 + $0x90] sm:$0xff]
        %v3471 = vld [vmem:[%s3451 + $0x98] sm:$0xff]
        %v3472 = vld [vmem:[%s3451 + $0xa0] sm:$0xff]
        %v3473 = vld [vmem:[%s3451 + $0xa8] sm:$0xff]
        %v3474 = vld [vmem:[%s3451 + $0xb0] sm:$0xff]
        %v3475 = vld [vmem:[%s3451 + $0xb8] sm:$0xff]
        %v3476 = vld [vmem:[%s3451 + $0xc0] sm:$0xff]
        %v3477 = vld [vmem:[%s3451 + $0xc8] sm:$0xff]
        %v3478 = vld [vmem:[%s3451 + $0xd0] sm:$0xff]
        %v3479 = vld [vmem:[%s3451 + $0xd8] sm:$0xff]
        %v3480 = vld [vmem:[%s3451 + $0xe0] sm:$0xff]
        %v3481 = vld [vmem:[%s3451 + $0xe8] sm:$0xff]
        %v3482 = vld [vmem:[%s3451 + $0xf0] sm:$0xff]
        %v3483 = vld [vmem:[%s3451 + $0xf8] sm:$0xff]
        %v3484 = vld [vmem:[%s3451 + $0x100] sm:$0xff]
        %v3485 = vld [vmem:[%s3451 + $0x108] sm:$0xff]
        %v3486 = vld [vmem:[%s3451 + $0x110] sm:$0xff]
        %v3487 = vld [vmem:[%s3451 + $0x118] sm:$0xff]
        %v3488 = vld [vmem:[%s3451 + $0x120] sm:$0xff]
        %v3489 = vld [vmem:[%s3451 + $0x128] sm:$0xff]
        %v3490 = vld [vmem:[%s3451 + $0x130] sm:$0xff]
        %v3491 = vld [vmem:[%s3451 + $0x138] sm:$0xff]
        %v3492 = vld [vmem:[%s3451 + $0x140] sm:$0xff]
        %v3493 = vld [vmem:[%s3451 + $0x148] sm:$0xff]
        %v3494 = vld [vmem:[%s3451 + $0x150] sm:$0xff]
        %v3495 = vld [vmem:[%s3451 + $0x158] sm:$0xff]
        %v3496 = vld [vmem:[%s3451 + $0x160] sm:$0xff]
        %v3497 = vld [vmem:[%s3451 + $0x168] sm:$0xff]
        %v3498 = vld [vmem:[%s3451 + $0x170] sm:$0xff]
        %v3499 = vld [vmem:[%s3451 + $0x178] sm:$0xff]
        %v3548 = vunpack.c.l.b16 %v3452
        %v3549 = vunpack.c.h.b16 %v3452
        %v3550 = vunpack.c.l.b16 %v3453
        %v3551 = vunpack.c.h.b16 %v3453
        %v3552 = vunpack.c.l.b16 %v3454
        %v3553 = vunpack.c.h.b16 %v3454
        %v3554 = vunpack.c.l.b16 %v3455
        %v3555 = vunpack.c.h.b16 %v3455
        %v3556 = vunpack.c.l.b16 %v3456
        %v3557 = vunpack.c.h.b16 %v3456
        %v3558 = vunpack.c.l.b16 %v3457
        %v3559 = vunpack.c.h.b16 %v3457
        %v3560 = vunpack.c.l.b16 %v3458
        %v3561 = vunpack.c.h.b16 %v3458
        %v3562 = vunpack.c.l.b16 %v3459
        %v3563 = vunpack.c.h.b16 %v3459
        %v3564 = vunpack.c.l.b16 %v3460
        %v3565 = vunpack.c.h.b16 %v3460
        %v3566 = vunpack.c.l.b16 %v3461
        %v3567 = vunpack.c.h.b16 %v3461
        %v3568 = vunpack.c.l.b16 %v3462
        %v3569 = vunpack.c.h.b16 %v3462
        %v3570 = vunpack.c.l.b16 %v3463
        %v3571 = vunpack.c.h.b16 %v3463
        %v3572 = vunpack.c.l.b16 %v3464
        %v3573 = vunpack.c.h.b16 %v3464
        %v3574 = vunpack.c.l.b16 %v3465
        %v3575 = vunpack.c.h.b16 %v3465
        %v3576 = vunpack.c.l.b16 %v3466
        %v3577 = vunpack.c.h.b16 %v3466
        %v3578 = vunpack.c.l.b16 %v3467
        %v3579 = vunpack.c.h.b16 %v3467
        %v3580 = vunpack.c.l.b16 %v3468
        %v3581 = vunpack.c.h.b16 %v3468
        %v3582 = vunpack.c.l.b16 %v3469
        %v3583 = vunpack.c.h.b16 %v3469
        %v3584 = vunpack.c.l.b16 %v3470
        %v3585 = vunpack.c.h.b16 %v3470
        %v3586 = vunpack.c.l.b16 %v3471
        %v3587 = vunpack.c.h.b16 %v3471
        %v3588 = vunpack.c.l.b16 %v3472
        %v3589 = vunpack.c.h.b16 %v3472
        %v3590 = vunpack.c.l.b16 %v3473
        %v3591 = vunpack.c.h.b16 %v3473
        %v3592 = vunpack.c.l.b16 %v3474
        %v3593 = vunpack.c.h.b16 %v3474
        %v3594 = vunpack.c.l.b16 %v3475
        %v3595 = vunpack.c.h.b16 %v3475
        %v3596 = vunpack.c.l.b16 %v3476
        %v3597 = vunpack.c.h.b16 %v3476
        %v3598 = vunpack.c.l.b16 %v3477
        %v3599 = vunpack.c.h.b16 %v3477
        %v3600 = vunpack.c.l.b16 %v3478
        %v3601 = vunpack.c.h.b16 %v3478
        %v3602 = vunpack.c.l.b16 %v3479
        %v3603 = vunpack.c.h.b16 %v3479
        %v3604 = vunpack.c.l.b16 %v3480
        %v3605 = vunpack.c.h.b16 %v3480
        %v3606 = vunpack.c.l.b16 %v3481
        %v3607 = vunpack.c.h.b16 %v3481
        %v3608 = vunpack.c.l.b16 %v3482
        %v3609 = vunpack.c.h.b16 %v3482
        %v3610 = vunpack.c.l.b16 %v3483
        %v3611 = vunpack.c.h.b16 %v3483
        %v3612 = vunpack.c.l.b16 %v3484
        %v3613 = vunpack.c.h.b16 %v3484
        %v3614 = vunpack.c.l.b16 %v3485
        %v3615 = vunpack.c.h.b16 %v3485
        %v3616 = vunpack.c.l.b16 %v3486
        %v3617 = vunpack.c.h.b16 %v3486
        %v3618 = vunpack.c.l.b16 %v3487
        %v3619 = vunpack.c.h.b16 %v3487
        %v3620 = vunpack.c.l.b16 %v3488
        %v3621 = vunpack.c.h.b16 %v3488
        %v3622 = vunpack.c.l.b16 %v3489
        %v3623 = vunpack.c.h.b16 %v3489
        %v3624 = vunpack.c.l.b16 %v3490
        %v3625 = vunpack.c.h.b16 %v3490
        %v3626 = vunpack.c.l.b16 %v3491
        %v3627 = vunpack.c.h.b16 %v3491
        %v3628 = vunpack.c.l.b16 %v3492
        %v3629 = vunpack.c.h.b16 %v3492
        %v3630 = vunpack.c.l.b16 %v3493
        %v3631 = vunpack.c.h.b16 %v3493
        %v3632 = vunpack.c.l.b16 %v3494
        %v3633 = vunpack.c.h.b16 %v3494
        %v3634 = vunpack.c.l.b16 %v3495
        %v3635 = vunpack.c.h.b16 %v3495
        %v3636 = vunpack.c.l.b16 %v3496
        %v3637 = vunpack.c.h.b16 %v3496
        %v3638 = vunpack.c.l.b16 %v3497
        %v3639 = vunpack.c.h.b16 %v3497
        %v3640 = vunpack.c.l.b16 %v3498
        %v3641 = vunpack.c.h.b16 %v3498
        %v3642 = vunpack.c.l.b16 %v3499
        %v3643 = vunpack.c.h.b16 %v3499
        %v3644 = vpack.c.b16 %v3550, %v3548
        %v3645 = vpack.c.b16 %v3551, %v3549
        %v3646 = vpack.c.b16 %v3554, %v3552
        %v3647 = vpack.c.b16 %v3555, %v3553
        %v3648 = vpack.c.b16 %v3558, %v3556
        %v3649 = vpack.c.b16 %v3559, %v3557
        %v3650 = vpack.c.b16 %v3562, %v3560
        %v3651 = vpack.c.b16 %v3563, %v3561
        %v3652 = vpack.c.b16 %v3566, %v3564
        %v3653 = vpack.c.b16 %v3567, %v3565
        %v3654 = vpack.c.b16 %v3570, %v3568
        %v3655 = vpack.c.b16 %v3571, %v3569
        %v3656 = vpack.c.b16 %v3574, %v3572
        %v3657 = vpack.c.b16 %v3575, %v3573
        %v3658 = vpack.c.b16 %v3578, %v3576
        %v3659 = vpack.c.b16 %v3579, %v3577
        %v3660 = vpack.c.b16 %v3582, %v3580
        %v3661 = vpack.c.b16 %v3583, %v3581
        %v3662 = vpack.c.b16 %v3586, %v3584
        %v3663 = vpack.c.b16 %v3587, %v3585
        %v3664 = vpack.c.b16 %v3590, %v3588
        %v3665 = vpack.c.b16 %v3591, %v3589
        %v3666 = vpack.c.b16 %v3594, %v3592
        %v3667 = vpack.c.b16 %v3595, %v3593
        %v3668 = vpack.c.b16 %v3598, %v3596
        %v3669 = vpack.c.b16 %v3599, %v3597
        %v3670 = vpack.c.b16 %v3602, %v3600
        %v3671 = vpack.c.b16 %v3603, %v3601
        %v3672 = vpack.c.b16 %v3606, %v3604
        %v3673 = vpack.c.b16 %v3607, %v3605
        %v3674 = vpack.c.b16 %v3610, %v3608
        %v3675 = vpack.c.b16 %v3611, %v3609
        %v3676 = vpack.c.b16 %v3614, %v3612
        %v3677 = vpack.c.b16 %v3615, %v3613
        %v3678 = vpack.c.b16 %v3618, %v3616
        %v3679 = vpack.c.b16 %v3619, %v3617
        %v3680 = vpack.c.b16 %v3622, %v3620
        %v3681 = vpack.c.b16 %v3623, %v3621
        %v3682 = vpack.c.b16 %v3626, %v3624
        %v3683 = vpack.c.b16 %v3627, %v3625
        %v3684 = vpack.c.b16 %v3630, %v3628
        %v3685 = vpack.c.b16 %v3631, %v3629
        %v3686 = vpack.c.b16 %v3634, %v3632
        %v3687 = vpack.c.b16 %v3635, %v3633
        %v3688 = vpack.c.b16 %v3638, %v3636
        %v3689 = vpack.c.b16 %v3639, %v3637
        %v3690 = vpack.c.b16 %v3642, %v3640
        %v3691 = vpack.c.b16 %v3643, %v3641
        %3740 = vmatpush.bf16.msra.mxu0 %v3658
        %3741 = vmatpush.bf16.msra.mxu0 %v3656
        %3742 = vmatpush.bf16.msra.mxu0 %v3654
        %3743 = vmatpush.bf16.msra.mxu0 %v3652
        %3744 = vmatpush.bf16.msra.mxu0 %v3650
        %3745 = vmatpush.bf16.msra.mxu0 %v3648
        %3746 = vmatpush.bf16.msra.mxu0 %v3646
        %3747 = vmatpush.bf16.msra.mxu0 %v3644
        %3748 = vmatmul.bf16.gmra.mxu0 %v3439
        %v3749 = vpop.f32.mrf.mxu0
        %v3750 = vadd.f32 0.0, %v3749
        %v3751 = vpop.f32.mrf.mxu0
        %v3752 = vadd.f32 0.0, %v3751
        %3753 = vmatmul.bf16.gmra.mxu0 %v3442
        %v3754 = vpop.f32.mrf.mxu0
        %v3755 = vadd.f32 0.0, %v3754
        %v3756 = vpop.f32.mrf.mxu0
        %v3757 = vadd.f32 0.0, %v3756
        %3758 = vmatmul.bf16.gmra.mxu0 %v3445
        %v3759 = vpop.f32.mrf.mxu0
        %v3760 = vadd.f32 0.0, %v3759
        %v3761 = vpop.f32.mrf.mxu0
        %v3762 = vadd.f32 0.0, %v3761
        %3763 = vmatmul.bf16.gmra.mxu0 %v3448
        %v3764 = vpop.f32.mrf.mxu0
        %v3765 = vadd.f32 0.0, %v3764
        %v3766 = vpop.f32.mrf.mxu0
        %v3767 = vadd.f32 0.0, %v3766
        %3768 = vdwg.mxu0
        %3769 = vmatpush.bf16.msra.mxu0 %v3674
        %3770 = vmatpush.bf16.msra.mxu0 %v3672
        %3771 = vmatpush.bf16.msra.mxu0 %v3670
        %3772 = vmatpush.bf16.msra.mxu0 %v3668
        %3773 = vmatpush.bf16.msra.mxu0 %v3666
        %3774 = vmatpush.bf16.msra.mxu0 %v3664
        %3775 = vmatpush.bf16.msra.mxu0 %v3662
        %3776 = vmatpush.bf16.msra.mxu0 %v3660
        %3777 = vmatmul.bf16.gmra.mxu0 %v3440
        %v3778 = vpop.f32.mrf.mxu0
        %v3779 = vadd.f32 %v3750, %v3778
        %v3780 = vpop.f32.mrf.mxu0
        %v3781 = vadd.f32 %v3752, %v3780
        %3782 = vmatmul.bf16.gmra.mxu0 %v3443
        %v3783 = vpop.f32.mrf.mxu0
        %v3784 = vadd.f32 %v3755, %v3783
        %v3785 = vpop.f32.mrf.mxu0
        %v3786 = vadd.f32 %v3757, %v3785
        %3787 = vmatmul.bf16.gmra.mxu0 %v3446
        %v3788 = vpop.f32.mrf.mxu0
        %v3789 = vadd.f32 %v3760, %v3788
        %v3790 = vpop.f32.mrf.mxu0
        %v3791 = vadd.f32 %v3762, %v3790
        %3792 = vmatmul.bf16.gmra.mxu0 %v3449
        %v3793 = vpop.f32.mrf.mxu0
        %v3794 = vadd.f32 %v3765, %v3793
        %v3795 = vpop.f32.mrf.mxu0
        %v3796 = vadd.f32 %v3767, %v3795
        %3797 = vdwg.mxu0
        %3798 = vmatpush.bf16.msra.mxu0 %v3690
        %3799 = vmatpush.bf16.msra.mxu0 %v3688
        %3800 = vmatpush.bf16.msra.mxu0 %v3686
        %3801 = vmatpush.bf16.msra.mxu0 %v3684
        %3802 = vmatpush.bf16.msra.mxu0 %v3682
        %3803 = vmatpush.bf16.msra.mxu0 %v3680
        %3804 = vmatpush.bf16.msra.mxu0 %v3678
        %3805 = vmatpush.bf16.msra.mxu0 %v3676
        %3806 = vmatmul.bf16.gmra.mxu0 %v3441
        %v3807 = vpop.f32.mrf.mxu0
        %v3808 = vadd.f32 %v3779, %v3807
        %v3809 = vpop.f32.mrf.mxu0
        %v3810 = vadd.f32 %v3781, %v3809
        %3811 = vmatmul.bf16.gmra.mxu0 %v3444
        %v3812 = vpop.f32.mrf.mxu0
        %v3813 = vadd.f32 %v3784, %v3812
        %v3814 = vpop.f32.mrf.mxu0
        %v3815 = vadd.f32 %v3786, %v3814
        %3816 = vmatmul.bf16.gmra.mxu0 %v3447
        %v3817 = vpop.f32.mrf.mxu0
        %v3818 = vadd.f32 %v3789, %v3817
        %v3819 = vpop.f32.mrf.mxu0
        %v3820 = vadd.f32 %v3791, %v3819
        %3821 = vmatmul.bf16.gmra.mxu0 %v3450
        %v3822 = vpop.f32.mrf.mxu0
        %v3823 = vadd.f32 %v3794, %v3822
        %v3824 = vpop.f32.mrf.mxu0
        %v3825 = vadd.f32 %v3796, %v3824
        %3826 = vdwg.mxu0
        %3827 = vmatpush.bf16.msra.mxu0 %v3659
        %3828 = vmatpush.bf16.msra.mxu0 %v3657
        %3829 = vmatpush.bf16.msra.mxu0 %v3655
        %3830 = vmatpush.bf16.msra.mxu0 %v3653
        %3831 = vmatpush.bf16.msra.mxu0 %v3651
        %3832 = vmatpush.bf16.msra.mxu0 %v3649
        %3833 = vmatpush.bf16.msra.mxu0 %v3647
        %3834 = vmatpush.bf16.msra.mxu0 %v3645
        %3835 = vmatmul.bf16.gmra.mxu0 %v3439
        %v3836 = vpop.f32.mrf.mxu0
        %v3837 = vadd.f32 0.0, %v3836
        %v3838 = vpop.f32.mrf.mxu0
        %v3839 = vadd.f32 0.0, %v3838
        %3840 = vmatmul.bf16.gmra.mxu0 %v3442
        %v3841 = vpop.f32.mrf.mxu0
        %v3842 = vadd.f32 0.0, %v3841
        %v3843 = vpop.f32.mrf.mxu0
        %v3844 = vadd.f32 0.0, %v3843
        %3845 = vmatmul.bf16.gmra.mxu0 %v3445
        %v3846 = vpop.f32.mrf.mxu0
        %v3847 = vadd.f32 0.0, %v3846
        %v3848 = vpop.f32.mrf.mxu0
        %v3849 = vadd.f32 0.0, %v3848
        %3850 = vmatmul.bf16.gmra.mxu0 %v3448
        %v3851 = vpop.f32.mrf.mxu0
        %v3852 = vadd.f32 0.0, %v3851
        %v3853 = vpop.f32.mrf.mxu0
        %v3854 = vadd.f32 0.0, %v3853
        %3855 = vdwg.mxu0
        %3856 = vmatpush.bf16.msra.mxu0 %v3675
        %3857 = vmatpush.bf16.msra.mxu0 %v3673
        %3858 = vmatpush.bf16.msra.mxu0 %v3671
        %3859 = vmatpush.bf16.msra.mxu0 %v3669
        %3860 = vmatpush.bf16.msra.mxu0 %v3667
        %3861 = vmatpush.bf16.msra.mxu0 %v3665
        %3862 = vmatpush.bf16.msra.mxu0 %v3663
        %3863 = vmatpush.bf16.msra.mxu0 %v3661
        %3864 = vmatmul.bf16.gmra.mxu0 %v3440
        %v3865 = vpop.f32.mrf.mxu0
        %v3866 = vadd.f32 %v3837, %v3865
        %v3867 = vpop.f32.mrf.mxu0
        %v3868 = vadd.f32 %v3839, %v3867
        %3869 = vmatmul.bf16.gmra.mxu0 %v3443
        %v3870 = vpop.f32.mrf.mxu0
        %v3871 = vadd.f32 %v3842, %v3870
        %v3872 = vpop.f32.mrf.mxu0
        %v3873 = vadd.f32 %v3844, %v3872
        %3874 = vmatmul.bf16.gmra.mxu0 %v3446
        %v3875 = vpop.f32.mrf.mxu0
        %v3876 = vadd.f32 %v3847, %v3875
        %v3877 = vpop.f32.mrf.mxu0
        %v3878 = vadd.f32 %v3849, %v3877
        %3879 = vmatmul.bf16.gmra.mxu0 %v3449
        %v3880 = vpop.f32.mrf.mxu0
        %v3881 = vadd.f32 %v3852, %v3880
        %v3882 = vpop.f32.mrf.mxu0
        %v3883 = vadd.f32 %v3854, %v3882
        %3884 = vdwg.mxu0
        %3885 = vmatpush.bf16.msra.mxu0 %v3691
        %3886 = vmatpush.bf16.msra.mxu0 %v3689
        %3887 = vmatpush.bf16.msra.mxu0 %v3687
        %3888 = vmatpush.bf16.msra.mxu0 %v3685
        %3889 = vmatpush.bf16.msra.mxu0 %v3683
        %3890 = vmatpush.bf16.msra.mxu0 %v3681
        %3891 = vmatpush.bf16.msra.mxu0 %v3679
        %3892 = vmatpush.bf16.msra.mxu0 %v3677
        %3893 = vmatmul.bf16.gmra.mxu0 %v3441
        %v3894 = vpop.f32.mrf.mxu0
        %v3895 = vadd.f32 %v3866, %v3894
        %v3896 = vpop.f32.mrf.mxu0
        %v3897 = vadd.f32 %v3868, %v3896
        %3898 = vmatmul.bf16.gmra.mxu0 %v3444
        %v3899 = vpop.f32.mrf.mxu0
        %v3900 = vadd.f32 %v3871, %v3899
        %v3901 = vpop.f32.mrf.mxu0
        %v3902 = vadd.f32 %v3873, %v3901
        %3903 = vmatmul.bf16.gmra.mxu0 %v3447
        %v3904 = vpop.f32.mrf.mxu0
        %v3905 = vadd.f32 %v3876, %v3904
        %v3906 = vpop.f32.mrf.mxu0
        %v3907 = vadd.f32 %v3878, %v3906
        %3908 = vmatmul.bf16.gmra.mxu0 %v3450
        %v3909 = vpop.f32.mrf.mxu0
        %v3910 = vadd.f32 %v3881, %v3909
        %v3911 = vpop.f32.mrf.mxu0
        %v3912 = vadd.f32 %v3883, %v3911
        %3913 = vdwg.mxu0
        %v3914 = vadd.f32 %v3420, %v3808
        %v3915 = vadd.f32 %v3421, %v3895
        %v3916 = vadd.f32 %v3422, %v3810
        %v3917 = vadd.f32 %v3423, %v3897
        %v3918 = vadd.f32 %v3424, %v3813
        %v3919 = vadd.f32 %v3425, %v3900
        %v3920 = vadd.f32 %v3426, %v3815
        %v3921 = vadd.f32 %v3427, %v3902
        %v3922 = vadd.f32 %v3428, %v3818
        %v3923 = vadd.f32 %v3429, %v3905
        %v3924 = vadd.f32 %v3430, %v3820
        %v3925 = vadd.f32 %v3431, %v3907
        %v3926 = vadd.f32 %v3432, %v3823
        %v3927 = vadd.f32 %v3433, %v3910
        %v3928 = vadd.f32 %v3434, %v3825
        %v3929 = vadd.f32 %v3435, %v3912
        %v3930 = vld [vmem:[#allocation2 + $0x18] sm:$0xfe]
        %v3931 = vld [vmem:[#allocation2 + $0x20] sm:$0xfe]
        %v3932 = vld [vmem:[#allocation2 + $0x28] sm:$0xfe]
        %v3933 = vld [vmem:[#allocation2 + $0x30] sm:$0xff]
        %v3934 = vld [vmem:[#allocation2 + $0x38] sm:$0xff]
        %v3935 = vld [vmem:[#allocation2 + $0x40] sm:$0xff]
        %v3936 = vld [vmem:[#allocation2 + $0x48] sm:$0xff]
        %v3937 = vld [vmem:[#allocation2 + $0x50] sm:$0xff]
        %v3938 = vld [vmem:[#allocation2 + $0x58] sm:$0xff]
        %v3939 = vld [vmem:[#allocation2 + $0x60] sm:$0xff]
        %v3940 = vld [vmem:[#allocation2 + $0x68] sm:$0xff]
        %v3941 = vld [vmem:[#allocation2 + $0x70] sm:$0xff]
        %v3942 = vld [vmem:[#allocation2 + $0x78] sm:$0xff]
        %v3943 = vld [vmem:[#allocation2 + $0x80] sm:$0xff]
        %v3944 = vld [vmem:[#allocation2 + $0x88] sm:$0xff]
        %v3945 = vld [vmem:[#allocation2 + $0x90] sm:$0xff]
        %v3946 = vld [vmem:[#allocation2 + $0x98] sm:$0xff]
        %v3947 = vld [vmem:[#allocation2 + $0xa0] sm:$0xff]
        %v3948 = vld [vmem:[#allocation2 + $0xa8] sm:$0xff]
        %v3949 = vld [vmem:[#allocation2 + $0xb0] sm:$0xff]
        %v3950 = vld [vmem:[#allocation2 + $0xb8] sm:$0xff]
        %v3951 = vld [vmem:[#allocation2 + $0xc0] sm:$0xff]
        %v3952 = vld [vmem:[#allocation2 + $0xc8] sm:$0xff]
        %v3953 = vld [vmem:[#allocation2 + $0xd0] sm:$0xff]
        %v3954 = vld [vmem:[#allocation2 + $0xd8] sm:$0x1]
        %v3955 = vld [vmem:[#allocation2 + $0xe0] sm:$0x1]
        %v3956 = vld [vmem:[#allocation2 + $0xe8] sm:$0x1]
        %v3957 = vpack.c.bf16 %v3933, %v3930
        %v3958 = vpack.c.bf16 %v3934, %v3931
        %v3959 = vpack.c.bf16 %v3935, %v3932
        %v3960 = vpack.c.bf16 %v3939, %v3936
        %v3961 = vpack.c.bf16 %v3940, %v3937
        %v3962 = vpack.c.bf16 %v3941, %v3938
        %v3963 = vpack.c.bf16 %v3945, %v3942
        %v3964 = vpack.c.bf16 %v3946, %v3943
        %v3965 = vpack.c.bf16 %v3947, %v3944
        %v3966 = vpack.c.bf16 %v3951, %v3948
        %v3967 = vpack.c.bf16 %v3952, %v3949
        %v3968 = vpack.c.bf16 %v3953, %v3950
        %v3969 = vpack.c.bf16 %v3954, %v3954
        %v3970 = vpack.c.bf16 %v3955, %v3955
        %v3971 = vpack.c.bf16 %v3956, %v3956
        %s3972 = scalar_lea.vmem %s3, 768
        %v3973 = vld [vmem:[%s3972] sm:$0xff]
        %v3974 = vld [vmem:[%s3972 + $0x8] sm:$0xff]
        %v3975 = vld [vmem:[%s3972 + $0x10] sm:$0xff]
        %v3976 = vld [vmem:[%s3972 + $0x18] sm:$0xff]
        %v3977 = vld [vmem:[%s3972 + $0x20] sm:$0xff]
        %v3978 = vld [vmem:[%s3972 + $0x28] sm:$0xff]
        %v3979 = vld [vmem:[%s3972 + $0x30] sm:$0xff]
        %v3980 = vld [vmem:[%s3972 + $0x38] sm:$0xff]
        %v3981 = vld [vmem:[%s3972 + $0x40] sm:$0xff]
        %v3982 = vld [vmem:[%s3972 + $0x48] sm:$0xff]
        %v3983 = vld [vmem:[%s3972 + $0x50] sm:$0xff]
        %v3984 = vld [vmem:[%s3972 + $0x58] sm:$0xff]
        %v3985 = vld [vmem:[%s3972 + $0x60] sm:$0xff]
        %v3986 = vld [vmem:[%s3972 + $0x68] sm:$0xff]
        %v3987 = vld [vmem:[%s3972 + $0x70] sm:$0xff]
        %v3988 = vld [vmem:[%s3972 + $0x78] sm:$0xff]
        %v3989 = vld [vmem:[%s3972 + $0x80] sm:$0xff]
        %v3990 = vld [vmem:[%s3972 + $0x88] sm:$0xff]
        %v3991 = vld [vmem:[%s3972 + $0x90] sm:$0xff]
        %v3992 = vld [vmem:[%s3972 + $0x98] sm:$0xff]
        %v3993 = vld [vmem:[%s3972 + $0xa0] sm:$0xff]
        %v3994 = vld [vmem:[%s3972 + $0xa8] sm:$0xff]
        %v3995 = vld [vmem:[%s3972 + $0xb0] sm:$0xff]
        %v3996 = vld [vmem:[%s3972 + $0xb8] sm:$0xff]
        %v3997 = vld [vmem:[%s3972 + $0xc0] sm:$0xff]
        %v3998 = vld [vmem:[%s3972 + $0xc8] sm:$0xff]
        %v3999 = vld [vmem:[%s3972 + $0xd0] sm:$0xff]
        %v4000 = vld [vmem:[%s3972 + $0xd8] sm:$0xff]
        %v4001 = vld [vmem:[%s3972 + $0xe0] sm:$0xff]
        %v4002 = vld [vmem:[%s3972 + $0xe8] sm:$0xff]
        %v4003 = vld [vmem:[%s3972 + $0xf0] sm:$0xff]
        %v4004 = vld [vmem:[%s3972 + $0xf8] sm:$0xff]
        %v4005 = vld [vmem:[%s3972 + $0x100] sm:$0xff]
        %v4006 = vld [vmem:[%s3972 + $0x108] sm:$0xff]
        %v4007 = vld [vmem:[%s3972 + $0x110] sm:$0xff]
        %v4008 = vld [vmem:[%s3972 + $0x118] sm:$0xff]
        %v4009 = vld [vmem:[%s3972 + $0x120] sm:$0xff]
        %v4010 = vld [vmem:[%s3972 + $0x128] sm:$0xff]
        %v4011 = vld [vmem:[%s3972 + $0x130] sm:$0xff]
        %v4012 = vld [vmem:[%s3972 + $0x138] sm:$0xff]
        %v4013 = vld [vmem:[%s3972 + $0x140] sm:$0xff]
        %v4014 = vld [vmem:[%s3972 + $0x148] sm:$0xff]
        %v4015 = vld [vmem:[%s3972 + $0x150] sm:$0xff]
        %v4016 = vld [vmem:[%s3972 + $0x158] sm:$0xff]
        %v4017 = vld [vmem:[%s3972 + $0x160] sm:$0xff]
        %v4018 = vld [vmem:[%s3972 + $0x168] sm:$0xff]
        %v4019 = vld [vmem:[%s3972 + $0x170] sm:$0xff]
        %v4020 = vld [vmem:[%s3972 + $0x178] sm:$0xff]
        %vm4021 = vsmask.f32 7424
        %v4023 = vshrl.u32 %v3957, 16
        %v4025 = vshll.u32 %v3957, 16
        %v4027 = vrot.slane %v4025, 1
        %v4028 = vor.u32 %v4023, %v4027
        %v4030 = vshll.u32 %v3960, 16
        %v4032 = vrot.slane %v4030, 1
        %v4033 = vsel %vm4021, %v4028, %v4032
        %v4035 = vshrl.u32 %v3958, 16
        %v4037 = vshll.u32 %v3958, 16
        %v4039 = vrot.slane %v4037, 1
        %v4040 = vor.u32 %v4035, %v4039
        %v4042 = vshll.u32 %v3961, 16
        %v4044 = vrot.slane %v4042, 1
        %v4045 = vsel %vm4021, %v4040, %v4044
        %v4047 = vshrl.u32 %v3959, 16
        %v4049 = vshll.u32 %v3959, 16
        %v4051 = vrot.slane %v4049, 1
        %v4052 = vor.u32 %v4047, %v4051
        %v4054 = vshll.u32 %v3962, 16
        %v4056 = vrot.slane %v4054, 1
        %v4057 = vsel %vm4021, %v4052, %v4056
        %v4058 = vshrl.u32 %v3960, 16
        %v4060 = vor.u32 %v4058, %v4032
        %v4062 = vshll.u32 %v3963, 16
        %v4064 = vrot.slane %v4062, 1
        %v4065 = vsel %vm4021, %v4060, %v4064
        %v4066 = vshrl.u32 %v3961, 16
        %v4068 = vor.u32 %v4066, %v4044
        %v4070 = vshll.u32 %v3964, 16
        %v4072 = vrot.slane %v4070, 1
        %v4073 = vsel %vm4021, %v4068, %v4072
        %v4074 = vshrl.u32 %v3962, 16
        %v4076 = vor.u32 %v4074, %v4056
        %v4078 = vshll.u32 %v3965, 16
        %v4080 = vrot.slane %v4078, 1
        %v4081 = vsel %vm4021, %v4076, %v4080
        %v4082 = vshrl.u32 %v3963, 16
        %v4084 = vor.u32 %v4082, %v4064
        %v4086 = vshll.u32 %v3966, 16
        %v4088 = vrot.slane %v4086, 1
        %v4089 = vsel %vm4021, %v4084, %v4088
        %v4090 = vshrl.u32 %v3964, 16
        %v4092 = vor.u32 %v4090, %v4072
        %v4094 = vshll.u32 %v3967, 16
        %v4096 = vrot.slane %v4094, 1
        %v4097 = vsel %vm4021, %v4092, %v4096
        %v4098 = vshrl.u32 %v3965, 16
        %v4100 = vor.u32 %v4098, %v4080
        %v4102 = vshll.u32 %v3968, 16
        %v4104 = vrot.slane %v4102, 1
        %v4105 = vsel %vm4021, %v4100, %v4104
        %v4106 = vshrl.u32 %v3966, 16
        %v4108 = vor.u32 %v4106, %v4088
        %v4110 = vshll.u32 %v3969, 16
        %v4112 = vrot.slane %v4110, 1
        %v4113 = vsel %vm4021, %v4108, %v4112
        %v4114 = vshrl.u32 %v3967, 16
        %v4116 = vor.u32 %v4114, %v4096
        %v4118 = vshll.u32 %v3970, 16
        %v4120 = vrot.slane %v4118, 1
        %v4121 = vsel %vm4021, %v4116, %v4120
        %v4122 = vshrl.u32 %v3968, 16
        %v4124 = vor.u32 %v4122, %v4104
        %v4126 = vshll.u32 %v3971, 16
        %v4128 = vrot.slane %v4126, 1
        %v4129 = vsel %vm4021, %v4124, %v4128
        %v4190 = vunpack.c.l.b16 %v3973
        %v4191 = vunpack.c.h.b16 %v3973
        %v4192 = vunpack.c.l.b16 %v3974
        %v4193 = vunpack.c.h.b16 %v3974
        %v4194 = vunpack.c.l.b16 %v3975
        %v4195 = vunpack.c.h.b16 %v3975
        %v4196 = vunpack.c.l.b16 %v3976
        %v4197 = vunpack.c.h.b16 %v3976
        %v4198 = vunpack.c.l.b16 %v3977
        %v4199 = vunpack.c.h.b16 %v3977
        %v4200 = vunpack.c.l.b16 %v3978
        %v4201 = vunpack.c.h.b16 %v3978
        %v4202 = vunpack.c.l.b16 %v3979
        %v4203 = vunpack.c.h.b16 %v3979
        %v4204 = vunpack.c.l.b16 %v3980
        %v4205 = vunpack.c.h.b16 %v3980
        %v4206 = vunpack.c.l.b16 %v3981
        %v4207 = vunpack.c.h.b16 %v3981
        %v4208 = vunpack.c.l.b16 %v3982
        %v4209 = vunpack.c.h.b16 %v3982
        %v4210 = vunpack.c.l.b16 %v3983
        %v4211 = vunpack.c.h.b16 %v3983
        %v4212 = vunpack.c.l.b16 %v3984
        %v4213 = vunpack.c.h.b16 %v3984
        %v4214 = vunpack.c.l.b16 %v3985
        %v4215 = vunpack.c.h.b16 %v3985
        %v4216 = vunpack.c.l.b16 %v3986
        %v4217 = vunpack.c.h.b16 %v3986
        %v4218 = vunpack.c.l.b16 %v3987
        %v4219 = vunpack.c.h.b16 %v3987
        %v4220 = vunpack.c.l.b16 %v3988
        %v4221 = vunpack.c.h.b16 %v3988
        %v4222 = vunpack.c.l.b16 %v3989
        %v4223 = vunpack.c.h.b16 %v3989
        %v4224 = vunpack.c.l.b16 %v3990
        %v4225 = vunpack.c.h.b16 %v3990
        %v4226 = vunpack.c.l.b16 %v3991
        %v4227 = vunpack.c.h.b16 %v3991
        %v4228 = vunpack.c.l.b16 %v3992
        %v4229 = vunpack.c.h.b16 %v3992
        %v4230 = vunpack.c.l.b16 %v3993
        %v4231 = vunpack.c.h.b16 %v3993
        %v4232 = vunpack.c.l.b16 %v3994
        %v4233 = vunpack.c.h.b16 %v3994
        %v4234 = vunpack.c.l.b16 %v3995
        %v4235 = vunpack.c.h.b16 %v3995
        %v4236 = vunpack.c.l.b16 %v3996
        %v4237 = vunpack.c.h.b16 %v3996
        %v4238 = vunpack.c.l.b16 %v3997
        %v4239 = vunpack.c.h.b16 %v3997
        %v4240 = vunpack.c.l.b16 %v3998
        %v4241 = vunpack.c.h.b16 %v3998
        %v4242 = vunpack.c.l.b16 %v3999
        %v4243 = vunpack.c.h.b16 %v3999
        %v4244 = vunpack.c.l.b16 %v4000
        %v4245 = vunpack.c.h.b16 %v4000
        %v4246 = vunpack.c.l.b16 %v4001
        %v4247 = vunpack.c.h.b16 %v4001
        %v4248 = vunpack.c.l.b16 %v4002
        %v4249 = vunpack.c.h.b16 %v4002
        %v4250 = vunpack.c.l.b16 %v4003
        %v4251 = vunpack.c.h.b16 %v4003
        %v4252 = vunpack.c.l.b16 %v4004
        %v4253 = vunpack.c.h.b16 %v4004
        %v4254 = vunpack.c.l.b16 %v4005
        %v4255 = vunpack.c.h.b16 %v4005
        %v4256 = vunpack.c.l.b16 %v4006
        %v4257 = vunpack.c.h.b16 %v4006
        %v4258 = vunpack.c.l.b16 %v4007
        %v4259 = vunpack.c.h.b16 %v4007
        %v4260 = vunpack.c.l.b16 %v4008
        %v4261 = vunpack.c.h.b16 %v4008
        %v4262 = vunpack.c.l.b16 %v4009
        %v4263 = vunpack.c.h.b16 %v4009
        %v4264 = vunpack.c.l.b16 %v4010
        %v4265 = vunpack.c.h.b16 %v4010
        %v4266 = vunpack.c.l.b16 %v4011
        %v4267 = vunpack.c.h.b16 %v4011
        %v4268 = vunpack.c.l.b16 %v4012
        %v4269 = vunpack.c.h.b16 %v4012
        %v4270 = vunpack.c.l.b16 %v4013
        %v4271 = vunpack.c.h.b16 %v4013
        %v4272 = vunpack.c.l.b16 %v4014
        %v4273 = vunpack.c.h.b16 %v4014
        %v4274 = vunpack.c.l.b16 %v4015
        %v4275 = vunpack.c.h.b16 %v4015
        %v4276 = vunpack.c.l.b16 %v4016
        %v4277 = vunpack.c.h.b16 %v4016
        %v4278 = vunpack.c.l.b16 %v4017
        %v4279 = vunpack.c.h.b16 %v4017
        %v4280 = vunpack.c.l.b16 %v4018
        %v4281 = vunpack.c.h.b16 %v4018
        %v4282 = vunpack.c.l.b16 %v4019
        %v4283 = vunpack.c.h.b16 %v4019
        %v4284 = vunpack.c.l.b16 %v4020
        %v4285 = vunpack.c.h.b16 %v4020
        %v4286 = vpack.c.b16 %v4192, %v4190
        %v4287 = vpack.c.b16 %v4193, %v4191
        %v4288 = vpack.c.b16 %v4196, %v4194
        %v4289 = vpack.c.b16 %v4197, %v4195
        %v4290 = vpack.c.b16 %v4200, %v4198
        %v4291 = vpack.c.b16 %v4201, %v4199
        %v4292 = vpack.c.b16 %v4204, %v4202
        %v4293 = vpack.c.b16 %v4205, %v4203
        %v4294 = vpack.c.b16 %v4208, %v4206
        %v4295 = vpack.c.b16 %v4209, %v4207
        %v4296 = vpack.c.b16 %v4212, %v4210
        %v4297 = vpack.c.b16 %v4213, %v4211
        %v4298 = vpack.c.b16 %v4216, %v4214
        %v4299 = vpack.c.b16 %v4217, %v4215
        %v4300 = vpack.c.b16 %v4220, %v4218
        %v4301 = vpack.c.b16 %v4221, %v4219
        %v4302 = vpack.c.b16 %v4224, %v4222
        %v4303 = vpack.c.b16 %v4225, %v4223
        %v4304 = vpack.c.b16 %v4228, %v4226
        %v4305 = vpack.c.b16 %v4229, %v4227
        %v4306 = vpack.c.b16 %v4232, %v4230
        %v4307 = vpack.c.b16 %v4233, %v4231
        %v4308 = vpack.c.b16 %v4236, %v4234
        %v4309 = vpack.c.b16 %v4237, %v4235
        %v4310 = vpack.c.b16 %v4240, %v4238
        %v4311 = vpack.c.b16 %v4241, %v4239
        %v4312 = vpack.c.b16 %v4244, %v4242
        %v4313 = vpack.c.b16 %v4245, %v4243
        %v4314 = vpack.c.b16 %v4248, %v4246
        %v4315 = vpack.c.b16 %v4249, %v4247
        %v4316 = vpack.c.b16 %v4252, %v4250
        %v4317 = vpack.c.b16 %v4253, %v4251
        %v4318 = vpack.c.b16 %v4256, %v4254
        %v4319 = vpack.c.b16 %v4257, %v4255
        %v4320 = vpack.c.b16 %v4260, %v4258
        %v4321 = vpack.c.b16 %v4261, %v4259
        %v4322 = vpack.c.b16 %v4264, %v4262
        %v4323 = vpack.c.b16 %v4265, %v4263
        %v4324 = vpack.c.b16 %v4268, %v4266
        %v4325 = vpack.c.b16 %v4269, %v4267
        %v4326 = vpack.c.b16 %v4272, %v4270
        %v4327 = vpack.c.b16 %v4273, %v4271
        %v4328 = vpack.c.b16 %v4276, %v4274
        %v4329 = vpack.c.b16 %v4277, %v4275
        %v4330 = vpack.c.b16 %v4280, %v4278
        %v4331 = vpack.c.b16 %v4281, %v4279
        %v4332 = vpack.c.b16 %v4284, %v4282
        %v4333 = vpack.c.b16 %v4285, %v4283
        %4382 = vmatpush.bf16.msra.mxu0 %v4300
        %4383 = vmatpush.bf16.msra.mxu0 %v4298
        %4384 = vmatpush.bf16.msra.mxu0 %v4296
        %4385 = vmatpush.bf16.msra.mxu0 %v4294
        %4386 = vmatpush.bf16.msra.mxu0 %v4292
        %4387 = vmatpush.bf16.msra.mxu0 %v4290
        %4388 = vmatpush.bf16.msra.mxu0 %v4288
        %4389 = vmatpush.bf16.msra.mxu0 %v4286
        %4390 = vmatmul.bf16.gmra.mxu0 %v4033
        %v4391 = vpop.f32.mrf.mxu0
        %v4392 = vadd.f32 0.0, %v4391
        %v4393 = vpop.f32.mrf.mxu0
        %v4394 = vadd.f32 0.0, %v4393
        %4395 = vmatmul.bf16.gmra.mxu0 %v4065
        %v4396 = vpop.f32.mrf.mxu0
        %v4397 = vadd.f32 0.0, %v4396
        %v4398 = vpop.f32.mrf.mxu0
        %v4399 = vadd.f32 0.0, %v4398
        %4400 = vmatmul.bf16.gmra.mxu0 %v4089
        %v4401 = vpop.f32.mrf.mxu0
        %v4402 = vadd.f32 0.0, %v4401
        %v4403 = vpop.f32.mrf.mxu0
        %v4404 = vadd.f32 0.0, %v4403
        %4405 = vmatmul.bf16.gmra.mxu0 %v4113
        %v4406 = vpop.f32.mrf.mxu0
        %v4407 = vadd.f32 0.0, %v4406
        %v4408 = vpop.f32.mrf.mxu0
        %v4409 = vadd.f32 0.0, %v4408
        %4410 = vdwg.mxu0
        %4411 = vmatpush.bf16.msra.mxu0 %v4316
        %4412 = vmatpush.bf16.msra.mxu0 %v4314
        %4413 = vmatpush.bf16.msra.mxu0 %v4312
        %4414 = vmatpush.bf16.msra.mxu0 %v4310
        %4415 = vmatpush.bf16.msra.mxu0 %v4308
        %4416 = vmatpush.bf16.msra.mxu0 %v4306
        %4417 = vmatpush.bf16.msra.mxu0 %v4304
        %4418 = vmatpush.bf16.msra.mxu0 %v4302
        %4419 = vmatmul.bf16.gmra.mxu0 %v4045
        %v4420 = vpop.f32.mrf.mxu0
        %v4421 = vadd.f32 %v4392, %v4420
        %v4422 = vpop.f32.mrf.mxu0
        %v4423 = vadd.f32 %v4394, %v4422
        %4424 = vmatmul.bf16.gmra.mxu0 %v4073
        %v4425 = vpop.f32.mrf.mxu0
        %v4426 = vadd.f32 %v4397, %v4425
        %v4427 = vpop.f32.mrf.mxu0
        %v4428 = vadd.f32 %v4399, %v4427
        %4429 = vmatmul.bf16.gmra.mxu0 %v4097
        %v4430 = vpop.f32.mrf.mxu0
        %v4431 = vadd.f32 %v4402, %v4430
        %v4432 = vpop.f32.mrf.mxu0
        %v4433 = vadd.f32 %v4404, %v4432
        %4434 = vmatmul.bf16.gmra.mxu0 %v4121
        %v4435 = vpop.f32.mrf.mxu0
        %v4436 = vadd.f32 %v4407, %v4435
        %v4437 = vpop.f32.mrf.mxu0
        %v4438 = vadd.f32 %v4409, %v4437
        %4439 = vdwg.mxu0
        %4440 = vmatpush.bf16.msra.mxu0 %v4332
        %4441 = vmatpush.bf16.msra.mxu0 %v4330
        %4442 = vmatpush.bf16.msra.mxu0 %v4328
        %4443 = vmatpush.bf16.msra.mxu0 %v4326
        %4444 = vmatpush.bf16.msra.mxu0 %v4324
        %4445 = vmatpush.bf16.msra.mxu0 %v4322
        %4446 = vmatpush.bf16.msra.mxu0 %v4320
        %4447 = vmatpush.bf16.msra.mxu0 %v4318
        %4448 = vmatmul.bf16.gmra.mxu0 %v4057
        %v4449 = vpop.f32.mrf.mxu0
        %v4450 = vadd.f32 %v4421, %v4449
        %v4451 = vpop.f32.mrf.mxu0
        %v4452 = vadd.f32 %v4423, %v4451
        %4453 = vmatmul.bf16.gmra.mxu0 %v4081
        %v4454 = vpop.f32.mrf.mxu0
        %v4455 = vadd.f32 %v4426, %v4454
        %v4456 = vpop.f32.mrf.mxu0
        %v4457 = vadd.f32 %v4428, %v4456
        %4458 = vmatmul.bf16.gmra.mxu0 %v4105
        %v4459 = vpop.f32.mrf.mxu0
        %v4460 = vadd.f32 %v4431, %v4459
        %v4461 = vpop.f32.mrf.mxu0
        %v4462 = vadd.f32 %v4433, %v4461
        %4463 = vmatmul.bf16.gmra.mxu0 %v4129
        %v4464 = vpop.f32.mrf.mxu0
        %v4465 = vadd.f32 %v4436, %v4464
        %v4466 = vpop.f32.mrf.mxu0
        %v4467 = vadd.f32 %v4438, %v4466
        %4468 = vdwg.mxu0
        %4469 = vmatpush.bf16.msra.mxu0 %v4301
        %4470 = vmatpush.bf16.msra.mxu0 %v4299
        %4471 = vmatpush.bf16.msra.mxu0 %v4297
        %4472 = vmatpush.bf16.msra.mxu0 %v4295
        %4473 = vmatpush.bf16.msra.mxu0 %v4293
        %4474 = vmatpush.bf16.msra.mxu0 %v4291
        %4475 = vmatpush.bf16.msra.mxu0 %v4289
        %4476 = vmatpush.bf16.msra.mxu0 %v4287
        %4477 = vmatmul.bf16.gmra.mxu0 %v4033
        %v4478 = vpop.f32.mrf.mxu0
        %v4479 = vadd.f32 0.0, %v4478
        %v4480 = vpop.f32.mrf.mxu0
        %v4481 = vadd.f32 0.0, %v4480
        %4482 = vmatmul.bf16.gmra.mxu0 %v4065
        %v4483 = vpop.f32.mrf.mxu0
        %v4484 = vadd.f32 0.0, %v4483
        %v4485 = vpop.f32.mrf.mxu0
        %v4486 = vadd.f32 0.0, %v4485
        %4487 = vmatmul.bf16.gmra.mxu0 %v4089
        %v4488 = vpop.f32.mrf.mxu0
        %v4489 = vadd.f32 0.0, %v4488
        %v4490 = vpop.f32.mrf.mxu0
        %v4491 = vadd.f32 0.0, %v4490
        %4492 = vmatmul.bf16.gmra.mxu0 %v4113
        %v4493 = vpop.f32.mrf.mxu0
        %v4494 = vadd.f32 0.0, %v4493
        %v4495 = vpop.f32.mrf.mxu0
        %v4496 = vadd.f32 0.0, %v4495
        %4497 = vdwg.mxu0
        %4498 = vmatpush.bf16.msra.mxu0 %v4317
        %4499 = vmatpush.bf16.msra.mxu0 %v4315
        %4500 = vmatpush.bf16.msra.mxu0 %v4313
        %4501 = vmatpush.bf16.msra.mxu0 %v4311
        %4502 = vmatpush.bf16.msra.mxu0 %v4309
        %4503 = vmatpush.bf16.msra.mxu0 %v4307
        %4504 = vmatpush.bf16.msra.mxu0 %v4305
        %4505 = vmatpush.bf16.msra.mxu0 %v4303
        %4506 = vmatmul.bf16.gmra.mxu0 %v4045
        %v4507 = vpop.f32.mrf.mxu0
        %v4508 = vadd.f32 %v4479, %v4507
        %v4509 = vpop.f32.mrf.mxu0
        %v4510 = vadd.f32 %v4481, %v4509
        %4511 = vmatmul.bf16.gmra.mxu0 %v4073
        %v4512 = vpop.f32.mrf.mxu0
        %v4513 = vadd.f32 %v4484, %v4512
        %v4514 = vpop.f32.mrf.mxu0
        %v4515 = vadd.f32 %v4486, %v4514
        %4516 = vmatmul.bf16.gmra.mxu0 %v4097
        %v4517 = vpop.f32.mrf.mxu0
        %v4518 = vadd.f32 %v4489, %v4517
        %v4519 = vpop.f32.mrf.mxu0
        %v4520 = vadd.f32 %v4491, %v4519
        %4521 = vmatmul.bf16.gmra.mxu0 %v4121
        %v4522 = vpop.f32.mrf.mxu0
        %v4523 = vadd.f32 %v4494, %v4522
        %v4524 = vpop.f32.mrf.mxu0
        %v4525 = vadd.f32 %v4496, %v4524
        %4526 = vdwg.mxu0
        %4527 = vmatpush.bf16.msra.mxu0 %v4333
        %4528 = vmatpush.bf16.msra.mxu0 %v4331
        %4529 = vmatpush.bf16.msra.mxu0 %v4329
        %4530 = vmatpush.bf16.msra.mxu0 %v4327
        %4531 = vmatpush.bf16.msra.mxu0 %v4325
        %4532 = vmatpush.bf16.msra.mxu0 %v4323
        %4533 = vmatpush.bf16.msra.mxu0 %v4321
        %4534 = vmatpush.bf16.msra.mxu0 %v4319
        %4535 = vmatmul.bf16.gmra.mxu0 %v4057
        %v4536 = vpop.f32.mrf.mxu0
        %v4537 = vadd.f32 %v4508, %v4536
        %v4538 = vpop.f32.mrf.mxu0
        %v4539 = vadd.f32 %v4510, %v4538
        %4540 = vmatmul.bf16.gmra.mxu0 %v4081
        %v4541 = vpop.f32.mrf.mxu0
        %v4542 = vadd.f32 %v4513, %v4541
        %v4543 = vpop.f32.mrf.mxu0
        %v4544 = vadd.f32 %v4515, %v4543
        %4545 = vmatmul.bf16.gmra.mxu0 %v4105
        %v4546 = vpop.f32.mrf.mxu0
        %v4547 = vadd.f32 %v4518, %v4546
        %v4548 = vpop.f32.mrf.mxu0
        %v4549 = vadd.f32 %v4520, %v4548
        %4550 = vmatmul.bf16.gmra.mxu0 %v4129
        %v4551 = vpop.f32.mrf.mxu0
        %v4552 = vadd.f32 %v4523, %v4551
        %v4553 = vpop.f32.mrf.mxu0
        %v4554 = vadd.f32 %v4525, %v4553
        %4555 = vdwg.mxu0
        %v4556 = vsel %vm618, 1, 0
        %v4557 = vsel %vm619, 1, 0
        %v4558 = vsel %vm620, 1, 0
        %v4559 = vsel %vm621, 1, 0
        %v4560 = vsel %vm622, 1, 0
        %v4561 = vsel %vm623, 1, 0
        %v4562 = vsel %vm624, 1, 0
        %v4563 = vsel %vm625, 1, 0
        %vm4564 = vcmp.eq.s32.totalorder %v4556, 1
        %vm4565 = vcmp.eq.s32.totalorder %v4557, 1
        %vm4566 = vcmp.eq.s32.totalorder %v4558, 1
        %vm4567 = vcmp.eq.s32.totalorder %v4559, 1
        %vm4568 = vcmp.eq.s32.totalorder %v4560, 1
        %vm4569 = vcmp.eq.s32.totalorder %v4561, 1
        %vm4570 = vcmp.eq.s32.totalorder %v4562, 1
        %vm4571 = vcmp.eq.s32.totalorder %v4563, 1
        %v4572 = vsel %vm4564, %v4450, 0.0
        %v4573 = vsel %vm4564, %v4537, 0.0
        %v4574 = vsel %vm4565, %v4452, 0.0
        %v4575 = vsel %vm4565, %v4539, 0.0
        %v4576 = vsel %vm4566, %v4455, 0.0
        %v4577 = vsel %vm4566, %v4542, 0.0
        %v4578 = vsel %vm4567, %v4457, 0.0
        %v4579 = vsel %vm4567, %v4544, 0.0
        %v4580 = vsel %vm4568, %v4460, 0.0
        %v4581 = vsel %vm4568, %v4547, 0.0
        %v4582 = vsel %vm4569, %v4462, 0.0
        %v4583 = vsel %vm4569, %v4549, 0.0
        %v4584 = vsel %vm4570, %v4465, 0.0
        %v4585 = vsel %vm4570, %v4552, 0.0
        %v4586 = vsel %vm4571, %v4467, 0.0
        %v4587 = vsel %vm4571, %v4554, 0.0
        %v4588 = vadd.f32 %v3914, %v4572
        %v4589 = vadd.f32 %v3915, %v4573
        %v4590 = vadd.f32 %v3916, %v4574
        %v4591 = vadd.f32 %v3917, %v4575
        %v4592 = vadd.f32 %v3918, %v4576
        %v4593 = vadd.f32 %v3919, %v4577
        %v4594 = vadd.f32 %v3920, %v4578
        %v4595 = vadd.f32 %v3921, %v4579
        %v4596 = vadd.f32 %v3922, %v4580
        %v4597 = vadd.f32 %v3923, %v4581
        %v4598 = vadd.f32 %v3924, %v4582
        %v4599 = vadd.f32 %v3925, %v4583
        %v4600 = vadd.f32 %v3926, %v4584
        %v4601 = vadd.f32 %v3927, %v4585
        %v4602 = vadd.f32 %v3928, %v4586
        %v4603 = vadd.f32 %v3929, %v4587
        %v4604 = vld [vmem:[#allocation2 + $0x18] sm:$0x80]
        %v4605 = vld [vmem:[#allocation2 + $0x20] sm:$0x80]
        %v4606 = vld [vmem:[#allocation2 + $0x28] sm:$0x80]
        %v4607 = vld [vmem:[#allocation2 + $0xd8] sm:$0x7f]
        %v4608 = vld [vmem:[#allocation2 + $0xe0] sm:$0x7f]
        %v4609 = vld [vmem:[#allocation2 + $0xe8] sm:$0x7f]
        %v4610 = vpack.c.bf16 %v3933, %v4604
        %v4611 = vpack.c.bf16 %v3934, %v4605
        %v4612 = vpack.c.bf16 %v3935, %v4606
        %v4613 = vpack.c.bf16 %v4607, %v4607
        %v4614 = vpack.c.bf16 %v4608, %v4608
        %v4615 = vpack.c.bf16 %v4609, %v4609
        %s4616 = scalar_lea.vmem %s3, 1152
        %v4617 = vld [vmem:[%s4616] sm:$0xff]
        %v4618 = vld [vmem:[%s4616 + $0x8] sm:$0xff]
        %v4619 = vld [vmem:[%s4616 + $0x10] sm:$0xff]
        %v4620 = vld [vmem:[%s4616 + $0x18] sm:$0xff]
        %v4621 = vld [vmem:[%s4616 + $0x20] sm:$0xff]
        %v4622 = vld [vmem:[%s4616 + $0x28] sm:$0xff]
        %v4623 = vld [vmem:[%s4616 + $0x30] sm:$0xff]
        %v4624 = vld [vmem:[%s4616 + $0x38] sm:$0xff]
        %v4625 = vld [vmem:[%s4616 + $0x40] sm:$0xff]
        %v4626 = vld [vmem:[%s4616 + $0x48] sm:$0xff]
        %v4627 = vld [vmem:[%s4616 + $0x50] sm:$0xff]
        %v4628 = vld [vmem:[%s4616 + $0x58] sm:$0xff]
        %v4629 = vld [vmem:[%s4616 + $0x60] sm:$0xff]
        %v4630 = vld [vmem:[%s4616 + $0x68] sm:$0xff]
        %v4631 = vld [vmem:[%s4616 + $0x70] sm:$0xff]
        %v4632 = vld [vmem:[%s4616 + $0x78] sm:$0xff]
        %v4633 = vld [vmem:[%s4616 + $0x80] sm:$0xff]
        %v4634 = vld [vmem:[%s4616 + $0x88] sm:$0xff]
        %v4635 = vld [vmem:[%s4616 + $0x90] sm:$0xff]
        %v4636 = vld [vmem:[%s4616 + $0x98] sm:$0xff]
        %v4637 = vld [vmem:[%s4616 + $0xa0] sm:$0xff]
        %v4638 = vld [vmem:[%s4616 + $0xa8] sm:$0xff]
        %v4639 = vld [vmem:[%s4616 + $0xb0] sm:$0xff]
        %v4640 = vld [vmem:[%s4616 + $0xb8] sm:$0xff]
        %v4641 = vld [vmem:[%s4616 + $0xc0] sm:$0xff]
        %v4642 = vld [vmem:[%s4616 + $0xc8] sm:$0xff]
        %v4643 = vld [vmem:[%s4616 + $0xd0] sm:$0xff]
        %v4644 = vld [vmem:[%s4616 + $0xd8] sm:$0xff]
        %v4645 = vld [vmem:[%s4616 + $0xe0] sm:$0xff]
        %v4646 = vld [vmem:[%s4616 + $0xe8] sm:$0xff]
        %v4647 = vld [vmem:[%s4616 + $0xf0] sm:$0xff]
        %v4648 = vld [vmem:[%s4616 + $0xf8] sm:$0xff]
        %v4649 = vld [vmem:[%s4616 + $0x100] sm:$0xff]
        %v4650 = vld [vmem:[%s4616 + $0x108] sm:$0xff]
        %v4651 = vld [vmem:[%s4616 + $0x110] sm:$0xff]
        %v4652 = vld [vmem:[%s4616 + $0x118] sm:$0xff]
        %v4653 = vld [vmem:[%s4616 + $0x120] sm:$0xff]
        %v4654 = vld [vmem:[%s4616 + $0x128] sm:$0xff]
        %v4655 = vld [vmem:[%s4616 + $0x130] sm:$0xff]
        %v4656 = vld [vmem:[%s4616 + $0x138] sm:$0xff]
        %v4657 = vld [vmem:[%s4616 + $0x140] sm:$0xff]
        %v4658 = vld [vmem:[%s4616 + $0x148] sm:$0xff]
        %v4659 = vld [vmem:[%s4616 + $0x150] sm:$0xff]
        %v4660 = vld [vmem:[%s4616 + $0x158] sm:$0xff]
        %v4661 = vld [vmem:[%s4616 + $0x160] sm:$0xff]
        %v4662 = vld [vmem:[%s4616 + $0x168] sm:$0xff]
        %v4663 = vld [vmem:[%s4616 + $0x170] sm:$0xff]
        %v4664 = vld [vmem:[%s4616 + $0x178] sm:$0xff]
        %v4666 = vshrl.u32 %v4610, 16
        %v4668 = vrot.slane %v4666, 3
        %v4669 = vshll.u32 %v4610, 16
        %v4671 = vrot.slane %v4669, 4
        %v4672 = vor.u32 %v4668, %v4671
        %v4673 = vrot.slane %v4058, 3
        %v4674 = vrot.slane %v4030, 4
        %v4675 = vor.u32 %v4673, %v4674
        %v4676 = vsel %vm2845, %v4672, %v4675
        %v4678 = vshrl.u32 %v4611, 16
        %v4680 = vrot.slane %v4678, 3
        %v4681 = vshll.u32 %v4611, 16
        %v4683 = vrot.slane %v4681, 4
        %v4684 = vor.u32 %v4680, %v4683
        %v4685 = vrot.slane %v4066, 3
        %v4686 = vrot.slane %v4042, 4
        %v4687 = vor.u32 %v4685, %v4686
        %v4688 = vsel %vm2845, %v4684, %v4687
        %v4690 = vshrl.u32 %v4612, 16
        %v4692 = vrot.slane %v4690, 3
        %v4693 = vshll.u32 %v4612, 16
        %v4695 = vrot.slane %v4693, 4
        %v4696 = vor.u32 %v4692, %v4695
        %v4697 = vrot.slane %v4074, 3
        %v4698 = vrot.slane %v4054, 4
        %v4699 = vor.u32 %v4697, %v4698
        %v4700 = vsel %vm2845, %v4696, %v4699
        %v4701 = vrot.slane %v4082, 3
        %v4702 = vrot.slane %v4062, 4
        %v4703 = vor.u32 %v4701, %v4702
        %v4704 = vsel %vm2845, %v4675, %v4703
        %v4705 = vrot.slane %v4090, 3
        %v4706 = vrot.slane %v4070, 4
        %v4707 = vor.u32 %v4705, %v4706
        %v4708 = vsel %vm2845, %v4687, %v4707
        %v4709 = vrot.slane %v4098, 3
        %v4710 = vrot.slane %v4078, 4
        %v4711 = vor.u32 %v4709, %v4710
        %v4712 = vsel %vm2845, %v4699, %v4711
        %v4713 = vrot.slane %v4106, 3
        %v4714 = vrot.slane %v4086, 4
        %v4715 = vor.u32 %v4713, %v4714
        %v4716 = vsel %vm2845, %v4703, %v4715
        %v4717 = vrot.slane %v4114, 3
        %v4718 = vrot.slane %v4094, 4
        %v4719 = vor.u32 %v4717, %v4718
        %v4720 = vsel %vm2845, %v4707, %v4719
        %v4721 = vrot.slane %v4122, 3
        %v4722 = vrot.slane %v4102, 4
        %v4723 = vor.u32 %v4721, %v4722
        %v4724 = vsel %vm2845, %v4711, %v4723
        %v4726 = vshrl.u32 %v4613, 16
        %v4728 = vrot.slane %v4726, 3
        %v4729 = vshll.u32 %v4613, 16
        %v4731 = vrot.slane %v4729, 4
        %v4732 = vor.u32 %v4728, %v4731
        %v4733 = vsel %vm2845, %v4715, %v4732
        %v4735 = vshrl.u32 %v4614, 16
        %v4737 = vrot.slane %v4735, 3
        %v4738 = vshll.u32 %v4614, 16
        %v4740 = vrot.slane %v4738, 4
        %v4741 = vor.u32 %v4737, %v4740
        %v4742 = vsel %vm2845, %v4719, %v4741
        %v4744 = vshrl.u32 %v4615, 16
        %v4746 = vrot.slane %v4744, 3
        %v4747 = vshll.u32 %v4615, 16
        %v4749 = vrot.slane %v4747, 4
        %v4750 = vor.u32 %v4746, %v4749
        %v4751 = vsel %vm2845, %v4723, %v4750
        %v4812 = vunpack.c.l.b16 %v4617
        %v4813 = vunpack.c.h.b16 %v4617
        %v4814 = vunpack.c.l.b16 %v4618
        %v4815 = vunpack.c.h.b16 %v4618
        %v4816 = vunpack.c.l.b16 %v4619
        %v4817 = vunpack.c.h.b16 %v4619
        %v4818 = vunpack.c.l.b16 %v4620
        %v4819 = vunpack.c.h.b16 %v4620
        %v4820 = vunpack.c.l.b16 %v4621
        %v4821 = vunpack.c.h.b16 %v4621
        %v4822 = vunpack.c.l.b16 %v4622
        %v4823 = vunpack.c.h.b16 %v4622
        %v4824 = vunpack.c.l.b16 %v4623
        %v4825 = vunpack.c.h.b16 %v4623
        %v4826 = vunpack.c.l.b16 %v4624
        %v4827 = vunpack.c.h.b16 %v4624
        %v4828 = vunpack.c.l.b16 %v4625
        %v4829 = vunpack.c.h.b16 %v4625
        %v4830 = vunpack.c.l.b16 %v4626
        %v4831 = vunpack.c.h.b16 %v4626
        %v4832 = vunpack.c.l.b16 %v4627
        %v4833 = vunpack.c.h.b16 %v4627
        %v4834 = vunpack.c.l.b16 %v4628
        %v4835 = vunpack.c.h.b16 %v4628
        %v4836 = vunpack.c.l.b16 %v4629
        %v4837 = vunpack.c.h.b16 %v4629
        %v4838 = vunpack.c.l.b16 %v4630
        %v4839 = vunpack.c.h.b16 %v4630
        %v4840 = vunpack.c.l.b16 %v4631
        %v4841 = vunpack.c.h.b16 %v4631
        %v4842 = vunpack.c.l.b16 %v4632
        %v4843 = vunpack.c.h.b16 %v4632
        %v4844 = vunpack.c.l.b16 %v4633
        %v4845 = vunpack.c.h.b16 %v4633
        %v4846 = vunpack.c.l.b16 %v4634
        %v4847 = vunpack.c.h.b16 %v4634
        %v4848 = vunpack.c.l.b16 %v4635
        %v4849 = vunpack.c.h.b16 %v4635
        %v4850 = vunpack.c.l.b16 %v4636
        %v4851 = vunpack.c.h.b16 %v4636
        %v4852 = vunpack.c.l.b16 %v4637
        %v4853 = vunpack.c.h.b16 %v4637
        %v4854 = vunpack.c.l.b16 %v4638
        %v4855 = vunpack.c.h.b16 %v4638
        %v4856 = vunpack.c.l.b16 %v4639
        %v4857 = vunpack.c.h.b16 %v4639
        %v4858 = vunpack.c.l.b16 %v4640
        %v4859 = vunpack.c.h.b16 %v4640
        %v4860 = vunpack.c.l.b16 %v4641
        %v4861 = vunpack.c.h.b16 %v4641
        %v4862 = vunpack.c.l.b16 %v4642
        %v4863 = vunpack.c.h.b16 %v4642
        %v4864 = vunpack.c.l.b16 %v4643
        %v4865 = vunpack.c.h.b16 %v4643
        %v4866 = vunpack.c.l.b16 %v4644
        %v4867 = vunpack.c.h.b16 %v4644
        %v4868 = vunpack.c.l.b16 %v4645
        %v4869 = vunpack.c.h.b16 %v4645
        %v4870 = vunpack.c.l.b16 %v4646
        %v4871 = vunpack.c.h.b16 %v4646
        %v4872 = vunpack.c.l.b16 %v4647
        %v4873 = vunpack.c.h.b16 %v4647
        %v4874 = vunpack.c.l.b16 %v4648
        %v4875 = vunpack.c.h.b16 %v4648
        %v4876 = vunpack.c.l.b16 %v4649
        %v4877 = vunpack.c.h.b16 %v4649
        %v4878 = vunpack.c.l.b16 %v4650
        %v4879 = vunpack.c.h.b16 %v4650
        %v4880 = vunpack.c.l.b16 %v4651
        %v4881 = vunpack.c.h.b16 %v4651
        %v4882 = vunpack.c.l.b16 %v4652
        %v4883 = vunpack.c.h.b16 %v4652
        %v4884 = vunpack.c.l.b16 %v4653
        %v4885 = vunpack.c.h.b16 %v4653
        %v4886 = vunpack.c.l.b16 %v4654
        %v4887 = vunpack.c.h.b16 %v4654
        %v4888 = vunpack.c.l.b16 %v4655
        %v4889 = vunpack.c.h.b16 %v4655
        %v4890 = vunpack.c.l.b16 %v4656
        %v4891 = vunpack.c.h.b16 %v4656
        %v4892 = vunpack.c.l.b16 %v4657
        %v4893 = vunpack.c.h.b16 %v4657
        %v4894 = vunpack.c.l.b16 %v4658
        %v4895 = vunpack.c.h.b16 %v4658
        %v4896 = vunpack.c.l.b16 %v4659
        %v4897 = vunpack.c.h.b16 %v4659
        %v4898 = vunpack.c.l.b16 %v4660
        %v4899 = vunpack.c.h.b16 %v4660
        %v4900 = vunpack.c.l.b16 %v4661
        %v4901 = vunpack.c.h.b16 %v4661
        %v4902 = vunpack.c.l.b16 %v4662
        %v4903 = vunpack.c.h.b16 %v4662
        %v4904 = vunpack.c.l.b16 %v4663
        %v4905 = vunpack.c.h.b16 %v4663
        %v4906 = vunpack.c.l.b16 %v4664
        %v4907 = vunpack.c.h.b16 %v4664
        %v4908 = vpack.c.b16 %v4814, %v4812
        %v4909 = vpack.c.b16 %v4815, %v4813
        %v4910 = vpack.c.b16 %v4818, %v4816
        %v4911 = vpack.c.b16 %v4819, %v4817
        %v4912 = vpack.c.b16 %v4822, %v4820
        %v4913 = vpack.c.b16 %v4823, %v4821
        %v4914 = vpack.c.b16 %v4826, %v4824
        %v4915 = vpack.c.b16 %v4827, %v4825
        %v4916 = vpack.c.b16 %v4830, %v4828
        %v4917 = vpack.c.b16 %v4831, %v4829
        %v4918 = vpack.c.b16 %v4834, %v4832
        %v4919 = vpack.c.b16 %v4835, %v4833
        %v4920 = vpack.c.b16 %v4838, %v4836
        %v4921 = vpack.c.b16 %v4839, %v4837
        %v4922 = vpack.c.b16 %v4842, %v4840
        %v4923 = vpack.c.b16 %v4843, %v4841
        %v4924 = vpack.c.b16 %v4846, %v4844
        %v4925 = vpack.c.b16 %v4847, %v4845
        %v4926 = vpack.c.b16 %v4850, %v4848
        %v4927 = vpack.c.b16 %v4851, %v4849
        %v4928 = vpack.c.b16 %v4854, %v4852
        %v4929 = vpack.c.b16 %v4855, %v4853
        %v4930 = vpack.c.b16 %v4858, %v4856
        %v4931 = vpack.c.b16 %v4859, %v4857
        %v4932 = vpack.c.b16 %v4862, %v4860
        %v4933 = vpack.c.b16 %v4863, %v4861
        %v4934 = vpack.c.b16 %v4866, %v4864
        %v4935 = vpack.c.b16 %v4867, %v4865
        %v4936 = vpack.c.b16 %v4870, %v4868
        %v4937 = vpack.c.b16 %v4871, %v4869
        %v4938 = vpack.c.b16 %v4874, %v4872
        %v4939 = vpack.c.b16 %v4875, %v4873
        %v4940 = vpack.c.b16 %v4878, %v4876
        %v4941 = vpack.c.b16 %v4879, %v4877
        %v4942 = vpack.c.b16 %v4882, %v4880
        %v4943 = vpack.c.b16 %v4883, %v4881
        %v4944 = vpack.c.b16 %v4886, %v4884
        %v4945 = vpack.c.b16 %v4887, %v4885
        %v4946 = vpack.c.b16 %v4890, %v4888
        %v4947 = vpack.c.b16 %v4891, %v4889
        %v4948 = vpack.c.b16 %v4894, %v4892
        %v4949 = vpack.c.b16 %v4895, %v4893
        %v4950 = vpack.c.b16 %v4898, %v4896
        %v4951 = vpack.c.b16 %v4899, %v4897
        %v4952 = vpack.c.b16 %v4902, %v4900
        %v4953 = vpack.c.b16 %v4903, %v4901
        %v4954 = vpack.c.b16 %v4906, %v4904
        %v4955 = vpack.c.b16 %v4907, %v4905
        %5004 = vmatpush.bf16.msra.mxu0 %v4922
        %5005 = vmatpush.bf16.msra.mxu0 %v4920
        %5006 = vmatpush.bf16.msra.mxu0 %v4918
        %5007 = vmatpush.bf16.msra.mxu0 %v4916
        %5008 = vmatpush.bf16.msra.mxu0 %v4914
        %5009 = vmatpush.bf16.msra.mxu0 %v4912
        %5010 = vmatpush.bf16.msra.mxu0 %v4910
        %5011 = vmatpush.bf16.msra.mxu0 %v4908
        %5012 = vmatmul.bf16.gmra.mxu0 %v4676
        %v5013 = vpop.f32.mrf.mxu0
        %v5014 = vadd.f32 0.0, %v5013
        %v5015 = vpop.f32.mrf.mxu0
        %v5016 = vadd.f32 0.0, %v5015
        %5017 = vmatmul.bf16.gmra.mxu0 %v4704
        %v5018 = vpop.f32.mrf.mxu0
        %v5019 = vadd.f32 0.0, %v5018
        %v5020 = vpop.f32.mrf.mxu0
        %v5021 = vadd.f32 0.0, %v5020
        %5022 = vmatmul.bf16.gmra.mxu0 %v4716
        %v5023 = vpop.f32.mrf.mxu0
        %v5024 = vadd.f32 0.0, %v5023
        %v5025 = vpop.f32.mrf.mxu0
        %v5026 = vadd.f32 0.0, %v5025
        %5027 = vmatmul.bf16.gmra.mxu0 %v4733
        %v5028 = vpop.f32.mrf.mxu0
        %v5029 = vadd.f32 0.0, %v5028
        %v5030 = vpop.f32.mrf.mxu0
        %v5031 = vadd.f32 0.0, %v5030
        %5032 = vdwg.mxu0
        %5033 = vmatpush.bf16.msra.mxu0 %v4938
        %5034 = vmatpush.bf16.msra.mxu0 %v4936
        %5035 = vmatpush.bf16.msra.mxu0 %v4934
        %5036 = vmatpush.bf16.msra.mxu0 %v4932
        %5037 = vmatpush.bf16.msra.mxu0 %v4930
        %5038 = vmatpush.bf16.msra.mxu0 %v4928
        %5039 = vmatpush.bf16.msra.mxu0 %v4926
        %5040 = vmatpush.bf16.msra.mxu0 %v4924
        %5041 = vmatmul.bf16.gmra.mxu0 %v4688
        %v5042 = vpop.f32.mrf.mxu0
        %v5043 = vadd.f32 %v5014, %v5042
        %v5044 = vpop.f32.mrf.mxu0
        %v5045 = vadd.f32 %v5016, %v5044
        %5046 = vmatmul.bf16.gmra.mxu0 %v4708
        %v5047 = vpop.f32.mrf.mxu0
        %v5048 = vadd.f32 %v5019, %v5047
        %v5049 = vpop.f32.mrf.mxu0
        %v5050 = vadd.f32 %v5021, %v5049
        %5051 = vmatmul.bf16.gmra.mxu0 %v4720
        %v5052 = vpop.f32.mrf.mxu0
        %v5053 = vadd.f32 %v5024, %v5052
        %v5054 = vpop.f32.mrf.mxu0
        %v5055 = vadd.f32 %v5026, %v5054
        %5056 = vmatmul.bf16.gmra.mxu0 %v4742
        %v5057 = vpop.f32.mrf.mxu0
        %v5058 = vadd.f32 %v5029, %v5057
        %v5059 = vpop.f32.mrf.mxu0
        %v5060 = vadd.f32 %v5031, %v5059
        %5061 = vdwg.mxu0
        %5062 = vmatpush.bf16.msra.mxu0 %v4954
        %5063 = vmatpush.bf16.msra.mxu0 %v4952
        %5064 = vmatpush.bf16.msra.mxu0 %v4950
        %5065 = vmatpush.bf16.msra.mxu0 %v4948
        %5066 = vmatpush.bf16.msra.mxu0 %v4946
        %5067 = vmatpush.bf16.msra.mxu0 %v4944
        %5068 = vmatpush.bf16.msra.mxu0 %v4942
        %5069 = vmatpush.bf16.msra.mxu0 %v4940
        %5070 = vmatmul.bf16.gmra.mxu0 %v4700
        %v5071 = vpop.f32.mrf.mxu0
        %v5072 = vadd.f32 %v5043, %v5071
        %v5073 = vpop.f32.mrf.mxu0
        %v5074 = vadd.f32 %v5045, %v5073
        %5075 = vmatmul.bf16.gmra.mxu0 %v4712
        %v5076 = vpop.f32.mrf.mxu0
        %v5077 = vadd.f32 %v5048, %v5076
        %v5078 = vpop.f32.mrf.mxu0
        %v5079 = vadd.f32 %v5050, %v5078
        %5080 = vmatmul.bf16.gmra.mxu0 %v4724
        %v5081 = vpop.f32.mrf.mxu0
        %v5082 = vadd.f32 %v5053, %v5081
        %v5083 = vpop.f32.mrf.mxu0
        %v5084 = vadd.f32 %v5055, %v5083
        %5085 = vmatmul.bf16.gmra.mxu0 %v4751
        %v5086 = vpop.f32.mrf.mxu0
        %v5087 = vadd.f32 %v5058, %v5086
        %v5088 = vpop.f32.mrf.mxu0
        %v5089 = vadd.f32 %v5060, %v5088
        %5090 = vdwg.mxu0
        %5091 = vmatpush.bf16.msra.mxu0 %v4923
        %5092 = vmatpush.bf16.msra.mxu0 %v4921
        %5093 = vmatpush.bf16.msra.mxu0 %v4919
        %5094 = vmatpush.bf16.msra.mxu0 %v4917
        %5095 = vmatpush.bf16.msra.mxu0 %v4915
        %5096 = vmatpush.bf16.msra.mxu0 %v4913
        %5097 = vmatpush.bf16.msra.mxu0 %v4911
        %5098 = vmatpush.bf16.msra.mxu0 %v4909
        %5099 = vmatmul.bf16.gmra.mxu0 %v4676
        %v5100 = vpop.f32.mrf.mxu0
        %v5101 = vadd.f32 0.0, %v5100
        %v5102 = vpop.f32.mrf.mxu0
        %v5103 = vadd.f32 0.0, %v5102
        %5104 = vmatmul.bf16.gmra.mxu0 %v4704
        %v5105 = vpop.f32.mrf.mxu0
        %v5106 = vadd.f32 0.0, %v5105
        %v5107 = vpop.f32.mrf.mxu0
        %v5108 = vadd.f32 0.0, %v5107
        %5109 = vmatmul.bf16.gmra.mxu0 %v4716
        %v5110 = vpop.f32.mrf.mxu0
        %v5111 = vadd.f32 0.0, %v5110
        %v5112 = vpop.f32.mrf.mxu0
        %v5113 = vadd.f32 0.0, %v5112
        %5114 = vmatmul.bf16.gmra.mxu0 %v4733
        %v5115 = vpop.f32.mrf.mxu0
        %v5116 = vadd.f32 0.0, %v5115
        %v5117 = vpop.f32.mrf.mxu0
        %v5118 = vadd.f32 0.0, %v5117
        %5119 = vdwg.mxu0
        %5120 = vmatpush.bf16.msra.mxu0 %v4939
        %5121 = vmatpush.bf16.msra.mxu0 %v4937
        %5122 = vmatpush.bf16.msra.mxu0 %v4935
        %5123 = vmatpush.bf16.msra.mxu0 %v4933
        %5124 = vmatpush.bf16.msra.mxu0 %v4931
        %5125 = vmatpush.bf16.msra.mxu0 %v4929
        %5126 = vmatpush.bf16.msra.mxu0 %v4927
        %5127 = vmatpush.bf16.msra.mxu0 %v4925
        %5128 = vmatmul.bf16.gmra.mxu0 %v4688
        %v5129 = vpop.f32.mrf.mxu0
        %v5130 = vadd.f32 %v5101, %v5129
        %v5131 = vpop.f32.mrf.mxu0
        %v5132 = vadd.f32 %v5103, %v5131
        %5133 = vmatmul.bf16.gmra.mxu0 %v4708
        %v5134 = vpop.f32.mrf.mxu0
        %v5135 = vadd.f32 %v5106, %v5134
        %v5136 = vpop.f32.mrf.mxu0
        %v5137 = vadd.f32 %v5108, %v5136
        %5138 = vmatmul.bf16.gmra.mxu0 %v4720
        %v5139 = vpop.f32.mrf.mxu0
        %v5140 = vadd.f32 %v5111, %v5139
        %v5141 = vpop.f32.mrf.mxu0
        %v5142 = vadd.f32 %v5113, %v5141
        %5143 = vmatmul.bf16.gmra.mxu0 %v4742
        %v5144 = vpop.f32.mrf.mxu0
        %v5145 = vadd.f32 %v5116, %v5144
        %v5146 = vpop.f32.mrf.mxu0
        %v5147 = vadd.f32 %v5118, %v5146
        %5148 = vdwg.mxu0
        %5149 = vmatpush.bf16.msra.mxu0 %v4955
        %5150 = vmatpush.bf16.msra.mxu0 %v4953
        %5151 = vmatpush.bf16.msra.mxu0 %v4951
        %5152 = vmatpush.bf16.msra.mxu0 %v4949
        %5153 = vmatpush.bf16.msra.mxu0 %v4947
        %5154 = vmatpush.bf16.msra.mxu0 %v4945
        %5155 = vmatpush.bf16.msra.mxu0 %v4943
        %5156 = vmatpush.bf16.msra.mxu0 %v4941
        %5157 = vmatmul.bf16.gmra.mxu0 %v4700
        %v5158 = vpop.f32.mrf.mxu0
        %v5159 = vadd.f32 %v5130, %v5158
        %v5160 = vpop.f32.mrf.mxu0
        %v5161 = vadd.f32 %v5132, %v5160
        %5162 = vmatmul.bf16.gmra.mxu0 %v4712
        %v5163 = vpop.f32.mrf.mxu0
        %v5164 = vadd.f32 %v5135, %v5163
        %v5165 = vpop.f32.mrf.mxu0
        %v5166 = vadd.f32 %v5137, %v5165
        %5167 = vmatmul.bf16.gmra.mxu0 %v4724
        %v5168 = vpop.f32.mrf.mxu0
        %v5169 = vadd.f32 %v5140, %v5168
        %v5170 = vpop.f32.mrf.mxu0
        %v5171 = vadd.f32 %v5142, %v5170
        %5172 = vmatmul.bf16.gmra.mxu0 %v4751
        %v5173 = vpop.f32.mrf.mxu0
        %v5174 = vadd.f32 %v5145, %v5173
        %v5175 = vpop.f32.mrf.mxu0
        %v5176 = vadd.f32 %v5147, %v5175
        %5177 = vdwg.mxu0
        %v5178 = vsel %vm3412, %v5072, 0.0
        %v5179 = vsel %vm3412, %v5159, 0.0
        %v5180 = vsel %vm3413, %v5074, 0.0
        %v5181 = vsel %vm3413, %v5161, 0.0
        %v5182 = vsel %vm3414, %v5077, 0.0
        %v5183 = vsel %vm3414, %v5164, 0.0
        %v5184 = vsel %vm3415, %v5079, 0.0
        %v5185 = vsel %vm3415, %v5166, 0.0
        %v5186 = vsel %vm3416, %v5082, 0.0
        %v5187 = vsel %vm3416, %v5169, 0.0
        %v5188 = vsel %vm3417, %v5084, 0.0
        %v5189 = vsel %vm3417, %v5171, 0.0
        %v5190 = vsel %vm3418, %v5087, 0.0
        %v5191 = vsel %vm3418, %v5174, 0.0
        %v5192 = vsel %vm3419, %v5089, 0.0
        %v5193 = vsel %vm3419, %v5176, 0.0
        %v5194 = vadd.f32 %v4588, %v5178
        %v5195 = vadd.f32 %v4589, %v5179
        %v5196 = vadd.f32 %v4590, %v5180
        %v5197 = vadd.f32 %v4591, %v5181
        %v5198 = vadd.f32 %v4592, %v5182
        %v5199 = vadd.f32 %v4593, %v5183
        %v5200 = vadd.f32 %v4594, %v5184
        %v5201 = vadd.f32 %v4595, %v5185
        %v5202 = vadd.f32 %v4596, %v5186
        %v5203 = vadd.f32 %v4597, %v5187
        %v5204 = vadd.f32 %v4598, %v5188
        %v5205 = vadd.f32 %v4599, %v5189
        %v5206 = vadd.f32 %v4600, %v5190
        %v5207 = vadd.f32 %v4601, %v5191
        %v5208 = vadd.f32 %v4602, %v5192
        %v5209 = vadd.f32 %v4603, %v5193
        %v5210 = vld [vmem:[#allocation2 + $0xd8] sm:$0xff]
        %v5211 = vld [vmem:[#allocation2 + $0xe0] sm:$0xff]
        %v5212 = vld [vmem:[#allocation2 + $0xe8] sm:$0xff]
        %v5213 = vpack.c.bf16 %v3936, %v3933
        %v5214 = vpack.c.bf16 %v3937, %v3934
        %v5215 = vpack.c.bf16 %v3938, %v3935
        %v5216 = vpack.c.bf16 %v3942, %v3939
        %v5217 = vpack.c.bf16 %v3943, %v3940
        %v5218 = vpack.c.bf16 %v3944, %v3941
        %v5219 = vpack.c.bf16 %v3948, %v3945
        %v5220 = vpack.c.bf16 %v3949, %v3946
        %v5221 = vpack.c.bf16 %v3950, %v3947
        %v5222 = vpack.c.bf16 %v5210, %v3951
        %v5223 = vpack.c.bf16 %v5211, %v3952
        %v5224 = vpack.c.bf16 %v5212, %v3953
        %s5225 = scalar_lea.vmem %s3, 1536
        %v5226 = vld [vmem:[%s5225] sm:$0xff]
        %v5227 = vld [vmem:[%s5225 + $0x8] sm:$0xff]
        %v5228 = vld [vmem:[%s5225 + $0x10] sm:$0xff]
        %v5229 = vld [vmem:[%s5225 + $0x18] sm:$0xff]
        %v5230 = vld [vmem:[%s5225 + $0x20] sm:$0xff]
        %v5231 = vld [vmem:[%s5225 + $0x28] sm:$0xff]
        %v5232 = vld [vmem:[%s5225 + $0x30] sm:$0xff]
        %v5233 = vld [vmem:[%s5225 + $0x38] sm:$0xff]
        %v5234 = vld [vmem:[%s5225 + $0x40] sm:$0xff]
        %v5235 = vld [vmem:[%s5225 + $0x48] sm:$0xff]
        %v5236 = vld [vmem:[%s5225 + $0x50] sm:$0xff]
        %v5237 = vld [vmem:[%s5225 + $0x58] sm:$0xff]
        %v5238 = vld [vmem:[%s5225 + $0x60] sm:$0xff]
        %v5239 = vld [vmem:[%s5225 + $0x68] sm:$0xff]
        %v5240 = vld [vmem:[%s5225 + $0x70] sm:$0xff]
        %v5241 = vld [vmem:[%s5225 + $0x78] sm:$0xff]
        %v5242 = vld [vmem:[%s5225 + $0x80] sm:$0xff]
        %v5243 = vld [vmem:[%s5225 + $0x88] sm:$0xff]
        %v5244 = vld [vmem:[%s5225 + $0x90] sm:$0xff]
        %v5245 = vld [vmem:[%s5225 + $0x98] sm:$0xff]
        %v5246 = vld [vmem:[%s5225 + $0xa0] sm:$0xff]
        %v5247 = vld [vmem:[%s5225 + $0xa8] sm:$0xff]
        %v5248 = vld [vmem:[%s5225 + $0xb0] sm:$0xff]
        %v5249 = vld [vmem:[%s5225 + $0xb8] sm:$0xff]
        %v5250 = vld [vmem:[%s5225 + $0xc0] sm:$0xff]
        %v5251 = vld [vmem:[%s5225 + $0xc8] sm:$0xff]
        %v5252 = vld [vmem:[%s5225 + $0xd0] sm:$0xff]
        %v5253 = vld [vmem:[%s5225 + $0xd8] sm:$0xff]
        %v5254 = vld [vmem:[%s5225 + $0xe0] sm:$0xff]
        %v5255 = vld [vmem:[%s5225 + $0xe8] sm:$0xff]
        %v5256 = vld [vmem:[%s5225 + $0xf0] sm:$0xff]
        %v5257 = vld [vmem:[%s5225 + $0xf8] sm:$0xff]
        %v5258 = vld [vmem:[%s5225 + $0x100] sm:$0xff]
        %v5259 = vld [vmem:[%s5225 + $0x108] sm:$0xff]
        %v5260 = vld [vmem:[%s5225 + $0x110] sm:$0xff]
        %v5261 = vld [vmem:[%s5225 + $0x118] sm:$0xff]
        %v5262 = vld [vmem:[%s5225 + $0x120] sm:$0xff]
        %v5263 = vld [vmem:[%s5225 + $0x128] sm:$0xff]
        %v5264 = vld [vmem:[%s5225 + $0x130] sm:$0xff]
        %v5265 = vld [vmem:[%s5225 + $0x138] sm:$0xff]
        %v5266 = vld [vmem:[%s5225 + $0x140] sm:$0xff]
        %v5267 = vld [vmem:[%s5225 + $0x148] sm:$0xff]
        %v5268 = vld [vmem:[%s5225 + $0x150] sm:$0xff]
        %v5269 = vld [vmem:[%s5225 + $0x158] sm:$0xff]
        %v5270 = vld [vmem:[%s5225 + $0x160] sm:$0xff]
        %v5271 = vld [vmem:[%s5225 + $0x168] sm:$0xff]
        %v5272 = vld [vmem:[%s5225 + $0x170] sm:$0xff]
        %v5273 = vld [vmem:[%s5225 + $0x178] sm:$0xff]
        %v5322 = vunpack.c.l.b16 %v5226
        %v5323 = vunpack.c.h.b16 %v5226
        %v5324 = vunpack.c.l.b16 %v5227
        %v5325 = vunpack.c.h.b16 %v5227
        %v5326 = vunpack.c.l.b16 %v5228
        %v5327 = vunpack.c.h.b16 %v5228
        %v5328 = vunpack.c.l.b16 %v5229
        %v5329 = vunpack.c.h.b16 %v5229
        %v5330 = vunpack.c.l.b16 %v5230
        %v5331 = vunpack.c.h.b16 %v5230
        %v5332 = vunpack.c.l.b16 %v5231
        %v5333 = vunpack.c.h.b16 %v5231
        %v5334 = vunpack.c.l.b16 %v5232
        %v5335 = vunpack.c.h.b16 %v5232
        %v5336 = vunpack.c.l.b16 %v5233
        %v5337 = vunpack.c.h.b16 %v5233
        %v5338 = vunpack.c.l.b16 %v5234
        %v5339 = vunpack.c.h.b16 %v5234
        %v5340 = vunpack.c.l.b16 %v5235
        %v5341 = vunpack.c.h.b16 %v5235
        %v5342 = vunpack.c.l.b16 %v5236
        %v5343 = vunpack.c.h.b16 %v5236
        %v5344 = vunpack.c.l.b16 %v5237
        %v5345 = vunpack.c.h.b16 %v5237
        %v5346 = vunpack.c.l.b16 %v5238
        %v5347 = vunpack.c.h.b16 %v5238
        %v5348 = vunpack.c.l.b16 %v5239
        %v5349 = vunpack.c.h.b16 %v5239
        %v5350 = vunpack.c.l.b16 %v5240
        %v5351 = vunpack.c.h.b16 %v5240
        %v5352 = vunpack.c.l.b16 %v5241
        %v5353 = vunpack.c.h.b16 %v5241
        %v5354 = vunpack.c.l.b16 %v5242
        %v5355 = vunpack.c.h.b16 %v5242
        %v5356 = vunpack.c.l.b16 %v5243
        %v5357 = vunpack.c.h.b16 %v5243
        %v5358 = vunpack.c.l.b16 %v5244
        %v5359 = vunpack.c.h.b16 %v5244
        %v5360 = vunpack.c.l.b16 %v5245
        %v5361 = vunpack.c.h.b16 %v5245
        %v5362 = vunpack.c.l.b16 %v5246
        %v5363 = vunpack.c.h.b16 %v5246
        %v5364 = vunpack.c.l.b16 %v5247
        %v5365 = vunpack.c.h.b16 %v5247
        %v5366 = vunpack.c.l.b16 %v5248
        %v5367 = vunpack.c.h.b16 %v5248
        %v5368 = vunpack.c.l.b16 %v5249
        %v5369 = vunpack.c.h.b16 %v5249
        %v5370 = vunpack.c.l.b16 %v5250
        %v5371 = vunpack.c.h.b16 %v5250
        %v5372 = vunpack.c.l.b16 %v5251
        %v5373 = vunpack.c.h.b16 %v5251
        %v5374 = vunpack.c.l.b16 %v5252
        %v5375 = vunpack.c.h.b16 %v5252
        %v5376 = vunpack.c.l.b16 %v5253
        %v5377 = vunpack.c.h.b16 %v5253
        %v5378 = vunpack.c.l.b16 %v5254
        %v5379 = vunpack.c.h.b16 %v5254
        %v5380 = vunpack.c.l.b16 %v5255
        %v5381 = vunpack.c.h.b16 %v5255
        %v5382 = vunpack.c.l.b16 %v5256
        %v5383 = vunpack.c.h.b16 %v5256
        %v5384 = vunpack.c.l.b16 %v5257
        %v5385 = vunpack.c.h.b16 %v5257
        %v5386 = vunpack.c.l.b16 %v5258
        %v5387 = vunpack.c.h.b16 %v5258
        %v5388 = vunpack.c.l.b16 %v5259
        %v5389 = vunpack.c.h.b16 %v5259
        %v5390 = vunpack.c.l.b16 %v5260
        %v5391 = vunpack.c.h.b16 %v5260
        %v5392 = vunpack.c.l.b16 %v5261
        %v5393 = vunpack.c.h.b16 %v5261
        %v5394 = vunpack.c.l.b16 %v5262
        %v5395 = vunpack.c.h.b16 %v5262
        %v5396 = vunpack.c.l.b16 %v5263
        %v5397 = vunpack.c.h.b16 %v5263
        %v5398 = vunpack.c.l.b16 %v5264
        %v5399 = vunpack.c.h.b16 %v5264
        %v5400 = vunpack.c.l.b16 %v5265
        %v5401 = vunpack.c.h.b16 %v5265
        %v5402 = vunpack.c.l.b16 %v5266
        %v5403 = vunpack.c.h.b16 %v5266
        %v5404 = vunpack.c.l.b16 %v5267
        %v5405 = vunpack.c.h.b16 %v5267
        %v5406 = vunpack.c.l.b16 %v5268
        %v5407 = vunpack.c.h.b16 %v5268
        %v5408 = vunpack.c.l.b16 %v5269
        %v5409 = vunpack.c.h.b16 %v5269
        %v5410 = vunpack.c.l.b16 %v5270
        %v5411 = vunpack.c.h.b16 %v5270
        %v5412 = vunpack.c.l.b16 %v5271
        %v5413 = vunpack.c.h.b16 %v5271
        %v5414 = vunpack.c.l.b16 %v5272
        %v5415 = vunpack.c.h.b16 %v5272
        %v5416 = vunpack.c.l.b16 %v5273
        %v5417 = vunpack.c.h.b16 %v5273
        %v5418 = vpack.c.b16 %v5324, %v5322
        %v5419 = vpack.c.b16 %v5325, %v5323
        %v5420 = vpack.c.b16 %v5328, %v5326
        %v5421 = vpack.c.b16 %v5329, %v5327
        %v5422 = vpack.c.b16 %v5332, %v5330
        %v5423 = vpack.c.b16 %v5333, %v5331
        %v5424 = vpack.c.b16 %v5336, %v5334
        %v5425 = vpack.c.b16 %v5337, %v5335
        %v5426 = vpack.c.b16 %v5340, %v5338
        %v5427 = vpack.c.b16 %v5341, %v5339
        %v5428 = vpack.c.b16 %v5344, %v5342
        %v5429 = vpack.c.b16 %v5345, %v5343
        %v5430 = vpack.c.b16 %v5348, %v5346
        %v5431 = vpack.c.b16 %v5349, %v5347
        %v5432 = vpack.c.b16 %v5352, %v5350
        %v5433 = vpack.c.b16 %v5353, %v5351
        %v5434 = vpack.c.b16 %v5356, %v5354
        %v5435 = vpack.c.b16 %v5357, %v5355
        %v5436 = vpack.c.b16 %v5360, %v5358
        %v5437 = vpack.c.b16 %v5361, %v5359
        %v5438 = vpack.c.b16 %v5364, %v5362
        %v5439 = vpack.c.b16 %v5365, %v5363
        %v5440 = vpack.c.b16 %v5368, %v5366
        %v5441 = vpack.c.b16 %v5369, %v5367
        %v5442 = vpack.c.b16 %v5372, %v5370
        %v5443 = vpack.c.b16 %v5373, %v5371
        %v5444 = vpack.c.b16 %v5376, %v5374
        %v5445 = vpack.c.b16 %v5377, %v5375
        %v5446 = vpack.c.b16 %v5380, %v5378
        %v5447 = vpack.c.b16 %v5381, %v5379
        %v5448 = vpack.c.b16 %v5384, %v5382
        %v5449 = vpack.c.b16 %v5385, %v5383
        %v5450 = vpack.c.b16 %v5388, %v5386
        %v5451 = vpack.c.b16 %v5389, %v5387
        %v5452 = vpack.c.b16 %v5392, %v5390
        %v5453 = vpack.c.b16 %v5393, %v5391
        %v5454 = vpack.c.b16 %v5396, %v5394
        %v5455 = vpack.c.b16 %v5397, %v5395
        %v5456 = vpack.c.b16 %v5400, %v5398
        %v5457 = vpack.c.b16 %v5401, %v5399
        %v5458 = vpack.c.b16 %v5404, %v5402
        %v5459 = vpack.c.b16 %v5405, %v5403
        %v5460 = vpack.c.b16 %v5408, %v5406
        %v5461 = vpack.c.b16 %v5409, %v5407
        %v5462 = vpack.c.b16 %v5412, %v5410
        %v5463 = vpack.c.b16 %v5413, %v5411
        %v5464 = vpack.c.b16 %v5416, %v5414
        %v5465 = vpack.c.b16 %v5417, %v5415
        %5514 = vmatpush.bf16.msra.mxu0 %v5432
        %5515 = vmatpush.bf16.msra.mxu0 %v5430
        %5516 = vmatpush.bf16.msra.mxu0 %v5428
        %5517 = vmatpush.bf16.msra.mxu0 %v5426
        %5518 = vmatpush.bf16.msra.mxu0 %v5424
        %5519 = vmatpush.bf16.msra.mxu0 %v5422
        %5520 = vmatpush.bf16.msra.mxu0 %v5420
        %5521 = vmatpush.bf16.msra.mxu0 %v5418
        %5522 = vmatmul.bf16.gmra.mxu0 %v5213
        %v5523 = vpop.f32.mrf.mxu0
        %v5524 = vadd.f32 0.0, %v5523
        %v5525 = vpop.f32.mrf.mxu0
        %v5526 = vadd.f32 0.0, %v5525
        %5527 = vmatmul.bf16.gmra.mxu0 %v5216
        %v5528 = vpop.f32.mrf.mxu0
        %v5529 = vadd.f32 0.0, %v5528
        %v5530 = vpop.f32.mrf.mxu0
        %v5531 = vadd.f32 0.0, %v5530
        %5532 = vmatmul.bf16.gmra.mxu0 %v5219
        %v5533 = vpop.f32.mrf.mxu0
        %v5534 = vadd.f32 0.0, %v5533
        %v5535 = vpop.f32.mrf.mxu0
        %v5536 = vadd.f32 0.0, %v5535
        %5537 = vmatmul.bf16.gmra.mxu0 %v5222
        %v5538 = vpop.f32.mrf.mxu0
        %v5539 = vadd.f32 0.0, %v5538
        %v5540 = vpop.f32.mrf.mxu0
        %v5541 = vadd.f32 0.0, %v5540
        %5542 = vdwg.mxu0
        %5543 = vmatpush.bf16.msra.mxu0 %v5448
        %5544 = vmatpush.bf16.msra.mxu0 %v5446
        %5545 = vmatpush.bf16.msra.mxu0 %v5444
        %5546 = vmatpush.bf16.msra.mxu0 %v5442
        %5547 = vmatpush.bf16.msra.mxu0 %v5440
        %5548 = vmatpush.bf16.msra.mxu0 %v5438
        %5549 = vmatpush.bf16.msra.mxu0 %v5436
        %5550 = vmatpush.bf16.msra.mxu0 %v5434
        %5551 = vmatmul.bf16.gmra.mxu0 %v5214
        %v5552 = vpop.f32.mrf.mxu0
        %v5553 = vadd.f32 %v5524, %v5552
        %v5554 = vpop.f32.mrf.mxu0
        %v5555 = vadd.f32 %v5526, %v5554
        %5556 = vmatmul.bf16.gmra.mxu0 %v5217
        %v5557 = vpop.f32.mrf.mxu0
        %v5558 = vadd.f32 %v5529, %v5557
        %v5559 = vpop.f32.mrf.mxu0
        %v5560 = vadd.f32 %v5531, %v5559
        %5561 = vmatmul.bf16.gmra.mxu0 %v5220
        %v5562 = vpop.f32.mrf.mxu0
        %v5563 = vadd.f32 %v5534, %v5562
        %v5564 = vpop.f32.mrf.mxu0
        %v5565 = vadd.f32 %v5536, %v5564
        %5566 = vmatmul.bf16.gmra.mxu0 %v5223
        %v5567 = vpop.f32.mrf.mxu0
        %v5568 = vadd.f32 %v5539, %v5567
        %v5569 = vpop.f32.mrf.mxu0
        %v5570 = vadd.f32 %v5541, %v5569
        %5571 = vdwg.mxu0
        %5572 = vmatpush.bf16.msra.mxu0 %v5464
        %5573 = vmatpush.bf16.msra.mxu0 %v5462
        %5574 = vmatpush.bf16.msra.mxu0 %v5460
        %5575 = vmatpush.bf16.msra.mxu0 %v5458
        %5576 = vmatpush.bf16.msra.mxu0 %v5456
        %5577 = vmatpush.bf16.msra.mxu0 %v5454
        %5578 = vmatpush.bf16.msra.mxu0 %v5452
        %5579 = vmatpush.bf16.msra.mxu0 %v5450
        %5580 = vmatmul.bf16.gmra.mxu0 %v5215
        %v5581 = vpop.f32.mrf.mxu0
        %v5582 = vadd.f32 %v5553, %v5581
        %v5583 = vpop.f32.mrf.mxu0
        %v5584 = vadd.f32 %v5555, %v5583
        %5585 = vmatmul.bf16.gmra.mxu0 %v5218
        %v5586 = vpop.f32.mrf.mxu0
        %v5587 = vadd.f32 %v5558, %v5586
        %v5588 = vpop.f32.mrf.mxu0
        %v5589 = vadd.f32 %v5560, %v5588
        %5590 = vmatmul.bf16.gmra.mxu0 %v5221
        %v5591 = vpop.f32.mrf.mxu0
        %v5592 = vadd.f32 %v5563, %v5591
        %v5593 = vpop.f32.mrf.mxu0
        %v5594 = vadd.f32 %v5565, %v5593
        %5595 = vmatmul.bf16.gmra.mxu0 %v5224
        %v5596 = vpop.f32.mrf.mxu0
        %v5597 = vadd.f32 %v5568, %v5596
        %v5598 = vpop.f32.mrf.mxu0
        %v5599 = vadd.f32 %v5570, %v5598
        %5600 = vdwg.mxu0
        %5601 = vmatpush.bf16.msra.mxu0 %v5433
        %5602 = vmatpush.bf16.msra.mxu0 %v5431
        %5603 = vmatpush.bf16.msra.mxu0 %v5429
        %5604 = vmatpush.bf16.msra.mxu0 %v5427
        %5605 = vmatpush.bf16.msra.mxu0 %v5425
        %5606 = vmatpush.bf16.msra.mxu0 %v5423
        %5607 = vmatpush.bf16.msra.mxu0 %v5421
        %5608 = vmatpush.bf16.msra.mxu0 %v5419
        %5609 = vmatmul.bf16.gmra.mxu0 %v5213
        %v5610 = vpop.f32.mrf.mxu0
        %v5611 = vadd.f32 0.0, %v5610
        %v5612 = vpop.f32.mrf.mxu0
        %v5613 = vadd.f32 0.0, %v5612
        %5614 = vmatmul.bf16.gmra.mxu0 %v5216
        %v5615 = vpop.f32.mrf.mxu0
        %v5616 = vadd.f32 0.0, %v5615
        %v5617 = vpop.f32.mrf.mxu0
        %v5618 = vadd.f32 0.0, %v5617
        %5619 = vmatmul.bf16.gmra.mxu0 %v5219
        %v5620 = vpop.f32.mrf.mxu0
        %v5621 = vadd.f32 0.0, %v5620
        %v5622 = vpop.f32.mrf.mxu0
        %v5623 = vadd.f32 0.0, %v5622
        %5624 = vmatmul.bf16.gmra.mxu0 %v5222
        %v5625 = vpop.f32.mrf.mxu0
        %v5626 = vadd.f32 0.0, %v5625
        %v5627 = vpop.f32.mrf.mxu0
        %v5628 = vadd.f32 0.0, %v5627
        %5629 = vdwg.mxu0
        %5630 = vmatpush.bf16.msra.mxu0 %v5449
        %5631 = vmatpush.bf16.msra.mxu0 %v5447
        %5632 = vmatpush.bf16.msra.mxu0 %v5445
        %5633 = vmatpush.bf16.msra.mxu0 %v5443
        %5634 = vmatpush.bf16.msra.mxu0 %v5441
        %5635 = vmatpush.bf16.msra.mxu0 %v5439
        %5636 = vmatpush.bf16.msra.mxu0 %v5437
        %5637 = vmatpush.bf16.msra.mxu0 %v5435
        %5638 = vmatmul.bf16.gmra.mxu0 %v5214
        %v5639 = vpop.f32.mrf.mxu0
        %v5640 = vadd.f32 %v5611, %v5639
        %v5641 = vpop.f32.mrf.mxu0
        %v5642 = vadd.f32 %v5613, %v5641
        %5643 = vmatmul.bf16.gmra.mxu0 %v5217
        %v5644 = vpop.f32.mrf.mxu0
        %v5645 = vadd.f32 %v5616, %v5644
        %v5646 = vpop.f32.mrf.mxu0
        %v5647 = vadd.f32 %v5618, %v5646
        %5648 = vmatmul.bf16.gmra.mxu0 %v5220
        %v5649 = vpop.f32.mrf.mxu0
        %v5650 = vadd.f32 %v5621, %v5649
        %v5651 = vpop.f32.mrf.mxu0
        %v5652 = vadd.f32 %v5623, %v5651
        %5653 = vmatmul.bf16.gmra.mxu0 %v5223
        %v5654 = vpop.f32.mrf.mxu0
        %v5655 = vadd.f32 %v5626, %v5654
        %v5656 = vpop.f32.mrf.mxu0
        %v5657 = vadd.f32 %v5628, %v5656
        %5658 = vdwg.mxu0
        %5659 = vmatpush.bf16.msra.mxu0 %v5465
        %5660 = vmatpush.bf16.msra.mxu0 %v5463
        %5661 = vmatpush.bf16.msra.mxu0 %v5461
        %5662 = vmatpush.bf16.msra.mxu0 %v5459
        %5663 = vmatpush.bf16.msra.mxu0 %v5457
        %5664 = vmatpush.bf16.msra.mxu0 %v5455
        %5665 = vmatpush.bf16.msra.mxu0 %v5453
        %5666 = vmatpush.bf16.msra.mxu0 %v5451
        %5667 = vmatmul.bf16.gmra.mxu0 %v5215
        %v5668 = vpop.f32.mrf.mxu0
        %v5669 = vadd.f32 %v5640, %v5668
        %v5670 = vpop.f32.mrf.mxu0
        %v5671 = vadd.f32 %v5642, %v5670
        %5672 = vmatmul.bf16.gmra.mxu0 %v5218
        %v5673 = vpop.f32.mrf.mxu0
        %v5674 = vadd.f32 %v5645, %v5673
        %v5675 = vpop.f32.mrf.mxu0
        %v5676 = vadd.f32 %v5647, %v5675
        %5677 = vmatmul.bf16.gmra.mxu0 %v5221
        %v5678 = vpop.f32.mrf.mxu0
        %v5679 = vadd.f32 %v5650, %v5678
        %v5680 = vpop.f32.mrf.mxu0
        %v5681 = vadd.f32 %v5652, %v5680
        %5682 = vmatmul.bf16.gmra.mxu0 %v5224
        %v5683 = vpop.f32.mrf.mxu0
        %v5684 = vadd.f32 %v5655, %v5683
        %v5685 = vpop.f32.mrf.mxu0
        %v5686 = vadd.f32 %v5657, %v5685
        %5687 = vdwg.mxu0
        %v5688 = vadd.f32 %v5194, %v5582
        %v5689 = vadd.f32 %v5195, %v5669
        %v5690 = vadd.f32 %v5196, %v5584
        %v5691 = vadd.f32 %v5197, %v5671
        %v5692 = vadd.f32 %v5198, %v5587
        %v5693 = vadd.f32 %v5199, %v5674
        %v5694 = vadd.f32 %v5200, %v5589
        %v5695 = vadd.f32 %v5201, %v5676
        %v5696 = vadd.f32 %v5202, %v5592
        %v5697 = vadd.f32 %v5203, %v5679
        %v5698 = vadd.f32 %v5204, %v5594
        %v5699 = vadd.f32 %v5205, %v5681
        %v5700 = vadd.f32 %v5206, %v5597
        %v5701 = vadd.f32 %v5207, %v5684
        %v5702 = vadd.f32 %v5208, %v5599
        %v5703 = vadd.f32 %v5209, %v5686
        %v5704 = vld [vmem:[#allocation2 + $0x30] sm:$0xfe]
        %v5705 = vld [vmem:[#allocation2 + $0x38] sm:$0xfe]
        %v5706 = vld [vmem:[#allocation2 + $0x40] sm:$0xfe]
        %v5707 = vld [vmem:[#allocation2 + $0x48] sm:$0xff]
        %v5708 = vld [vmem:[#allocation2 + $0x50] sm:$0xff]
        %v5709 = vld [vmem:[#allocation2 + $0x58] sm:$0xff]
        %v5710 = vld [vmem:[#allocation2 + $0x60] sm:$0xff]
        %v5711 = vld [vmem:[#allocation2 + $0x68] sm:$0xff]
        %v5712 = vld [vmem:[#allocation2 + $0x70] sm:$0xff]
        %v5713 = vld [vmem:[#allocation2 + $0x78] sm:$0xff]
        %v5714 = vld [vmem:[#allocation2 + $0x80] sm:$0xff]
        %v5715 = vld [vmem:[#allocation2 + $0x88] sm:$0xff]
        %v5716 = vld [vmem:[#allocation2 + $0x90] sm:$0xff]
        %v5717 = vld [vmem:[#allocation2 + $0x98] sm:$0xff]
        %v5718 = vld [vmem:[#allocation2 + $0xa0] sm:$0xff]
        %v5719 = vld [vmem:[#allocation2 + $0xa8] sm:$0xff]
        %v5720 = vld [vmem:[#allocation2 + $0xb0] sm:$0xff]
        %v5721 = vld [vmem:[#allocation2 + $0xb8] sm:$0xff]
        %v5722 = vld [vmem:[#allocation2 + $0xc0] sm:$0xff]
        %v5723 = vld [vmem:[#allocation2 + $0xc8] sm:$0xff]
        %v5724 = vld [vmem:[#allocation2 + $0xd0] sm:$0xff]
        %v5725 = vld [vmem:[#allocation2 + $0xd8] sm:$0xff]
        %v5726 = vld [vmem:[#allocation2 + $0xe0] sm:$0xff]
        %v5727 = vld [vmem:[#allocation2 + $0xe8] sm:$0xff]
        %v5728 = vld [vmem:[#allocation2 + $0xf0] sm:$0x1]
        %v5729 = vld [vmem:[#allocation2 + $0xf8] sm:$0x1]
        %v5730 = vld [vmem:[#allocation2 + $0x100] sm:$0x1]
        %v5731 = vpack.c.bf16 %v5707, %v5704
        %v5732 = vpack.c.bf16 %v5708, %v5705
        %v5733 = vpack.c.bf16 %v5709, %v5706
        %v5734 = vpack.c.bf16 %v5713, %v5710
        %v5735 = vpack.c.bf16 %v5714, %v5711
        %v5736 = vpack.c.bf16 %v5715, %v5712
        %v5737 = vpack.c.bf16 %v5719, %v5716
        %v5738 = vpack.c.bf16 %v5720, %v5717
        %v5739 = vpack.c.bf16 %v5721, %v5718
        %v5740 = vpack.c.bf16 %v5725, %v5722
        %v5741 = vpack.c.bf16 %v5726, %v5723
        %v5742 = vpack.c.bf16 %v5727, %v5724
        %v5743 = vpack.c.bf16 %v5728, %v5728
        %v5744 = vpack.c.bf16 %v5729, %v5729
        %v5745 = vpack.c.bf16 %v5730, %v5730
        %s5746 = scalar_lea.vmem %s3, 1920
        %v5747 = vld [vmem:[%s5746] sm:$0xff]
        %v5748 = vld [vmem:[%s5746 + $0x8] sm:$0xff]
        %v5749 = vld [vmem:[%s5746 + $0x10] sm:$0xff]
        %v5750 = vld [vmem:[%s5746 + $0x18] sm:$0xff]
        %v5751 = vld [vmem:[%s5746 + $0x20] sm:$0xff]
        %v5752 = vld [vmem:[%s5746 + $0x28] sm:$0xff]
        %v5753 = vld [vmem:[%s5746 + $0x30] sm:$0xff]
        %v5754 = vld [vmem:[%s5746 + $0x38] sm:$0xff]
        %v5755 = vld [vmem:[%s5746 + $0x40] sm:$0xff]
        %v5756 = vld [vmem:[%s5746 + $0x48] sm:$0xff]
        %v5757 = vld [vmem:[%s5746 + $0x50] sm:$0xff]
        %v5758 = vld [vmem:[%s5746 + $0x58] sm:$0xff]
        %v5759 = vld [vmem:[%s5746 + $0x60] sm:$0xff]
        %v5760 = vld [vmem:[%s5746 + $0x68] sm:$0xff]
        %v5761 = vld [vmem:[%s5746 + $0x70] sm:$0xff]
        %v5762 = vld [vmem:[%s5746 + $0x78] sm:$0xff]
        %v5763 = vld [vmem:[%s5746 + $0x80] sm:$0xff]
        %v5764 = vld [vmem:[%s5746 + $0x88] sm:$0xff]
        %v5765 = vld [vmem:[%s5746 + $0x90] sm:$0xff]
        %v5766 = vld [vmem:[%s5746 + $0x98] sm:$0xff]
        %v5767 = vld [vmem:[%s5746 + $0xa0] sm:$0xff]
        %v5768 = vld [vmem:[%s5746 + $0xa8] sm:$0xff]
        %v5769 = vld [vmem:[%s5746 + $0xb0] sm:$0xff]
        %v5770 = vld [vmem:[%s5746 + $0xb8] sm:$0xff]
        %v5771 = vld [vmem:[%s5746 + $0xc0] sm:$0xff]
        %v5772 = vld [vmem:[%s5746 + $0xc8] sm:$0xff]
        %v5773 = vld [vmem:[%s5746 + $0xd0] sm:$0xff]
        %v5774 = vld [vmem:[%s5746 + $0xd8] sm:$0xff]
        %v5775 = vld [vmem:[%s5746 + $0xe0] sm:$0xff]
        %v5776 = vld [vmem:[%s5746 + $0xe8] sm:$0xff]
        %v5777 = vld [vmem:[%s5746 + $0xf0] sm:$0xff]
        %v5778 = vld [vmem:[%s5746 + $0xf8] sm:$0xff]
        %v5779 = vld [vmem:[%s5746 + $0x100] sm:$0xff]
        %v5780 = vld [vmem:[%s5746 + $0x108] sm:$0xff]
        %v5781 = vld [vmem:[%s5746 + $0x110] sm:$0xff]
        %v5782 = vld [vmem:[%s5746 + $0x118] sm:$0xff]
        %v5783 = vld [vmem:[%s5746 + $0x120] sm:$0xff]
        %v5784 = vld [vmem:[%s5746 + $0x128] sm:$0xff]
        %v5785 = vld [vmem:[%s5746 + $0x130] sm:$0xff]
        %v5786 = vld [vmem:[%s5746 + $0x138] sm:$0xff]
        %v5787 = vld [vmem:[%s5746 + $0x140] sm:$0xff]
        %v5788 = vld [vmem:[%s5746 + $0x148] sm:$0xff]
        %v5789 = vld [vmem:[%s5746 + $0x150] sm:$0xff]
        %v5790 = vld [vmem:[%s5746 + $0x158] sm:$0xff]
        %v5791 = vld [vmem:[%s5746 + $0x160] sm:$0xff]
        %v5792 = vld [vmem:[%s5746 + $0x168] sm:$0xff]
        %v5793 = vld [vmem:[%s5746 + $0x170] sm:$0xff]
        %v5794 = vld [vmem:[%s5746 + $0x178] sm:$0xff]
        %v5796 = vshrl.u32 %v5731, 16
        %v5798 = vshll.u32 %v5731, 16
        %v5800 = vrot.slane %v5798, 1
        %v5801 = vor.u32 %v5796, %v5800
        %v5803 = vshll.u32 %v5734, 16
        %v5805 = vrot.slane %v5803, 1
        %v5806 = vsel %vm4021, %v5801, %v5805
        %v5808 = vshrl.u32 %v5732, 16
        %v5810 = vshll.u32 %v5732, 16
        %v5812 = vrot.slane %v5810, 1
        %v5813 = vor.u32 %v5808, %v5812
        %v5815 = vshll.u32 %v5735, 16
        %v5817 = vrot.slane %v5815, 1
        %v5818 = vsel %vm4021, %v5813, %v5817
        %v5820 = vshrl.u32 %v5733, 16
        %v5822 = vshll.u32 %v5733, 16
        %v5824 = vrot.slane %v5822, 1
        %v5825 = vor.u32 %v5820, %v5824
        %v5827 = vshll.u32 %v5736, 16
        %v5829 = vrot.slane %v5827, 1
        %v5830 = vsel %vm4021, %v5825, %v5829
        %v5831 = vshrl.u32 %v5734, 16
        %v5833 = vor.u32 %v5831, %v5805
        %v5835 = vshll.u32 %v5737, 16
        %v5837 = vrot.slane %v5835, 1
        %v5838 = vsel %vm4021, %v5833, %v5837
        %v5839 = vshrl.u32 %v5735, 16
        %v5841 = vor.u32 %v5839, %v5817
        %v5843 = vshll.u32 %v5738, 16
        %v5845 = vrot.slane %v5843, 1
        %v5846 = vsel %vm4021, %v5841, %v5845
        %v5847 = vshrl.u32 %v5736, 16
        %v5849 = vor.u32 %v5847, %v5829
        %v5851 = vshll.u32 %v5739, 16
        %v5853 = vrot.slane %v5851, 1
        %v5854 = vsel %vm4021, %v5849, %v5853
        %v5855 = vshrl.u32 %v5737, 16
        %v5857 = vor.u32 %v5855, %v5837
        %v5859 = vshll.u32 %v5740, 16
        %v5861 = vrot.slane %v5859, 1
        %v5862 = vsel %vm4021, %v5857, %v5861
        %v5863 = vshrl.u32 %v5738, 16
        %v5865 = vor.u32 %v5863, %v5845
        %v5867 = vshll.u32 %v5741, 16
        %v5869 = vrot.slane %v5867, 1
        %v5870 = vsel %vm4021, %v5865, %v5869
        %v5871 = vshrl.u32 %v5739, 16
        %v5873 = vor.u32 %v5871, %v5853
        %v5875 = vshll.u32 %v5742, 16
        %v5877 = vrot.slane %v5875, 1
        %v5878 = vsel %vm4021, %v5873, %v5877
        %v5879 = vshrl.u32 %v5740, 16
        %v5881 = vor.u32 %v5879, %v5861
        %v5883 = vshll.u32 %v5743, 16
        %v5885 = vrot.slane %v5883, 1
        %v5886 = vsel %vm4021, %v5881, %v5885
        %v5887 = vshrl.u32 %v5741, 16
        %v5889 = vor.u32 %v5887, %v5869
        %v5891 = vshll.u32 %v5744, 16
        %v5893 = vrot.slane %v5891, 1
        %v5894 = vsel %vm4021, %v5889, %v5893
        %v5895 = vshrl.u32 %v5742, 16
        %v5897 = vor.u32 %v5895, %v5877
        %v5899 = vshll.u32 %v5745, 16
        %v5901 = vrot.slane %v5899, 1
        %v5902 = vsel %vm4021, %v5897, %v5901
        %v5963 = vunpack.c.l.b16 %v5747
        %v5964 = vunpack.c.h.b16 %v5747
        %v5965 = vunpack.c.l.b16 %v5748
        %v5966 = vunpack.c.h.b16 %v5748
        %v5967 = vunpack.c.l.b16 %v5749
        %v5968 = vunpack.c.h.b16 %v5749
        %v5969 = vunpack.c.l.b16 %v5750
        %v5970 = vunpack.c.h.b16 %v5750
        %v5971 = vunpack.c.l.b16 %v5751
        %v5972 = vunpack.c.h.b16 %v5751
        %v5973 = vunpack.c.l.b16 %v5752
        %v5974 = vunpack.c.h.b16 %v5752
        %v5975 = vunpack.c.l.b16 %v5753
        %v5976 = vunpack.c.h.b16 %v5753
        %v5977 = vunpack.c.l.b16 %v5754
        %v5978 = vunpack.c.h.b16 %v5754
        %v5979 = vunpack.c.l.b16 %v5755
        %v5980 = vunpack.c.h.b16 %v5755
        %v5981 = vunpack.c.l.b16 %v5756
        %v5982 = vunpack.c.h.b16 %v5756
        %v5983 = vunpack.c.l.b16 %v5757
        %v5984 = vunpack.c.h.b16 %v5757
        %v5985 = vunpack.c.l.b16 %v5758
        %v5986 = vunpack.c.h.b16 %v5758
        %v5987 = vunpack.c.l.b16 %v5759
        %v5988 = vunpack.c.h.b16 %v5759
        %v5989 = vunpack.c.l.b16 %v5760
        %v5990 = vunpack.c.h.b16 %v5760
        %v5991 = vunpack.c.l.b16 %v5761
        %v5992 = vunpack.c.h.b16 %v5761
        %v5993 = vunpack.c.l.b16 %v5762
        %v5994 = vunpack.c.h.b16 %v5762
        %v5995 = vunpack.c.l.b16 %v5763
        %v5996 = vunpack.c.h.b16 %v5763
        %v5997 = vunpack.c.l.b16 %v5764
        %v5998 = vunpack.c.h.b16 %v5764
        %v5999 = vunpack.c.l.b16 %v5765
        %v6000 = vunpack.c.h.b16 %v5765
        %v6001 = vunpack.c.l.b16 %v5766
        %v6002 = vunpack.c.h.b16 %v5766
        %v6003 = vunpack.c.l.b16 %v5767
        %v6004 = vunpack.c.h.b16 %v5767
        %v6005 = vunpack.c.l.b16 %v5768
        %v6006 = vunpack.c.h.b16 %v5768
        %v6007 = vunpack.c.l.b16 %v5769
        %v6008 = vunpack.c.h.b16 %v5769
        %v6009 = vunpack.c.l.b16 %v5770
        %v6010 = vunpack.c.h.b16 %v5770
        %v6011 = vunpack.c.l.b16 %v5771
        %v6012 = vunpack.c.h.b16 %v5771
        %v6013 = vunpack.c.l.b16 %v5772
        %v6014 = vunpack.c.h.b16 %v5772
        %v6015 = vunpack.c.l.b16 %v5773
        %v6016 = vunpack.c.h.b16 %v5773
        %v6017 = vunpack.c.l.b16 %v5774
        %v6018 = vunpack.c.h.b16 %v5774
        %v6019 = vunpack.c.l.b16 %v5775
        %v6020 = vunpack.c.h.b16 %v5775
        %v6021 = vunpack.c.l.b16 %v5776
        %v6022 = vunpack.c.h.b16 %v5776
        %v6023 = vunpack.c.l.b16 %v5777
        %v6024 = vunpack.c.h.b16 %v5777
        %v6025 = vunpack.c.l.b16 %v5778
        %v6026 = vunpack.c.h.b16 %v5778
        %v6027 = vunpack.c.l.b16 %v5779
        %v6028 = vunpack.c.h.b16 %v5779
        %v6029 = vunpack.c.l.b16 %v5780
        %v6030 = vunpack.c.h.b16 %v5780
        %v6031 = vunpack.c.l.b16 %v5781
        %v6032 = vunpack.c.h.b16 %v5781
        %v6033 = vunpack.c.l.b16 %v5782
        %v6034 = vunpack.c.h.b16 %v5782
        %v6035 = vunpack.c.l.b16 %v5783
        %v6036 = vunpack.c.h.b16 %v5783
        %v6037 = vunpack.c.l.b16 %v5784
        %v6038 = vunpack.c.h.b16 %v5784
        %v6039 = vunpack.c.l.b16 %v5785
        %v6040 = vunpack.c.h.b16 %v5785
        %v6041 = vunpack.c.l.b16 %v5786
        %v6042 = vunpack.c.h.b16 %v5786
        %v6043 = vunpack.c.l.b16 %v5787
        %v6044 = vunpack.c.h.b16 %v5787
        %v6045 = vunpack.c.l.b16 %v5788
        %v6046 = vunpack.c.h.b16 %v5788
        %v6047 = vunpack.c.l.b16 %v5789
        %v6048 = vunpack.c.h.b16 %v5789
        %v6049 = vunpack.c.l.b16 %v5790
        %v6050 = vunpack.c.h.b16 %v5790
        %v6051 = vunpack.c.l.b16 %v5791
        %v6052 = vunpack.c.h.b16 %v5791
        %v6053 = vunpack.c.l.b16 %v5792
        %v6054 = vunpack.c.h.b16 %v5792
        %v6055 = vunpack.c.l.b16 %v5793
        %v6056 = vunpack.c.h.b16 %v5793
        %v6057 = vunpack.c.l.b16 %v5794
        %v6058 = vunpack.c.h.b16 %v5794
        %v6059 = vpack.c.b16 %v5965, %v5963
        %v6060 = vpack.c.b16 %v5966, %v5964
        %v6061 = vpack.c.b16 %v5969, %v5967
        %v6062 = vpack.c.b16 %v5970, %v5968
        %v6063 = vpack.c.b16 %v5973, %v5971
        %v6064 = vpack.c.b16 %v5974, %v5972
        %v6065 = vpack.c.b16 %v5977, %v5975
        %v6066 = vpack.c.b16 %v5978, %v5976
        %v6067 = vpack.c.b16 %v5981, %v5979
        %v6068 = vpack.c.b16 %v5982, %v5980
        %v6069 = vpack.c.b16 %v5985, %v5983
        %v6070 = vpack.c.b16 %v5986, %v5984
        %v6071 = vpack.c.b16 %v5989, %v5987
        %v6072 = vpack.c.b16 %v5990, %v5988
        %v6073 = vpack.c.b16 %v5993, %v5991
        %v6074 = vpack.c.b16 %v5994, %v5992
        %v6075 = vpack.c.b16 %v5997, %v5995
        %v6076 = vpack.c.b16 %v5998, %v5996
        %v6077 = vpack.c.b16 %v6001, %v5999
        %v6078 = vpack.c.b16 %v6002, %v6000
        %v6079 = vpack.c.b16 %v6005, %v6003
        %v6080 = vpack.c.b16 %v6006, %v6004
        %v6081 = vpack.c.b16 %v6009, %v6007
        %v6082 = vpack.c.b16 %v6010, %v6008
        %v6083 = vpack.c.b16 %v6013, %v6011
        %v6084 = vpack.c.b16 %v6014, %v6012
        %v6085 = vpack.c.b16 %v6017, %v6015
        %v6086 = vpack.c.b16 %v6018, %v6016
        %v6087 = vpack.c.b16 %v6021, %v6019
        %v6088 = vpack.c.b16 %v6022, %v6020
        %v6089 = vpack.c.b16 %v6025, %v6023
        %v6090 = vpack.c.b16 %v6026, %v6024
        %v6091 = vpack.c.b16 %v6029, %v6027
        %v6092 = vpack.c.b16 %v6030, %v6028
        %v6093 = vpack.c.b16 %v6033, %v6031
        %v6094 = vpack.c.b16 %v6034, %v6032
        %v6095 = vpack.c.b16 %v6037, %v6035
        %v6096 = vpack.c.b16 %v6038, %v6036
        %v6097 = vpack.c.b16 %v6041, %v6039
        %v6098 = vpack.c.b16 %v6042, %v6040
        %v6099 = vpack.c.b16 %v6045, %v6043
        %v6100 = vpack.c.b16 %v6046, %v6044
        %v6101 = vpack.c.b16 %v6049, %v6047
        %v6102 = vpack.c.b16 %v6050, %v6048
        %v6103 = vpack.c.b16 %v6053, %v6051
        %v6104 = vpack.c.b16 %v6054, %v6052
        %v6105 = vpack.c.b16 %v6057, %v6055
        %v6106 = vpack.c.b16 %v6058, %v6056
        %6155 = vmatpush.bf16.msra.mxu0 %v6073
        %6156 = vmatpush.bf16.msra.mxu0 %v6071
        %6157 = vmatpush.bf16.msra.mxu0 %v6069
        %6158 = vmatpush.bf16.msra.mxu0 %v6067
        %6159 = vmatpush.bf16.msra.mxu0 %v6065
        %6160 = vmatpush.bf16.msra.mxu0 %v6063
        %6161 = vmatpush.bf16.msra.mxu0 %v6061
        %6162 = vmatpush.bf16.msra.mxu0 %v6059
        %6163 = vmatmul.bf16.gmra.mxu0 %v5806
        %v6164 = vpop.f32.mrf.mxu0
        %v6165 = vadd.f32 0.0, %v6164
        %v6166 = vpop.f32.mrf.mxu0
        %v6167 = vadd.f32 0.0, %v6166
        %6168 = vmatmul.bf16.gmra.mxu0 %v5838
        %v6169 = vpop.f32.mrf.mxu0
        %v6170 = vadd.f32 0.0, %v6169
        %v6171 = vpop.f32.mrf.mxu0
        %v6172 = vadd.f32 0.0, %v6171
        %6173 = vmatmul.bf16.gmra.mxu0 %v5862
        %v6174 = vpop.f32.mrf.mxu0
        %v6175 = vadd.f32 0.0, %v6174
        %v6176 = vpop.f32.mrf.mxu0
        %v6177 = vadd.f32 0.0, %v6176
        %6178 = vmatmul.bf16.gmra.mxu0 %v5886
        %v6179 = vpop.f32.mrf.mxu0
        %v6180 = vadd.f32 0.0, %v6179
        %v6181 = vpop.f32.mrf.mxu0
        %v6182 = vadd.f32 0.0, %v6181
        %6183 = vdwg.mxu0
        %6184 = vmatpush.bf16.msra.mxu0 %v6089
        %6185 = vmatpush.bf16.msra.mxu0 %v6087
        %6186 = vmatpush.bf16.msra.mxu0 %v6085
        %6187 = vmatpush.bf16.msra.mxu0 %v6083
        %6188 = vmatpush.bf16.msra.mxu0 %v6081
        %6189 = vmatpush.bf16.msra.mxu0 %v6079
        %6190 = vmatpush.bf16.msra.mxu0 %v6077
        %6191 = vmatpush.bf16.msra.mxu0 %v6075
        %6192 = vmatmul.bf16.gmra.mxu0 %v5818
        %v6193 = vpop.f32.mrf.mxu0
        %v6194 = vadd.f32 %v6165, %v6193
        %v6195 = vpop.f32.mrf.mxu0
        %v6196 = vadd.f32 %v6167, %v6195
        %6197 = vmatmul.bf16.gmra.mxu0 %v5846
        %v6198 = vpop.f32.mrf.mxu0
        %v6199 = vadd.f32 %v6170, %v6198
        %v6200 = vpop.f32.mrf.mxu0
        %v6201 = vadd.f32 %v6172, %v6200
        %6202 = vmatmul.bf16.gmra.mxu0 %v5870
        %v6203 = vpop.f32.mrf.mxu0
        %v6204 = vadd.f32 %v6175, %v6203
        %v6205 = vpop.f32.mrf.mxu0
        %v6206 = vadd.f32 %v6177, %v6205
        %6207 = vmatmul.bf16.gmra.mxu0 %v5894
        %v6208 = vpop.f32.mrf.mxu0
        %v6209 = vadd.f32 %v6180, %v6208
        %v6210 = vpop.f32.mrf.mxu0
        %v6211 = vadd.f32 %v6182, %v6210
        %6212 = vdwg.mxu0
        %6213 = vmatpush.bf16.msra.mxu0 %v6105
        %6214 = vmatpush.bf16.msra.mxu0 %v6103
        %6215 = vmatpush.bf16.msra.mxu0 %v6101
        %6216 = vmatpush.bf16.msra.mxu0 %v6099
        %6217 = vmatpush.bf16.msra.mxu0 %v6097
        %6218 = vmatpush.bf16.msra.mxu0 %v6095
        %6219 = vmatpush.bf16.msra.mxu0 %v6093
        %6220 = vmatpush.bf16.msra.mxu0 %v6091
        %6221 = vmatmul.bf16.gmra.mxu0 %v5830
        %v6222 = vpop.f32.mrf.mxu0
        %v6223 = vadd.f32 %v6194, %v6222
        %v6224 = vpop.f32.mrf.mxu0
        %v6225 = vadd.f32 %v6196, %v6224
        %6226 = vmatmul.bf16.gmra.mxu0 %v5854
        %v6227 = vpop.f32.mrf.mxu0
        %v6228 = vadd.f32 %v6199, %v6227
        %v6229 = vpop.f32.mrf.mxu0
        %v6230 = vadd.f32 %v6201, %v6229
        %6231 = vmatmul.bf16.gmra.mxu0 %v5878
        %v6232 = vpop.f32.mrf.mxu0
        %v6233 = vadd.f32 %v6204, %v6232
        %v6234 = vpop.f32.mrf.mxu0
        %v6235 = vadd.f32 %v6206, %v6234
        %6236 = vmatmul.bf16.gmra.mxu0 %v5902
        %v6237 = vpop.f32.mrf.mxu0
        %v6238 = vadd.f32 %v6209, %v6237
        %v6239 = vpop.f32.mrf.mxu0
        %v6240 = vadd.f32 %v6211, %v6239
        %6241 = vdwg.mxu0
        %6242 = vmatpush.bf16.msra.mxu0 %v6074
        %6243 = vmatpush.bf16.msra.mxu0 %v6072
        %6244 = vmatpush.bf16.msra.mxu0 %v6070
        %6245 = vmatpush.bf16.msra.mxu0 %v6068
        %6246 = vmatpush.bf16.msra.mxu0 %v6066
        %6247 = vmatpush.bf16.msra.mxu0 %v6064
        %6248 = vmatpush.bf16.msra.mxu0 %v6062
        %6249 = vmatpush.bf16.msra.mxu0 %v6060
        %6250 = vmatmul.bf16.gmra.mxu0 %v5806
        %v6251 = vpop.f32.mrf.mxu0
        %v6252 = vadd.f32 0.0, %v6251
        %v6253 = vpop.f32.mrf.mxu0
        %v6254 = vadd.f32 0.0, %v6253
        %6255 = vmatmul.bf16.gmra.mxu0 %v5838
        %v6256 = vpop.f32.mrf.mxu0
        %v6257 = vadd.f32 0.0, %v6256
        %v6258 = vpop.f32.mrf.mxu0
        %v6259 = vadd.f32 0.0, %v6258
        %6260 = vmatmul.bf16.gmra.mxu0 %v5862
        %v6261 = vpop.f32.mrf.mxu0
        %v6262 = vadd.f32 0.0, %v6261
        %v6263 = vpop.f32.mrf.mxu0
        %v6264 = vadd.f32 0.0, %v6263
        %6265 = vmatmul.bf16.gmra.mxu0 %v5886
        %v6266 = vpop.f32.mrf.mxu0
        %v6267 = vadd.f32 0.0, %v6266
        %v6268 = vpop.f32.mrf.mxu0
        %v6269 = vadd.f32 0.0, %v6268
        %6270 = vdwg.mxu0
        %6271 = vmatpush.bf16.msra.mxu0 %v6090
        %6272 = vmatpush.bf16.msra.mxu0 %v6088
        %6273 = vmatpush.bf16.msra.mxu0 %v6086
        %6274 = vmatpush.bf16.msra.mxu0 %v6084
        %6275 = vmatpush.bf16.msra.mxu0 %v6082
        %6276 = vmatpush.bf16.msra.mxu0 %v6080
        %6277 = vmatpush.bf16.msra.mxu0 %v6078
        %6278 = vmatpush.bf16.msra.mxu0 %v6076
        %6279 = vmatmul.bf16.gmra.mxu0 %v5818
        %v6280 = vpop.f32.mrf.mxu0
        %v6281 = vadd.f32 %v6252, %v6280
        %v6282 = vpop.f32.mrf.mxu0
        %v6283 = vadd.f32 %v6254, %v6282
        %6284 = vmatmul.bf16.gmra.mxu0 %v5846
        %v6285 = vpop.f32.mrf.mxu0
        %v6286 = vadd.f32 %v6257, %v6285
        %v6287 = vpop.f32.mrf.mxu0
        %v6288 = vadd.f32 %v6259, %v6287
        %6289 = vmatmul.bf16.gmra.mxu0 %v5870
        %v6290 = vpop.f32.mrf.mxu0
        %v6291 = vadd.f32 %v6262, %v6290
        %v6292 = vpop.f32.mrf.mxu0
        %v6293 = vadd.f32 %v6264, %v6292
        %6294 = vmatmul.bf16.gmra.mxu0 %v5894
        %v6295 = vpop.f32.mrf.mxu0
        %v6296 = vadd.f32 %v6267, %v6295
        %v6297 = vpop.f32.mrf.mxu0
        %v6298 = vadd.f32 %v6269, %v6297
        %6299 = vdwg.mxu0
        %6300 = vmatpush.bf16.msra.mxu0 %v6106
        %6301 = vmatpush.bf16.msra.mxu0 %v6104
        %6302 = vmatpush.bf16.msra.mxu0 %v6102
        %6303 = vmatpush.bf16.msra.mxu0 %v6100
        %6304 = vmatpush.bf16.msra.mxu0 %v6098
        %6305 = vmatpush.bf16.msra.mxu0 %v6096
        %6306 = vmatpush.bf16.msra.mxu0 %v6094
        %6307 = vmatpush.bf16.msra.mxu0 %v6092
        %6308 = vmatmul.bf16.gmra.mxu0 %v5830
        %v6309 = vpop.f32.mrf.mxu0
        %v6310 = vadd.f32 %v6281, %v6309
        %v6311 = vpop.f32.mrf.mxu0
        %v6312 = vadd.f32 %v6283, %v6311
        %6313 = vmatmul.bf16.gmra.mxu0 %v5854
        %v6314 = vpop.f32.mrf.mxu0
        %v6315 = vadd.f32 %v6286, %v6314
        %v6316 = vpop.f32.mrf.mxu0
        %v6317 = vadd.f32 %v6288, %v6316
        %6318 = vmatmul.bf16.gmra.mxu0 %v5878
        %v6319 = vpop.f32.mrf.mxu0
        %v6320 = vadd.f32 %v6291, %v6319
        %v6321 = vpop.f32.mrf.mxu0
        %v6322 = vadd.f32 %v6293, %v6321
        %6323 = vmatmul.bf16.gmra.mxu0 %v5902
        %v6324 = vpop.f32.mrf.mxu0
        %v6325 = vadd.f32 %v6296, %v6324
        %v6326 = vpop.f32.mrf.mxu0
        %v6327 = vadd.f32 %v6298, %v6326
        %6328 = vdwg.mxu0
        %v6329 = vsel %vm4564, %v6223, 0.0
        %v6330 = vsel %vm4564, %v6310, 0.0
        %v6331 = vsel %vm4565, %v6225, 0.0
        %v6332 = vsel %vm4565, %v6312, 0.0
        %v6333 = vsel %vm4566, %v6228, 0.0
        %v6334 = vsel %vm4566, %v6315, 0.0
        %v6335 = vsel %vm4567, %v6230, 0.0
        %v6336 = vsel %vm4567, %v6317, 0.0
        %v6337 = vsel %vm4568, %v6233, 0.0
        %v6338 = vsel %vm4568, %v6320, 0.0
        %v6339 = vsel %vm4569, %v6235, 0.0
        %v6340 = vsel %vm4569, %v6322, 0.0
        %v6341 = vsel %vm4570, %v6238, 0.0
        %v6342 = vsel %vm4570, %v6325, 0.0
        %v6343 = vsel %vm4571, %v6240, 0.0
        %v6344 = vsel %vm4571, %v6327, 0.0
        %v6345 = vadd.f32 %v5688, %v6329
        %v6346 = vadd.f32 %v5689, %v6330
        %v6347 = vadd.f32 %v5690, %v6331
        %v6348 = vadd.f32 %v5691, %v6332
        %v6349 = vadd.f32 %v5692, %v6333
        %v6350 = vadd.f32 %v5693, %v6334
        %v6351 = vadd.f32 %v5694, %v6335
        %v6352 = vadd.f32 %v5695, %v6336
        %v6353 = vadd.f32 %v5696, %v6337
        %v6354 = vadd.f32 %v5697, %v6338
        %v6355 = vadd.f32 %v5698, %v6339
        %v6356 = vadd.f32 %v5699, %v6340
        %v6357 = vadd.f32 %v5700, %v6341
        %v6358 = vadd.f32 %v5701, %v6342
        %v6359 = vadd.f32 %v5702, %v6343
        %v6360 = vadd.f32 %v5703, %v6344
        %v6361 = vld [vmem:[#allocation2 + $0x30] sm:$0x80]
        %v6362 = vld [vmem:[#allocation2 + $0x38] sm:$0x80]
        %v6363 = vld [vmem:[#allocation2 + $0x40] sm:$0x80]
        %v6364 = vld [vmem:[#allocation2 + $0xf0] sm:$0x7f]
        %v6365 = vld [vmem:[#allocation2 + $0xf8] sm:$0x7f]
        %v6366 = vld [vmem:[#allocation2 + $0x100] sm:$0x7f]
        %v6367 = vpack.c.bf16 %v5707, %v6361
        %v6368 = vpack.c.bf16 %v5708, %v6362
        %v6369 = vpack.c.bf16 %v5709, %v6363
        %v6370 = vpack.c.bf16 %v6364, %v6364
        %v6371 = vpack.c.bf16 %v6365, %v6365
        %v6372 = vpack.c.bf16 %v6366, %v6366
        %s6373 = scalar_lea.vmem %s3, 2304
        %v6374 = vld [vmem:[%s6373] sm:$0xff]
        %v6375 = vld [vmem:[%s6373 + $0x8] sm:$0xff]
        %v6376 = vld [vmem:[%s6373 + $0x10] sm:$0xff]
        %v6377 = vld [vmem:[%s6373 + $0x18] sm:$0xff]
        %v6378 = vld [vmem:[%s6373 + $0x20] sm:$0xff]
        %v6379 = vld [vmem:[%s6373 + $0x28] sm:$0xff]
        %v6380 = vld [vmem:[%s6373 + $0x30] sm:$0xff]
        %v6381 = vld [vmem:[%s6373 + $0x38] sm:$0xff]
        %v6382 = vld [vmem:[%s6373 + $0x40] sm:$0xff]
        %v6383 = vld [vmem:[%s6373 + $0x48] sm:$0xff]
        %v6384 = vld [vmem:[%s6373 + $0x50] sm:$0xff]
        %v6385 = vld [vmem:[%s6373 + $0x58] sm:$0xff]
        %v6386 = vld [vmem:[%s6373 + $0x60] sm:$0xff]
        %v6387 = vld [vmem:[%s6373 + $0x68] sm:$0xff]
        %v6388 = vld [vmem:[%s6373 + $0x70] sm:$0xff]
        %v6389 = vld [vmem:[%s6373 + $0x78] sm:$0xff]
        %v6390 = vld [vmem:[%s6373 + $0x80] sm:$0xff]
        %v6391 = vld [vmem:[%s6373 + $0x88] sm:$0xff]
        %v6392 = vld [vmem:[%s6373 + $0x90] sm:$0xff]
        %v6393 = vld [vmem:[%s6373 + $0x98] sm:$0xff]
        %v6394 = vld [vmem:[%s6373 + $0xa0] sm:$0xff]
        %v6395 = vld [vmem:[%s6373 + $0xa8] sm:$0xff]
        %v6396 = vld [vmem:[%s6373 + $0xb0] sm:$0xff]
        %v6397 = vld [vmem:[%s6373 + $0xb8] sm:$0xff]
        %v6398 = vld [vmem:[%s6373 + $0xc0] sm:$0xff]
        %v6399 = vld [vmem:[%s6373 + $0xc8] sm:$0xff]
        %v6400 = vld [vmem:[%s6373 + $0xd0] sm:$0xff]
        %v6401 = vld [vmem:[%s6373 + $0xd8] sm:$0xff]
        %v6402 = vld [vmem:[%s6373 + $0xe0] sm:$0xff]
        %v6403 = vld [vmem:[%s6373 + $0xe8] sm:$0xff]
        %v6404 = vld [vmem:[%s6373 + $0xf0] sm:$0xff]
        %v6405 = vld [vmem:[%s6373 + $0xf8] sm:$0xff]
        %v6406 = vld [vmem:[%s6373 + $0x100] sm:$0xff]
        %v6407 = vld [vmem:[%s6373 + $0x108] sm:$0xff]
        %v6408 = vld [vmem:[%s6373 + $0x110] sm:$0xff]
        %v6409 = vld [vmem:[%s6373 + $0x118] sm:$0xff]
        %v6410 = vld [vmem:[%s6373 + $0x120] sm:$0xff]
        %v6411 = vld [vmem:[%s6373 + $0x128] sm:$0xff]
        %v6412 = vld [vmem:[%s6373 + $0x130] sm:$0xff]
        %v6413 = vld [vmem:[%s6373 + $0x138] sm:$0xff]
        %v6414 = vld [vmem:[%s6373 + $0x140] sm:$0xff]
        %v6415 = vld [vmem:[%s6373 + $0x148] sm:$0xff]
        %v6416 = vld [vmem:[%s6373 + $0x150] sm:$0xff]
        %v6417 = vld [vmem:[%s6373 + $0x158] sm:$0xff]
        %v6418 = vld [vmem:[%s6373 + $0x160] sm:$0xff]
        %v6419 = vld [vmem:[%s6373 + $0x168] sm:$0xff]
        %v6420 = vld [vmem:[%s6373 + $0x170] sm:$0xff]
        %v6421 = vld [vmem:[%s6373 + $0x178] sm:$0xff]
        %v6423 = vshrl.u32 %v6367, 16
        %v6425 = vrot.slane %v6423, 3
        %v6426 = vshll.u32 %v6367, 16
        %v6428 = vrot.slane %v6426, 4
        %v6429 = vor.u32 %v6425, %v6428
        %v6430 = vrot.slane %v5831, 3
        %v6431 = vrot.slane %v5803, 4
        %v6432 = vor.u32 %v6430, %v6431
        %v6433 = vsel %vm2845, %v6429, %v6432
        %v6435 = vshrl.u32 %v6368, 16
        %v6437 = vrot.slane %v6435, 3
        %v6438 = vshll.u32 %v6368, 16
        %v6440 = vrot.slane %v6438, 4
        %v6441 = vor.u32 %v6437, %v6440
        %v6442 = vrot.slane %v5839, 3
        %v6443 = vrot.slane %v5815, 4
        %v6444 = vor.u32 %v6442, %v6443
        %v6445 = vsel %vm2845, %v6441, %v6444
        %v6447 = vshrl.u32 %v6369, 16
        %v6449 = vrot.slane %v6447, 3
        %v6450 = vshll.u32 %v6369, 16
        %v6452 = vrot.slane %v6450, 4
        %v6453 = vor.u32 %v6449, %v6452
        %v6454 = vrot.slane %v5847, 3
        %v6455 = vrot.slane %v5827, 4
        %v6456 = vor.u32 %v6454, %v6455
        %v6457 = vsel %vm2845, %v6453, %v6456
        %v6458 = vrot.slane %v5855, 3
        %v6459 = vrot.slane %v5835, 4
        %v6460 = vor.u32 %v6458, %v6459
        %v6461 = vsel %vm2845, %v6432, %v6460
        %v6462 = vrot.slane %v5863, 3
        %v6463 = vrot.slane %v5843, 4
        %v6464 = vor.u32 %v6462, %v6463
        %v6465 = vsel %vm2845, %v6444, %v6464
        %v6466 = vrot.slane %v5871, 3
        %v6467 = vrot.slane %v5851, 4
        %v6468 = vor.u32 %v6466, %v6467
        %v6469 = vsel %vm2845, %v6456, %v6468
        %v6470 = vrot.slane %v5879, 3
        %v6471 = vrot.slane %v5859, 4
        %v6472 = vor.u32 %v6470, %v6471
        %v6473 = vsel %vm2845, %v6460, %v6472
        %v6474 = vrot.slane %v5887, 3
        %v6475 = vrot.slane %v5867, 4
        %v6476 = vor.u32 %v6474, %v6475
        %v6477 = vsel %vm2845, %v6464, %v6476
        %v6478 = vrot.slane %v5895, 3
        %v6479 = vrot.slane %v5875, 4
        %v6480 = vor.u32 %v6478, %v6479
        %v6481 = vsel %vm2845, %v6468, %v6480
        %v6483 = vshrl.u32 %v6370, 16
        %v6485 = vrot.slane %v6483, 3
        %v6486 = vshll.u32 %v6370, 16
        %v6488 = vrot.slane %v6486, 4
        %v6489 = vor.u32 %v6485, %v6488
        %v6490 = vsel %vm2845, %v6472, %v6489
        %v6492 = vshrl.u32 %v6371, 16
        %v6494 = vrot.slane %v6492, 3
        %v6495 = vshll.u32 %v6371, 16
        %v6497 = vrot.slane %v6495, 4
        %v6498 = vor.u32 %v6494, %v6497
        %v6499 = vsel %vm2845, %v6476, %v6498
        %v6501 = vshrl.u32 %v6372, 16
        %v6503 = vrot.slane %v6501, 3
        %v6504 = vshll.u32 %v6372, 16
        %v6506 = vrot.slane %v6504, 4
        %v6507 = vor.u32 %v6503, %v6506
        %v6508 = vsel %vm2845, %v6480, %v6507
        %v6569 = vunpack.c.l.b16 %v6374
        %v6570 = vunpack.c.h.b16 %v6374
        %v6571 = vunpack.c.l.b16 %v6375
        %v6572 = vunpack.c.h.b16 %v6375
        %v6573 = vunpack.c.l.b16 %v6376
        %v6574 = vunpack.c.h.b16 %v6376
        %v6575 = vunpack.c.l.b16 %v6377
        %v6576 = vunpack.c.h.b16 %v6377
        %v6577 = vunpack.c.l.b16 %v6378
        %v6578 = vunpack.c.h.b16 %v6378
        %v6579 = vunpack.c.l.b16 %v6379
        %v6580 = vunpack.c.h.b16 %v6379
        %v6581 = vunpack.c.l.b16 %v6380
        %v6582 = vunpack.c.h.b16 %v6380
        %v6583 = vunpack.c.l.b16 %v6381
        %v6584 = vunpack.c.h.b16 %v6381
        %v6585 = vunpack.c.l.b16 %v6382
        %v6586 = vunpack.c.h.b16 %v6382
        %v6587 = vunpack.c.l.b16 %v6383
        %v6588 = vunpack.c.h.b16 %v6383
        %v6589 = vunpack.c.l.b16 %v6384
        %v6590 = vunpack.c.h.b16 %v6384
        %v6591 = vunpack.c.l.b16 %v6385
        %v6592 = vunpack.c.h.b16 %v6385
        %v6593 = vunpack.c.l.b16 %v6386
        %v6594 = vunpack.c.h.b16 %v6386
        %v6595 = vunpack.c.l.b16 %v6387
        %v6596 = vunpack.c.h.b16 %v6387
        %v6597 = vunpack.c.l.b16 %v6388
        %v6598 = vunpack.c.h.b16 %v6388
        %v6599 = vunpack.c.l.b16 %v6389
        %v6600 = vunpack.c.h.b16 %v6389
        %v6601 = vunpack.c.l.b16 %v6390
        %v6602 = vunpack.c.h.b16 %v6390
        %v6603 = vunpack.c.l.b16 %v6391
        %v6604 = vunpack.c.h.b16 %v6391
        %v6605 = vunpack.c.l.b16 %v6392
        %v6606 = vunpack.c.h.b16 %v6392
        %v6607 = vunpack.c.l.b16 %v6393
        %v6608 = vunpack.c.h.b16 %v6393
        %v6609 = vunpack.c.l.b16 %v6394
        %v6610 = vunpack.c.h.b16 %v6394
        %v6611 = vunpack.c.l.b16 %v6395
        %v6612 = vunpack.c.h.b16 %v6395
        %v6613 = vunpack.c.l.b16 %v6396
        %v6614 = vunpack.c.h.b16 %v6396
        %v6615 = vunpack.c.l.b16 %v6397
        %v6616 = vunpack.c.h.b16 %v6397
        %v6617 = vunpack.c.l.b16 %v6398
        %v6618 = vunpack.c.h.b16 %v6398
        %v6619 = vunpack.c.l.b16 %v6399
        %v6620 = vunpack.c.h.b16 %v6399
        %v6621 = vunpack.c.l.b16 %v6400
        %v6622 = vunpack.c.h.b16 %v6400
        %v6623 = vunpack.c.l.b16 %v6401
        %v6624 = vunpack.c.h.b16 %v6401
        %v6625 = vunpack.c.l.b16 %v6402
        %v6626 = vunpack.c.h.b16 %v6402
        %v6627 = vunpack.c.l.b16 %v6403
        %v6628 = vunpack.c.h.b16 %v6403
        %v6629 = vunpack.c.l.b16 %v6404
        %v6630 = vunpack.c.h.b16 %v6404
        %v6631 = vunpack.c.l.b16 %v6405
        %v6632 = vunpack.c.h.b16 %v6405
        %v6633 = vunpack.c.l.b16 %v6406
        %v6634 = vunpack.c.h.b16 %v6406
        %v6635 = vunpack.c.l.b16 %v6407
        %v6636 = vunpack.c.h.b16 %v6407
        %v6637 = vunpack.c.l.b16 %v6408
        %v6638 = vunpack.c.h.b16 %v6408
        %v6639 = vunpack.c.l.b16 %v6409
        %v6640 = vunpack.c.h.b16 %v6409
        %v6641 = vunpack.c.l.b16 %v6410
        %v6642 = vunpack.c.h.b16 %v6410
        %v6643 = vunpack.c.l.b16 %v6411
        %v6644 = vunpack.c.h.b16 %v6411
        %v6645 = vunpack.c.l.b16 %v6412
        %v6646 = vunpack.c.h.b16 %v6412
        %v6647 = vunpack.c.l.b16 %v6413
        %v6648 = vunpack.c.h.b16 %v6413
        %v6649 = vunpack.c.l.b16 %v6414
        %v6650 = vunpack.c.h.b16 %v6414
        %v6651 = vunpack.c.l.b16 %v6415
        %v6652 = vunpack.c.h.b16 %v6415
        %v6653 = vunpack.c.l.b16 %v6416
        %v6654 = vunpack.c.h.b16 %v6416
        %v6655 = vunpack.c.l.b16 %v6417
        %v6656 = vunpack.c.h.b16 %v6417
        %v6657 = vunpack.c.l.b16 %v6418
        %v6658 = vunpack.c.h.b16 %v6418
        %v6659 = vunpack.c.l.b16 %v6419
        %v6660 = vunpack.c.h.b16 %v6419
        %v6661 = vunpack.c.l.b16 %v6420
        %v6662 = vunpack.c.h.b16 %v6420
        %v6663 = vunpack.c.l.b16 %v6421
        %v6664 = vunpack.c.h.b16 %v6421
        %v6665 = vpack.c.b16 %v6571, %v6569
        %v6666 = vpack.c.b16 %v6572, %v6570
        %v6667 = vpack.c.b16 %v6575, %v6573
        %v6668 = vpack.c.b16 %v6576, %v6574
        %v6669 = vpack.c.b16 %v6579, %v6577
        %v6670 = vpack.c.b16 %v6580, %v6578
        %v6671 = vpack.c.b16 %v6583, %v6581
        %v6672 = vpack.c.b16 %v6584, %v6582
        %v6673 = vpack.c.b16 %v6587, %v6585
        %v6674 = vpack.c.b16 %v6588, %v6586
        %v6675 = vpack.c.b16 %v6591, %v6589
        %v6676 = vpack.c.b16 %v6592, %v6590
        %v6677 = vpack.c.b16 %v6595, %v6593
        %v6678 = vpack.c.b16 %v6596, %v6594
        %v6679 = vpack.c.b16 %v6599, %v6597
        %v6680 = vpack.c.b16 %v6600, %v6598
        %v6681 = vpack.c.b16 %v6603, %v6601
        %v6682 = vpack.c.b16 %v6604, %v6602
        %v6683 = vpack.c.b16 %v6607, %v6605
        %v6684 = vpack.c.b16 %v6608, %v6606
        %v6685 = vpack.c.b16 %v6611, %v6609
        %v6686 = vpack.c.b16 %v6612, %v6610
        %v6687 = vpack.c.b16 %v6615, %v6613
        %v6688 = vpack.c.b16 %v6616, %v6614
        %v6689 = vpack.c.b16 %v6619, %v6617
        %v6690 = vpack.c.b16 %v6620, %v6618
        %v6691 = vpack.c.b16 %v6623, %v6621
        %v6692 = vpack.c.b16 %v6624, %v6622
        %v6693 = vpack.c.b16 %v6627, %v6625
        %v6694 = vpack.c.b16 %v6628, %v6626
        %v6695 = vpack.c.b16 %v6631, %v6629
        %v6696 = vpack.c.b16 %v6632, %v6630
        %v6697 = vpack.c.b16 %v6635, %v6633
        %v6698 = vpack.c.b16 %v6636, %v6634
        %v6699 = vpack.c.b16 %v6639, %v6637
        %v6700 = vpack.c.b16 %v6640, %v6638
        %v6701 = vpack.c.b16 %v6643, %v6641
        %v6702 = vpack.c.b16 %v6644, %v6642
        %v6703 = vpack.c.b16 %v6647, %v6645
        %v6704 = vpack.c.b16 %v6648, %v6646
        %v6705 = vpack.c.b16 %v6651, %v6649
        %v6706 = vpack.c.b16 %v6652, %v6650
        %v6707 = vpack.c.b16 %v6655, %v6653
        %v6708 = vpack.c.b16 %v6656, %v6654
        %v6709 = vpack.c.b16 %v6659, %v6657
        %v6710 = vpack.c.b16 %v6660, %v6658
        %v6711 = vpack.c.b16 %v6663, %v6661
        %v6712 = vpack.c.b16 %v6664, %v6662
        %6761 = vmatpush.bf16.msra.mxu0 %v6679
        %6762 = vmatpush.bf16.msra.mxu0 %v6677
        %6763 = vmatpush.bf16.msra.mxu0 %v6675
        %6764 = vmatpush.bf16.msra.mxu0 %v6673
        %6765 = vmatpush.bf16.msra.mxu0 %v6671
        %6766 = vmatpush.bf16.msra.mxu0 %v6669
        %6767 = vmatpush.bf16.msra.mxu0 %v6667
        %6768 = vmatpush.bf16.msra.mxu0 %v6665
        %6769 = vmatmul.bf16.gmra.mxu0 %v6433
        %v6770 = vpop.f32.mrf.mxu0
        %v6771 = vadd.f32 0.0, %v6770
        %v6772 = vpop.f32.mrf.mxu0
        %v6773 = vadd.f32 0.0, %v6772
        %6774 = vmatmul.bf16.gmra.mxu0 %v6461
        %v6775 = vpop.f32.mrf.mxu0
        %v6776 = vadd.f32 0.0, %v6775
        %v6777 = vpop.f32.mrf.mxu0
        %v6778 = vadd.f32 0.0, %v6777
        %6779 = vmatmul.bf16.gmra.mxu0 %v6473
        %v6780 = vpop.f32.mrf.mxu0
        %v6781 = vadd.f32 0.0, %v6780
        %v6782 = vpop.f32.mrf.mxu0
        %v6783 = vadd.f32 0.0, %v6782
        %6784 = vmatmul.bf16.gmra.mxu0 %v6490
        %v6785 = vpop.f32.mrf.mxu0
        %v6786 = vadd.f32 0.0, %v6785
        %v6787 = vpop.f32.mrf.mxu0
        %v6788 = vadd.f32 0.0, %v6787
        %6789 = vdwg.mxu0
        %6790 = vmatpush.bf16.msra.mxu0 %v6695
        %6791 = vmatpush.bf16.msra.mxu0 %v6693
        %6792 = vmatpush.bf16.msra.mxu0 %v6691
        %6793 = vmatpush.bf16.msra.mxu0 %v6689
        %6794 = vmatpush.bf16.msra.mxu0 %v6687
        %6795 = vmatpush.bf16.msra.mxu0 %v6685
        %6796 = vmatpush.bf16.msra.mxu0 %v6683
        %6797 = vmatpush.bf16.msra.mxu0 %v6681
        %6798 = vmatmul.bf16.gmra.mxu0 %v6445
        %v6799 = vpop.f32.mrf.mxu0
        %v6800 = vadd.f32 %v6771, %v6799
        %v6801 = vpop.f32.mrf.mxu0
        %v6802 = vadd.f32 %v6773, %v6801
        %6803 = vmatmul.bf16.gmra.mxu0 %v6465
        %v6804 = vpop.f32.mrf.mxu0
        %v6805 = vadd.f32 %v6776, %v6804
        %v6806 = vpop.f32.mrf.mxu0
        %v6807 = vadd.f32 %v6778, %v6806
        %6808 = vmatmul.bf16.gmra.mxu0 %v6477
        %v6809 = vpop.f32.mrf.mxu0
        %v6810 = vadd.f32 %v6781, %v6809
        %v6811 = vpop.f32.mrf.mxu0
        %v6812 = vadd.f32 %v6783, %v6811
        %6813 = vmatmul.bf16.gmra.mxu0 %v6499
        %v6814 = vpop.f32.mrf.mxu0
        %v6815 = vadd.f32 %v6786, %v6814
        %v6816 = vpop.f32.mrf.mxu0
        %v6817 = vadd.f32 %v6788, %v6816
        %6818 = vdwg.mxu0
        %6819 = vmatpush.bf16.msra.mxu0 %v6711
        %6820 = vmatpush.bf16.msra.mxu0 %v6709
        %6821 = vmatpush.bf16.msra.mxu0 %v6707
        %6822 = vmatpush.bf16.msra.mxu0 %v6705
        %6823 = vmatpush.bf16.msra.mxu0 %v6703
        %6824 = vmatpush.bf16.msra.mxu0 %v6701
        %6825 = vmatpush.bf16.msra.mxu0 %v6699
        %6826 = vmatpush.bf16.msra.mxu0 %v6697
        %6827 = vmatmul.bf16.gmra.mxu0 %v6457
        %v6828 = vpop.f32.mrf.mxu0
        %v6829 = vadd.f32 %v6800, %v6828
        %v6830 = vpop.f32.mrf.mxu0
        %v6831 = vadd.f32 %v6802, %v6830
        %6832 = vmatmul.bf16.gmra.mxu0 %v6469
        %v6833 = vpop.f32.mrf.mxu0
        %v6834 = vadd.f32 %v6805, %v6833
        %v6835 = vpop.f32.mrf.mxu0
        %v6836 = vadd.f32 %v6807, %v6835
        %6837 = vmatmul.bf16.gmra.mxu0 %v6481
        %v6838 = vpop.f32.mrf.mxu0
        %v6839 = vadd.f32 %v6810, %v6838
        %v6840 = vpop.f32.mrf.mxu0
        %v6841 = vadd.f32 %v6812, %v6840
        %6842 = vmatmul.bf16.gmra.mxu0 %v6508
        %v6843 = vpop.f32.mrf.mxu0
        %v6844 = vadd.f32 %v6815, %v6843
        %v6845 = vpop.f32.mrf.mxu0
        %v6846 = vadd.f32 %v6817, %v6845
        %6847 = vdwg.mxu0
        %6848 = vmatpush.bf16.msra.mxu0 %v6680
        %6849 = vmatpush.bf16.msra.mxu0 %v6678
        %6850 = vmatpush.bf16.msra.mxu0 %v6676
        %6851 = vmatpush.bf16.msra.mxu0 %v6674
        %6852 = vmatpush.bf16.msra.mxu0 %v6672
        %6853 = vmatpush.bf16.msra.mxu0 %v6670
        %6854 = vmatpush.bf16.msra.mxu0 %v6668
        %6855 = vmatpush.bf16.msra.mxu0 %v6666
        %6856 = vmatmul.bf16.gmra.mxu0 %v6433
        %v6857 = vpop.f32.mrf.mxu0
        %v6858 = vadd.f32 0.0, %v6857
        %v6859 = vpop.f32.mrf.mxu0
        %v6860 = vadd.f32 0.0, %v6859
        %6861 = vmatmul.bf16.gmra.mxu0 %v6461
        %v6862 = vpop.f32.mrf.mxu0
        %v6863 = vadd.f32 0.0, %v6862
        %v6864 = vpop.f32.mrf.mxu0
        %v6865 = vadd.f32 0.0, %v6864
        %6866 = vmatmul.bf16.gmra.mxu0 %v6473
        %v6867 = vpop.f32.mrf.mxu0
        %v6868 = vadd.f32 0.0, %v6867
        %v6869 = vpop.f32.mrf.mxu0
        %v6870 = vadd.f32 0.0, %v6869
        %6871 = vmatmul.bf16.gmra.mxu0 %v6490
        %v6872 = vpop.f32.mrf.mxu0
        %v6873 = vadd.f32 0.0, %v6872
        %v6874 = vpop.f32.mrf.mxu0
        %v6875 = vadd.f32 0.0, %v6874
        %6876 = vdwg.mxu0
        %6877 = vmatpush.bf16.msra.mxu0 %v6696
        %6878 = vmatpush.bf16.msra.mxu0 %v6694
        %6879 = vmatpush.bf16.msra.mxu0 %v6692
        %6880 = vmatpush.bf16.msra.mxu0 %v6690
        %6881 = vmatpush.bf16.msra.mxu0 %v6688
        %6882 = vmatpush.bf16.msra.mxu0 %v6686
        %6883 = vmatpush.bf16.msra.mxu0 %v6684
        %6884 = vmatpush.bf16.msra.mxu0 %v6682
        %6885 = vmatmul.bf16.gmra.mxu0 %v6445
        %v6886 = vpop.f32.mrf.mxu0
        %v6887 = vadd.f32 %v6858, %v6886
        %v6888 = vpop.f32.mrf.mxu0
        %v6889 = vadd.f32 %v6860, %v6888
        %6890 = vmatmul.bf16.gmra.mxu0 %v6465
        %v6891 = vpop.f32.mrf.mxu0
        %v6892 = vadd.f32 %v6863, %v6891
        %v6893 = vpop.f32.mrf.mxu0
        %v6894 = vadd.f32 %v6865, %v6893
        %6895 = vmatmul.bf16.gmra.mxu0 %v6477
        %v6896 = vpop.f32.mrf.mxu0
        %v6897 = vadd.f32 %v6868, %v6896
        %v6898 = vpop.f32.mrf.mxu0
        %v6899 = vadd.f32 %v6870, %v6898
        %6900 = vmatmul.bf16.gmra.mxu0 %v6499
        %v6901 = vpop.f32.mrf.mxu0
        %v6902 = vadd.f32 %v6873, %v6901
        %v6903 = vpop.f32.mrf.mxu0
        %v6904 = vadd.f32 %v6875, %v6903
        %6905 = vdwg.mxu0
        %6906 = vmatpush.bf16.msra.mxu0 %v6712
        %6907 = vmatpush.bf16.msra.mxu0 %v6710
        %6908 = vmatpush.bf16.msra.mxu0 %v6708
        %6909 = vmatpush.bf16.msra.mxu0 %v6706
        %6910 = vmatpush.bf16.msra.mxu0 %v6704
        %6911 = vmatpush.bf16.msra.mxu0 %v6702
        %6912 = vmatpush.bf16.msra.mxu0 %v6700
        %6913 = vmatpush.bf16.msra.mxu0 %v6698
        %6914 = vmatmul.bf16.gmra.mxu0 %v6457
        %v6915 = vpop.f32.mrf.mxu0
        %v6916 = vadd.f32 %v6887, %v6915
        %v6917 = vpop.f32.mrf.mxu0
        %v6918 = vadd.f32 %v6889, %v6917
        %6919 = vmatmul.bf16.gmra.mxu0 %v6469
        %v6920 = vpop.f32.mrf.mxu0
        %v6921 = vadd.f32 %v6892, %v6920
        %v6922 = vpop.f32.mrf.mxu0
        %v6923 = vadd.f32 %v6894, %v6922
        %6924 = vmatmul.bf16.gmra.mxu0 %v6481
        %v6925 = vpop.f32.mrf.mxu0
        %v6926 = vadd.f32 %v6897, %v6925
        %v6927 = vpop.f32.mrf.mxu0
        %v6928 = vadd.f32 %v6899, %v6927
        %6929 = vmatmul.bf16.gmra.mxu0 %v6508
        %v6930 = vpop.f32.mrf.mxu0
        %v6931 = vadd.f32 %v6902, %v6930
        %v6932 = vpop.f32.mrf.mxu0
        %v6933 = vadd.f32 %v6904, %v6932
        %6934 = vdwg.mxu0
        %v6935 = vsel %vm3412, %v6829, 0.0
        %v6936 = vsel %vm3412, %v6916, 0.0
        %v6937 = vsel %vm3413, %v6831, 0.0
        %v6938 = vsel %vm3413, %v6918, 0.0
        %v6939 = vsel %vm3414, %v6834, 0.0
        %v6940 = vsel %vm3414, %v6921, 0.0
        %v6941 = vsel %vm3415, %v6836, 0.0
        %v6942 = vsel %vm3415, %v6923, 0.0
        %v6943 = vsel %vm3416, %v6839, 0.0
        %v6944 = vsel %vm3416, %v6926, 0.0
        %v6945 = vsel %vm3417, %v6841, 0.0
        %v6946 = vsel %vm3417, %v6928, 0.0
        %v6947 = vsel %vm3418, %v6844, 0.0
        %v6948 = vsel %vm3418, %v6931, 0.0
        %v6949 = vsel %vm3419, %v6846, 0.0
        %v6950 = vsel %vm3419, %v6933, 0.0
        %v6951 = vadd.f32 %v6345, %v6935
        %v6952 = vadd.f32 %v6346, %v6936
        %v6953 = vadd.f32 %v6347, %v6937
        %v6954 = vadd.f32 %v6348, %v6938
        %v6955 = vadd.f32 %v6349, %v6939
        %v6956 = vadd.f32 %v6350, %v6940
        %v6957 = vadd.f32 %v6351, %v6941
        %v6958 = vadd.f32 %v6352, %v6942
        %v6959 = vadd.f32 %v6353, %v6943
        %v6960 = vadd.f32 %v6354, %v6944
        %v6961 = vadd.f32 %v6355, %v6945
        %v6962 = vadd.f32 %v6356, %v6946
        %v6963 = vadd.f32 %v6357, %v6947
        %v6964 = vadd.f32 %v6358, %v6948
        %v6965 = vadd.f32 %v6359, %v6949
        %v6966 = vadd.f32 %v6360, %v6950
        %v6967 = vld [vmem:[#allocation2 + $0xf0] sm:$0xff]
        %v6968 = vld [vmem:[#allocation2 + $0xf8] sm:$0xff]
        %v6969 = vld [vmem:[#allocation2 + $0x100] sm:$0xff]
        %v6970 = vpack.c.bf16 %v5710, %v5707
        %v6971 = vpack.c.bf16 %v5711, %v5708
        %v6972 = vpack.c.bf16 %v5712, %v5709
        %v6973 = vpack.c.bf16 %v5716, %v5713
        %v6974 = vpack.c.bf16 %v5717, %v5714
        %v6975 = vpack.c.bf16 %v5718, %v5715
        %v6976 = vpack.c.bf16 %v5722, %v5719
        %v6977 = vpack.c.bf16 %v5723, %v5720
        %v6978 = vpack.c.bf16 %v5724, %v5721
        %v6979 = vpack.c.bf16 %v6967, %v5725
        %v6980 = vpack.c.bf16 %v6968, %v5726
        %v6981 = vpack.c.bf16 %v6969, %v5727
        %s6982 = scalar_lea.vmem %s3, 2688
        %v6983 = vld [vmem:[%s6982] sm:$0xff]
        %v6984 = vld [vmem:[%s6982 + $0x8] sm:$0xff]
        %v6985 = vld [vmem:[%s6982 + $0x10] sm:$0xff]
        %v6986 = vld [vmem:[%s6982 + $0x18] sm:$0xff]
        %v6987 = vld [vmem:[%s6982 + $0x20] sm:$0xff]
        %v6988 = vld [vmem:[%s6982 + $0x28] sm:$0xff]
        %v6989 = vld [vmem:[%s6982 + $0x30] sm:$0xff]
        %v6990 = vld [vmem:[%s6982 + $0x38] sm:$0xff]
        %v6991 = vld [vmem:[%s6982 + $0x40] sm:$0xff]
        %v6992 = vld [vmem:[%s6982 + $0x48] sm:$0xff]
        %v6993 = vld [vmem:[%s6982 + $0x50] sm:$0xff]
        %v6994 = vld [vmem:[%s6982 + $0x58] sm:$0xff]
        %v6995 = vld [vmem:[%s6982 + $0x60] sm:$0xff]
        %v6996 = vld [vmem:[%s6982 + $0x68] sm:$0xff]
        %v6997 = vld [vmem:[%s6982 + $0x70] sm:$0xff]
        %v6998 = vld [vmem:[%s6982 + $0x78] sm:$0xff]
        %v6999 = vld [vmem:[%s6982 + $0x80] sm:$0xff]
        %v7000 = vld [vmem:[%s6982 + $0x88] sm:$0xff]
        %v7001 = vld [vmem:[%s6982 + $0x90] sm:$0xff]
        %v7002 = vld [vmem:[%s6982 + $0x98] sm:$0xff]
        %v7003 = vld [vmem:[%s6982 + $0xa0] sm:$0xff]
        %v7004 = vld [vmem:[%s6982 + $0xa8] sm:$0xff]
        %v7005 = vld [vmem:[%s6982 + $0xb0] sm:$0xff]
        %v7006 = vld [vmem:[%s6982 + $0xb8] sm:$0xff]
        %v7007 = vld [vmem:[%s6982 + $0xc0] sm:$0xff]
        %v7008 = vld [vmem:[%s6982 + $0xc8] sm:$0xff]
        %v7009 = vld [vmem:[%s6982 + $0xd0] sm:$0xff]
        %v7010 = vld [vmem:[%s6982 + $0xd8] sm:$0xff]
        %v7011 = vld [vmem:[%s6982 + $0xe0] sm:$0xff]
        %v7012 = vld [vmem:[%s6982 + $0xe8] sm:$0xff]
        %v7013 = vld [vmem:[%s6982 + $0xf0] sm:$0xff]
        %v7014 = vld [vmem:[%s6982 + $0xf8] sm:$0xff]
        %v7015 = vld [vmem:[%s6982 + $0x100] sm:$0xff]
        %v7016 = vld [vmem:[%s6982 + $0x108] sm:$0xff]
        %v7017 = vld [vmem:[%s6982 + $0x110] sm:$0xff]
        %v7018 = vld [vmem:[%s6982 + $0x118] sm:$0xff]
        %v7019 = vld [vmem:[%s6982 + $0x120] sm:$0xff]
        %v7020 = vld [vmem:[%s6982 + $0x128] sm:$0xff]
        %v7021 = vld [vmem:[%s6982 + $0x130] sm:$0xff]
        %v7022 = vld [vmem:[%s6982 + $0x138] sm:$0xff]
        %v7023 = vld [vmem:[%s6982 + $0x140] sm:$0xff]
        %v7024 = vld [vmem:[%s6982 + $0x148] sm:$0xff]
        %v7025 = vld [vmem:[%s6982 + $0x150] sm:$0xff]
        %v7026 = vld [vmem:[%s6982 + $0x158] sm:$0xff]
        %v7027 = vld [vmem:[%s6982 + $0x160] sm:$0xff]
        %v7028 = vld [vmem:[%s6982 + $0x168] sm:$0xff]
        %v7029 = vld [vmem:[%s6982 + $0x170] sm:$0xff]
        %v7030 = vld [vmem:[%s6982 + $0x178] sm:$0xff]
        %v7079 = vunpack.c.l.b16 %v6983
        %v7080 = vunpack.c.h.b16 %v6983
        %v7081 = vunpack.c.l.b16 %v6984
        %v7082 = vunpack.c.h.b16 %v6984
        %v7083 = vunpack.c.l.b16 %v6985
        %v7084 = vunpack.c.h.b16 %v6985
        %v7085 = vunpack.c.l.b16 %v6986
        %v7086 = vunpack.c.h.b16 %v6986
        %v7087 = vunpack.c.l.b16 %v6987
        %v7088 = vunpack.c.h.b16 %v6987
        %v7089 = vunpack.c.l.b16 %v6988
        %v7090 = vunpack.c.h.b16 %v6988
        %v7091 = vunpack.c.l.b16 %v6989
        %v7092 = vunpack.c.h.b16 %v6989
        %v7093 = vunpack.c.l.b16 %v6990
        %v7094 = vunpack.c.h.b16 %v6990
        %v7095 = vunpack.c.l.b16 %v6991
        %v7096 = vunpack.c.h.b16 %v6991
        %v7097 = vunpack.c.l.b16 %v6992
        %v7098 = vunpack.c.h.b16 %v6992
        %v7099 = vunpack.c.l.b16 %v6993
        %v7100 = vunpack.c.h.b16 %v6993
        %v7101 = vunpack.c.l.b16 %v6994
        %v7102 = vunpack.c.h.b16 %v6994
        %v7103 = vunpack.c.l.b16 %v6995
        %v7104 = vunpack.c.h.b16 %v6995
        %v7105 = vunpack.c.l.b16 %v6996
        %v7106 = vunpack.c.h.b16 %v6996
        %v7107 = vunpack.c.l.b16 %v6997
        %v7108 = vunpack.c.h.b16 %v6997
        %v7109 = vunpack.c.l.b16 %v6998
        %v7110 = vunpack.c.h.b16 %v6998
        %v7111 = vunpack.c.l.b16 %v6999
        %v7112 = vunpack.c.h.b16 %v6999
        %v7113 = vunpack.c.l.b16 %v7000
        %v7114 = vunpack.c.h.b16 %v7000
        %v7115 = vunpack.c.l.b16 %v7001
        %v7116 = vunpack.c.h.b16 %v7001
        %v7117 = vunpack.c.l.b16 %v7002
        %v7118 = vunpack.c.h.b16 %v7002
        %v7119 = vunpack.c.l.b16 %v7003
        %v7120 = vunpack.c.h.b16 %v7003
        %v7121 = vunpack.c.l.b16 %v7004
        %v7122 = vunpack.c.h.b16 %v7004
        %v7123 = vunpack.c.l.b16 %v7005
        %v7124 = vunpack.c.h.b16 %v7005
        %v7125 = vunpack.c.l.b16 %v7006
        %v7126 = vunpack.c.h.b16 %v7006
        %v7127 = vunpack.c.l.b16 %v7007
        %v7128 = vunpack.c.h.b16 %v7007
        %v7129 = vunpack.c.l.b16 %v7008
        %v7130 = vunpack.c.h.b16 %v7008
        %v7131 = vunpack.c.l.b16 %v7009
        %v7132 = vunpack.c.h.b16 %v7009
        %v7133 = vunpack.c.l.b16 %v7010
        %v7134 = vunpack.c.h.b16 %v7010
        %v7135 = vunpack.c.l.b16 %v7011
        %v7136 = vunpack.c.h.b16 %v7011
        %v7137 = vunpack.c.l.b16 %v7012
        %v7138 = vunpack.c.h.b16 %v7012
        %v7139 = vunpack.c.l.b16 %v7013
        %v7140 = vunpack.c.h.b16 %v7013
        %v7141 = vunpack.c.l.b16 %v7014
        %v7142 = vunpack.c.h.b16 %v7014
        %v7143 = vunpack.c.l.b16 %v7015
        %v7144 = vunpack.c.h.b16 %v7015
        %v7145 = vunpack.c.l.b16 %v7016
        %v7146 = vunpack.c.h.b16 %v7016
        %v7147 = vunpack.c.l.b16 %v7017
        %v7148 = vunpack.c.h.b16 %v7017
        %v7149 = vunpack.c.l.b16 %v7018
        %v7150 = vunpack.c.h.b16 %v7018
        %v7151 = vunpack.c.l.b16 %v7019
        %v7152 = vunpack.c.h.b16 %v7019
        %v7153 = vunpack.c.l.b16 %v7020
        %v7154 = vunpack.c.h.b16 %v7020
        %v7155 = vunpack.c.l.b16 %v7021
        %v7156 = vunpack.c.h.b16 %v7021
        %v7157 = vunpack.c.l.b16 %v7022
        %v7158 = vunpack.c.h.b16 %v7022
        %v7159 = vunpack.c.l.b16 %v7023
        %v7160 = vunpack.c.h.b16 %v7023
        %v7161 = vunpack.c.l.b16 %v7024
        %v7162 = vunpack.c.h.b16 %v7024
        %v7163 = vunpack.c.l.b16 %v7025
        %v7164 = vunpack.c.h.b16 %v7025
        %v7165 = vunpack.c.l.b16 %v7026
        %v7166 = vunpack.c.h.b16 %v7026
        %v7167 = vunpack.c.l.b16 %v7027
        %v7168 = vunpack.c.h.b16 %v7027
        %v7169 = vunpack.c.l.b16 %v7028
        %v7170 = vunpack.c.h.b16 %v7028
        %v7171 = vunpack.c.l.b16 %v7029
        %v7172 = vunpack.c.h.b16 %v7029
        %v7173 = vunpack.c.l.b16 %v7030
        %v7174 = vunpack.c.h.b16 %v7030
        %v7175 = vpack.c.b16 %v7081, %v7079
        %v7176 = vpack.c.b16 %v7082, %v7080
        %v7177 = vpack.c.b16 %v7085, %v7083
        %v7178 = vpack.c.b16 %v7086, %v7084
        %v7179 = vpack.c.b16 %v7089, %v7087
        %v7180 = vpack.c.b16 %v7090, %v7088
        %v7181 = vpack.c.b16 %v7093, %v7091
        %v7182 = vpack.c.b16 %v7094, %v7092
        %v7183 = vpack.c.b16 %v7097, %v7095
        %v7184 = vpack.c.b16 %v7098, %v7096
        %v7185 = vpack.c.b16 %v7101, %v7099
        %v7186 = vpack.c.b16 %v7102, %v7100
        %v7187 = vpack.c.b16 %v7105, %v7103
        %v7188 = vpack.c.b16 %v7106, %v7104
        %v7189 = vpack.c.b16 %v7109, %v7107
        %v7190 = vpack.c.b16 %v7110, %v7108
        %v7191 = vpack.c.b16 %v7113, %v7111
        %v7192 = vpack.c.b16 %v7114, %v7112
        %v7193 = vpack.c.b16 %v7117, %v7115
        %v7194 = vpack.c.b16 %v7118, %v7116
        %v7195 = vpack.c.b16 %v7121, %v7119
        %v7196 = vpack.c.b16 %v7122, %v7120
        %v7197 = vpack.c.b16 %v7125, %v7123
        %v7198 = vpack.c.b16 %v7126, %v7124
        %v7199 = vpack.c.b16 %v7129, %v7127
        %v7200 = vpack.c.b16 %v7130, %v7128
        %v7201 = vpack.c.b16 %v7133, %v7131
        %v7202 = vpack.c.b16 %v7134, %v7132
        %v7203 = vpack.c.b16 %v7137, %v7135
        %v7204 = vpack.c.b16 %v7138, %v7136
        %v7205 = vpack.c.b16 %v7141, %v7139
        %v7206 = vpack.c.b16 %v7142, %v7140
        %v7207 = vpack.c.b16 %v7145, %v7143
        %v7208 = vpack.c.b16 %v7146, %v7144
        %v7209 = vpack.c.b16 %v7149, %v7147
        %v7210 = vpack.c.b16 %v7150, %v7148
        %v7211 = vpack.c.b16 %v7153, %v7151
        %v7212 = vpack.c.b16 %v7154, %v7152
        %v7213 = vpack.c.b16 %v7157, %v7155
        %v7214 = vpack.c.b16 %v7158, %v7156
        %v7215 = vpack.c.b16 %v7161, %v7159
        %v7216 = vpack.c.b16 %v7162, %v7160
        %v7217 = vpack.c.b16 %v7165, %v7163
        %v7218 = vpack.c.b16 %v7166, %v7164
        %v7219 = vpack.c.b16 %v7169, %v7167
        %v7220 = vpack.c.b16 %v7170, %v7168
        %v7221 = vpack.c.b16 %v7173, %v7171
        %v7222 = vpack.c.b16 %v7174, %v7172
        %7271 = vmatpush.bf16.msra.mxu0 %v7189
        %7272 = vmatpush.bf16.msra.mxu0 %v7187
        %7273 = vmatpush.bf16.msra.mxu0 %v7185
        %7274 = vmatpush.bf16.msra.mxu0 %v7183
        %7275 = vmatpush.bf16.msra.mxu0 %v7181
        %7276 = vmatpush.bf16.msra.mxu0 %v7179
        %7277 = vmatpush.bf16.msra.mxu0 %v7177
        %7278 = vmatpush.bf16.msra.mxu0 %v7175
        %7279 = vmatmul.bf16.gmra.mxu0 %v6970
        %v7280 = vpop.f32.mrf.mxu0
        %v7281 = vadd.f32 0.0, %v7280
        %v7282 = vpop.f32.mrf.mxu0
        %v7283 = vadd.f32 0.0, %v7282
        %7284 = vmatmul.bf16.gmra.mxu0 %v6973
        %v7285 = vpop.f32.mrf.mxu0
        %v7286 = vadd.f32 0.0, %v7285
        %v7287 = vpop.f32.mrf.mxu0
        %v7288 = vadd.f32 0.0, %v7287
        %7289 = vmatmul.bf16.gmra.mxu0 %v6976
        %v7290 = vpop.f32.mrf.mxu0
        %v7291 = vadd.f32 0.0, %v7290
        %v7292 = vpop.f32.mrf.mxu0
        %v7293 = vadd.f32 0.0, %v7292
        %7294 = vmatmul.bf16.gmra.mxu0 %v6979
        %v7295 = vpop.f32.mrf.mxu0
        %v7296 = vadd.f32 0.0, %v7295
        %v7297 = vpop.f32.mrf.mxu0
        %v7298 = vadd.f32 0.0, %v7297
        %7299 = vdwg.mxu0
        %7300 = vmatpush.bf16.msra.mxu0 %v7205
        %7301 = vmatpush.bf16.msra.mxu0 %v7203
        %7302 = vmatpush.bf16.msra.mxu0 %v7201
        %7303 = vmatpush.bf16.msra.mxu0 %v7199
        %7304 = vmatpush.bf16.msra.mxu0 %v7197
        %7305 = vmatpush.bf16.msra.mxu0 %v7195
        %7306 = vmatpush.bf16.msra.mxu0 %v7193
        %7307 = vmatpush.bf16.msra.mxu0 %v7191
        %7308 = vmatmul.bf16.gmra.mxu0 %v6971
        %v7309 = vpop.f32.mrf.mxu0
        %v7310 = vadd.f32 %v7281, %v7309
        %v7311 = vpop.f32.mrf.mxu0
        %v7312 = vadd.f32 %v7283, %v7311
        %7313 = vmatmul.bf16.gmra.mxu0 %v6974
        %v7314 = vpop.f32.mrf.mxu0
        %v7315 = vadd.f32 %v7286, %v7314
        %v7316 = vpop.f32.mrf.mxu0
        %v7317 = vadd.f32 %v7288, %v7316
        %7318 = vmatmul.bf16.gmra.mxu0 %v6977
        %v7319 = vpop.f32.mrf.mxu0
        %v7320 = vadd.f32 %v7291, %v7319
        %v7321 = vpop.f32.mrf.mxu0
        %v7322 = vadd.f32 %v7293, %v7321
        %7323 = vmatmul.bf16.gmra.mxu0 %v6980
        %v7324 = vpop.f32.mrf.mxu0
        %v7325 = vadd.f32 %v7296, %v7324
        %v7326 = vpop.f32.mrf.mxu0
        %v7327 = vadd.f32 %v7298, %v7326
        %7328 = vdwg.mxu0
        %7329 = vmatpush.bf16.msra.mxu0 %v7221
        %7330 = vmatpush.bf16.msra.mxu0 %v7219
        %7331 = vmatpush.bf16.msra.mxu0 %v7217
        %7332 = vmatpush.bf16.msra.mxu0 %v7215
        %7333 = vmatpush.bf16.msra.mxu0 %v7213
        %7334 = vmatpush.bf16.msra.mxu0 %v7211
        %7335 = vmatpush.bf16.msra.mxu0 %v7209
        %7336 = vmatpush.bf16.msra.mxu0 %v7207
        %7337 = vmatmul.bf16.gmra.mxu0 %v6972
        %v7338 = vpop.f32.mrf.mxu0
        %v7339 = vadd.f32 %v7310, %v7338
        %v7340 = vpop.f32.mrf.mxu0
        %v7341 = vadd.f32 %v7312, %v7340
        %7342 = vmatmul.bf16.gmra.mxu0 %v6975
        %v7343 = vpop.f32.mrf.mxu0
        %v7344 = vadd.f32 %v7315, %v7343
        %v7345 = vpop.f32.mrf.mxu0
        %v7346 = vadd.f32 %v7317, %v7345
        %7347 = vmatmul.bf16.gmra.mxu0 %v6978
        %v7348 = vpop.f32.mrf.mxu0
        %v7349 = vadd.f32 %v7320, %v7348
        %v7350 = vpop.f32.mrf.mxu0
        %v7351 = vadd.f32 %v7322, %v7350
        %7352 = vmatmul.bf16.gmra.mxu0 %v6981
        %v7353 = vpop.f32.mrf.mxu0
        %v7354 = vadd.f32 %v7325, %v7353
        %v7355 = vpop.f32.mrf.mxu0
        %v7356 = vadd.f32 %v7327, %v7355
        %7357 = vdwg.mxu0
        %7358 = vmatpush.bf16.msra.mxu0 %v7190
        %7359 = vmatpush.bf16.msra.mxu0 %v7188
        %7360 = vmatpush.bf16.msra.mxu0 %v7186
        %7361 = vmatpush.bf16.msra.mxu0 %v7184
        %7362 = vmatpush.bf16.msra.mxu0 %v7182
        %7363 = vmatpush.bf16.msra.mxu0 %v7180
        %7364 = vmatpush.bf16.msra.mxu0 %v7178
        %7365 = vmatpush.bf16.msra.mxu0 %v7176
        %7366 = vmatmul.bf16.gmra.mxu0 %v6970
        %v7367 = vpop.f32.mrf.mxu0
        %v7368 = vadd.f32 0.0, %v7367
        %v7369 = vpop.f32.mrf.mxu0
        %v7370 = vadd.f32 0.0, %v7369
        %7371 = vmatmul.bf16.gmra.mxu0 %v6973
        %v7372 = vpop.f32.mrf.mxu0
        %v7373 = vadd.f32 0.0, %v7372
        %v7374 = vpop.f32.mrf.mxu0
        %v7375 = vadd.f32 0.0, %v7374
        %7376 = vmatmul.bf16.gmra.mxu0 %v6976
        %v7377 = vpop.f32.mrf.mxu0
        %v7378 = vadd.f32 0.0, %v7377
        %v7379 = vpop.f32.mrf.mxu0
        %v7380 = vadd.f32 0.0, %v7379
        %7381 = vmatmul.bf16.gmra.mxu0 %v6979
        %v7382 = vpop.f32.mrf.mxu0
        %v7383 = vadd.f32 0.0, %v7382
        %v7384 = vpop.f32.mrf.mxu0
        %v7385 = vadd.f32 0.0, %v7384
        %7386 = vdwg.mxu0
        %7387 = vmatpush.bf16.msra.mxu0 %v7206
        %7388 = vmatpush.bf16.msra.mxu0 %v7204
        %7389 = vmatpush.bf16.msra.mxu0 %v7202
        %7390 = vmatpush.bf16.msra.mxu0 %v7200
        %7391 = vmatpush.bf16.msra.mxu0 %v7198
        %7392 = vmatpush.bf16.msra.mxu0 %v7196
        %7393 = vmatpush.bf16.msra.mxu0 %v7194
        %7394 = vmatpush.bf16.msra.mxu0 %v7192
        %7395 = vmatmul.bf16.gmra.mxu0 %v6971
        %v7396 = vpop.f32.mrf.mxu0
        %v7397 = vadd.f32 %v7368, %v7396
        %v7398 = vpop.f32.mrf.mxu0
        %v7399 = vadd.f32 %v7370, %v7398
        %7400 = vmatmul.bf16.gmra.mxu0 %v6974
        %v7401 = vpop.f32.mrf.mxu0
        %v7402 = vadd.f32 %v7373, %v7401
        %v7403 = vpop.f32.mrf.mxu0
        %v7404 = vadd.f32 %v7375, %v7403
        %7405 = vmatmul.bf16.gmra.mxu0 %v6977
        %v7406 = vpop.f32.mrf.mxu0
        %v7407 = vadd.f32 %v7378, %v7406
        %v7408 = vpop.f32.mrf.mxu0
        %v7409 = vadd.f32 %v7380, %v7408
        %7410 = vmatmul.bf16.gmra.mxu0 %v6980
        %v7411 = vpop.f32.mrf.mxu0
        %v7412 = vadd.f32 %v7383, %v7411
        %v7413 = vpop.f32.mrf.mxu0
        %v7414 = vadd.f32 %v7385, %v7413
        %7415 = vdwg.mxu0
        %7416 = vmatpush.bf16.msra.mxu0 %v7222
        %7417 = vmatpush.bf16.msra.mxu0 %v7220
        %7418 = vmatpush.bf16.msra.mxu0 %v7218
        %7419 = vmatpush.bf16.msra.mxu0 %v7216
        %7420 = vmatpush.bf16.msra.mxu0 %v7214
        %7421 = vmatpush.bf16.msra.mxu0 %v7212
        %7422 = vmatpush.bf16.msra.mxu0 %v7210
        %7423 = vmatpush.bf16.msra.mxu0 %v7208
        %7424 = vmatmul.bf16.gmra.mxu0 %v6972
        %v7425 = vpop.f32.mrf.mxu0
        %v7426 = vadd.f32 %v7397, %v7425
        %v7427 = vpop.f32.mrf.mxu0
        %v7428 = vadd.f32 %v7399, %v7427
        %7429 = vmatmul.bf16.gmra.mxu0 %v6975
        %v7430 = vpop.f32.mrf.mxu0
        %v7431 = vadd.f32 %v7402, %v7430
        %v7432 = vpop.f32.mrf.mxu0
        %v7433 = vadd.f32 %v7404, %v7432
        %7434 = vmatmul.bf16.gmra.mxu0 %v6978
        %v7435 = vpop.f32.mrf.mxu0
        %v7436 = vadd.f32 %v7407, %v7435
        %v7437 = vpop.f32.mrf.mxu0
        %v7438 = vadd.f32 %v7409, %v7437
        %7439 = vmatmul.bf16.gmra.mxu0 %v6981
        %v7440 = vpop.f32.mrf.mxu0
        %v7441 = vadd.f32 %v7412, %v7440
        %v7442 = vpop.f32.mrf.mxu0
        %v7443 = vadd.f32 %v7414, %v7442
        %7444 = vdwg.mxu0
        %v7445 = vadd.f32 %v6951, %v7339
        %v7446 = vadd.f32 %v6952, %v7426
        %v7447 = vadd.f32 %v6953, %v7341
        %v7448 = vadd.f32 %v6954, %v7428
        %v7449 = vadd.f32 %v6955, %v7344
        %v7450 = vadd.f32 %v6956, %v7431
        %v7451 = vadd.f32 %v6957, %v7346
        %v7452 = vadd.f32 %v6958, %v7433
        %v7453 = vadd.f32 %v6959, %v7349
        %v7454 = vadd.f32 %v6960, %v7436
        %v7455 = vadd.f32 %v6961, %v7351
        %v7456 = vadd.f32 %v6962, %v7438
        %v7457 = vadd.f32 %v6963, %v7354
        %v7458 = vadd.f32 %v6964, %v7441
        %v7459 = vadd.f32 %v6965, %v7356
        %v7460 = vadd.f32 %v6966, %v7443
        %v7461 = vld [vmem:[#allocation2 + $0x48] sm:$0xfe]
        %v7462 = vld [vmem:[#allocation2 + $0x50] sm:$0xfe]
        %v7463 = vld [vmem:[#allocation2 + $0x58] sm:$0xfe]
        %v7464 = vld [vmem:[#allocation2 + $0x60] sm:$0xff]
        %v7465 = vld [vmem:[#allocation2 + $0x68] sm:$0xff]
        %v7466 = vld [vmem:[#allocation2 + $0x70] sm:$0xff]
        %v7467 = vld [vmem:[#allocation2 + $0x78] sm:$0xff]
        %v7468 = vld [vmem:[#allocation2 + $0x80] sm:$0xff]
        %v7469 = vld [vmem:[#allocation2 + $0x88] sm:$0xff]
        %v7470 = vld [vmem:[#allocation2 + $0x90] sm:$0xff]
        %v7471 = vld [vmem:[#allocation2 + $0x98] sm:$0xff]
        %v7472 = vld [vmem:[#allocation2 + $0xa0] sm:$0xff]
        %v7473 = vld [vmem:[#allocation2 + $0xa8] sm:$0xff]
        %v7474 = vld [vmem:[#allocation2 + $0xb0] sm:$0xff]
        %v7475 = vld [vmem:[#allocation2 + $0xb8] sm:$0xff]
        %v7476 = vld [vmem:[#allocation2 + $0xc0] sm:$0xff]
        %v7477 = vld [vmem:[#allocation2 + $0xc8] sm:$0xff]
        %v7478 = vld [vmem:[#allocation2 + $0xd0] sm:$0xff]
        %v7479 = vld [vmem:[#allocation2 + $0xd8] sm:$0xff]
        %v7480 = vld [vmem:[#allocation2 + $0xe0] sm:$0xff]
        %v7481 = vld [vmem:[#allocation2 + $0xe8] sm:$0xff]
        %v7482 = vld [vmem:[#allocation2 + $0xf0] sm:$0xff]
        %v7483 = vld [vmem:[#allocation2 + $0xf8] sm:$0xff]
        %v7484 = vld [vmem:[#allocation2 + $0x100] sm:$0xff]
        %v7485 = vld [vmem:[#allocation2 + $0x108] sm:$0x1]
        %v7486 = vld [vmem:[#allocation2 + $0x110] sm:$0x1]
        %v7487 = vld [vmem:[#allocation2 + $0x118] sm:$0x1]
        %v7488 = vpack.c.bf16 %v7464, %v7461
        %v7489 = vpack.c.bf16 %v7465, %v7462
        %v7490 = vpack.c.bf16 %v7466, %v7463
        %v7491 = vpack.c.bf16 %v7470, %v7467
        %v7492 = vpack.c.bf16 %v7471, %v7468
        %v7493 = vpack.c.bf16 %v7472, %v7469
        %v7494 = vpack.c.bf16 %v7476, %v7473
        %v7495 = vpack.c.bf16 %v7477, %v7474
        %v7496 = vpack.c.bf16 %v7478, %v7475
        %v7497 = vpack.c.bf16 %v7482, %v7479
        %v7498 = vpack.c.bf16 %v7483, %v7480
        %v7499 = vpack.c.bf16 %v7484, %v7481
        %v7500 = vpack.c.bf16 %v7485, %v7485
        %v7501 = vpack.c.bf16 %v7486, %v7486
        %v7502 = vpack.c.bf16 %v7487, %v7487
        %s7503 = scalar_lea.vmem %s3, 3072
        %v7504 = vld [vmem:[%s7503] sm:$0xff]
        %v7505 = vld [vmem:[%s7503 + $0x8] sm:$0xff]
        %v7506 = vld [vmem:[%s7503 + $0x10] sm:$0xff]
        %v7507 = vld [vmem:[%s7503 + $0x18] sm:$0xff]
        %v7508 = vld [vmem:[%s7503 + $0x20] sm:$0xff]
        %v7509 = vld [vmem:[%s7503 + $0x28] sm:$0xff]
        %v7510 = vld [vmem:[%s7503 + $0x30] sm:$0xff]
        %v7511 = vld [vmem:[%s7503 + $0x38] sm:$0xff]
        %v7512 = vld [vmem:[%s7503 + $0x40] sm:$0xff]
        %v7513 = vld [vmem:[%s7503 + $0x48] sm:$0xff]
        %v7514 = vld [vmem:[%s7503 + $0x50] sm:$0xff]
        %v7515 = vld [vmem:[%s7503 + $0x58] sm:$0xff]
        %v7516 = vld [vmem:[%s7503 + $0x60] sm:$0xff]
        %v7517 = vld [vmem:[%s7503 + $0x68] sm:$0xff]
        %v7518 = vld [vmem:[%s7503 + $0x70] sm:$0xff]
        %v7519 = vld [vmem:[%s7503 + $0x78] sm:$0xff]
        %v7520 = vld [vmem:[%s7503 + $0x80] sm:$0xff]
        %v7521 = vld [vmem:[%s7503 + $0x88] sm:$0xff]
        %v7522 = vld [vmem:[%s7503 + $0x90] sm:$0xff]
        %v7523 = vld [vmem:[%s7503 + $0x98] sm:$0xff]
        %v7524 = vld [vmem:[%s7503 + $0xa0] sm:$0xff]
        %v7525 = vld [vmem:[%s7503 + $0xa8] sm:$0xff]
        %v7526 = vld [vmem:[%s7503 + $0xb0] sm:$0xff]
        %v7527 = vld [vmem:[%s7503 + $0xb8] sm:$0xff]
        %v7528 = vld [vmem:[%s7503 + $0xc0] sm:$0xff]
        %v7529 = vld [vmem:[%s7503 + $0xc8] sm:$0xff]
        %v7530 = vld [vmem:[%s7503 + $0xd0] sm:$0xff]
        %v7531 = vld [vmem:[%s7503 + $0xd8] sm:$0xff]
        %v7532 = vld [vmem:[%s7503 + $0xe0] sm:$0xff]
        %v7533 = vld [vmem:[%s7503 + $0xe8] sm:$0xff]
        %v7534 = vld [vmem:[%s7503 + $0xf0] sm:$0xff]
        %v7535 = vld [vmem:[%s7503 + $0xf8] sm:$0xff]
        %v7536 = vld [vmem:[%s7503 + $0x100] sm:$0xff]
        %v7537 = vld [vmem:[%s7503 + $0x108] sm:$0xff]
        %v7538 = vld [vmem:[%s7503 + $0x110] sm:$0xff]
        %v7539 = vld [vmem:[%s7503 + $0x118] sm:$0xff]
        %v7540 = vld [vmem:[%s7503 + $0x120] sm:$0xff]
        %v7541 = vld [vmem:[%s7503 + $0x128] sm:$0xff]
        %v7542 = vld [vmem:[%s7503 + $0x130] sm:$0xff]
        %v7543 = vld [vmem:[%s7503 + $0x138] sm:$0xff]
        %v7544 = vld [vmem:[%s7503 + $0x140] sm:$0xff]
        %v7545 = vld [vmem:[%s7503 + $0x148] sm:$0xff]
        %v7546 = vld [vmem:[%s7503 + $0x150] sm:$0xff]
        %v7547 = vld [vmem:[%s7503 + $0x158] sm:$0xff]
        %v7548 = vld [vmem:[%s7503 + $0x160] sm:$0xff]
        %v7549 = vld [vmem:[%s7503 + $0x168] sm:$0xff]
        %v7550 = vld [vmem:[%s7503 + $0x170] sm:$0xff]
        %v7551 = vld [vmem:[%s7503 + $0x178] sm:$0xff]
        %v7553 = vshrl.u32 %v7488, 16
        %v7555 = vshll.u32 %v7488, 16
        %v7557 = vrot.slane %v7555, 1
        %v7558 = vor.u32 %v7553, %v7557
        %v7560 = vshll.u32 %v7491, 16
        %v7562 = vrot.slane %v7560, 1
        %v7563 = vsel %vm4021, %v7558, %v7562
        %v7565 = vshrl.u32 %v7489, 16
        %v7567 = vshll.u32 %v7489, 16
        %v7569 = vrot.slane %v7567, 1
        %v7570 = vor.u32 %v7565, %v7569
        %v7572 = vshll.u32 %v7492, 16
        %v7574 = vrot.slane %v7572, 1
        %v7575 = vsel %vm4021, %v7570, %v7574
        %v7577 = vshrl.u32 %v7490, 16
        %v7579 = vshll.u32 %v7490, 16
        %v7581 = vrot.slane %v7579, 1
        %v7582 = vor.u32 %v7577, %v7581
        %v7584 = vshll.u32 %v7493, 16
        %v7586 = vrot.slane %v7584, 1
        %v7587 = vsel %vm4021, %v7582, %v7586
        %v7588 = vshrl.u32 %v7491, 16
        %v7590 = vor.u32 %v7588, %v7562
        %v7592 = vshll.u32 %v7494, 16
        %v7594 = vrot.slane %v7592, 1
        %v7595 = vsel %vm4021, %v7590, %v7594
        %v7596 = vshrl.u32 %v7492, 16
        %v7598 = vor.u32 %v7596, %v7574
        %v7600 = vshll.u32 %v7495, 16
        %v7602 = vrot.slane %v7600, 1
        %v7603 = vsel %vm4021, %v7598, %v7602
        %v7604 = vshrl.u32 %v7493, 16
        %v7606 = vor.u32 %v7604, %v7586
        %v7608 = vshll.u32 %v7496, 16
        %v7610 = vrot.slane %v7608, 1
        %v7611 = vsel %vm4021, %v7606, %v7610
        %v7612 = vshrl.u32 %v7494, 16
        %v7614 = vor.u32 %v7612, %v7594
        %v7616 = vshll.u32 %v7497, 16
        %v7618 = vrot.slane %v7616, 1
        %v7619 = vsel %vm4021, %v7614, %v7618
        %v7620 = vshrl.u32 %v7495, 16
        %v7622 = vor.u32 %v7620, %v7602
        %v7624 = vshll.u32 %v7498, 16
        %v7626 = vrot.slane %v7624, 1
        %v7627 = vsel %vm4021, %v7622, %v7626
        %v7628 = vshrl.u32 %v7496, 16
        %v7630 = vor.u32 %v7628, %v7610
        %v7632 = vshll.u32 %v7499, 16
        %v7634 = vrot.slane %v7632, 1
        %v7635 = vsel %vm4021, %v7630, %v7634
        %v7636 = vshrl.u32 %v7497, 16
        %v7638 = vor.u32 %v7636, %v7618
        %v7640 = vshll.u32 %v7500, 16
        %v7642 = vrot.slane %v7640, 1
        %v7643 = vsel %vm4021, %v7638, %v7642
        %v7644 = vshrl.u32 %v7498, 16
        %v7646 = vor.u32 %v7644, %v7626
        %v7648 = vshll.u32 %v7501, 16
        %v7650 = vrot.slane %v7648, 1
        %v7651 = vsel %vm4021, %v7646, %v7650
        %v7652 = vshrl.u32 %v7499, 16
        %v7654 = vor.u32 %v7652, %v7634
        %v7656 = vshll.u32 %v7502, 16
        %v7658 = vrot.slane %v7656, 1
        %v7659 = vsel %vm4021, %v7654, %v7658
        %v7720 = vunpack.c.l.b16 %v7504
        %v7721 = vunpack.c.h.b16 %v7504
        %v7722 = vunpack.c.l.b16 %v7505
        %v7723 = vunpack.c.h.b16 %v7505
        %v7724 = vunpack.c.l.b16 %v7506
        %v7725 = vunpack.c.h.b16 %v7506
        %v7726 = vunpack.c.l.b16 %v7507
        %v7727 = vunpack.c.h.b16 %v7507
        %v7728 = vunpack.c.l.b16 %v7508
        %v7729 = vunpack.c.h.b16 %v7508
        %v7730 = vunpack.c.l.b16 %v7509
        %v7731 = vunpack.c.h.b16 %v7509
        %v7732 = vunpack.c.l.b16 %v7510
        %v7733 = vunpack.c.h.b16 %v7510
        %v7734 = vunpack.c.l.b16 %v7511
        %v7735 = vunpack.c.h.b16 %v7511
        %v7736 = vunpack.c.l.b16 %v7512
        %v7737 = vunpack.c.h.b16 %v7512
        %v7738 = vunpack.c.l.b16 %v7513
        %v7739 = vunpack.c.h.b16 %v7513
        %v7740 = vunpack.c.l.b16 %v7514
        %v7741 = vunpack.c.h.b16 %v7514
        %v7742 = vunpack.c.l.b16 %v7515
        %v7743 = vunpack.c.h.b16 %v7515
        %v7744 = vunpack.c.l.b16 %v7516
        %v7745 = vunpack.c.h.b16 %v7516
        %v7746 = vunpack.c.l.b16 %v7517
        %v7747 = vunpack.c.h.b16 %v7517
        %v7748 = vunpack.c.l.b16 %v7518
        %v7749 = vunpack.c.h.b16 %v7518
        %v7750 = vunpack.c.l.b16 %v7519
        %v7751 = vunpack.c.h.b16 %v7519
        %v7752 = vunpack.c.l.b16 %v7520
        %v7753 = vunpack.c.h.b16 %v7520
        %v7754 = vunpack.c.l.b16 %v7521
        %v7755 = vunpack.c.h.b16 %v7521
        %v7756 = vunpack.c.l.b16 %v7522
        %v7757 = vunpack.c.h.b16 %v7522
        %v7758 = vunpack.c.l.b16 %v7523
        %v7759 = vunpack.c.h.b16 %v7523
        %v7760 = vunpack.c.l.b16 %v7524
        %v7761 = vunpack.c.h.b16 %v7524
        %v7762 = vunpack.c.l.b16 %v7525
        %v7763 = vunpack.c.h.b16 %v7525
        %v7764 = vunpack.c.l.b16 %v7526
        %v7765 = vunpack.c.h.b16 %v7526
        %v7766 = vunpack.c.l.b16 %v7527
        %v7767 = vunpack.c.h.b16 %v7527
        %v7768 = vunpack.c.l.b16 %v7528
        %v7769 = vunpack.c.h.b16 %v7528
        %v7770 = vunpack.c.l.b16 %v7529
        %v7771 = vunpack.c.h.b16 %v7529
        %v7772 = vunpack.c.l.b16 %v7530
        %v7773 = vunpack.c.h.b16 %v7530
        %v7774 = vunpack.c.l.b16 %v7531
        %v7775 = vunpack.c.h.b16 %v7531
        %v7776 = vunpack.c.l.b16 %v7532
        %v7777 = vunpack.c.h.b16 %v7532
        %v7778 = vunpack.c.l.b16 %v7533
        %v7779 = vunpack.c.h.b16 %v7533
        %v7780 = vunpack.c.l.b16 %v7534
        %v7781 = vunpack.c.h.b16 %v7534
        %v7782 = vunpack.c.l.b16 %v7535
        %v7783 = vunpack.c.h.b16 %v7535
        %v7784 = vunpack.c.l.b16 %v7536
        %v7785 = vunpack.c.h.b16 %v7536
        %v7786 = vunpack.c.l.b16 %v7537
        %v7787 = vunpack.c.h.b16 %v7537
        %v7788 = vunpack.c.l.b16 %v7538
        %v7789 = vunpack.c.h.b16 %v7538
        %v7790 = vunpack.c.l.b16 %v7539
        %v7791 = vunpack.c.h.b16 %v7539
        %v7792 = vunpack.c.l.b16 %v7540
        %v7793 = vunpack.c.h.b16 %v7540
        %v7794 = vunpack.c.l.b16 %v7541
        %v7795 = vunpack.c.h.b16 %v7541
        %v7796 = vunpack.c.l.b16 %v7542
        %v7797 = vunpack.c.h.b16 %v7542
        %v7798 = vunpack.c.l.b16 %v7543
        %v7799 = vunpack.c.h.b16 %v7543
        %v7800 = vunpack.c.l.b16 %v7544
        %v7801 = vunpack.c.h.b16 %v7544
        %v7802 = vunpack.c.l.b16 %v7545
        %v7803 = vunpack.c.h.b16 %v7545
        %v7804 = vunpack.c.l.b16 %v7546
        %v7805 = vunpack.c.h.b16 %v7546
        %v7806 = vunpack.c.l.b16 %v7547
        %v7807 = vunpack.c.h.b16 %v7547
        %v7808 = vunpack.c.l.b16 %v7548
        %v7809 = vunpack.c.h.b16 %v7548
        %v7810 = vunpack.c.l.b16 %v7549
        %v7811 = vunpack.c.h.b16 %v7549
        %v7812 = vunpack.c.l.b16 %v7550
        %v7813 = vunpack.c.h.b16 %v7550
        %v7814 = vunpack.c.l.b16 %v7551
        %v7815 = vunpack.c.h.b16 %v7551
        %v7816 = vpack.c.b16 %v7722, %v7720
        %v7817 = vpack.c.b16 %v7723, %v7721
        %v7818 = vpack.c.b16 %v7726, %v7724
        %v7819 = vpack.c.b16 %v7727, %v7725
        %v7820 = vpack.c.b16 %v7730, %v7728
        %v7821 = vpack.c.b16 %v7731, %v7729
        %v7822 = vpack.c.b16 %v7734, %v7732
        %v7823 = vpack.c.b16 %v7735, %v7733
        %v7824 = vpack.c.b16 %v7738, %v7736
        %v7825 = vpack.c.b16 %v7739, %v7737
        %v7826 = vpack.c.b16 %v7742, %v7740
        %v7827 = vpack.c.b16 %v7743, %v7741
        %v7828 = vpack.c.b16 %v7746, %v7744
        %v7829 = vpack.c.b16 %v7747, %v7745
        %v7830 = vpack.c.b16 %v7750, %v7748
        %v7831 = vpack.c.b16 %v7751, %v7749
        %v7832 = vpack.c.b16 %v7754, %v7752
        %v7833 = vpack.c.b16 %v7755, %v7753
        %v7834 = vpack.c.b16 %v7758, %v7756
        %v7835 = vpack.c.b16 %v7759, %v7757
        %v7836 = vpack.c.b16 %v7762, %v7760
        %v7837 = vpack.c.b16 %v7763, %v7761
        %v7838 = vpack.c.b16 %v7766, %v7764
        %v7839 = vpack.c.b16 %v7767, %v7765
        %v7840 = vpack.c.b16 %v7770, %v7768
        %v7841 = vpack.c.b16 %v7771, %v7769
        %v7842 = vpack.c.b16 %v7774, %v7772
        %v7843 = vpack.c.b16 %v7775, %v7773
        %v7844 = vpack.c.b16 %v7778, %v7776
        %v7845 = vpack.c.b16 %v7779, %v7777
        %v7846 = vpack.c.b16 %v7782, %v7780
        %v7847 = vpack.c.b16 %v7783, %v7781
        %v7848 = vpack.c.b16 %v7786, %v7784
        %v7849 = vpack.c.b16 %v7787, %v7785
        %v7850 = vpack.c.b16 %v7790, %v7788
        %v7851 = vpack.c.b16 %v7791, %v7789
        %v7852 = vpack.c.b16 %v7794, %v7792
        %v7853 = vpack.c.b16 %v7795, %v7793
        %v7854 = vpack.c.b16 %v7798, %v7796
        %v7855 = vpack.c.b16 %v7799, %v7797
        %v7856 = vpack.c.b16 %v7802, %v7800
        %v7857 = vpack.c.b16 %v7803, %v7801
        %v7858 = vpack.c.b16 %v7806, %v7804
        %v7859 = vpack.c.b16 %v7807, %v7805
        %v7860 = vpack.c.b16 %v7810, %v7808
        %v7861 = vpack.c.b16 %v7811, %v7809
        %v7862 = vpack.c.b16 %v7814, %v7812
        %v7863 = vpack.c.b16 %v7815, %v7813
        %7912 = vmatpush.bf16.msra.mxu0 %v7830
        %7913 = vmatpush.bf16.msra.mxu0 %v7828
        %7914 = vmatpush.bf16.msra.mxu0 %v7826
        %7915 = vmatpush.bf16.msra.mxu0 %v7824
        %7916 = vmatpush.bf16.msra.mxu0 %v7822
        %7917 = vmatpush.bf16.msra.mxu0 %v7820
        %7918 = vmatpush.bf16.msra.mxu0 %v7818
        %7919 = vmatpush.bf16.msra.mxu0 %v7816
        %7920 = vmatmul.bf16.gmra.mxu0 %v7563
        %v7921 = vpop.f32.mrf.mxu0
        %v7922 = vadd.f32 0.0, %v7921
        %v7923 = vpop.f32.mrf.mxu0
        %v7924 = vadd.f32 0.0, %v7923
        %7925 = vmatmul.bf16.gmra.mxu0 %v7595
        %v7926 = vpop.f32.mrf.mxu0
        %v7927 = vadd.f32 0.0, %v7926
        %v7928 = vpop.f32.mrf.mxu0
        %v7929 = vadd.f32 0.0, %v7928
        %7930 = vmatmul.bf16.gmra.mxu0 %v7619
        %v7931 = vpop.f32.mrf.mxu0
        %v7932 = vadd.f32 0.0, %v7931
        %v7933 = vpop.f32.mrf.mxu0
        %v7934 = vadd.f32 0.0, %v7933
        %7935 = vmatmul.bf16.gmra.mxu0 %v7643
        %v7936 = vpop.f32.mrf.mxu0
        %v7937 = vadd.f32 0.0, %v7936
        %v7938 = vpop.f32.mrf.mxu0
        %v7939 = vadd.f32 0.0, %v7938
        %7940 = vdwg.mxu0
        %7941 = vmatpush.bf16.msra.mxu0 %v7846
        %7942 = vmatpush.bf16.msra.mxu0 %v7844
        %7943 = vmatpush.bf16.msra.mxu0 %v7842
        %7944 = vmatpush.bf16.msra.mxu0 %v7840
        %7945 = vmatpush.bf16.msra.mxu0 %v7838
        %7946 = vmatpush.bf16.msra.mxu0 %v7836
        %7947 = vmatpush.bf16.msra.mxu0 %v7834
        %7948 = vmatpush.bf16.msra.mxu0 %v7832
        %7949 = vmatmul.bf16.gmra.mxu0 %v7575
        %v7950 = vpop.f32.mrf.mxu0
        %v7951 = vadd.f32 %v7922, %v7950
        %v7952 = vpop.f32.mrf.mxu0
        %v7953 = vadd.f32 %v7924, %v7952
        %7954 = vmatmul.bf16.gmra.mxu0 %v7603
        %v7955 = vpop.f32.mrf.mxu0
        %v7956 = vadd.f32 %v7927, %v7955
        %v7957 = vpop.f32.mrf.mxu0
        %v7958 = vadd.f32 %v7929, %v7957
        %7959 = vmatmul.bf16.gmra.mxu0 %v7627
        %v7960 = vpop.f32.mrf.mxu0
        %v7961 = vadd.f32 %v7932, %v7960
        %v7962 = vpop.f32.mrf.mxu0
        %v7963 = vadd.f32 %v7934, %v7962
        %7964 = vmatmul.bf16.gmra.mxu0 %v7651
        %v7965 = vpop.f32.mrf.mxu0
        %v7966 = vadd.f32 %v7937, %v7965
        %v7967 = vpop.f32.mrf.mxu0
        %v7968 = vadd.f32 %v7939, %v7967
        %7969 = vdwg.mxu0
        %7970 = vmatpush.bf16.msra.mxu0 %v7862
        %7971 = vmatpush.bf16.msra.mxu0 %v7860
        %7972 = vmatpush.bf16.msra.mxu0 %v7858
        %7973 = vmatpush.bf16.msra.mxu0 %v7856
        %7974 = vmatpush.bf16.msra.mxu0 %v7854
        %7975 = vmatpush.bf16.msra.mxu0 %v7852
        %7976 = vmatpush.bf16.msra.mxu0 %v7850
        %7977 = vmatpush.bf16.msra.mxu0 %v7848
        %7978 = vmatmul.bf16.gmra.mxu0 %v7587
        %v7979 = vpop.f32.mrf.mxu0
        %v7980 = vadd.f32 %v7951, %v7979
        %v7981 = vpop.f32.mrf.mxu0
        %v7982 = vadd.f32 %v7953, %v7981
        %7983 = vmatmul.bf16.gmra.mxu0 %v7611
        %v7984 = vpop.f32.mrf.mxu0
        %v7985 = vadd.f32 %v7956, %v7984
        %v7986 = vpop.f32.mrf.mxu0
        %v7987 = vadd.f32 %v7958, %v7986
        %7988 = vmatmul.bf16.gmra.mxu0 %v7635
        %v7989 = vpop.f32.mrf.mxu0
        %v7990 = vadd.f32 %v7961, %v7989
        %v7991 = vpop.f32.mrf.mxu0
        %v7992 = vadd.f32 %v7963, %v7991
        %7993 = vmatmul.bf16.gmra.mxu0 %v7659
        %v7994 = vpop.f32.mrf.mxu0
        %v7995 = vadd.f32 %v7966, %v7994
        %v7996 = vpop.f32.mrf.mxu0
        %v7997 = vadd.f32 %v7968, %v7996
        %7998 = vdwg.mxu0
        %7999 = vmatpush.bf16.msra.mxu0 %v7831
        %8000 = vmatpush.bf16.msra.mxu0 %v7829
        %8001 = vmatpush.bf16.msra.mxu0 %v7827
        %8002 = vmatpush.bf16.msra.mxu0 %v7825
        %8003 = vmatpush.bf16.msra.mxu0 %v7823
        %8004 = vmatpush.bf16.msra.mxu0 %v7821
        %8005 = vmatpush.bf16.msra.mxu0 %v7819
        %8006 = vmatpush.bf16.msra.mxu0 %v7817
        %8007 = vmatmul.bf16.gmra.mxu0 %v7563
        %v8008 = vpop.f32.mrf.mxu0
        %v8009 = vadd.f32 0.0, %v8008
        %v8010 = vpop.f32.mrf.mxu0
        %v8011 = vadd.f32 0.0, %v8010
        %8012 = vmatmul.bf16.gmra.mxu0 %v7595
        %v8013 = vpop.f32.mrf.mxu0
        %v8014 = vadd.f32 0.0, %v8013
        %v8015 = vpop.f32.mrf.mxu0
        %v8016 = vadd.f32 0.0, %v8015
        %8017 = vmatmul.bf16.gmra.mxu0 %v7619
        %v8018 = vpop.f32.mrf.mxu0
        %v8019 = vadd.f32 0.0, %v8018
        %v8020 = vpop.f32.mrf.mxu0
        %v8021 = vadd.f32 0.0, %v8020
        %8022 = vmatmul.bf16.gmra.mxu0 %v7643
        %v8023 = vpop.f32.mrf.mxu0
        %v8024 = vadd.f32 0.0, %v8023
        %v8025 = vpop.f32.mrf.mxu0
        %v8026 = vadd.f32 0.0, %v8025
        %8027 = vdwg.mxu0
        %8028 = vmatpush.bf16.msra.mxu0 %v7847
        %8029 = vmatpush.bf16.msra.mxu0 %v7845
        %8030 = vmatpush.bf16.msra.mxu0 %v7843
        %8031 = vmatpush.bf16.msra.mxu0 %v7841
        %8032 = vmatpush.bf16.msra.mxu0 %v7839
        %8033 = vmatpush.bf16.msra.mxu0 %v7837
        %8034 = vmatpush.bf16.msra.mxu0 %v7835
        %8035 = vmatpush.bf16.msra.mxu0 %v7833
        %8036 = vmatmul.bf16.gmra.mxu0 %v7575
        %v8037 = vpop.f32.mrf.mxu0
        %v8038 = vadd.f32 %v8009, %v8037
        %v8039 = vpop.f32.mrf.mxu0
        %v8040 = vadd.f32 %v8011, %v8039
        %8041 = vmatmul.bf16.gmra.mxu0 %v7603
        %v8042 = vpop.f32.mrf.mxu0
        %v8043 = vadd.f32 %v8014, %v8042
        %v8044 = vpop.f32.mrf.mxu0
        %v8045 = vadd.f32 %v8016, %v8044
        %8046 = vmatmul.bf16.gmra.mxu0 %v7627
        %v8047 = vpop.f32.mrf.mxu0
        %v8048 = vadd.f32 %v8019, %v8047
        %v8049 = vpop.f32.mrf.mxu0
        %v8050 = vadd.f32 %v8021, %v8049
        %8051 = vmatmul.bf16.gmra.mxu0 %v7651
        %v8052 = vpop.f32.mrf.mxu0
        %v8053 = vadd.f32 %v8024, %v8052
        %v8054 = vpop.f32.mrf.mxu0
        %v8055 = vadd.f32 %v8026, %v8054
        %8056 = vdwg.mxu0
        %8057 = vmatpush.bf16.msra.mxu0 %v7863
        %8058 = vmatpush.bf16.msra.mxu0 %v7861
        %8059 = vmatpush.bf16.msra.mxu0 %v7859
        %8060 = vmatpush.bf16.msra.mxu0 %v7857
        %8061 = vmatpush.bf16.msra.mxu0 %v7855
        %8062 = vmatpush.bf16.msra.mxu0 %v7853
        %8063 = vmatpush.bf16.msra.mxu0 %v7851
        %8064 = vmatpush.bf16.msra.mxu0 %v7849
        %8065 = vmatmul.bf16.gmra.mxu0 %v7587
        %v8066 = vpop.f32.mrf.mxu0
        %v8067 = vadd.f32 %v8038, %v8066
        %v8068 = vpop.f32.mrf.mxu0
        %v8069 = vadd.f32 %v8040, %v8068
        %8070 = vmatmul.bf16.gmra.mxu0 %v7611
        %v8071 = vpop.f32.mrf.mxu0
        %v8072 = vadd.f32 %v8043, %v8071
        %v8073 = vpop.f32.mrf.mxu0
        %v8074 = vadd.f32 %v8045, %v8073
        %8075 = vmatmul.bf16.gmra.mxu0 %v7635
        %v8076 = vpop.f32.mrf.mxu0
        %v8077 = vadd.f32 %v8048, %v8076
        %v8078 = vpop.f32.mrf.mxu0
        %v8079 = vadd.f32 %v8050, %v8078
        %8080 = vmatmul.bf16.gmra.mxu0 %v7659
        %v8081 = vpop.f32.mrf.mxu0
        %v8082 = vadd.f32 %v8053, %v8081
        %v8083 = vpop.f32.mrf.mxu0
        %v8084 = vadd.f32 %v8055, %v8083
        %8085 = vdwg.mxu0
        %v8086 = vsel %vm4564, %v7980, 0.0
        %v8087 = vsel %vm4564, %v8067, 0.0
        %v8088 = vsel %vm4565, %v7982, 0.0
        %v8089 = vsel %vm4565, %v8069, 0.0
        %v8090 = vsel %vm4566, %v7985, 0.0
        %v8091 = vsel %vm4566, %v8072, 0.0
        %v8092 = vsel %vm4567, %v7987, 0.0
        %v8093 = vsel %vm4567, %v8074, 0.0
        %v8094 = vsel %vm4568, %v7990, 0.0
        %v8095 = vsel %vm4568, %v8077, 0.0
        %v8096 = vsel %vm4569, %v7992, 0.0
        %v8097 = vsel %vm4569, %v8079, 0.0
        %v8098 = vsel %vm4570, %v7995, 0.0
        %v8099 = vsel %vm4570, %v8082, 0.0
        %v8100 = vsel %vm4571, %v7997, 0.0
        %v8101 = vsel %vm4571, %v8084, 0.0
        %v8102 = vadd.f32 %v7445, %v8086
        %v8103 = vadd.f32 %v7446, %v8087
        %v8104 = vadd.f32 %v7447, %v8088
        %v8105 = vadd.f32 %v7448, %v8089
        %v8106 = vadd.f32 %v7449, %v8090
        %v8107 = vadd.f32 %v7450, %v8091
        %v8108 = vadd.f32 %v7451, %v8092
        %v8109 = vadd.f32 %v7452, %v8093
        %v8110 = vadd.f32 %v7453, %v8094
        %v8111 = vadd.f32 %v7454, %v8095
        %v8112 = vadd.f32 %v7455, %v8096
        %v8113 = vadd.f32 %v7456, %v8097
        %v8114 = vadd.f32 %v7457, %v8098
        %v8115 = vadd.f32 %v7458, %v8099
        %v8116 = vadd.f32 %v7459, %v8100
        %v8117 = vadd.f32 %v7460, %v8101
        %v8118 = vld [vmem:[%s4] sm:$0x3]
        %v8120 = vperm.slane %v8118, 0
        %v8121 = vperm.slane %v8118, 1
        %v8124 = vmul.f32 %v8102, %v8120
        %v8125 = vmul.f32 %v8103, %v8121
        %v8126 = vmul.f32 %v8104, %v8120
        %v8127 = vmul.f32 %v8105, %v8121
        %v8128 = vmul.f32 %v8106, %v8120
        %v8129 = vmul.f32 %v8107, %v8121
        %v8130 = vmul.f32 %v8108, %v8120
        %v8131 = vmul.f32 %v8109, %v8121
        %v8132 = vmul.f32 %v8110, %v8120
        %v8133 = vmul.f32 %v8111, %v8121
        %v8134 = vmul.f32 %v8112, %v8120
        %v8135 = vmul.f32 %v8113, %v8121
        %v8136 = vmul.f32 %v8114, %v8120
        %v8137 = vmul.f32 %v8115, %v8121
        %v8138 = vmul.f32 %v8116, %v8120
        %v8139 = vmul.f32 %v8117, %v8121
        %v8140 = vld [vmem:[%s5] sm:$0x3]
        %v8142 = vperm.slane %v8140, 0
        %v8143 = vperm.slane %v8140, 1
        %v8146 = vadd.f32 %v8124, %v8142
        %v8147 = vadd.f32 %v8125, %v8143
        %v8148 = vadd.f32 %v8126, %v8142
        %v8149 = vadd.f32 %v8127, %v8143
        %v8150 = vadd.f32 %v8128, %v8142
        %v8151 = vadd.f32 %v8129, %v8143
        %v8152 = vadd.f32 %v8130, %v8142
        %v8153 = vadd.f32 %v8131, %v8143
        %v8154 = vadd.f32 %v8132, %v8142
        %v8155 = vadd.f32 %v8133, %v8143
        %v8156 = vadd.f32 %v8134, %v8142
        %v8157 = vadd.f32 %v8135, %v8143
        %v8158 = vadd.f32 %v8136, %v8142
        %v8159 = vadd.f32 %v8137, %v8143
        %v8160 = vadd.f32 %v8138, %v8142
        %v8161 = vadd.f32 %v8139, %v8143
        %v8162 = vmax.f32 %v8146, 0.0
        %v8163 = vmax.f32 %v8147, 0.0
        %v8164 = vmax.f32 %v8148, 0.0
        %v8165 = vmax.f32 %v8149, 0.0
        %v8166 = vmax.f32 %v8150, 0.0
        %v8167 = vmax.f32 %v8151, 0.0
        %v8168 = vmax.f32 %v8152, 0.0
        %v8169 = vmax.f32 %v8153, 0.0
        %v8170 = vmax.f32 %v8154, 0.0
        %v8171 = vmax.f32 %v8155, 0.0
        %v8172 = vmax.f32 %v8156, 0.0
        %v8173 = vmax.f32 %v8157, 0.0
        %v8174 = vmax.f32 %v8158, 0.0
        %v8175 = vmax.f32 %v8159, 0.0
        %v8176 = vmax.f32 %v8160, 0.0
        %v8177 = vmax.f32 %v8161, 0.0
        %8178 = vst [vmem:[#allocation3 + $0x20] sm:$0xff] %v8162
        %8179 = vst.msk [vmem:[#allocation3 + $0x28] sm:$0xff] %vm2022, %v8163
        %8180 = vst [vmem:[#allocation3 + $0x30] sm:$0xff] %v8164
        %8181 = vst.msk [vmem:[#allocation3 + $0x38] sm:$0xff] %vm2022, %v8165
        %8182 = vst [vmem:[#allocation3 + $0x40] sm:$0xff] %v8166
        %8183 = vst.msk [vmem:[#allocation3 + $0x48] sm:$0xff] %vm2022, %v8167
        %8184 = vst [vmem:[#allocation3 + $0x50] sm:$0xff] %v8168
        %8185 = vst.msk [vmem:[#allocation3 + $0x58] sm:$0xff] %vm2022, %v8169
        %8186 = vst [vmem:[#allocation3 + $0x60] sm:$0xff] %v8170
        %8187 = vst.msk [vmem:[#allocation3 + $0x68] sm:$0xff] %vm2022, %v8171
        %8188 = vst [vmem:[#allocation3 + $0x70] sm:$0xff] %v8172
        %8189 = vst.msk [vmem:[#allocation3 + $0x78] sm:$0xff] %vm2022, %v8173
        %8190 = vst [vmem:[#allocation3 + $0x80] sm:$0xff] %v8174
        %8191 = vst.msk [vmem:[#allocation3 + $0x88] sm:$0xff] %vm2022, %v8175
        %8192 = vst [vmem:[#allocation3 + $0x90] sm:$0xff] %v8176
        %8193 = vst.msk [vmem:[#allocation3 + $0x98] sm:$0xff] %vm2022, %v8177
        %v8194 = vld [vmem:[#allocation3] sm:$0x80]
        %v8195 = vld [vmem:[#allocation3 + $0x8] sm:$0x80]
        %v8196 = vld [vmem:[#allocation3 + $0x10] sm:$0xff]
        %v8197 = vld [vmem:[#allocation3 + $0x18] sm:$0xff]
        %v8198 = vld [vmem:[#allocation3 + $0x20] sm:$0xff]
        %v8199 = vld [vmem:[#allocation3 + $0x28] sm:$0xff]
        %v8200 = vld [vmem:[#allocation3 + $0x30] sm:$0xff]
        %v8201 = vld [vmem:[#allocation3 + $0x38] sm:$0xff]
        %v8202 = vld [vmem:[#allocation3 + $0x40] sm:$0xff]
        %v8203 = vld [vmem:[#allocation3 + $0x48] sm:$0xff]
        %v8204 = vld [vmem:[#allocation3 + $0x50] sm:$0xff]
        %v8205 = vld [vmem:[#allocation3 + $0x58] sm:$0xff]
        %v8206 = vld [vmem:[#allocation3 + $0x60] sm:$0xff]
        %v8207 = vld [vmem:[#allocation3 + $0x68] sm:$0xff]
        %v8208 = vld [vmem:[#allocation3 + $0x70] sm:$0xff]
        %v8209 = vld [vmem:[#allocation3 + $0x78] sm:$0xff]
        %v8210 = vld [vmem:[#allocation3 + $0x80] sm:$0x7f]
        %v8211 = vld [vmem:[#allocation3 + $0x88] sm:$0x7f]
        %v8212 = vpack.c.bf16 %v8196, %v8194
        %v8213 = vpack.c.bf16 %v8197, %v8195
        %v8214 = vpack.c.bf16 %v8200, %v8198
        %v8215 = vpack.c.bf16 %v8201, %v8199
        %v8216 = vpack.c.bf16 %v8204, %v8202
        %v8217 = vpack.c.bf16 %v8205, %v8203
        %v8218 = vpack.c.bf16 %v8208, %v8206
        %v8219 = vpack.c.bf16 %v8209, %v8207
        %v8220 = vpack.c.bf16 %v8210, %v8210
        %v8221 = vpack.c.bf16 %v8211, %v8211
        %v8222 = vld [vmem:[%s6] sm:$0xf]
        %v8223 = vld [vmem:[%s6 + $0x4] sm:$0xf]
        %v8224 = vld [vmem:[%s6 + $0x8] sm:$0xf]
        %v8225 = vld [vmem:[%s6 + $0xc] sm:$0xf]
        %v8226 = vld [vmem:[%s6 + $0x10] sm:$0xf]
        %v8227 = vld [vmem:[%s6 + $0x14] sm:$0xf]
        %v8228 = vld [vmem:[%s6 + $0x18] sm:$0xf]
        %v8229 = vld [vmem:[%s6 + $0x1c] sm:$0xf]
        %v8230 = vld [vmem:[%s6 + $0x20] sm:$0xf]
        %v8231 = vld [vmem:[%s6 + $0x24] sm:$0xf]
        %v8232 = vld [vmem:[%s6 + $0x28] sm:$0xf]
        %v8233 = vld [vmem:[%s6 + $0x2c] sm:$0xf]
        %v8234 = vld [vmem:[%s6 + $0x30] sm:$0xf]
        %v8235 = vld [vmem:[%s6 + $0x34] sm:$0xf]
        %v8236 = vld [vmem:[%s6 + $0x38] sm:$0xf]
        %v8237 = vld [vmem:[%s6 + $0x3c] sm:$0xf]
        %v8238 = vld [vmem:[%s6 + $0x40] sm:$0xf]
        %v8239 = vld [vmem:[%s6 + $0x44] sm:$0xf]
        %v8240 = vld [vmem:[%s6 + $0x48] sm:$0xf]
        %v8241 = vld [vmem:[%s6 + $0x4c] sm:$0xf]
        %v8242 = vld [vmem:[%s6 + $0x50] sm:$0xf]
        %v8243 = vld [vmem:[%s6 + $0x54] sm:$0xf]
        %v8244 = vld [vmem:[%s6 + $0x58] sm:$0xf]
        %v8245 = vld [vmem:[%s6 + $0x5c] sm:$0xf]
        %v8247 = vshrl.u32 %v8212, 16
        %v8249 = vrot.slane %v8247, 3
        %v8250 = vshll.u32 %v8212, 16
        %v8252 = vrot.slane %v8250, 4
        %v8253 = vor.u32 %v8249, %v8252
        %v8255 = vshrl.u32 %v8214, 16
        %v8257 = vrot.slane %v8255, 3
        %v8258 = vshll.u32 %v8214, 16
        %v8260 = vrot.slane %v8258, 4
        %v8261 = vor.u32 %v8257, %v8260
        %v8262 = vsel %vm2845, %v8253, %v8261
        %v8264 = vshrl.u32 %v8213, 16
        %v8266 = vrot.slane %v8264, 3
        %v8267 = vshll.u32 %v8213, 16
        %v8269 = vrot.slane %v8267, 4
        %v8270 = vor.u32 %v8266, %v8269
        %v8272 = vshrl.u32 %v8215, 16
        %v8274 = vrot.slane %v8272, 3
        %v8275 = vshll.u32 %v8215, 16
        %v8277 = vrot.slane %v8275, 4
        %v8278 = vor.u32 %v8274, %v8277
        %v8279 = vsel %vm2845, %v8270, %v8278
        %v8281 = vshrl.u32 %v8216, 16
        %v8283 = vrot.slane %v8281, 3
        %v8284 = vshll.u32 %v8216, 16
        %v8286 = vrot.slane %v8284, 4
        %v8287 = vor.u32 %v8283, %v8286
        %v8288 = vsel %vm2845, %v8261, %v8287
        %v8290 = vshrl.u32 %v8217, 16
        %v8292 = vrot.slane %v8290, 3
        %v8293 = vshll.u32 %v8217, 16
        %v8295 = vrot.slane %v8293, 4
        %v8296 = vor.u32 %v8292, %v8295
        %v8297 = vsel %vm2845, %v8278, %v8296
        %v8299 = vshrl.u32 %v8218, 16
        %v8301 = vrot.slane %v8299, 3
        %v8302 = vshll.u32 %v8218, 16
        %v8304 = vrot.slane %v8302, 4
        %v8305 = vor.u32 %v8301, %v8304
        %v8306 = vsel %vm2845, %v8287, %v8305
        %v8308 = vshrl.u32 %v8219, 16
        %v8310 = vrot.slane %v8308, 3
        %v8311 = vshll.u32 %v8219, 16
        %v8313 = vrot.slane %v8311, 4
        %v8314 = vor.u32 %v8310, %v8313
        %v8315 = vsel %vm2845, %v8296, %v8314
        %v8317 = vshrl.u32 %v8220, 16
        %v8319 = vrot.slane %v8317, 3
        %v8320 = vshll.u32 %v8220, 16
        %v8322 = vrot.slane %v8320, 4
        %v8323 = vor.u32 %v8319, %v8322
        %v8324 = vsel %vm2845, %v8305, %v8323
        %v8326 = vshrl.u32 %v8221, 16
        %v8328 = vrot.slane %v8326, 3
        %v8329 = vshll.u32 %v8221, 16
        %v8331 = vrot.slane %v8329, 4
        %v8332 = vor.u32 %v8328, %v8331
        %v8333 = vsel %vm2845, %v8314, %v8332
        %v8362 = vunpack.c.l.b16 %v8222
        %v8363 = vunpack.c.l.b16 %v8223
        %v8364 = vunpack.c.l.b16 %v8224
        %v8365 = vunpack.c.l.b16 %v8225
        %v8366 = vunpack.c.l.b16 %v8226
        %v8367 = vunpack.c.l.b16 %v8227
        %v8368 = vunpack.c.l.b16 %v8228
        %v8369 = vunpack.c.l.b16 %v8229
        %v8370 = vunpack.c.l.b16 %v8230
        %v8371 = vunpack.c.l.b16 %v8231
        %v8372 = vunpack.c.l.b16 %v8232
        %v8373 = vunpack.c.l.b16 %v8233
        %v8374 = vunpack.c.l.b16 %v8234
        %v8375 = vunpack.c.l.b16 %v8235
        %v8376 = vunpack.c.l.b16 %v8236
        %v8377 = vunpack.c.l.b16 %v8237
        %v8378 = vunpack.c.l.b16 %v8238
        %v8379 = vunpack.c.l.b16 %v8239
        %v8380 = vunpack.c.l.b16 %v8240
        %v8381 = vunpack.c.l.b16 %v8241
        %v8382 = vunpack.c.l.b16 %v8242
        %v8383 = vunpack.c.l.b16 %v8243
        %v8384 = vunpack.c.l.b16 %v8244
        %v8385 = vunpack.c.l.b16 %v8245
        %v8386 = vpack.c.b16 %v8363, %v8362
        %v8387 = vpack.c.b16 %v8365, %v8364
        %v8388 = vpack.c.b16 %v8367, %v8366
        %v8389 = vpack.c.b16 %v8369, %v8368
        %v8390 = vpack.c.b16 %v8371, %v8370
        %v8391 = vpack.c.b16 %v8373, %v8372
        %v8392 = vpack.c.b16 %v8375, %v8374
        %v8393 = vpack.c.b16 %v8377, %v8376
        %v8394 = vpack.c.b16 %v8379, %v8378
        %v8395 = vpack.c.b16 %v8381, %v8380
        %v8396 = vpack.c.b16 %v8383, %v8382
        %v8397 = vpack.c.b16 %v8385, %v8384
        %v8411 = vsel %vm2022, %v8279, 0
        %v8414 = vsel %vm2022, %v8297, 0
        %v8417 = vsel %vm2022, %v8315, 0
        %v8420 = vsel %vm2022, %v8333, 0
        %8422 = vmatpush.bf16.msra.mxu0 %v8393
        %8423 = vmatpush.bf16.msra.mxu0 %v8392
        %8424 = vmatpush.bf16.msra.mxu0 %v8391
        %8425 = vmatpush.bf16.msra.mxu0 %v8390
        %8426 = vmatpush.bf16.msra.mxu0 %v8389
        %8427 = vmatpush.bf16.msra.mxu0 %v8388
        %8428 = vmatpush.bf16.msra.mxu0 %v8387
        %8429 = vmatpush.bf16.msra.mxu0 %v8386
        %8430 = vmatmul.bf16.gmra.mxu0 %v8262
        %v8431 = vpop.f32.mrf.mxu0
        %v8432 = vadd.f32 0.0, %v8431
        %v8433 = vpop.f32.mrf.mxu0
        %v8434 = vadd.f32 0.0, %v8433
        %8435 = vmatmul.bf16.gmra.mxu0 %v8288
        %v8436 = vpop.f32.mrf.mxu0
        %v8437 = vadd.f32 0.0, %v8436
        %v8438 = vpop.f32.mrf.mxu0
        %v8439 = vadd.f32 0.0, %v8438
        %8440 = vmatmul.bf16.gmra.mxu0 %v8306
        %v8441 = vpop.f32.mrf.mxu0
        %v8442 = vadd.f32 0.0, %v8441
        %v8443 = vpop.f32.mrf.mxu0
        %v8444 = vadd.f32 0.0, %v8443
        %8445 = vmatmul.bf16.gmra.mxu0 %v8324
        %v8446 = vpop.f32.mrf.mxu0
        %v8447 = vadd.f32 0.0, %v8446
        %v8448 = vpop.f32.mrf.mxu0
        %v8449 = vadd.f32 0.0, %v8448
        %8450 = vdwg.mxu0
        %8451 = vmatpush.bf16.msra.mxu0 0
        %8452 = vmatpush.bf16.msra.mxu0 0
        %8453 = vmatpush.bf16.msra.mxu0 0
        %8454 = vmatpush.bf16.msra.mxu0 0
        %8455 = vmatpush.bf16.msra.mxu0 %v8397
        %8456 = vmatpush.bf16.msra.mxu0 %v8396
        %8457 = vmatpush.bf16.msra.mxu0 %v8395
        %8458 = vmatpush.bf16.msra.mxu0 %v8394
        %8459 = vmatmul.bf16.gmra.mxu0 %v8411
        %v8460 = vpop.f32.mrf.mxu0
        %v8461 = vadd.f32 %v8432, %v8460
        %v8462 = vpop.f32.mrf.mxu0
        %v8463 = vadd.f32 %v8434, %v8462
        %8464 = vmatmul.bf16.gmra.mxu0 %v8414
        %v8465 = vpop.f32.mrf.mxu0
        %v8466 = vadd.f32 %v8437, %v8465
        %v8467 = vpop.f32.mrf.mxu0
        %v8468 = vadd.f32 %v8439, %v8467
        %8469 = vmatmul.bf16.gmra.mxu0 %v8417
        %v8470 = vpop.f32.mrf.mxu0
        %v8471 = vadd.f32 %v8442, %v8470
        %v8472 = vpop.f32.mrf.mxu0
        %v8473 = vadd.f32 %v8444, %v8472
        %8474 = vmatmul.bf16.gmra.mxu0 %v8420
        %v8475 = vpop.f32.mrf.mxu0
        %v8476 = vadd.f32 %v8447, %v8475
        %v8477 = vpop.f32.mrf.mxu0
        %v8478 = vadd.f32 %v8449, %v8477
        %8479 = vdwg.mxu0
        %v8480 = vsel %vm3412, %v8461, 0.0
        %v8481 = vsel %vm3413, %v8463, 0.0
        %v8482 = vsel %vm3414, %v8466, 0.0
        %v8483 = vsel %vm3415, %v8468, 0.0
        %v8484 = vsel %vm3416, %v8471, 0.0
        %v8485 = vsel %vm3417, %v8473, 0.0
        %v8486 = vsel %vm3418, %v8476, 0.0
        %v8487 = vsel %vm3419, %v8478, 0.0
        %v8488 = vld [vmem:[#allocation3 + $0x80] sm:$0xff]
        %v8489 = vld [vmem:[#allocation3 + $0x88] sm:$0xff]
        %v8490 = vpack.c.bf16 %v8198, %v8196
        %v8491 = vpack.c.bf16 %v8199, %v8197
        %v8492 = vpack.c.bf16 %v8202, %v8200
        %v8493 = vpack.c.bf16 %v8203, %v8201
        %v8494 = vpack.c.bf16 %v8206, %v8204
        %v8495 = vpack.c.bf16 %v8207, %v8205
        %v8496 = vpack.c.bf16 %v8488, %v8208
        %v8497 = vpack.c.bf16 %v8489, %v8209
        %s8498 = scalar_lea.vmem %s6, 96
        %v8499 = vld [vmem:[%s8498] sm:$0xf]
        %v8500 = vld [vmem:[%s8498 + $0x4] sm:$0xf]
        %v8501 = vld [vmem:[%s8498 + $0x8] sm:$0xf]
        %v8502 = vld [vmem:[%s8498 + $0xc] sm:$0xf]
        %v8503 = vld [vmem:[%s8498 + $0x10] sm:$0xf]
        %v8504 = vld [vmem:[%s8498 + $0x14] sm:$0xf]
        %v8505 = vld [vmem:[%s8498 + $0x18] sm:$0xf]
        %v8506 = vld [vmem:[%s8498 + $0x1c] sm:$0xf]
        %v8507 = vld [vmem:[%s8498 + $0x20] sm:$0xf]
        %v8508 = vld [vmem:[%s8498 + $0x24] sm:$0xf]
        %v8509 = vld [vmem:[%s8498 + $0x28] sm:$0xf]
        %v8510 = vld [vmem:[%s8498 + $0x2c] sm:$0xf]
        %v8511 = vld [vmem:[%s8498 + $0x30] sm:$0xf]
        %v8512 = vld [vmem:[%s8498 + $0x34] sm:$0xf]
        %v8513 = vld [vmem:[%s8498 + $0x38] sm:$0xf]
        %v8514 = vld [vmem:[%s8498 + $0x3c] sm:$0xf]
        %v8515 = vld [vmem:[%s8498 + $0x40] sm:$0xf]
        %v8516 = vld [vmem:[%s8498 + $0x44] sm:$0xf]
        %v8517 = vld [vmem:[%s8498 + $0x48] sm:$0xf]
        %v8518 = vld [vmem:[%s8498 + $0x4c] sm:$0xf]
        %v8519 = vld [vmem:[%s8498 + $0x50] sm:$0xf]
        %v8520 = vld [vmem:[%s8498 + $0x54] sm:$0xf]
        %v8521 = vld [vmem:[%s8498 + $0x58] sm:$0xf]
        %v8522 = vld [vmem:[%s8498 + $0x5c] sm:$0xf]
        %v8547 = vunpack.c.l.b16 %v8499
        %v8548 = vunpack.c.l.b16 %v8500
        %v8549 = vunpack.c.l.b16 %v8501
        %v8550 = vunpack.c.l.b16 %v8502
        %v8551 = vunpack.c.l.b16 %v8503
        %v8552 = vunpack.c.l.b16 %v8504
        %v8553 = vunpack.c.l.b16 %v8505
        %v8554 = vunpack.c.l.b16 %v8506
        %v8555 = vunpack.c.l.b16 %v8507
        %v8556 = vunpack.c.l.b16 %v8508
        %v8557 = vunpack.c.l.b16 %v8509
        %v8558 = vunpack.c.l.b16 %v8510
        %v8559 = vunpack.c.l.b16 %v8511
        %v8560 = vunpack.c.l.b16 %v8512
        %v8561 = vunpack.c.l.b16 %v8513
        %v8562 = vunpack.c.l.b16 %v8514
        %v8563 = vunpack.c.l.b16 %v8515
        %v8564 = vunpack.c.l.b16 %v8516
        %v8565 = vunpack.c.l.b16 %v8517
        %v8566 = vunpack.c.l.b16 %v8518
        %v8567 = vunpack.c.l.b16 %v8519
        %v8568 = vunpack.c.l.b16 %v8520
        %v8569 = vunpack.c.l.b16 %v8521
        %v8570 = vunpack.c.l.b16 %v8522
        %v8571 = vpack.c.b16 %v8548, %v8547
        %v8572 = vpack.c.b16 %v8550, %v8549
        %v8573 = vpack.c.b16 %v8552, %v8551
        %v8574 = vpack.c.b16 %v8554, %v8553
        %v8575 = vpack.c.b16 %v8556, %v8555
        %v8576 = vpack.c.b16 %v8558, %v8557
        %v8577 = vpack.c.b16 %v8560, %v8559
        %v8578 = vpack.c.b16 %v8562, %v8561
        %v8579 = vpack.c.b16 %v8564, %v8563
        %v8580 = vpack.c.b16 %v8566, %v8565
        %v8581 = vpack.c.b16 %v8568, %v8567
        %v8582 = vpack.c.b16 %v8570, %v8569
        %v8596 = vsel %vm2022, %v8491, 0
        %v8599 = vsel %vm2022, %v8493, 0
        %v8602 = vsel %vm2022, %v8495, 0
        %v8605 = vsel %vm2022, %v8497, 0
        %8607 = vmatpush.bf16.msra.mxu0 %v8578
        %8608 = vmatpush.bf16.msra.mxu0 %v8577
        %8609 = vmatpush.bf16.msra.mxu0 %v8576
        %8610 = vmatpush.bf16.msra.mxu0 %v8575
        %8611 = vmatpush.bf16.msra.mxu0 %v8574
        %8612 = vmatpush.bf16.msra.mxu0 %v8573
        %8613 = vmatpush.bf16.msra.mxu0 %v8572
        %8614 = vmatpush.bf16.msra.mxu0 %v8571
        %8615 = vmatmul.bf16.gmra.mxu0 %v8490
        %v8616 = vpop.f32.mrf.mxu0
        %v8617 = vadd.f32 0.0, %v8616
        %v8618 = vpop.f32.mrf.mxu0
        %v8619 = vadd.f32 0.0, %v8618
        %8620 = vmatmul.bf16.gmra.mxu0 %v8492
        %v8621 = vpop.f32.mrf.mxu0
        %v8622 = vadd.f32 0.0, %v8621
        %v8623 = vpop.f32.mrf.mxu0
        %v8624 = vadd.f32 0.0, %v8623
        %8625 = vmatmul.bf16.gmra.mxu0 %v8494
        %v8626 = vpop.f32.mrf.mxu0
        %v8627 = vadd.f32 0.0, %v8626
        %v8628 = vpop.f32.mrf.mxu0
        %v8629 = vadd.f32 0.0, %v8628
        %8630 = vmatmul.bf16.gmra.mxu0 %v8496
        %v8631 = vpop.f32.mrf.mxu0
        %v8632 = vadd.f32 0.0, %v8631
        %v8633 = vpop.f32.mrf.mxu0
        %v8634 = vadd.f32 0.0, %v8633
        %8635 = vdwg.mxu0
        %8636 = vmatpush.bf16.msra.mxu0 0
        %8637 = vmatpush.bf16.msra.mxu0 0
        %8638 = vmatpush.bf16.msra.mxu0 0
        %8639 = vmatpush.bf16.msra.mxu0 0
        %8640 = vmatpush.bf16.msra.mxu0 %v8582
        %8641 = vmatpush.bf16.msra.mxu0 %v8581
        %8642 = vmatpush.bf16.msra.mxu0 %v8580
        %8643 = vmatpush.bf16.msra.mxu0 %v8579
        %8644 = vmatmul.bf16.gmra.mxu0 %v8596
        %v8645 = vpop.f32.mrf.mxu0
        %v8646 = vadd.f32 %v8617, %v8645
        %v8647 = vpop.f32.mrf.mxu0
        %v8648 = vadd.f32 %v8619, %v8647
        %8649 = vmatmul.bf16.gmra.mxu0 %v8599
        %v8650 = vpop.f32.mrf.mxu0
        %v8651 = vadd.f32 %v8622, %v8650
        %v8652 = vpop.f32.mrf.mxu0
        %v8653 = vadd.f32 %v8624, %v8652
        %8654 = vmatmul.bf16.gmra.mxu0 %v8602
        %v8655 = vpop.f32.mrf.mxu0
        %v8656 = vadd.f32 %v8627, %v8655
        %v8657 = vpop.f32.mrf.mxu0
        %v8658 = vadd.f32 %v8629, %v8657
        %8659 = vmatmul.bf16.gmra.mxu0 %v8605
        %v8660 = vpop.f32.mrf.mxu0
        %v8661 = vadd.f32 %v8632, %v8660
        %v8662 = vpop.f32.mrf.mxu0
        %v8663 = vadd.f32 %v8634, %v8662
        %8664 = vdwg.mxu0
        %v8665 = vadd.f32 %v8480, %v8646
        %v8666 = vadd.f32 %v8481, %v8648
        %v8667 = vadd.f32 %v8482, %v8651
        %v8668 = vadd.f32 %v8483, %v8653
        %v8669 = vadd.f32 %v8484, %v8656
        %v8670 = vadd.f32 %v8485, %v8658
        %v8671 = vadd.f32 %v8486, %v8661
        %v8672 = vadd.f32 %v8487, %v8663
        %v8673 = vld [vmem:[#allocation3 + $0x10] sm:$0xfe]
        %v8674 = vld [vmem:[#allocation3 + $0x18] sm:$0xfe]
        %v8675 = vld [vmem:[#allocation3 + $0x20] sm:$0xff]
        %v8676 = vld [vmem:[#allocation3 + $0x28] sm:$0xff]
        %v8677 = vld [vmem:[#allocation3 + $0x30] sm:$0xff]
        %v8678 = vld [vmem:[#allocation3 + $0x38] sm:$0xff]
        %v8679 = vld [vmem:[#allocation3 + $0x40] sm:$0xff]
        %v8680 = vld [vmem:[#allocation3 + $0x48] sm:$0xff]
        %v8681 = vld [vmem:[#allocation3 + $0x50] sm:$0xff]
        %v8682 = vld [vmem:[#allocation3 + $0x58] sm:$0xff]
        %v8683 = vld [vmem:[#allocation3 + $0x60] sm:$0xff]
        %v8684 = vld [vmem:[#allocation3 + $0x68] sm:$0xff]
        %v8685 = vld [vmem:[#allocation3 + $0x70] sm:$0xff]
        %v8686 = vld [vmem:[#allocation3 + $0x78] sm:$0xff]
        %v8687 = vld [vmem:[#allocation3 + $0x80] sm:$0xff]
        %v8688 = vld [vmem:[#allocation3 + $0x88] sm:$0xff]
        %v8689 = vld [vmem:[#allocation3 + $0x90] sm:$0x1]
        %v8690 = vld [vmem:[#allocation3 + $0x98] sm:$0x1]
        %v8691 = vpack.c.bf16 %v8675, %v8673
        %v8692 = vpack.c.bf16 %v8676, %v8674
        %v8693 = vpack.c.bf16 %v8679, %v8677
        %v8694 = vpack.c.bf16 %v8680, %v8678
        %v8695 = vpack.c.bf16 %v8683, %v8681
        %v8696 = vpack.c.bf16 %v8684, %v8682
        %v8697 = vpack.c.bf16 %v8687, %v8685
        %v8698 = vpack.c.bf16 %v8688, %v8686
        %v8699 = vpack.c.bf16 %v8689, %v8689
        %v8700 = vpack.c.bf16 %v8690, %v8690
        %s8701 = scalar_lea.vmem %s6, 192
        %v8702 = vld [vmem:[%s8701] sm:$0xf]
        %v8703 = vld [vmem:[%s8701 + $0x4] sm:$0xf]
        %v8704 = vld [vmem:[%s8701 + $0x8] sm:$0xf]
        %v8705 = vld [vmem:[%s8701 + $0xc] sm:$0xf]
        %v8706 = vld [vmem:[%s8701 + $0x10] sm:$0xf]
        %v8707 = vld [vmem:[%s8701 + $0x14] sm:$0xf]
        %v8708 = vld [vmem:[%s8701 + $0x18] sm:$0xf]
        %v8709 = vld [vmem:[%s8701 + $0x1c] sm:$0xf]
        %v8710 = vld [vmem:[%s8701 + $0x20] sm:$0xf]
        %v8711 = vld [vmem:[%s8701 + $0x24] sm:$0xf]
        %v8712 = vld [vmem:[%s8701 + $0x28] sm:$0xf]
        %v8713 = vld [vmem:[%s8701 + $0x2c] sm:$0xf]
        %v8714 = vld [vmem:[%s8701 + $0x30] sm:$0xf]
        %v8715 = vld [vmem:[%s8701 + $0x34] sm:$0xf]
        %v8716 = vld [vmem:[%s8701 + $0x38] sm:$0xf]
        %v8717 = vld [vmem:[%s8701 + $0x3c] sm:$0xf]
        %v8718 = vld [vmem:[%s8701 + $0x40] sm:$0xf]
        %v8719 = vld [vmem:[%s8701 + $0x44] sm:$0xf]
        %v8720 = vld [vmem:[%s8701 + $0x48] sm:$0xf]
        %v8721 = vld [vmem:[%s8701 + $0x4c] sm:$0xf]
        %v8722 = vld [vmem:[%s8701 + $0x50] sm:$0xf]
        %v8723 = vld [vmem:[%s8701 + $0x54] sm:$0xf]
        %v8724 = vld [vmem:[%s8701 + $0x58] sm:$0xf]
        %v8725 = vld [vmem:[%s8701 + $0x5c] sm:$0xf]
        %v8727 = vshrl.u32 %v8691, 16
        %v8729 = vshll.u32 %v8691, 16
        %v8731 = vrot.slane %v8729, 1
        %v8732 = vor.u32 %v8727, %v8731
        %v8734 = vshll.u32 %v8693, 16
        %v8736 = vrot.slane %v8734, 1
        %v8737 = vsel %vm4021, %v8732, %v8736
        %v8739 = vshrl.u32 %v8692, 16
        %v8741 = vshll.u32 %v8692, 16
        %v8743 = vrot.slane %v8741, 1
        %v8744 = vor.u32 %v8739, %v8743
        %v8746 = vshll.u32 %v8694, 16
        %v8748 = vrot.slane %v8746, 1
        %v8749 = vsel %vm4021, %v8744, %v8748
        %v8750 = vshrl.u32 %v8693, 16
        %v8752 = vor.u32 %v8750, %v8736
        %v8754 = vshll.u32 %v8695, 16
        %v8756 = vrot.slane %v8754, 1
        %v8757 = vsel %vm4021, %v8752, %v8756
        %v8758 = vshrl.u32 %v8694, 16
        %v8760 = vor.u32 %v8758, %v8748
        %v8762 = vshll.u32 %v8696, 16
        %v8764 = vrot.slane %v8762, 1
        %v8765 = vsel %vm4021, %v8760, %v8764
        %v8766 = vshrl.u32 %v8695, 16
        %v8768 = vor.u32 %v8766, %v8756
        %v8770 = vshll.u32 %v8697, 16
        %v8772 = vrot.slane %v8770, 1
        %v8773 = vsel %vm4021, %v8768, %v8772
        %v8774 = vshrl.u32 %v8696, 16
        %v8776 = vor.u32 %v8774, %v8764
        %v8778 = vshll.u32 %v8698, 16
        %v8780 = vrot.slane %v8778, 1
        %v8781 = vsel %vm4021, %v8776, %v8780
        %v8782 = vshrl.u32 %v8697, 16
        %v8784 = vor.u32 %v8782, %v8772
        %v8786 = vshll.u32 %v8699, 16
        %v8788 = vrot.slane %v8786, 1
        %v8789 = vsel %vm4021, %v8784, %v8788
        %v8790 = vshrl.u32 %v8698, 16
        %v8792 = vor.u32 %v8790, %v8780
        %v8794 = vshll.u32 %v8700, 16
        %v8796 = vrot.slane %v8794, 1
        %v8797 = vsel %vm4021, %v8792, %v8796
        %v8826 = vunpack.c.l.b16 %v8702
        %v8827 = vunpack.c.l.b16 %v8703
        %v8828 = vunpack.c.l.b16 %v8704
        %v8829 = vunpack.c.l.b16 %v8705
        %v8830 = vunpack.c.l.b16 %v8706
        %v8831 = vunpack.c.l.b16 %v8707
        %v8832 = vunpack.c.l.b16 %v8708
        %v8833 = vunpack.c.l.b16 %v8709
        %v8834 = vunpack.c.l.b16 %v8710
        %v8835 = vunpack.c.l.b16 %v8711
        %v8836 = vunpack.c.l.b16 %v8712
        %v8837 = vunpack.c.l.b16 %v8713
        %v8838 = vunpack.c.l.b16 %v8714
        %v8839 = vunpack.c.l.b16 %v8715
        %v8840 = vunpack.c.l.b16 %v8716
        %v8841 = vunpack.c.l.b16 %v8717
        %v8842 = vunpack.c.l.b16 %v8718
        %v8843 = vunpack.c.l.b16 %v8719
        %v8844 = vunpack.c.l.b16 %v8720
        %v8845 = vunpack.c.l.b16 %v8721
        %v8846 = vunpack.c.l.b16 %v8722
        %v8847 = vunpack.c.l.b16 %v8723
        %v8848 = vunpack.c.l.b16 %v8724
        %v8849 = vunpack.c.l.b16 %v8725
        %v8850 = vpack.c.b16 %v8827, %v8826
        %v8851 = vpack.c.b16 %v8829, %v8828
        %v8852 = vpack.c.b16 %v8831, %v8830
        %v8853 = vpack.c.b16 %v8833, %v8832
        %v8854 = vpack.c.b16 %v8835, %v8834
        %v8855 = vpack.c.b16 %v8837, %v8836
        %v8856 = vpack.c.b16 %v8839, %v8838
        %v8857 = vpack.c.b16 %v8841, %v8840
        %v8858 = vpack.c.b16 %v8843, %v8842
        %v8859 = vpack.c.b16 %v8845, %v8844
        %v8860 = vpack.c.b16 %v8847, %v8846
        %v8861 = vpack.c.b16 %v8849, %v8848
        %v8875 = vsel %vm2022, %v8749, 0
        %v8878 = vsel %vm2022, %v8765, 0
        %v8881 = vsel %vm2022, %v8781, 0
        %v8884 = vsel %vm2022, %v8797, 0
        %8886 = vmatpush.bf16.msra.mxu0 %v8857
        %8887 = vmatpush.bf16.msra.mxu0 %v8856
        %8888 = vmatpush.bf16.msra.mxu0 %v8855
        %8889 = vmatpush.bf16.msra.mxu0 %v8854
        %8890 = vmatpush.bf16.msra.mxu0 %v8853
        %8891 = vmatpush.bf16.msra.mxu0 %v8852
        %8892 = vmatpush.bf16.msra.mxu0 %v8851
        %8893 = vmatpush.bf16.msra.mxu0 %v8850
        %8894 = vmatmul.bf16.gmra.mxu0 %v8737
        %v8895 = vpop.f32.mrf.mxu0
        %v8896 = vadd.f32 0.0, %v8895
        %v8897 = vpop.f32.mrf.mxu0
        %v8898 = vadd.f32 0.0, %v8897
        %8899 = vmatmul.bf16.gmra.mxu0 %v8757
        %v8900 = vpop.f32.mrf.mxu0
        %v8901 = vadd.f32 0.0, %v8900
        %v8902 = vpop.f32.mrf.mxu0
        %v8903 = vadd.f32 0.0, %v8902
        %8904 = vmatmul.bf16.gmra.mxu0 %v8773
        %v8905 = vpop.f32.mrf.mxu0
        %v8906 = vadd.f32 0.0, %v8905
        %v8907 = vpop.f32.mrf.mxu0
        %v8908 = vadd.f32 0.0, %v8907
        %8909 = vmatmul.bf16.gmra.mxu0 %v8789
        %v8910 = vpop.f32.mrf.mxu0
        %v8911 = vadd.f32 0.0, %v8910
        %v8912 = vpop.f32.mrf.mxu0
        %v8913 = vadd.f32 0.0, %v8912
        %8914 = vdwg.mxu0
        %8915 = vmatpush.bf16.msra.mxu0 0
        %8916 = vmatpush.bf16.msra.mxu0 0
        %8917 = vmatpush.bf16.msra.mxu0 0
        %8918 = vmatpush.bf16.msra.mxu0 0
        %8919 = vmatpush.bf16.msra.mxu0 %v8861
        %8920 = vmatpush.bf16.msra.mxu0 %v8860
        %8921 = vmatpush.bf16.msra.mxu0 %v8859
        %8922 = vmatpush.bf16.msra.mxu0 %v8858
        %8923 = vmatmul.bf16.gmra.mxu0 %v8875
        %v8924 = vpop.f32.mrf.mxu0
        %v8925 = vadd.f32 %v8896, %v8924
        %v8926 = vpop.f32.mrf.mxu0
        %v8927 = vadd.f32 %v8898, %v8926
        %8928 = vmatmul.bf16.gmra.mxu0 %v8878
        %v8929 = vpop.f32.mrf.mxu0
        %v8930 = vadd.f32 %v8901, %v8929
        %v8931 = vpop.f32.mrf.mxu0
        %v8932 = vadd.f32 %v8903, %v8931
        %8933 = vmatmul.bf16.gmra.mxu0 %v8881
        %v8934 = vpop.f32.mrf.mxu0
        %v8935 = vadd.f32 %v8906, %v8934
        %v8936 = vpop.f32.mrf.mxu0
        %v8937 = vadd.f32 %v8908, %v8936
        %8938 = vmatmul.bf16.gmra.mxu0 %v8884
        %v8939 = vpop.f32.mrf.mxu0
        %v8940 = vadd.f32 %v8911, %v8939
        %v8941 = vpop.f32.mrf.mxu0
        %v8942 = vadd.f32 %v8913, %v8941
        %8943 = vdwg.mxu0
        %v8944 = vsel %vm4564, %v8925, 0.0
        %v8945 = vsel %vm4565, %v8927, 0.0
        %v8946 = vsel %vm4566, %v8930, 0.0
        %v8947 = vsel %vm4567, %v8932, 0.0
        %v8948 = vsel %vm4568, %v8935, 0.0
        %v8949 = vsel %vm4569, %v8937, 0.0
        %v8950 = vsel %vm4570, %v8940, 0.0
        %v8951 = vsel %vm4571, %v8942, 0.0
        %v8952 = vadd.f32 %v8665, %v8944
        %v8953 = vadd.f32 %v8666, %v8945
        %v8954 = vadd.f32 %v8667, %v8946
        %v8955 = vadd.f32 %v8668, %v8947
        %v8956 = vadd.f32 %v8669, %v8948
        %v8957 = vadd.f32 %v8670, %v8949
        %v8958 = vadd.f32 %v8671, %v8950
        %v8959 = vadd.f32 %v8672, %v8951
        %v8960 = vld [vmem:[#allocation3 + $0x10] sm:$0x80]
        %v8961 = vld [vmem:[#allocation3 + $0x18] sm:$0x80]
        %v8962 = vld [vmem:[#allocation3 + $0x90] sm:$0x7f]
        %v8963 = vld [vmem:[#allocation3 + $0x98] sm:$0x7f]
        %v8964 = vpack.c.bf16 %v8675, %v8960
        %v8965 = vpack.c.bf16 %v8676, %v8961
        %v8966 = vpack.c.bf16 %v8962, %v8962
        %v8967 = vpack.c.bf16 %v8963, %v8963
        %s8968 = scalar_lea.vmem %s6, 288
        %v8969 = vld [vmem:[%s8968] sm:$0xf]
        %v8970 = vld [vmem:[%s8968 + $0x4] sm:$0xf]
        %v8971 = vld [vmem:[%s8968 + $0x8] sm:$0xf]
        %v8972 = vld [vmem:[%s8968 + $0xc] sm:$0xf]
        %v8973 = vld [vmem:[%s8968 + $0x10] sm:$0xf]
        %v8974 = vld [vmem:[%s8968 + $0x14] sm:$0xf]
        %v8975 = vld [vmem:[%s8968 + $0x18] sm:$0xf]
        %v8976 = vld [vmem:[%s8968 + $0x1c] sm:$0xf]
        %v8977 = vld [vmem:[%s8968 + $0x20] sm:$0xf]
        %v8978 = vld [vmem:[%s8968 + $0x24] sm:$0xf]
        %v8979 = vld [vmem:[%s8968 + $0x28] sm:$0xf]
        %v8980 = vld [vmem:[%s8968 + $0x2c] sm:$0xf]
        %v8981 = vld [vmem:[%s8968 + $0x30] sm:$0xf]
        %v8982 = vld [vmem:[%s8968 + $0x34] sm:$0xf]
        %v8983 = vld [vmem:[%s8968 + $0x38] sm:$0xf]
        %v8984 = vld [vmem:[%s8968 + $0x3c] sm:$0xf]
        %v8985 = vld [vmem:[%s8968 + $0x40] sm:$0xf]
        %v8986 = vld [vmem:[%s8968 + $0x44] sm:$0xf]
        %v8987 = vld [vmem:[%s8968 + $0x48] sm:$0xf]
        %v8988 = vld [vmem:[%s8968 + $0x4c] sm:$0xf]
        %v8989 = vld [vmem:[%s8968 + $0x50] sm:$0xf]
        %v8990 = vld [vmem:[%s8968 + $0x54] sm:$0xf]
        %v8991 = vld [vmem:[%s8968 + $0x58] sm:$0xf]
        %v8992 = vld [vmem:[%s8968 + $0x5c] sm:$0xf]
        %v8994 = vshrl.u32 %v8964, 16
        %v8996 = vrot.slane %v8994, 3
        %v8997 = vshll.u32 %v8964, 16
        %v8999 = vrot.slane %v8997, 4
        %v9000 = vor.u32 %v8996, %v8999
        %v9001 = vrot.slane %v8750, 3
        %v9002 = vrot.slane %v8734, 4
        %v9003 = vor.u32 %v9001, %v9002
        %v9004 = vsel %vm2845, %v9000, %v9003
        %v9006 = vshrl.u32 %v8965, 16
        %v9008 = vrot.slane %v9006, 3
        %v9009 = vshll.u32 %v8965, 16
        %v9011 = vrot.slane %v9009, 4
        %v9012 = vor.u32 %v9008, %v9011
        %v9013 = vrot.slane %v8758, 3
        %v9014 = vrot.slane %v8746, 4
        %v9015 = vor.u32 %v9013, %v9014
        %v9016 = vsel %vm2845, %v9012, %v9015
        %v9017 = vrot.slane %v8766, 3
        %v9018 = vrot.slane %v8754, 4
        %v9019 = vor.u32 %v9017, %v9018
        %v9020 = vsel %vm2845, %v9003, %v9019
        %v9021 = vrot.slane %v8774, 3
        %v9022 = vrot.slane %v8762, 4
        %v9023 = vor.u32 %v9021, %v9022
        %v9024 = vsel %vm2845, %v9015, %v9023
        %v9025 = vrot.slane %v8782, 3
        %v9026 = vrot.slane %v8770, 4
        %v9027 = vor.u32 %v9025, %v9026
        %v9028 = vsel %vm2845, %v9019, %v9027
        %v9029 = vrot.slane %v8790, 3
        %v9030 = vrot.slane %v8778, 4
        %v9031 = vor.u32 %v9029, %v9030
        %v9032 = vsel %vm2845, %v9023, %v9031
        %v9034 = vshrl.u32 %v8966, 16
        %v9036 = vrot.slane %v9034, 3
        %v9037 = vshll.u32 %v8966, 16
        %v9039 = vrot.slane %v9037, 4
        %v9040 = vor.u32 %v9036, %v9039
        %v9041 = vsel %vm2845, %v9027, %v9040
        %v9043 = vshrl.u32 %v8967, 16
        %v9045 = vrot.slane %v9043, 3
        %v9046 = vshll.u32 %v8967, 16
        %v9048 = vrot.slane %v9046, 4
        %v9049 = vor.u32 %v9045, %v9048
        %v9050 = vsel %vm2845, %v9031, %v9049
        %v9079 = vunpack.c.l.b16 %v8969
        %v9080 = vunpack.c.l.b16 %v8970
        %v9081 = vunpack.c.l.b16 %v8971
        %v9082 = vunpack.c.l.b16 %v8972
        %v9083 = vunpack.c.l.b16 %v8973
        %v9084 = vunpack.c.l.b16 %v8974
        %v9085 = vunpack.c.l.b16 %v8975
        %v9086 = vunpack.c.l.b16 %v8976
        %v9087 = vunpack.c.l.b16 %v8977
        %v9088 = vunpack.c.l.b16 %v8978
        %v9089 = vunpack.c.l.b16 %v8979
        %v9090 = vunpack.c.l.b16 %v8980
        %v9091 = vunpack.c.l.b16 %v8981
        %v9092 = vunpack.c.l.b16 %v8982
        %v9093 = vunpack.c.l.b16 %v8983
        %v9094 = vunpack.c.l.b16 %v8984
        %v9095 = vunpack.c.l.b16 %v8985
        %v9096 = vunpack.c.l.b16 %v8986
        %v9097 = vunpack.c.l.b16 %v8987
        %v9098 = vunpack.c.l.b16 %v8988
        %v9099 = vunpack.c.l.b16 %v8989
        %v9100 = vunpack.c.l.b16 %v8990
        %v9101 = vunpack.c.l.b16 %v8991
        %v9102 = vunpack.c.l.b16 %v8992
        %v9103 = vpack.c.b16 %v9080, %v9079
        %v9104 = vpack.c.b16 %v9082, %v9081
        %v9105 = vpack.c.b16 %v9084, %v9083
        %v9106 = vpack.c.b16 %v9086, %v9085
        %v9107 = vpack.c.b16 %v9088, %v9087
        %v9108 = vpack.c.b16 %v9090, %v9089
        %v9109 = vpack.c.b16 %v9092, %v9091
        %v9110 = vpack.c.b16 %v9094, %v9093
        %v9111 = vpack.c.b16 %v9096, %v9095
        %v9112 = vpack.c.b16 %v9098, %v9097
        %v9113 = vpack.c.b16 %v9100, %v9099
        %v9114 = vpack.c.b16 %v9102, %v9101
        %v9128 = vsel %vm2022, %v9016, 0
        %v9131 = vsel %vm2022, %v9024, 0
        %v9134 = vsel %vm2022, %v9032, 0
        %v9137 = vsel %vm2022, %v9050, 0
        %9139 = vmatpush.bf16.msra.mxu0 %v9110
        %9140 = vmatpush.bf16.msra.mxu0 %v9109
        %9141 = vmatpush.bf16.msra.mxu0 %v9108
        %9142 = vmatpush.bf16.msra.mxu0 %v9107
        %9143 = vmatpush.bf16.msra.mxu0 %v9106
        %9144 = vmatpush.bf16.msra.mxu0 %v9105
        %9145 = vmatpush.bf16.msra.mxu0 %v9104
        %9146 = vmatpush.bf16.msra.mxu0 %v9103
        %9147 = vmatmul.bf16.gmra.mxu0 %v9004
        %v9148 = vpop.f32.mrf.mxu0
        %v9149 = vadd.f32 0.0, %v9148
        %v9150 = vpop.f32.mrf.mxu0
        %v9151 = vadd.f32 0.0, %v9150
        %9152 = vmatmul.bf16.gmra.mxu0 %v9020
        %v9153 = vpop.f32.mrf.mxu0
        %v9154 = vadd.f32 0.0, %v9153
        %v9155 = vpop.f32.mrf.mxu0
        %v9156 = vadd.f32 0.0, %v9155
        %9157 = vmatmul.bf16.gmra.mxu0 %v9028
        %v9158 = vpop.f32.mrf.mxu0
        %v9159 = vadd.f32 0.0, %v9158
        %v9160 = vpop.f32.mrf.mxu0
        %v9161 = vadd.f32 0.0, %v9160
        %9162 = vmatmul.bf16.gmra.mxu0 %v9041
        %v9163 = vpop.f32.mrf.mxu0
        %v9164 = vadd.f32 0.0, %v9163
        %v9165 = vpop.f32.mrf.mxu0
        %v9166 = vadd.f32 0.0, %v9165
        %9167 = vdwg.mxu0
        %9168 = vmatpush.bf16.msra.mxu0 0
        %9169 = vmatpush.bf16.msra.mxu0 0
        %9170 = vmatpush.bf16.msra.mxu0 0
        %9171 = vmatpush.bf16.msra.mxu0 0
        %9172 = vmatpush.bf16.msra.mxu0 %v9114
        %9173 = vmatpush.bf16.msra.mxu0 %v9113
        %9174 = vmatpush.bf16.msra.mxu0 %v9112
        %9175 = vmatpush.bf16.msra.mxu0 %v9111
        %9176 = vmatmul.bf16.gmra.mxu0 %v9128
        %v9177 = vpop.f32.mrf.mxu0
        %v9178 = vadd.f32 %v9149, %v9177
        %v9179 = vpop.f32.mrf.mxu0
        %v9180 = vadd.f32 %v9151, %v9179
        %9181 = vmatmul.bf16.gmra.mxu0 %v9131
        %v9182 = vpop.f32.mrf.mxu0
        %v9183 = vadd.f32 %v9154, %v9182
        %v9184 = vpop.f32.mrf.mxu0
        %v9185 = vadd.f32 %v9156, %v9184
        %9186 = vmatmul.bf16.gmra.mxu0 %v9134
        %v9187 = vpop.f32.mrf.mxu0
        %v9188 = vadd.f32 %v9159, %v9187
        %v9189 = vpop.f32.mrf.mxu0
        %v9190 = vadd.f32 %v9161, %v9189
        %9191 = vmatmul.bf16.gmra.mxu0 %v9137
        %v9192 = vpop.f32.mrf.mxu0
        %v9193 = vadd.f32 %v9164, %v9192
        %v9194 = vpop.f32.mrf.mxu0
        %v9195 = vadd.f32 %v9166, %v9194
        %9196 = vdwg.mxu0
        %v9197 = vsel %vm3412, %v9178, 0.0
        %v9198 = vsel %vm3413, %v9180, 0.0
        %v9199 = vsel %vm3414, %v9183, 0.0
        %v9200 = vsel %vm3415, %v9185, 0.0
        %v9201 = vsel %vm3416, %v9188, 0.0
        %v9202 = vsel %vm3417, %v9190, 0.0
        %v9203 = vsel %vm3418, %v9193, 0.0
        %v9204 = vsel %vm3419, %v9195, 0.0
        %v9205 = vadd.f32 %v8952, %v9197
        %v9206 = vadd.f32 %v8953, %v9198
        %v9207 = vadd.f32 %v8954, %v9199
        %v9208 = vadd.f32 %v8955, %v9200
        %v9209 = vadd.f32 %v8956, %v9201
        %v9210 = vadd.f32 %v8957, %v9202
        %v9211 = vadd.f32 %v8958, %v9203
        %v9212 = vadd.f32 %v8959, %v9204
        %v9213 = vld [vmem:[#allocation3 + $0x90] sm:$0xff]
        %v9214 = vld [vmem:[#allocation3 + $0x98] sm:$0xff]
        %v9215 = vpack.c.bf16 %v8677, %v8675
        %v9216 = vpack.c.bf16 %v8678, %v8676
        %v9217 = vpack.c.bf16 %v8681, %v8679
        %v9218 = vpack.c.bf16 %v8682, %v8680
        %v9219 = vpack.c.bf16 %v8685, %v8683
        %v9220 = vpack.c.bf16 %v8686, %v8684
        %v9221 = vpack.c.bf16 %v9213, %v8687
        %v9222 = vpack.c.bf16 %v9214, %v8688
        %s9223 = scalar_lea.vmem %s6, 384
        %v9224 = vld [vmem:[%s9223] sm:$0xf]
        %v9225 = vld [vmem:[%s9223 + $0x4] sm:$0xf]
        %v9226 = vld [vmem:[%s9223 + $0x8] sm:$0xf]
        %v9227 = vld [vmem:[%s9223 + $0xc] sm:$0xf]
        %v9228 = vld [vmem:[%s9223 + $0x10] sm:$0xf]
        %v9229 = vld [vmem:[%s9223 + $0x14] sm:$0xf]
        %v9230 = vld [vmem:[%s9223 + $0x18] sm:$0xf]
        %v9231 = vld [vmem:[%s9223 + $0x1c] sm:$0xf]
        %v9232 = vld [vmem:[%s9223 + $0x20] sm:$0xf]
        %v9233 = vld [vmem:[%s9223 + $0x24] sm:$0xf]
        %v9234 = vld [vmem:[%s9223 + $0x28] sm:$0xf]
        %v9235 = vld [vmem:[%s9223 + $0x2c] sm:$0xf]
        %v9236 = vld [vmem:[%s9223 + $0x30] sm:$0xf]
        %v9237 = vld [vmem:[%s9223 + $0x34] sm:$0xf]
        %v9238 = vld [vmem:[%s9223 + $0x38] sm:$0xf]
        %v9239 = vld [vmem:[%s9223 + $0x3c] sm:$0xf]
        %v9240 = vld [vmem:[%s9223 + $0x40] sm:$0xf]
        %v9241 = vld [vmem:[%s9223 + $0x44] sm:$0xf]
        %v9242 = vld [vmem:[%s9223 + $0x48] sm:$0xf]
        %v9243 = vld [vmem:[%s9223 + $0x4c] sm:$0xf]
        %v9244 = vld [vmem:[%s9223 + $0x50] sm:$0xf]
        %v9245 = vld [vmem:[%s9223 + $0x54] sm:$0xf]
        %v9246 = vld [vmem:[%s9223 + $0x58] sm:$0xf]
        %v9247 = vld [vmem:[%s9223 + $0x5c] sm:$0xf]
        %v9272 = vunpack.c.l.b16 %v9224
        %v9273 = vunpack.c.l.b16 %v9225
        %v9274 = vunpack.c.l.b16 %v9226
        %v9275 = vunpack.c.l.b16 %v9227
        %v9276 = vunpack.c.l.b16 %v9228
        %v9277 = vunpack.c.l.b16 %v9229
        %v9278 = vunpack.c.l.b16 %v9230
        %v9279 = vunpack.c.l.b16 %v9231
        %v9280 = vunpack.c.l.b16 %v9232
        %v9281 = vunpack.c.l.b16 %v9233
        %v9282 = vunpack.c.l.b16 %v9234
        %v9283 = vunpack.c.l.b16 %v9235
        %v9284 = vunpack.c.l.b16 %v9236
        %v9285 = vunpack.c.l.b16 %v9237
        %v9286 = vunpack.c.l.b16 %v9238
        %v9287 = vunpack.c.l.b16 %v9239
        %v9288 = vunpack.c.l.b16 %v9240
        %v9289 = vunpack.c.l.b16 %v9241
        %v9290 = vunpack.c.l.b16 %v9242
        %v9291 = vunpack.c.l.b16 %v9243
        %v9292 = vunpack.c.l.b16 %v9244
        %v9293 = vunpack.c.l.b16 %v9245
        %v9294 = vunpack.c.l.b16 %v9246
        %v9295 = vunpack.c.l.b16 %v9247
        %v9296 = vpack.c.b16 %v9273, %v9272
        %v9297 = vpack.c.b16 %v9275, %v9274
        %v9298 = vpack.c.b16 %v9277, %v9276
        %v9299 = vpack.c.b16 %v9279, %v9278
        %v9300 = vpack.c.b16 %v9281, %v9280
        %v9301 = vpack.c.b16 %v9283, %v9282
        %v9302 = vpack.c.b16 %v9285, %v9284
        %v9303 = vpack.c.b16 %v9287, %v9286
        %v9304 = vpack.c.b16 %v9289, %v9288
        %v9305 = vpack.c.b16 %v9291, %v9290
        %v9306 = vpack.c.b16 %v9293, %v9292
        %v9307 = vpack.c.b16 %v9295, %v9294
        %v9321 = vsel %vm2022, %v9216, 0
        %v9324 = vsel %vm2022, %v9218, 0
        %v9327 = vsel %vm2022, %v9220, 0
        %v9330 = vsel %vm2022, %v9222, 0
        %9332 = vmatpush.bf16.msra.mxu0 %v9303
        %9333 = vmatpush.bf16.msra.mxu0 %v9302
        %9334 = vmatpush.bf16.msra.mxu0 %v9301
        %9335 = vmatpush.bf16.msra.mxu0 %v9300
        %9336 = vmatpush.bf16.msra.mxu0 %v9299
        %9337 = vmatpush.bf16.msra.mxu0 %v9298
        %9338 = vmatpush.bf16.msra.mxu0 %v9297
        %9339 = vmatpush.bf16.msra.mxu0 %v9296
        %9340 = vmatmul.bf16.gmra.mxu0 %v9215
        %v9341 = vpop.f32.mrf.mxu0
        %v9342 = vadd.f32 0.0, %v9341
        %v9343 = vpop.f32.mrf.mxu0
        %v9344 = vadd.f32 0.0, %v9343
        %9345 = vmatmul.bf16.gmra.mxu0 %v9217
        %v9346 = vpop.f32.mrf.mxu0
        %v9347 = vadd.f32 0.0, %v9346
        %v9348 = vpop.f32.mrf.mxu0
        %v9349 = vadd.f32 0.0, %v9348
        %9350 = vmatmul.bf16.gmra.mxu0 %v9219
        %v9351 = vpop.f32.mrf.mxu0
        %v9352 = vadd.f32 0.0, %v9351
        %v9353 = vpop.f32.mrf.mxu0
        %v9354 = vadd.f32 0.0, %v9353
        %9355 = vmatmul.bf16.gmra.mxu0 %v9221
        %v9356 = vpop.f32.mrf.mxu0
        %v9357 = vadd.f32 0.0, %v9356
        %v9358 = vpop.f32.mrf.mxu0
        %v9359 = vadd.f32 0.0, %v9358
        %9360 = vdwg.mxu0
        %9361 = vmatpush.bf16.msra.mxu0 0
        %9362 = vmatpush.bf16.msra.mxu0 0
        %9363 = vmatpush.bf16.msra.mxu0 0
        %9364 = vmatpush.bf16.msra.mxu0 0
        %9365 = vmatpush.bf16.msra.mxu0 %v9307
        %9366 = vmatpush.bf16.msra.mxu0 %v9306
        %9367 = vmatpush.bf16.msra.mxu0 %v9305
        %9368 = vmatpush.bf16.msra.mxu0 %v9304
        %9369 = vmatmul.bf16.gmra.mxu0 %v9321
        %v9370 = vpop.f32.mrf.mxu0
        %v9371 = vadd.f32 %v9342, %v9370
        %v9372 = vpop.f32.mrf.mxu0
        %v9373 = vadd.f32 %v9344, %v9372
        %9374 = vmatmul.bf16.gmra.mxu0 %v9324
        %v9375 = vpop.f32.mrf.mxu0
        %v9376 = vadd.f32 %v9347, %v9375
        %v9377 = vpop.f32.mrf.mxu0
        %v9378 = vadd.f32 %v9349, %v9377
        %9379 = vmatmul.bf16.gmra.mxu0 %v9327
        %v9380 = vpop.f32.mrf.mxu0
        %v9381 = vadd.f32 %v9352, %v9380
        %v9382 = vpop.f32.mrf.mxu0
        %v9383 = vadd.f32 %v9354, %v9382
        %9384 = vmatmul.bf16.gmra.mxu0 %v9330
        %v9385 = vpop.f32.mrf.mxu0
        %v9386 = vadd.f32 %v9357, %v9385
        %v9387 = vpop.f32.mrf.mxu0
        %v9388 = vadd.f32 %v9359, %v9387
        %9389 = vdwg.mxu0
        %v9390 = vadd.f32 %v9205, %v9371
        %v9391 = vadd.f32 %v9206, %v9373
        %v9392 = vadd.f32 %v9207, %v9376
        %v9393 = vadd.f32 %v9208, %v9378
        %v9394 = vadd.f32 %v9209, %v9381
        %v9395 = vadd.f32 %v9210, %v9383
        %v9396 = vadd.f32 %v9211, %v9386
        %v9397 = vadd.f32 %v9212, %v9388
        %v9398 = vld [vmem:[#allocation3 + $0x20] sm:$0xfe]
        %v9399 = vld [vmem:[#allocation3 + $0x28] sm:$0xfe]
        %v9400 = vld [vmem:[#allocation3 + $0x30] sm:$0xff]
        %v9401 = vld [vmem:[#allocation3 + $0x38] sm:$0xff]
        %v9402 = vld [vmem:[#allocation3 + $0x40] sm:$0xff]
        %v9403 = vld [vmem:[#allocation3 + $0x48] sm:$0xff]
        %v9404 = vld [vmem:[#allocation3 + $0x50] sm:$0xff]
        %v9405 = vld [vmem:[#allocation3 + $0x58] sm:$0xff]
        %v9406 = vld [vmem:[#allocation3 + $0x60] sm:$0xff]
        %v9407 = vld [vmem:[#allocation3 + $0x68] sm:$0xff]
        %v9408 = vld [vmem:[#allocation3 + $0x70] sm:$0xff]
        %v9409 = vld [vmem:[#allocation3 + $0x78] sm:$0xff]
        %v9410 = vld [vmem:[#allocation3 + $0x80] sm:$0xff]
        %v9411 = vld [vmem:[#allocation3 + $0x88] sm:$0xff]
        %v9412 = vld [vmem:[#allocation3 + $0x90] sm:$0xff]
        %v9413 = vld [vmem:[#allocation3 + $0x98] sm:$0xff]
        %v9414 = vld [vmem:[#allocation3 + $0xa0] sm:$0x1]
        %v9415 = vld [vmem:[#allocation3 + $0xa8] sm:$0x1]
        %v9416 = vpack.c.bf16 %v9400, %v9398
        %v9417 = vpack.c.bf16 %v9401, %v9399
        %v9418 = vpack.c.bf16 %v9404, %v9402
        %v9419 = vpack.c.bf16 %v9405, %v9403
        %v9420 = vpack.c.bf16 %v9408, %v9406
        %v9421 = vpack.c.bf16 %v9409, %v9407
        %v9422 = vpack.c.bf16 %v9412, %v9410
        %v9423 = vpack.c.bf16 %v9413, %v9411
        %v9424 = vpack.c.bf16 %v9414, %v9414
        %v9425 = vpack.c.bf16 %v9415, %v9415
        %s9426 = scalar_lea.vmem %s6, 480
        %v9427 = vld [vmem:[%s9426] sm:$0xf]
        %v9428 = vld [vmem:[%s9426 + $0x4] sm:$0xf]
        %v9429 = vld [vmem:[%s9426 + $0x8] sm:$0xf]
        %v9430 = vld [vmem:[%s9426 + $0xc] sm:$0xf]
        %v9431 = vld [vmem:[%s9426 + $0x10] sm:$0xf]
        %v9432 = vld [vmem:[%s9426 + $0x14] sm:$0xf]
        %v9433 = vld [vmem:[%s9426 + $0x18] sm:$0xf]
        %v9434 = vld [vmem:[%s9426 + $0x1c] sm:$0xf]
        %v9435 = vld [vmem:[%s9426 + $0x20] sm:$0xf]
        %v9436 = vld [vmem:[%s9426 + $0x24] sm:$0xf]
        %v9437 = vld [vmem:[%s9426 + $0x28] sm:$0xf]
        %v9438 = vld [vmem:[%s9426 + $0x2c] sm:$0xf]
        %v9439 = vld [vmem:[%s9426 + $0x30] sm:$0xf]
        %v9440 = vld [vmem:[%s9426 + $0x34] sm:$0xf]
        %v9441 = vld [vmem:[%s9426 + $0x38] sm:$0xf]
        %v9442 = vld [vmem:[%s9426 + $0x3c] sm:$0xf]
        %v9443 = vld [vmem:[%s9426 + $0x40] sm:$0xf]
        %v9444 = vld [vmem:[%s9426 + $0x44] sm:$0xf]
        %v9445 = vld [vmem:[%s9426 + $0x48] sm:$0xf]
        %v9446 = vld [vmem:[%s9426 + $0x4c] sm:$0xf]
        %v9447 = vld [vmem:[%s9426 + $0x50] sm:$0xf]
        %v9448 = vld [vmem:[%s9426 + $0x54] sm:$0xf]
        %v9449 = vld [vmem:[%s9426 + $0x58] sm:$0xf]
        %v9450 = vld [vmem:[%s9426 + $0x5c] sm:$0xf]
        %v9452 = vshrl.u32 %v9416, 16
        %v9454 = vshll.u32 %v9416, 16
        %v9456 = vrot.slane %v9454, 1
        %v9457 = vor.u32 %v9452, %v9456
        %v9459 = vshll.u32 %v9418, 16
        %v9461 = vrot.slane %v9459, 1
        %v9462 = vsel %vm4021, %v9457, %v9461
        %v9464 = vshrl.u32 %v9417, 16
        %v9466 = vshll.u32 %v9417, 16
        %v9468 = vrot.slane %v9466, 1
        %v9469 = vor.u32 %v9464, %v9468
        %v9471 = vshll.u32 %v9419, 16
        %v9473 = vrot.slane %v9471, 1
        %v9474 = vsel %vm4021, %v9469, %v9473
        %v9475 = vshrl.u32 %v9418, 16
        %v9477 = vor.u32 %v9475, %v9461
        %v9479 = vshll.u32 %v9420, 16
        %v9481 = vrot.slane %v9479, 1
        %v9482 = vsel %vm4021, %v9477, %v9481
        %v9483 = vshrl.u32 %v9419, 16
        %v9485 = vor.u32 %v9483, %v9473
        %v9487 = vshll.u32 %v9421, 16
        %v9489 = vrot.slane %v9487, 1
        %v9490 = vsel %vm4021, %v9485, %v9489
        %v9491 = vshrl.u32 %v9420, 16
        %v9493 = vor.u32 %v9491, %v9481
        %v9495 = vshll.u32 %v9422, 16
        %v9497 = vrot.slane %v9495, 1
        %v9498 = vsel %vm4021, %v9493, %v9497
        %v9499 = vshrl.u32 %v9421, 16
        %v9501 = vor.u32 %v9499, %v9489
        %v9503 = vshll.u32 %v9423, 16
        %v9505 = vrot.slane %v9503, 1
        %v9506 = vsel %vm4021, %v9501, %v9505
        %v9507 = vshrl.u32 %v9422, 16
        %v9509 = vor.u32 %v9507, %v9497
        %v9511 = vshll.u32 %v9424, 16
        %v9513 = vrot.slane %v9511, 1
        %v9514 = vsel %vm4021, %v9509, %v9513
        %v9515 = vshrl.u32 %v9423, 16
        %v9517 = vor.u32 %v9515, %v9505
        %v9519 = vshll.u32 %v9425, 16
        %v9521 = vrot.slane %v9519, 1
        %v9522 = vsel %vm4021, %v9517, %v9521
        %v9551 = vunpack.c.l.b16 %v9427
        %v9552 = vunpack.c.l.b16 %v9428
        %v9553 = vunpack.c.l.b16 %v9429
        %v9554 = vunpack.c.l.b16 %v9430
        %v9555 = vunpack.c.l.b16 %v9431
        %v9556 = vunpack.c.l.b16 %v9432
        %v9557 = vunpack.c.l.b16 %v9433
        %v9558 = vunpack.c.l.b16 %v9434
        %v9559 = vunpack.c.l.b16 %v9435
        %v9560 = vunpack.c.l.b16 %v9436
        %v9561 = vunpack.c.l.b16 %v9437
        %v9562 = vunpack.c.l.b16 %v9438
        %v9563 = vunpack.c.l.b16 %v9439
        %v9564 = vunpack.c.l.b16 %v9440
        %v9565 = vunpack.c.l.b16 %v9441
        %v9566 = vunpack.c.l.b16 %v9442
        %v9567 = vunpack.c.l.b16 %v9443
        %v9568 = vunpack.c.l.b16 %v9444
        %v9569 = vunpack.c.l.b16 %v9445
        %v9570 = vunpack.c.l.b16 %v9446
        %v9571 = vunpack.c.l.b16 %v9447
        %v9572 = vunpack.c.l.b16 %v9448
        %v9573 = vunpack.c.l.b16 %v9449
        %v9574 = vunpack.c.l.b16 %v9450
        %v9575 = vpack.c.b16 %v9552, %v9551
        %v9576 = vpack.c.b16 %v9554, %v9553
        %v9577 = vpack.c.b16 %v9556, %v9555
        %v9578 = vpack.c.b16 %v9558, %v9557
        %v9579 = vpack.c.b16 %v9560, %v9559
        %v9580 = vpack.c.b16 %v9562, %v9561
        %v9581 = vpack.c.b16 %v9564, %v9563
        %v9582 = vpack.c.b16 %v9566, %v9565
        %v9583 = vpack.c.b16 %v9568, %v9567
        %v9584 = vpack.c.b16 %v9570, %v9569
        %v9585 = vpack.c.b16 %v9572, %v9571
        %v9586 = vpack.c.b16 %v9574, %v9573
        %v9600 = vsel %vm2022, %v9474, 0
        %v9603 = vsel %vm2022, %v9490, 0
        %v9606 = vsel %vm2022, %v9506, 0
        %v9609 = vsel %vm2022, %v9522, 0
        %9611 = vmatpush.bf16.msra.mxu0 %v9582
        %9612 = vmatpush.bf16.msra.mxu0 %v9581
        %9613 = vmatpush.bf16.msra.mxu0 %v9580
        %9614 = vmatpush.bf16.msra.mxu0 %v9579
        %9615 = vmatpush.bf16.msra.mxu0 %v9578
        %9616 = vmatpush.bf16.msra.mxu0 %v9577
        %9617 = vmatpush.bf16.msra.mxu0 %v9576
        %9618 = vmatpush.bf16.msra.mxu0 %v9575
        %9619 = vmatmul.bf16.gmra.mxu0 %v9462
        %v9620 = vpop.f32.mrf.mxu0
        %v9621 = vadd.f32 0.0, %v9620
        %v9622 = vpop.f32.mrf.mxu0
        %v9623 = vadd.f32 0.0, %v9622
        %9624 = vmatmul.bf16.gmra.mxu0 %v9482
        %v9625 = vpop.f32.mrf.mxu0
        %v9626 = vadd.f32 0.0, %v9625
        %v9627 = vpop.f32.mrf.mxu0
        %v9628 = vadd.f32 0.0, %v9627
        %9629 = vmatmul.bf16.gmra.mxu0 %v9498
        %v9630 = vpop.f32.mrf.mxu0
        %v9631 = vadd.f32 0.0, %v9630
        %v9632 = vpop.f32.mrf.mxu0
        %v9633 = vadd.f32 0.0, %v9632
        %9634 = vmatmul.bf16.gmra.mxu0 %v9514
        %v9635 = vpop.f32.mrf.mxu0
        %v9636 = vadd.f32 0.0, %v9635
        %v9637 = vpop.f32.mrf.mxu0
        %v9638 = vadd.f32 0.0, %v9637
        %9639 = vdwg.mxu0
        %9640 = vmatpush.bf16.msra.mxu0 0
        %9641 = vmatpush.bf16.msra.mxu0 0
        %9642 = vmatpush.bf16.msra.mxu0 0
        %9643 = vmatpush.bf16.msra.mxu0 0
        %9644 = vmatpush.bf16.msra.mxu0 %v9586
        %9645 = vmatpush.bf16.msra.mxu0 %v9585
        %9646 = vmatpush.bf16.msra.mxu0 %v9584
        %9647 = vmatpush.bf16.msra.mxu0 %v9583
        %9648 = vmatmul.bf16.gmra.mxu0 %v9600
        %v9649 = vpop.f32.mrf.mxu0
        %v9650 = vadd.f32 %v9621, %v9649
        %v9651 = vpop.f32.mrf.mxu0
        %v9652 = vadd.f32 %v9623, %v9651
        %9653 = vmatmul.bf16.gmra.mxu0 %v9603
        %v9654 = vpop.f32.mrf.mxu0
        %v9655 = vadd.f32 %v9626, %v9654
        %v9656 = vpop.f32.mrf.mxu0
        %v9657 = vadd.f32 %v9628, %v9656
        %9658 = vmatmul.bf16.gmra.mxu0 %v9606
        %v9659 = vpop.f32.mrf.mxu0
        %v9660 = vadd.f32 %v9631, %v9659
        %v9661 = vpop.f32.mrf.mxu0
        %v9662 = vadd.f32 %v9633, %v9661
        %9663 = vmatmul.bf16.gmra.mxu0 %v9609
        %v9664 = vpop.f32.mrf.mxu0
        %v9665 = vadd.f32 %v9636, %v9664
        %v9666 = vpop.f32.mrf.mxu0
        %v9667 = vadd.f32 %v9638, %v9666
        %9668 = vdwg.mxu0
        %v9669 = vsel %vm4564, %v9650, 0.0
        %v9670 = vsel %vm4565, %v9652, 0.0
        %v9671 = vsel %vm4566, %v9655, 0.0
        %v9672 = vsel %vm4567, %v9657, 0.0
        %v9673 = vsel %vm4568, %v9660, 0.0
        %v9674 = vsel %vm4569, %v9662, 0.0
        %v9675 = vsel %vm4570, %v9665, 0.0
        %v9676 = vsel %vm4571, %v9667, 0.0
        %v9677 = vadd.f32 %v9390, %v9669
        %v9678 = vadd.f32 %v9391, %v9670
        %v9679 = vadd.f32 %v9392, %v9671
        %v9680 = vadd.f32 %v9393, %v9672
        %v9681 = vadd.f32 %v9394, %v9673
        %v9682 = vadd.f32 %v9395, %v9674
        %v9683 = vadd.f32 %v9396, %v9675
        %v9684 = vadd.f32 %v9397, %v9676
        %v9685 = vld [vmem:[#allocation3 + $0x20] sm:$0x80]
        %v9686 = vld [vmem:[#allocation3 + $0x28] sm:$0x80]
        %v9687 = vld [vmem:[#allocation3 + $0xa0] sm:$0x7f]
        %v9688 = vld [vmem:[#allocation3 + $0xa8] sm:$0x7f]
        %v9689 = vpack.c.bf16 %v9400, %v9685
        %v9690 = vpack.c.bf16 %v9401, %v9686
        %v9691 = vpack.c.bf16 %v9687, %v9687
        %v9692 = vpack.c.bf16 %v9688, %v9688
        %s9693 = scalar_lea.vmem %s6, 576
        %v9694 = vld [vmem:[%s9693] sm:$0xf]
        %v9695 = vld [vmem:[%s9693 + $0x4] sm:$0xf]
        %v9696 = vld [vmem:[%s9693 + $0x8] sm:$0xf]
        %v9697 = vld [vmem:[%s9693 + $0xc] sm:$0xf]
        %v9698 = vld [vmem:[%s9693 + $0x10] sm:$0xf]
        %v9699 = vld [vmem:[%s9693 + $0x14] sm:$0xf]
        %v9700 = vld [vmem:[%s9693 + $0x18] sm:$0xf]
        %v9701 = vld [vmem:[%s9693 + $0x1c] sm:$0xf]
        %v9702 = vld [vmem:[%s9693 + $0x20] sm:$0xf]
        %v9703 = vld [vmem:[%s9693 + $0x24] sm:$0xf]
        %v9704 = vld [vmem:[%s9693 + $0x28] sm:$0xf]
        %v9705 = vld [vmem:[%s9693 + $0x2c] sm:$0xf]
        %v9706 = vld [vmem:[%s9693 + $0x30] sm:$0xf]
        %v9707 = vld [vmem:[%s9693 + $0x34] sm:$0xf]
        %v9708 = vld [vmem:[%s9693 + $0x38] sm:$0xf]
        %v9709 = vld [vmem:[%s9693 + $0x3c] sm:$0xf]
        %v9710 = vld [vmem:[%s9693 + $0x40] sm:$0xf]
        %v9711 = vld [vmem:[%s9693 + $0x44] sm:$0xf]
        %v9712 = vld [vmem:[%s9693 + $0x48] sm:$0xf]
        %v9713 = vld [vmem:[%s9693 + $0x4c] sm:$0xf]
        %v9714 = vld [vmem:[%s9693 + $0x50] sm:$0xf]
        %v9715 = vld [vmem:[%s9693 + $0x54] sm:$0xf]
        %v9716 = vld [vmem:[%s9693 + $0x58] sm:$0xf]
        %v9717 = vld [vmem:[%s9693 + $0x5c] sm:$0xf]
        %v9719 = vshrl.u32 %v9689, 16
        %v9721 = vrot.slane %v9719, 3
        %v9722 = vshll.u32 %v9689, 16
        %v9724 = vrot.slane %v9722, 4
        %v9725 = vor.u32 %v9721, %v9724
        %v9726 = vrot.slane %v9475, 3
        %v9727 = vrot.slane %v9459, 4
        %v9728 = vor.u32 %v9726, %v9727
        %v9729 = vsel %vm2845, %v9725, %v9728
        %v9731 = vshrl.u32 %v9690, 16
        %v9733 = vrot.slane %v9731, 3
        %v9734 = vshll.u32 %v9690, 16
        %v9736 = vrot.slane %v9734, 4
        %v9737 = vor.u32 %v9733, %v9736
        %v9738 = vrot.slane %v9483, 3
        %v9739 = vrot.slane %v9471, 4
        %v9740 = vor.u32 %v9738, %v9739
        %v9741 = vsel %vm2845, %v9737, %v9740
        %v9742 = vrot.slane %v9491, 3
        %v9743 = vrot.slane %v9479, 4
        %v9744 = vor.u32 %v9742, %v9743
        %v9745 = vsel %vm2845, %v9728, %v9744
        %v9746 = vrot.slane %v9499, 3
        %v9747 = vrot.slane %v9487, 4
        %v9748 = vor.u32 %v9746, %v9747
        %v9749 = vsel %vm2845, %v9740, %v9748
        %v9750 = vrot.slane %v9507, 3
        %v9751 = vrot.slane %v9495, 4
        %v9752 = vor.u32 %v9750, %v9751
        %v9753 = vsel %vm2845, %v9744, %v9752
        %v9754 = vrot.slane %v9515, 3
        %v9755 = vrot.slane %v9503, 4
        %v9756 = vor.u32 %v9754, %v9755
        %v9757 = vsel %vm2845, %v9748, %v9756
        %v9759 = vshrl.u32 %v9691, 16
        %v9761 = vrot.slane %v9759, 3
        %v9762 = vshll.u32 %v9691, 16
        %v9764 = vrot.slane %v9762, 4
        %v9765 = vor.u32 %v9761, %v9764
        %v9766 = vsel %vm2845, %v9752, %v9765
        %v9768 = vshrl.u32 %v9692, 16
        %v9770 = vrot.slane %v9768, 3
        %v9771 = vshll.u32 %v9692, 16
        %v9773 = vrot.slane %v9771, 4
        %v9774 = vor.u32 %v9770, %v9773
        %v9775 = vsel %vm2845, %v9756, %v9774
        %v9804 = vunpack.c.l.b16 %v9694
        %v9805 = vunpack.c.l.b16 %v9695
        %v9806 = vunpack.c.l.b16 %v9696
        %v9807 = vunpack.c.l.b16 %v9697
        %v9808 = vunpack.c.l.b16 %v9698
        %v9809 = vunpack.c.l.b16 %v9699
        %v9810 = vunpack.c.l.b16 %v9700
        %v9811 = vunpack.c.l.b16 %v9701
        %v9812 = vunpack.c.l.b16 %v9702
        %v9813 = vunpack.c.l.b16 %v9703
        %v9814 = vunpack.c.l.b16 %v9704
        %v9815 = vunpack.c.l.b16 %v9705
        %v9816 = vunpack.c.l.b16 %v9706
        %v9817 = vunpack.c.l.b16 %v9707
        %v9818 = vunpack.c.l.b16 %v9708
        %v9819 = vunpack.c.l.b16 %v9709
        %v9820 = vunpack.c.l.b16 %v9710
        %v9821 = vunpack.c.l.b16 %v9711
        %v9822 = vunpack.c.l.b16 %v9712
        %v9823 = vunpack.c.l.b16 %v9713
        %v9824 = vunpack.c.l.b16 %v9714
        %v9825 = vunpack.c.l.b16 %v9715
        %v9826 = vunpack.c.l.b16 %v9716
        %v9827 = vunpack.c.l.b16 %v9717
        %v9828 = vpack.c.b16 %v9805, %v9804
        %v9829 = vpack.c.b16 %v9807, %v9806
        %v9830 = vpack.c.b16 %v9809, %v9808
        %v9831 = vpack.c.b16 %v9811, %v9810
        %v9832 = vpack.c.b16 %v9813, %v9812
        %v9833 = vpack.c.b16 %v9815, %v9814
        %v9834 = vpack.c.b16 %v9817, %v9816
        %v9835 = vpack.c.b16 %v9819, %v9818
        %v9836 = vpack.c.b16 %v9821, %v9820
        %v9837 = vpack.c.b16 %v9823, %v9822
        %v9838 = vpack.c.b16 %v9825, %v9824
        %v9839 = vpack.c.b16 %v9827, %v9826
        %v9853 = vsel %vm2022, %v9741, 0
        %v9856 = vsel %vm2022, %v9749, 0
        %v9859 = vsel %vm2022, %v9757, 0
        %v9862 = vsel %vm2022, %v9775, 0
        %9864 = vmatpush.bf16.msra.mxu0 %v9835
        %9865 = vmatpush.bf16.msra.mxu0 %v9834
        %9866 = vmatpush.bf16.msra.mxu0 %v9833
        %9867 = vmatpush.bf16.msra.mxu0 %v9832
        %9868 = vmatpush.bf16.msra.mxu0 %v9831
        %9869 = vmatpush.bf16.msra.mxu0 %v9830
        %9870 = vmatpush.bf16.msra.mxu0 %v9829
        %9871 = vmatpush.bf16.msra.mxu0 %v9828
        %9872 = vmatmul.bf16.gmra.mxu0 %v9729
        %v9873 = vpop.f32.mrf.mxu0
        %v9874 = vadd.f32 0.0, %v9873
        %v9875 = vpop.f32.mrf.mxu0
        %v9876 = vadd.f32 0.0, %v9875
        %9877 = vmatmul.bf16.gmra.mxu0 %v9745
        %v9878 = vpop.f32.mrf.mxu0
        %v9879 = vadd.f32 0.0, %v9878
        %v9880 = vpop.f32.mrf.mxu0
        %v9881 = vadd.f32 0.0, %v9880
        %9882 = vmatmul.bf16.gmra.mxu0 %v9753
        %v9883 = vpop.f32.mrf.mxu0
        %v9884 = vadd.f32 0.0, %v9883
        %v9885 = vpop.f32.mrf.mxu0
        %v9886 = vadd.f32 0.0, %v9885
        %9887 = vmatmul.bf16.gmra.mxu0 %v9766
        %v9888 = vpop.f32.mrf.mxu0
        %v9889 = vadd.f32 0.0, %v9888
        %v9890 = vpop.f32.mrf.mxu0
        %v9891 = vadd.f32 0.0, %v9890
        %9892 = vdwg.mxu0
        %9893 = vmatpush.bf16.msra.mxu0 0
        %9894 = vmatpush.bf16.msra.mxu0 0
        %9895 = vmatpush.bf16.msra.mxu0 0
        %9896 = vmatpush.bf16.msra.mxu0 0
        %9897 = vmatpush.bf16.msra.mxu0 %v9839
        %9898 = vmatpush.bf16.msra.mxu0 %v9838
        %9899 = vmatpush.bf16.msra.mxu0 %v9837
        %9900 = vmatpush.bf16.msra.mxu0 %v9836
        %9901 = vmatmul.bf16.gmra.mxu0 %v9853
        %v9902 = vpop.f32.mrf.mxu0
        %v9903 = vadd.f32 %v9874, %v9902
        %v9904 = vpop.f32.mrf.mxu0
        %v9905 = vadd.f32 %v9876, %v9904
        %9906 = vmatmul.bf16.gmra.mxu0 %v9856
        %v9907 = vpop.f32.mrf.mxu0
        %v9908 = vadd.f32 %v9879, %v9907
        %v9909 = vpop.f32.mrf.mxu0
        %v9910 = vadd.f32 %v9881, %v9909
        %9911 = vmatmul.bf16.gmra.mxu0 %v9859
        %v9912 = vpop.f32.mrf.mxu0
        %v9913 = vadd.f32 %v9884, %v9912
        %v9914 = vpop.f32.mrf.mxu0
        %v9915 = vadd.f32 %v9886, %v9914
        %9916 = vmatmul.bf16.gmra.mxu0 %v9862
        %v9917 = vpop.f32.mrf.mxu0
        %v9918 = vadd.f32 %v9889, %v9917
        %v9919 = vpop.f32.mrf.mxu0
        %v9920 = vadd.f32 %v9891, %v9919
        %9921 = vdwg.mxu0
        %v9922 = vsel %vm3412, %v9903, 0.0
        %v9923 = vsel %vm3413, %v9905, 0.0
        %v9924 = vsel %vm3414, %v9908, 0.0
        %v9925 = vsel %vm3415, %v9910, 0.0
        %v9926 = vsel %vm3416, %v9913, 0.0
        %v9927 = vsel %vm3417, %v9915, 0.0
        %v9928 = vsel %vm3418, %v9918, 0.0
        %v9929 = vsel %vm3419, %v9920, 0.0
        %v9930 = vadd.f32 %v9677, %v9922
        %v9931 = vadd.f32 %v9678, %v9923
        %v9932 = vadd.f32 %v9679, %v9924
        %v9933 = vadd.f32 %v9680, %v9925
        %v9934 = vadd.f32 %v9681, %v9926
        %v9935 = vadd.f32 %v9682, %v9927
        %v9936 = vadd.f32 %v9683, %v9928
        %v9937 = vadd.f32 %v9684, %v9929
        %v9938 = vld [vmem:[#allocation3 + $0xa0] sm:$0xff]
        %v9939 = vld [vmem:[#allocation3 + $0xa8] sm:$0xff]
        %v9940 = vpack.c.bf16 %v9402, %v9400
        %v9941 = vpack.c.bf16 %v9403, %v9401
        %v9942 = vpack.c.bf16 %v9406, %v9404
        %v9943 = vpack.c.bf16 %v9407, %v9405
        %v9944 = vpack.c.bf16 %v9410, %v9408
        %v9945 = vpack.c.bf16 %v9411, %v9409
        %v9946 = vpack.c.bf16 %v9938, %v9412
        %v9947 = vpack.c.bf16 %v9939, %v9413
        %s9948 = scalar_lea.vmem %s6, 672
        %v9949 = vld [vmem:[%s9948] sm:$0xf]
        %v9950 = vld [vmem:[%s9948 + $0x4] sm:$0xf]
        %v9951 = vld [vmem:[%s9948 + $0x8] sm:$0xf]
        %v9952 = vld [vmem:[%s9948 + $0xc] sm:$0xf]
        %v9953 = vld [vmem:[%s9948 + $0x10] sm:$0xf]
        %v9954 = vld [vmem:[%s9948 + $0x14] sm:$0xf]
        %v9955 = vld [vmem:[%s9948 + $0x18] sm:$0xf]
        %v9956 = vld [vmem:[%s9948 + $0x1c] sm:$0xf]
        %v9957 = vld [vmem:[%s9948 + $0x20] sm:$0xf]
        %v9958 = vld [vmem:[%s9948 + $0x24] sm:$0xf]
        %v9959 = vld [vmem:[%s9948 + $0x28] sm:$0xf]
        %v9960 = vld [vmem:[%s9948 + $0x2c] sm:$0xf]
        %v9961 = vld [vmem:[%s9948 + $0x30] sm:$0xf]
        %v9962 = vld [vmem:[%s9948 + $0x34] sm:$0xf]
        %v9963 = vld [vmem:[%s9948 + $0x38] sm:$0xf]
        %v9964 = vld [vmem:[%s9948 + $0x3c] sm:$0xf]
        %v9965 = vld [vmem:[%s9948 + $0x40] sm:$0xf]
        %v9966 = vld [vmem:[%s9948 + $0x44] sm:$0xf]
        %v9967 = vld [vmem:[%s9948 + $0x48] sm:$0xf]
        %v9968 = vld [vmem:[%s9948 + $0x4c] sm:$0xf]
        %v9969 = vld [vmem:[%s9948 + $0x50] sm:$0xf]
        %v9970 = vld [vmem:[%s9948 + $0x54] sm:$0xf]
        %v9971 = vld [vmem:[%s9948 + $0x58] sm:$0xf]
        %v9972 = vld [vmem:[%s9948 + $0x5c] sm:$0xf]
        %v9997 = vunpack.c.l.b16 %v9949
        %v9998 = vunpack.c.l.b16 %v9950
        %v9999 = vunpack.c.l.b16 %v9951
        %v10000 = vunpack.c.l.b16 %v9952
        %v10001 = vunpack.c.l.b16 %v9953
        %v10002 = vunpack.c.l.b16 %v9954
        %v10003 = vunpack.c.l.b16 %v9955
        %v10004 = vunpack.c.l.b16 %v9956
        %v10005 = vunpack.c.l.b16 %v9957
        %v10006 = vunpack.c.l.b16 %v9958
        %v10007 = vunpack.c.l.b16 %v9959
        %v10008 = vunpack.c.l.b16 %v9960
        %v10009 = vunpack.c.l.b16 %v9961
        %v10010 = vunpack.c.l.b16 %v9962
        %v10011 = vunpack.c.l.b16 %v9963
        %v10012 = vunpack.c.l.b16 %v9964
        %v10013 = vunpack.c.l.b16 %v9965
        %v10014 = vunpack.c.l.b16 %v9966
        %v10015 = vunpack.c.l.b16 %v9967
        %v10016 = vunpack.c.l.b16 %v9968
        %v10017 = vunpack.c.l.b16 %v9969
        %v10018 = vunpack.c.l.b16 %v9970
        %v10019 = vunpack.c.l.b16 %v9971
        %v10020 = vunpack.c.l.b16 %v9972
        %v10021 = vpack.c.b16 %v9998, %v9997
        %v10022 = vpack.c.b16 %v10000, %v9999
        %v10023 = vpack.c.b16 %v10002, %v10001
        %v10024 = vpack.c.b16 %v10004, %v10003
        %v10025 = vpack.c.b16 %v10006, %v10005
        %v10026 = vpack.c.b16 %v10008, %v10007
        %v10027 = vpack.c.b16 %v10010, %v10009
        %v10028 = vpack.c.b16 %v10012, %v10011
        %v10029 = vpack.c.b16 %v10014, %v10013
        %v10030 = vpack.c.b16 %v10016, %v10015
        %v10031 = vpack.c.b16 %v10018, %v10017
        %v10032 = vpack.c.b16 %v10020, %v10019
        %v10046 = vsel %vm2022, %v9941, 0
        %v10049 = vsel %vm2022, %v9943, 0
        %v10052 = vsel %vm2022, %v9945, 0
        %v10055 = vsel %vm2022, %v9947, 0
        %10057 = vmatpush.bf16.msra.mxu0 %v10028
        %10058 = vmatpush.bf16.msra.mxu0 %v10027
        %10059 = vmatpush.bf16.msra.mxu0 %v10026
        %10060 = vmatpush.bf16.msra.mxu0 %v10025
        %10061 = vmatpush.bf16.msra.mxu0 %v10024
        %10062 = vmatpush.bf16.msra.mxu0 %v10023
        %10063 = vmatpush.bf16.msra.mxu0 %v10022
        %10064 = vmatpush.bf16.msra.mxu0 %v10021
        %10065 = vmatmul.bf16.gmra.mxu0 %v9940
        %v10066 = vpop.f32.mrf.mxu0
        %v10067 = vadd.f32 0.0, %v10066
        %v10068 = vpop.f32.mrf.mxu0
        %v10069 = vadd.f32 0.0, %v10068
        %10070 = vmatmul.bf16.gmra.mxu0 %v9942
        %v10071 = vpop.f32.mrf.mxu0
        %v10072 = vadd.f32 0.0, %v10071
        %v10073 = vpop.f32.mrf.mxu0
        %v10074 = vadd.f32 0.0, %v10073
        %10075 = vmatmul.bf16.gmra.mxu0 %v9944
        %v10076 = vpop.f32.mrf.mxu0
        %v10077 = vadd.f32 0.0, %v10076
        %v10078 = vpop.f32.mrf.mxu0
        %v10079 = vadd.f32 0.0, %v10078
        %10080 = vmatmul.bf16.gmra.mxu0 %v9946
        %v10081 = vpop.f32.mrf.mxu0
        %v10082 = vadd.f32 0.0, %v10081
        %v10083 = vpop.f32.mrf.mxu0
        %v10084 = vadd.f32 0.0, %v10083
        %10085 = vdwg.mxu0
        %10086 = vmatpush.bf16.msra.mxu0 0
        %10087 = vmatpush.bf16.msra.mxu0 0
        %10088 = vmatpush.bf16.msra.mxu0 0
        %10089 = vmatpush.bf16.msra.mxu0 0
        %10090 = vmatpush.bf16.msra.mxu0 %v10032
        %10091 = vmatpush.bf16.msra.mxu0 %v10031
        %10092 = vmatpush.bf16.msra.mxu0 %v10030
        %10093 = vmatpush.bf16.msra.mxu0 %v10029
        %10094 = vmatmul.bf16.gmra.mxu0 %v10046
        %v10095 = vpop.f32.mrf.mxu0
        %v10096 = vadd.f32 %v10067, %v10095
        %v10097 = vpop.f32.mrf.mxu0
        %v10098 = vadd.f32 %v10069, %v10097
        %10099 = vmatmul.bf16.gmra.mxu0 %v10049
        %v10100 = vpop.f32.mrf.mxu0
        %v10101 = vadd.f32 %v10072, %v10100
        %v10102 = vpop.f32.mrf.mxu0
        %v10103 = vadd.f32 %v10074, %v10102
        %10104 = vmatmul.bf16.gmra.mxu0 %v10052
        %v10105 = vpop.f32.mrf.mxu0
        %v10106 = vadd.f32 %v10077, %v10105
        %v10107 = vpop.f32.mrf.mxu0
        %v10108 = vadd.f32 %v10079, %v10107
        %10109 = vmatmul.bf16.gmra.mxu0 %v10055
        %v10110 = vpop.f32.mrf.mxu0
        %v10111 = vadd.f32 %v10082, %v10110
        %v10112 = vpop.f32.mrf.mxu0
        %v10113 = vadd.f32 %v10084, %v10112
        %10114 = vdwg.mxu0
        %v10115 = vadd.f32 %v9930, %v10096
        %v10116 = vadd.f32 %v9931, %v10098
        %v10117 = vadd.f32 %v9932, %v10101
        %v10118 = vadd.f32 %v9933, %v10103
        %v10119 = vadd.f32 %v9934, %v10106
        %v10120 = vadd.f32 %v9935, %v10108
        %v10121 = vadd.f32 %v9936, %v10111
        %v10122 = vadd.f32 %v9937, %v10113
        %v10123 = vld [vmem:[#allocation3 + $0x30] sm:$0xfe]
        %v10124 = vld [vmem:[#allocation3 + $0x38] sm:$0xfe]
        %v10125 = vld [vmem:[#allocation3 + $0x40] sm:$0xff]
        %v10126 = vld [vmem:[#allocation3 + $0x48] sm:$0xff]
        %v10127 = vld [vmem:[#allocation3 + $0x50] sm:$0xff]
        %v10128 = vld [vmem:[#allocation3 + $0x58] sm:$0xff]
        %v10129 = vld [vmem:[#allocation3 + $0x60] sm:$0xff]
        %v10130 = vld [vmem:[#allocation3 + $0x68] sm:$0xff]
        %v10131 = vld [vmem:[#allocation3 + $0x70] sm:$0xff]
        %v10132 = vld [vmem:[#allocation3 + $0x78] sm:$0xff]
        %v10133 = vld [vmem:[#allocation3 + $0x80] sm:$0xff]
        %v10134 = vld [vmem:[#allocation3 + $0x88] sm:$0xff]
        %v10135 = vld [vmem:[#allocation3 + $0x90] sm:$0xff]
        %v10136 = vld [vmem:[#allocation3 + $0x98] sm:$0xff]
        %v10137 = vld [vmem:[#allocation3 + $0xa0] sm:$0xff]
        %v10138 = vld [vmem:[#allocation3 + $0xa8] sm:$0xff]
        %v10139 = vld [vmem:[#allocation3 + $0xb0] sm:$0x1]
        %v10140 = vld [vmem:[#allocation3 + $0xb8] sm:$0x1]
        %v10141 = vpack.c.bf16 %v10125, %v10123
        %v10142 = vpack.c.bf16 %v10126, %v10124
        %v10143 = vpack.c.bf16 %v10129, %v10127
        %v10144 = vpack.c.bf16 %v10130, %v10128
        %v10145 = vpack.c.bf16 %v10133, %v10131
        %v10146 = vpack.c.bf16 %v10134, %v10132
        %v10147 = vpack.c.bf16 %v10137, %v10135
        %v10148 = vpack.c.bf16 %v10138, %v10136
        %v10149 = vpack.c.bf16 %v10139, %v10139
        %v10150 = vpack.c.bf16 %v10140, %v10140
        %s10151 = scalar_lea.vmem %s6, 768
        %v10152 = vld [vmem:[%s10151] sm:$0xf]
        %v10153 = vld [vmem:[%s10151 + $0x4] sm:$0xf]
        %v10154 = vld [vmem:[%s10151 + $0x8] sm:$0xf]
        %v10155 = vld [vmem:[%s10151 + $0xc] sm:$0xf]
        %v10156 = vld [vmem:[%s10151 + $0x10] sm:$0xf]
        %v10157 = vld [vmem:[%s10151 + $0x14] sm:$0xf]
        %v10158 = vld [vmem:[%s10151 + $0x18] sm:$0xf]
        %v10159 = vld [vmem:[%s10151 + $0x1c] sm:$0xf]
        %v10160 = vld [vmem:[%s10151 + $0x20] sm:$0xf]
        %v10161 = vld [vmem:[%s10151 + $0x24] sm:$0xf]
        %v10162 = vld [vmem:[%s10151 + $0x28] sm:$0xf]
        %v10163 = vld [vmem:[%s10151 + $0x2c] sm:$0xf]
        %v10164 = vld [vmem:[%s10151 + $0x30] sm:$0xf]
        %v10165 = vld [vmem:[%s10151 + $0x34] sm:$0xf]
        %v10166 = vld [vmem:[%s10151 + $0x38] sm:$0xf]
        %v10167 = vld [vmem:[%s10151 + $0x3c] sm:$0xf]
        %v10168 = vld [vmem:[%s10151 + $0x40] sm:$0xf]
        %v10169 = vld [vmem:[%s10151 + $0x44] sm:$0xf]
        %v10170 = vld [vmem:[%s10151 + $0x48] sm:$0xf]
        %v10171 = vld [vmem:[%s10151 + $0x4c] sm:$0xf]
        %v10172 = vld [vmem:[%s10151 + $0x50] sm:$0xf]
        %v10173 = vld [vmem:[%s10151 + $0x54] sm:$0xf]
        %v10174 = vld [vmem:[%s10151 + $0x58] sm:$0xf]
        %v10175 = vld [vmem:[%s10151 + $0x5c] sm:$0xf]
        %v10177 = vshrl.u32 %v10141, 16
        %v10179 = vshll.u32 %v10141, 16
        %v10181 = vrot.slane %v10179, 1
        %v10182 = vor.u32 %v10177, %v10181
        %v10184 = vshll.u32 %v10143, 16
        %v10186 = vrot.slane %v10184, 1
        %v10187 = vsel %vm4021, %v10182, %v10186
        %v10189 = vshrl.u32 %v10142, 16
        %v10191 = vshll.u32 %v10142, 16
        %v10193 = vrot.slane %v10191, 1
        %v10194 = vor.u32 %v10189, %v10193
        %v10196 = vshll.u32 %v10144, 16
        %v10198 = vrot.slane %v10196, 1
        %v10199 = vsel %vm4021, %v10194, %v10198
        %v10200 = vshrl.u32 %v10143, 16
        %v10202 = vor.u32 %v10200, %v10186
        %v10204 = vshll.u32 %v10145, 16
        %v10206 = vrot.slane %v10204, 1
        %v10207 = vsel %vm4021, %v10202, %v10206
        %v10208 = vshrl.u32 %v10144, 16
        %v10210 = vor.u32 %v10208, %v10198
        %v10212 = vshll.u32 %v10146, 16
        %v10214 = vrot.slane %v10212, 1
        %v10215 = vsel %vm4021, %v10210, %v10214
        %v10216 = vshrl.u32 %v10145, 16
        %v10218 = vor.u32 %v10216, %v10206
        %v10220 = vshll.u32 %v10147, 16
        %v10222 = vrot.slane %v10220, 1
        %v10223 = vsel %vm4021, %v10218, %v10222
        %v10224 = vshrl.u32 %v10146, 16
        %v10226 = vor.u32 %v10224, %v10214
        %v10228 = vshll.u32 %v10148, 16
        %v10230 = vrot.slane %v10228, 1
        %v10231 = vsel %vm4021, %v10226, %v10230
        %v10232 = vshrl.u32 %v10147, 16
        %v10234 = vor.u32 %v10232, %v10222
        %v10236 = vshll.u32 %v10149, 16
        %v10238 = vrot.slane %v10236, 1
        %v10239 = vsel %vm4021, %v10234, %v10238
        %v10240 = vshrl.u32 %v10148, 16
        %v10242 = vor.u32 %v10240, %v10230
        %v10244 = vshll.u32 %v10150, 16
        %v10246 = vrot.slane %v10244, 1
        %v10247 = vsel %vm4021, %v10242, %v10246
        %v10276 = vunpack.c.l.b16 %v10152
        %v10277 = vunpack.c.l.b16 %v10153
        %v10278 = vunpack.c.l.b16 %v10154
        %v10279 = vunpack.c.l.b16 %v10155
        %v10280 = vunpack.c.l.b16 %v10156
        %v10281 = vunpack.c.l.b16 %v10157
        %v10282 = vunpack.c.l.b16 %v10158
        %v10283 = vunpack.c.l.b16 %v10159
        %v10284 = vunpack.c.l.b16 %v10160
        %v10285 = vunpack.c.l.b16 %v10161
        %v10286 = vunpack.c.l.b16 %v10162
        %v10287 = vunpack.c.l.b16 %v10163
        %v10288 = vunpack.c.l.b16 %v10164
        %v10289 = vunpack.c.l.b16 %v10165
        %v10290 = vunpack.c.l.b16 %v10166
        %v10291 = vunpack.c.l.b16 %v10167
        %v10292 = vunpack.c.l.b16 %v10168
        %v10293 = vunpack.c.l.b16 %v10169
        %v10294 = vunpack.c.l.b16 %v10170
        %v10295 = vunpack.c.l.b16 %v10171
        %v10296 = vunpack.c.l.b16 %v10172
        %v10297 = vunpack.c.l.b16 %v10173
        %v10298 = vunpack.c.l.b16 %v10174
        %v10299 = vunpack.c.l.b16 %v10175
        %v10300 = vpack.c.b16 %v10277, %v10276
        %v10301 = vpack.c.b16 %v10279, %v10278
        %v10302 = vpack.c.b16 %v10281, %v10280
        %v10303 = vpack.c.b16 %v10283, %v10282
        %v10304 = vpack.c.b16 %v10285, %v10284
        %v10305 = vpack.c.b16 %v10287, %v10286
        %v10306 = vpack.c.b16 %v10289, %v10288
        %v10307 = vpack.c.b16 %v10291, %v10290
        %v10308 = vpack.c.b16 %v10293, %v10292
        %v10309 = vpack.c.b16 %v10295, %v10294
        %v10310 = vpack.c.b16 %v10297, %v10296
        %v10311 = vpack.c.b16 %v10299, %v10298
        %v10325 = vsel %vm2022, %v10199, 0
        %v10328 = vsel %vm2022, %v10215, 0
        %v10331 = vsel %vm2022, %v10231, 0
        %v10334 = vsel %vm2022, %v10247, 0
        %10336 = vmatpush.bf16.msra.mxu0 %v10307
        %10337 = vmatpush.bf16.msra.mxu0 %v10306
        %10338 = vmatpush.bf16.msra.mxu0 %v10305
        %10339 = vmatpush.bf16.msra.mxu0 %v10304
        %10340 = vmatpush.bf16.msra.mxu0 %v10303
        %10341 = vmatpush.bf16.msra.mxu0 %v10302
        %10342 = vmatpush.bf16.msra.mxu0 %v10301
        %10343 = vmatpush.bf16.msra.mxu0 %v10300
        %10344 = vmatmul.bf16.gmra.mxu0 %v10187
        %v10345 = vpop.f32.mrf.mxu0
        %v10346 = vadd.f32 0.0, %v10345
        %v10347 = vpop.f32.mrf.mxu0
        %v10348 = vadd.f32 0.0, %v10347
        %10349 = vmatmul.bf16.gmra.mxu0 %v10207
        %v10350 = vpop.f32.mrf.mxu0
        %v10351 = vadd.f32 0.0, %v10350
        %v10352 = vpop.f32.mrf.mxu0
        %v10353 = vadd.f32 0.0, %v10352
        %10354 = vmatmul.bf16.gmra.mxu0 %v10223
        %v10355 = vpop.f32.mrf.mxu0
        %v10356 = vadd.f32 0.0, %v10355
        %v10357 = vpop.f32.mrf.mxu0
        %v10358 = vadd.f32 0.0, %v10357
        %10359 = vmatmul.bf16.gmra.mxu0 %v10239
        %v10360 = vpop.f32.mrf.mxu0
        %v10361 = vadd.f32 0.0, %v10360
        %v10362 = vpop.f32.mrf.mxu0
        %v10363 = vadd.f32 0.0, %v10362
        %10364 = vdwg.mxu0
        %10365 = vmatpush.bf16.msra.mxu0 0
        %10366 = vmatpush.bf16.msra.mxu0 0
        %10367 = vmatpush.bf16.msra.mxu0 0
        %10368 = vmatpush.bf16.msra.mxu0 0
        %10369 = vmatpush.bf16.msra.mxu0 %v10311
        %10370 = vmatpush.bf16.msra.mxu0 %v10310
        %10371 = vmatpush.bf16.msra.mxu0 %v10309
        %10372 = vmatpush.bf16.msra.mxu0 %v10308
        %10373 = vmatmul.bf16.gmra.mxu0 %v10325
        %v10374 = vpop.f32.mrf.mxu0
        %v10375 = vadd.f32 %v10346, %v10374
        %v10376 = vpop.f32.mrf.mxu0
        %v10377 = vadd.f32 %v10348, %v10376
        %10378 = vmatmul.bf16.gmra.mxu0 %v10328
        %v10379 = vpop.f32.mrf.mxu0
        %v10380 = vadd.f32 %v10351, %v10379
        %v10381 = vpop.f32.mrf.mxu0
        %v10382 = vadd.f32 %v10353, %v10381
        %10383 = vmatmul.bf16.gmra.mxu0 %v10331
        %v10384 = vpop.f32.mrf.mxu0
        %v10385 = vadd.f32 %v10356, %v10384
        %v10386 = vpop.f32.mrf.mxu0
        %v10387 = vadd.f32 %v10358, %v10386
        %10388 = vmatmul.bf16.gmra.mxu0 %v10334
        %v10389 = vpop.f32.mrf.mxu0
        %v10390 = vadd.f32 %v10361, %v10389
        %v10391 = vpop.f32.mrf.mxu0
        %v10392 = vadd.f32 %v10363, %v10391
        %10393 = vdwg.mxu0
        %v10394 = vsel %vm4564, %v10375, 0.0
        %v10395 = vsel %vm4565, %v10377, 0.0
        %v10396 = vsel %vm4566, %v10380, 0.0
        %v10397 = vsel %vm4567, %v10382, 0.0
        %v10398 = vsel %vm4568, %v10385, 0.0
        %v10399 = vsel %vm4569, %v10387, 0.0
        %v10400 = vsel %vm4570, %v10390, 0.0
        %v10401 = vsel %vm4571, %v10392, 0.0
        %v10402 = vadd.f32 %v10115, %v10394
        %v10403 = vadd.f32 %v10116, %v10395
        %v10404 = vadd.f32 %v10117, %v10396
        %v10405 = vadd.f32 %v10118, %v10397
        %v10406 = vadd.f32 %v10119, %v10398
        %v10407 = vadd.f32 %v10120, %v10399
        %v10408 = vadd.f32 %v10121, %v10400
        %v10409 = vadd.f32 %v10122, %v10401
        %v10410 = vld [vmem:[%s7] sm:$0x1]
        %v10412 = vperm.slane %v10410, 0
        %v10414 = vmul.f32 %v10402, %v10412
        %v10415 = vmul.f32 %v10403, %v10412
        %v10416 = vmul.f32 %v10404, %v10412
        %v10417 = vmul.f32 %v10405, %v10412
        %v10418 = vmul.f32 %v10406, %v10412
        %v10419 = vmul.f32 %v10407, %v10412
        %v10420 = vmul.f32 %v10408, %v10412
        %v10421 = vmul.f32 %v10409, %v10412
        %v10422 = vld [vmem:[%s8] sm:$0x1]
        %v10424 = vperm.slane %v10422, 0
        %v10426 = vadd.f32 %v10414, %v10424
        %v10427 = vadd.f32 %v10415, %v10424
        %v10428 = vadd.f32 %v10416, %v10424
        %v10429 = vadd.f32 %v10417, %v10424
        %v10430 = vadd.f32 %v10418, %v10424
        %v10431 = vadd.f32 %v10419, %v10424
        %v10432 = vadd.f32 %v10420, %v10424
        %v10433 = vadd.f32 %v10421, %v10424
        %v10434 = vmax.f32 %v10426, 0.0
        %v10435 = vmax.f32 %v10427, 0.0
        %v10436 = vmax.f32 %v10428, 0.0
        %v10437 = vmax.f32 %v10429, 0.0
        %v10438 = vmax.f32 %v10430, 0.0
        %v10439 = vmax.f32 %v10431, 0.0
        %v10440 = vmax.f32 %v10432, 0.0
        %v10441 = vmax.f32 %v10433, 0.0
        %v10442 = vadd.f32 %v10434, %v10435
        %v10443 = vadd.f32 %v10442, %v10436
        %v10444 = vadd.f32 %v10443, %v10437
        %v10445 = vadd.f32 %v10444, %v10438
        %v10446 = vadd.f32 %v10445, %v10439
        %v10447 = vadd.f32 %v10446, %v10440
        %v10448 = vadd.f32 %v10447, %v10441
        %v10449 = vrot.slane %v10448, 4
        %v10450 = vadd.f32 %v10448, %v10449
        %v10451 = vrot.slane %v10450, 2
        %v10452 = vadd.f32 %v10450, %v10451
        %v10453 = vrot.slane %v10452, 1
        %v10454 = vadd.f32 %v10452, %v10453
        %v10455 = vrcp.pop 64.0
        %v10456 = vmul.f32 64.0, %v10455
        %v10457 = vsub.f32 1.0, %v10456
        %v10458 = vmul.f32 %v10455, %v10457
        %v10459 = vadd.f32 %v10455, %v10458
        %vm10460 = vweird.f32 %v10455
        %v10461 = vsel %vm10460, %v10455, %v10459
        %v10462 = vmul.f32 %v10454, %v10461
        %v10463 = vpack.c.bf16 %v10462, %v10462
        %v10464 = vld [vmem:[%s9] sm:$0xf]
        %v10465 = vld [vmem:[%s9 + $0x4] sm:$0xf]
        %v10466 = vld [vmem:[%s9 + $0x8] sm:$0xf]
        %v10467 = vld [vmem:[%s9 + $0xc] sm:$0xf]
        %v10468 = vld [vmem:[%s9 + $0x10] sm:$0xf]
        %v10469 = vld [vmem:[%s9 + $0x14] sm:$0xf]
        %v10470 = vld [vmem:[%s9 + $0x18] sm:$0xf]
        %v10471 = vld [vmem:[%s9 + $0x1c] sm:$0xf]
        %v10472 = vld [vmem:[%s9 + $0x20] sm:$0xf]
        %v10473 = vld [vmem:[%s9 + $0x24] sm:$0xf]
        %v10474 = vld [vmem:[%s9 + $0x28] sm:$0xf]
        %v10475 = vld [vmem:[%s9 + $0x2c] sm:$0xf]
        %v10476 = vld [vmem:[%s9 + $0x30] sm:$0xf]
        %v10477 = vld [vmem:[%s9 + $0x34] sm:$0xf]
        %v10478 = vld [vmem:[%s9 + $0x38] sm:$0xf]
        %v10479 = vld [vmem:[%s9 + $0x3c] sm:$0xf]
        %v10496 = vunpack.c.l.b16 %v10464
        %v10497 = vunpack.c.l.b16 %v10465
        %v10498 = vunpack.c.l.b16 %v10466
        %v10499 = vunpack.c.l.b16 %v10467
        %v10500 = vunpack.c.l.b16 %v10468
        %v10501 = vunpack.c.l.b16 %v10469
        %v10502 = vunpack.c.l.b16 %v10470
        %v10503 = vunpack.c.l.b16 %v10471
        %v10504 = vunpack.c.l.b16 %v10472
        %v10505 = vunpack.c.l.b16 %v10473
        %v10506 = vunpack.c.l.b16 %v10474
        %v10507 = vunpack.c.l.b16 %v10475
        %v10508 = vunpack.c.l.b16 %v10476
        %v10509 = vunpack.c.l.b16 %v10477
        %v10510 = vunpack.c.l.b16 %v10478
        %v10511 = vunpack.c.l.b16 %v10479
        %v10512 = vpack.c.b16 %v10497, %v10496
        %v10513 = vpack.c.b16 %v10499, %v10498
        %v10514 = vpack.c.b16 %v10501, %v10500
        %v10515 = vpack.c.b16 %v10503, %v10502
        %v10516 = vpack.c.b16 %v10505, %v10504
        %v10517 = vpack.c.b16 %v10507, %v10506
        %v10518 = vpack.c.b16 %v10509, %v10508
        %v10519 = vpack.c.b16 %v10511, %v10510
        %10528 = vmatpush.bf16.msra.mxu0 %v10519
        %10529 = vmatpush.bf16.msra.mxu0 %v10518
        %10530 = vmatpush.bf16.msra.mxu0 %v10517
        %10531 = vmatpush.bf16.msra.mxu0 %v10516
        %10532 = vmatpush.bf16.msra.mxu0 %v10515
        %10533 = vmatpush.bf16.msra.mxu0 %v10514
        %10534 = vmatpush.bf16.msra.mxu0 %v10513
        %10535 = vmatpush.bf16.msra.mxu0 %v10512
        %10536 = vmatmul.bf16.gmra.mxu0 %v10463
        %v10537 = vpop.f32.mrf.mxu0
        %v10538 = vadd.f32 0.0, %v10537
        %v10539 = vpop.f32.mrf.mxu0
        %10540 = vdwg.mxu0
        %v10541 = vmax.f32 %v10538, 0.0
        %v10542 = vpack.c.bf16 %v10541, %v10541
        %v10543 = vld [vmem:[%s10] sm:$0xf]
        %v10544 = vld [vmem:[%s10 + $0x4] sm:$0xf]
        %v10545 = vld [vmem:[%s10 + $0x8] sm:$0xf]
        %v10546 = vld [vmem:[%s10 + $0xc] sm:$0xf]
        %v10547 = vld [vmem:[%s10 + $0x10] sm:$0xf]
        %v10548 = vld [vmem:[%s10 + $0x14] sm:$0xf]
        %v10549 = vld [vmem:[%s10 + $0x18] sm:$0xf]
        %v10550 = vld [vmem:[%s10 + $0x1c] sm:$0xf]
        %v10551 = vld [vmem:[%s10 + $0x20] sm:$0xf]
        %v10552 = vld [vmem:[%s10 + $0x24] sm:$0xf]
        %v10553 = vld [vmem:[%s10 + $0x28] sm:$0xf]
        %v10554 = vld [vmem:[%s10 + $0x2c] sm:$0xf]
        %v10555 = vld [vmem:[%s10 + $0x30] sm:$0xf]
        %v10556 = vld [vmem:[%s10 + $0x34] sm:$0xf]
        %v10557 = vld [vmem:[%s10 + $0x38] sm:$0xf]
        %v10558 = vld [vmem:[%s10 + $0x3c] sm:$0xf]
        %v10575 = vunpack.c.l.b16 %v10543
        %v10576 = vunpack.c.l.b16 %v10544
        %v10577 = vunpack.c.l.b16 %v10545
        %v10578 = vunpack.c.l.b16 %v10546
        %v10579 = vunpack.c.l.b16 %v10547
        %v10580 = vunpack.c.l.b16 %v10548
        %v10581 = vunpack.c.l.b16 %v10549
        %v10582 = vunpack.c.l.b16 %v10550
        %v10583 = vunpack.c.l.b16 %v10551
        %v10584 = vunpack.c.l.b16 %v10552
        %v10585 = vunpack.c.l.b16 %v10553
        %v10586 = vunpack.c.l.b16 %v10554
        %v10587 = vunpack.c.l.b16 %v10555
        %v10588 = vunpack.c.l.b16 %v10556
        %v10589 = vunpack.c.l.b16 %v10557
        %v10590 = vunpack.c.l.b16 %v10558
        %v10591 = vpack.c.b16 %v10576, %v10575
        %v10592 = vpack.c.b16 %v10578, %v10577
        %v10593 = vpack.c.b16 %v10580, %v10579
        %v10594 = vpack.c.b16 %v10582, %v10581
        %v10595 = vpack.c.b16 %v10584, %v10583
        %v10596 = vpack.c.b16 %v10586, %v10585
        %v10597 = vpack.c.b16 %v10588, %v10587
        %v10598 = vpack.c.b16 %v10590, %v10589
        %10607 = vmatpush.bf16.msra.mxu0 %v10598
        %10608 = vmatpush.bf16.msra.mxu0 %v10597
        %10609 = vmatpush.bf16.msra.mxu0 %v10596
        %10610 = vmatpush.bf16.msra.mxu0 %v10595
        %10611 = vmatpush.bf16.msra.mxu0 %v10594
        %10612 = vmatpush.bf16.msra.mxu0 %v10593
        %10613 = vmatpush.bf16.msra.mxu0 %v10592
        %10614 = vmatpush.bf16.msra.mxu0 %v10591
        %10615 = vmatmul.bf16.gmra.mxu0 %v10542
        %v10616 = vpop.f32.mrf.mxu0
        %v10617 = vadd.f32 0.0, %v10616
        %v10618 = vpop.f32.mrf.mxu0
        %10619 = vdwg.mxu0
        %v10620 = vxor.u32 %v10617, 2147483648
        %v10621 = vmul.f32 %v10620, 1.442695
        %v10622 = vpow.pop %v10621
        %v10623 = vadd.f32 %v10622, 1.0
        %v10624 = vrcp.pop %v10623
        %v10625 = vmul.f32 %v10623, %v10624
        %v10626 = vsub.f32 1.0, %v10625
        %v10627 = vmul.f32 %v10624, %v10626
        %v10628 = vadd.f32 %v10624, %v10627
        %vm10629 = vweird.f32 %v10623
        %vm10630 = vweird.f32 %v10624
        %vm10631 = vmor %vm10629, %vm10630
        %v10632 = vsel %vm10631, %v10624, %v10628
        %v10633 = vand.u32 2147483647, %v10623
        %vm10634 = vcmp.eq.f32.partialorder %v10633, 8.507059e+37
        %v10635 = vand.u32 %v10623, 2147483648
        %v10636 = vor.u32 1.1754944e-38, %v10635
        %v10637 = vsel %vm10634, %v10636, %v10632
        %v10638 = vmul.f32 1.0, %v10637
        %v10639 = vperm.slane %v10638, 0
        %v10640 = vmul.f32 %v10434, %v10639
        %v10641 = vmul.f32 %v10435, %v10639
        %v10642 = vmul.f32 %v10436, %v10639
        %v10643 = vmul.f32 %v10437, %v10639
        %v10644 = vmul.f32 %v10438, %v10639
        %v10645 = vmul.f32 %v10439, %v10639
        %v10646 = vmul.f32 %v10440, %v10639
        %v10647 = vmul.f32 %v10441, %v10639
        %v10648 = vpack.c.bf16 %v10641, %v10640
        %v10649 = vpack.c.bf16 %v10643, %v10642
        %v10650 = vpack.c.bf16 %v10645, %v10644
        %v10651 = vpack.c.bf16 %v10647, %v10646
        %v10652 = vld [vmem:[%s11] sm:$0xf]
        %v10653 = vld [vmem:[%s11 + $0x4] sm:$0xf]
        %v10654 = vld [vmem:[%s11 + $0x8] sm:$0xf]
        %v10655 = vld [vmem:[%s11 + $0xc] sm:$0xf]
        %v10656 = vld [vmem:[%s11 + $0x10] sm:$0xf]
        %v10657 = vld [vmem:[%s11 + $0x14] sm:$0xf]
        %v10658 = vld [vmem:[%s11 + $0x18] sm:$0xf]
        %v10659 = vld [vmem:[%s11 + $0x1c] sm:$0xf]
        %v10660 = vld [vmem:[%s11 + $0x20] sm:$0xf]
        %v10661 = vld [vmem:[%s11 + $0x24] sm:$0xf]
        %v10662 = vld [vmem:[%s11 + $0x28] sm:$0xf]
        %v10663 = vld [vmem:[%s11 + $0x2c] sm:$0xf]
        %v10664 = vld [vmem:[%s11 + $0x30] sm:$0xf]
        %v10665 = vld [vmem:[%s11 + $0x34] sm:$0xf]
        %v10666 = vld [vmem:[%s11 + $0x38] sm:$0xf]
        %v10667 = vld [vmem:[%s11 + $0x3c] sm:$0xf]
        %v10668 = vld [vmem:[%s12] sm:$0x1]
        %v10670 = vperm.slane %v10668, 0
        %v10688 = vunpack.c.l.b16 %v10652
        %v10689 = vunpack.c.l.b16 %v10653
        %v10690 = vunpack.c.l.b16 %v10654
        %v10691 = vunpack.c.l.b16 %v10655
        %v10692 = vunpack.c.l.b16 %v10656
        %v10693 = vunpack.c.l.b16 %v10657
        %v10694 = vunpack.c.l.b16 %v10658
        %v10695 = vunpack.c.l.b16 %v10659
        %v10696 = vunpack.c.l.b16 %v10660
        %v10697 = vunpack.c.l.b16 %v10661
        %v10698 = vunpack.c.l.b16 %v10662
        %v10699 = vunpack.c.l.b16 %v10663
        %v10700 = vunpack.c.l.b16 %v10664
        %v10701 = vunpack.c.l.b16 %v10665
        %v10702 = vunpack.c.l.b16 %v10666
        %v10703 = vunpack.c.l.b16 %v10667
        %v10704 = vpack.c.b16 %v10689, %v10688
        %v10705 = vpack.c.b16 %v10691, %v10690
        %v10706 = vpack.c.b16 %v10693, %v10692
        %v10707 = vpack.c.b16 %v10695, %v10694
        %v10708 = vpack.c.b16 %v10697, %v10696
        %v10709 = vpack.c.b16 %v10699, %v10698
        %v10710 = vpack.c.b16 %v10701, %v10700
        %v10711 = vpack.c.b16 %v10703, %v10702
        %10720 = vmatpush.bf16.msra.mxu0 %v10711
        %10721 = vmatpush.bf16.msra.mxu0 %v10710
        %10722 = vmatpush.bf16.msra.mxu0 %v10709
        %10723 = vmatpush.bf16.msra.mxu0 %v10708
        %10724 = vmatpush.bf16.msra.mxu0 %v10707
        %10725 = vmatpush.bf16.msra.mxu0 %v10706
        %10726 = vmatpush.bf16.msra.mxu0 %v10705
        %10727 = vmatpush.bf16.msra.mxu0 %v10704
        %10728 = vmatmul.bf16.gmra.mxu0 %v10648
        %v10729 = vpop.f32.mrf.mxu0
        %v10730 = vadd.f32 %v10670, %v10729
        %v10731 = vpop.f32.mrf.mxu0
        %v10732 = vadd.f32 %v10670, %v10731
        %10733 = vmatmul.bf16.gmra.mxu0 %v10649
        %v10734 = vpop.f32.mrf.mxu0
        %v10735 = vadd.f32 %v10670, %v10734
        %v10736 = vpop.f32.mrf.mxu0
        %v10737 = vadd.f32 %v10670, %v10736
        %10738 = vmatmul.bf16.gmra.mxu0 %v10650
        %v10739 = vpop.f32.mrf.mxu0
        %v10740 = vadd.f32 %v10670, %v10739
        %v10741 = vpop.f32.mrf.mxu0
        %v10742 = vadd.f32 %v10670, %v10741
        %10743 = vmatmul.bf16.gmra.mxu0 %v10651
        %v10744 = vpop.f32.mrf.mxu0
        %v10745 = vadd.f32 %v10670, %v10744
        %v10746 = vpop.f32.mrf.mxu0
        %v10747 = vadd.f32 %v10670, %v10746
        %10748 = vdwg.mxu0
        %10749 = vst [vmem:[%s433] sm:$0xff] %v10730
        %10750 = vst [vmem:[%s433 + $0x8] sm:$0xff] %v10732
        %10751 = vst [vmem:[%s433 + $0x10] sm:$0xff] %v10735
        %10752 = vst [vmem:[%s433 + $0x18] sm:$0xff] %v10737
        %10753 = vst [vmem:[%s433 + $0x20] sm:$0xff] %v10740
        %10754 = vst [vmem:[%s433 + $0x28] sm:$0xff] %v10742
        %10755 = vst [vmem:[%s433 + $0x30] sm:$0xff] %v10745
        %10756 = vst [vmem:[%s433 + $0x38] sm:$0xff] %v10747
        %s10757 = sand.u32 %s313, 1
        %s10758 = scalar_lea.sflag [#allocation5], %s10757
        %s10759 = sand.u32 %s313, 1
        %s10760 = smul.addr %s10759, 64
        %s10761 = scalar_lea.vmem [#allocation4], %s10760
        // Predicated region
        $region77: #{tpu_custom_call.1} parent=71 // pred_check
          %p10762 = pneg %p323
        $region78: #{tpu_custom_call.1} parent=71 // pred_check_branch
          %10764 = sbr.rel (%p10762) target = $region80
        $region79: #{tpu_custom_call.1} parent=71 // pred_region
          %10766 = vsyncadd %s10758, 0
          %s10767 = smul.addr %s27, 8
          %s10768 = smul.addr %s10767, 8
          %s10769 = scalar_lea.hbm %s13, %s10768
          %s10770 = sshll.u32 %s10761, 4
          %s10771 = int_to_ptr.vmem [resolvable:$true] %s10770
          %s10772 = sshll.u32 %s10769, 4
          %s10773 = int_to_ptr.hbm [resolvable:$true] %s10772
          %10778 = dma.vmem_to_hbm [thread:$0]  %s10771, 1024, %s10773, %s10758, 128, 128, 8
        $region80: #{tpu_custom_call.1} parent=71 // pred_fallthru
          _
      $region72: #{tpu_custom_call.1} parent=5 // pred_fallthru
        _
      %p10779 = scmp.le.s32.totalorder 2, %s22
      // Predicated region
      $region81: #{tpu_custom_call.1} parent=5 // pred_check
        %p10780 = pneg %p10779
      $region82: #{tpu_custom_call.1} parent=5 // pred_check_branch
        %10782 = sbr.rel (%p10780) target = $region84
      $region83: #{tpu_custom_call.1} parent=5 // pred_region
        %s10783 = ssub.s32 %s22, 2
        // Predicated region
        $region85: #{tpu_custom_call.1} parent=83 // pred_check
          %p10784 = pneg %p329
        $region86: #{tpu_custom_call.1} parent=83 // pred_check_branch
          %10786 = sbr.rel (%p10784) target = $region88
        $region87: #{tpu_custom_call.1} parent=83 // pred_region
          %s10787 = sand.u32 %s314, 1
          %s10788 = scalar_lea.sflag [#allocation5], %s10787
          %s10789 = sand.u32 %s314, 1
          %s10790 = smul.addr %s10789, 64
          %s10791 = scalar_lea.vmem [#allocation4], %s10790
          %10793 = dma.done %s10788, 1024
        $region88: #{tpu_custom_call.1} parent=83 // pred_fallthru
          _
      $region84: #{tpu_custom_call.1} parent=5 // pred_fallthru
        _
    $region6: #{tpu_custom_call.1} parent=1 // loop_footer
      %s26 = sadd.s32 1, %s22
    $region7: #{tpu_custom_call.1} parent=1 // loop_footer_branch
      %21 = sbr.rel target = $region3
    $region8: #{tpu_custom_call.1} parent=1 // loop_exit
      _
    %10794 = vsyncpa [#allocation5], 1
    %s10795 = scalar_lea.sflag [#allocation5], 1
    %10796 = vsyncpa %s10795, 1

</llo_original>
